<compile_context>
chip_gen: v7x
topology: tpu7x:2x2x1
jax: 0.10.0
libtpu: 0.0.40
codegen_flags: <defaults>
</compile_context>

<pallas_src>
import functools

import jax
import jax.numpy as jnp
from jax import lax
from jax.experimental import pallas as pl
from jax.experimental.pallas import tpu as pltpu


def _round_up(v, m):
    return (v + m - 1) // m * m


def se_resnet_block_kernel(x_ref, w1_ref, w2_ref, bn_ref, wse1_ref, wse2_ref,
                           out_ref, *, wf, shrink, n1, n2, cpo, img_h, img_w,
                           inv_hw):
    """One batch element.  Spatial positions live on a flattened, halo-padded
    row-major axis of width `wf`.  x spans flat rows [0, n0); conv1's output
    (and the fused shortcut) spans [shrink, shrink+n1); conv2 / output span
    [2*shrink, 2*shrink+n2).  shrink >= wf+1 so every tap slice is in-bounds."""
    x = x_ref[0]                                    # (n0, cpi) bf16
    bn = bn_ref[...]                                # (8, cpo) f32
    s1, b1 = bn[0:1], bn[1:2]
    s2, b2 = bn[2:3], bn[3:4]
    ssc, bsc = bn[4:5], bn[5:6]

    def conv3x3(src_bf, w_ref, start, nrows):
        # Shared im2col slab: row j holds the 3 kx taps of src row (base+j),
        # concatenated along the contraction dim.  The 3 ky matmuls are
        # leading-dim slices of the SAME slab at offsets {0, wf, 2*wf}.
        base = start - wf - 1
        nslab = nrows + 2 * wf
        slab = jnp.concatenate(
            [src_bf[base + kx:base + kx + nslab, :] for kx in range(3)],
            axis=1)                                 # (nslab, 3*C) bf16
        acc = None
        for ky in range(3):
            lhs = slab[ky * wf:ky * wf + nrows, :]
            part = jnp.dot(lhs, w_ref[ky], preferred_element_type=jnp.float32)
            acc = part if acc is None else acc + part
        return acc                                  # (nrows, Nout) f32

    def flat_mask(nrows, offset):
        # 1.0 exactly at real (y, x) pixels of the padded image; generated
        # in-kernel (no DMA).  Float row/col decomposition of the flat index
        # (exact for images up to ~2M flat pixels).
        idx = (lax.broadcasted_iota(jnp.int32, (nrows, 1), 0)
               .astype(jnp.float32) + float(offset))
        r = jnp.floor((idx + 0.5) * (1.0 / wf))
        c = idx - r * wf
        ok = ((r >= 1.0) & (r <= float(img_h))
              & (c >= 1.0) & (c <= float(img_w)))
        return ok.astype(jnp.float32)               # (nrows, 1)

    # ---- conv1 (+ fused 1x1 shortcut in extra N columns) -> BN -> ReLU ------
    c1 = conv3x3(x, w1_ref, shrink, n1)             # (n1, 2*cpo) f32
    mask1 = flat_mask(n1, -shrink)
    # Mask zeroes all non-real rows -> provides conv2's zero padding.
    a1 = jnp.maximum(c1[:, :cpo] * s1 + b1, 0.0) * mask1
    # Shortcut = center-tap columns of the same matmul chain, + folded BN.
    sc = c1[shrink:shrink + n2, cpo:] * ssc + bsc   # (n2, cpo)

    # ---- conv2 -> BN2 --------------------------------------------------------
    c2 = conv3x3(a1.astype(jnp.bfloat16), w2_ref, shrink, n2)
    out2 = c2 * s2 + b2                             # (n2, cpo)

    # ---- squeeze-and-excite --------------------------------------------------
    mask2 = flat_mask(n2, 0)
    y = jnp.sum(out2 * mask2, axis=0, keepdims=True) * inv_hw    # (1, cpo)
    h = jnp.dot(y.astype(jnp.bfloat16), wse1_ref[...],
                preferred_element_type=jnp.float32)
    # TODO(synk): no ReLU between the two SE FCs (matches the in-script
    # reference); verify against the original PyTorch Block before fusing.
    gate = jax.nn.sigmoid(jnp.dot(h.astype(jnp.bfloat16), wse2_ref[...],
                                  preferred_element_type=jnp.float32))

    # ---- residual add + ReLU, lane-dense (n2, cpo) store ---------------------
    out_ref[0] = jnp.maximum(out2 * gate + sc, 0.0).astype(out_ref.dtype)


def se_resnet_block_2d(x_nchw, params):
    """x_nchw: (B, Cin, H, W) float32; returns (B, Cout, H, W) float32."""
    B, Cin, H, W = x_nchw.shape
    Cout = params["w1"].shape[0]
    Cmid = params["fc1"].shape[0]
    eps = 1e-5
    LANE = 128

    cpi = _round_up(Cin, LANE)
    cpo = _round_up(Cout, LANE)
    cpm = _round_up(Cmid, LANE)
    Hp, Wp = H + 2, W + 2
    # Align the flat row width to 8 sublanes when the relative cost is small.
    wf = Wp if W < 24 else _round_up(Wp, 8)
    S = _round_up(wf + 1, 8)           # per-conv domain shrink, >= max |tap offset|
    n2 = _round_up(Hp * wf, 8)         # rows of conv2 / output domain
    n1 = n2 + 2 * S                    # rows of conv1 / shortcut domain
    n0 = n2 + 4 * S                    # rows of the input flat domain
    M = 2 * S                          # flat row where the padded image starts

    # ---- activations: NCHW -> bf16 flat halo-padded rows, channels -> 128 ----
    x_nhwc = jnp.transpose(x_nchw, (0, 2, 3, 1)).astype(jnp.bfloat16)
    x_sp = jnp.pad(x_nhwc, ((0, 0), (1, 1), (1, wf - W - 1), (0, cpi - Cin)))
    x_flat = x_sp.reshape(B, Hp * wf, cpi)
    x_flat = jnp.pad(x_flat, ((0, 0), (M, n0 - M - Hp * wf), (0, 0)))

    # ---- weights / folded BN --------------------------------------------------
    def fold_bn(g, b, m, v):
        scale = g / jnp.sqrt(v + eps)
        return scale.astype(jnp.float32), (b - m * scale).astype(jnp.float32)

    def conv_w(w, ci, cif):
        # (Co, Ci, 3, 3) -> (3, 3*cif, cpo) f32, K ordered (kx, ci).
        co = w.shape[0]
        wt = jnp.transpose(w, (2, 3, 1, 0)).astype(jnp.float32)  # (ky,kx,Ci,Co)
        wt = jnp.pad(wt, ((0, 0), (0, 0), (0, cif - ci), (0, cpo - co)))
        return wt.reshape(3, 3 * cif, cpo)

    s1, b1 = fold_bn(params["bn1_gamma"], params["bn1_beta"],
                     params["bn1_mean"], params["bn1_var"])
    s2, b2 = fold_bn(params["bn2_gamma"], params["bn2_beta"],
                     params["bn2_mean"], params["bn2_var"])

    if "wsc" in params:                              # projection shortcut
        wsc_mat = params["wsc"][:, :, 0, 0].T.astype(jnp.float32)  # (Cin, Cout)
        ssc, bsc = fold_bn(params["bnsc_gamma"], params["bnsc_beta"],
                           params["bnsc_mean"], params["bnsc_var"])
    else:                                            # identity shortcut
        assert Cin == Cout, "identity shortcut requires Cin == Cout"
        wsc_mat = jnp.eye(Cin, dtype=jnp.float32)
        ssc = jnp.ones((Cout,), jnp.float32)
        bsc = jnp.zeros((Cout,), jnp.float32)

    # conv1 weight with the 1x1 shortcut fused into extra N columns at the
    # ky=1 / kx=1 K slot (zeros elsewhere): one matmul chain, N = 2*cpo.
    w1_main = conv_w(params["w1"], Cin, cpi)                      # (3,3*cpi,cpo)
    wsc_pad = jnp.pad(wsc_mat, ((0, cpi - Cin), (0, cpo - Cout)))
    w1_sc = jnp.zeros((3, 3 * cpi, cpo), jnp.float32)
    w1_sc = w1_sc.at[1, cpi:2 * cpi, :].set(wsc_pad)
    w1f = jnp.concatenate([w1_main, w1_sc], axis=2).astype(jnp.bfloat16)
    w2 = conv_w(params["w2"], Cout, cpo).astype(jnp.bfloat16)

    # Pack the six per-channel BN vectors into one (8, cpo) input (one DMA).
    def padc(v):
        return jnp.pad(v.astype(jnp.float32), (0, cpo - Cout))
    bn_pack = jnp.stack([padc(s1), padc(b1), padc(s2), padc(b2),
                         padc(ssc), padc(bsc),
                         jnp.zeros((cpo,), jnp.float32),
                         jnp.zeros((cpo,), jnp.float32)])          # (8, cpo)

    wse1 = jnp.pad(params["fc1"].T,
                   ((0, cpo - Cout), (0, cpm - Cmid))).astype(jnp.bfloat16)
    wse2 = jnp.pad(params["fc2"].T,
                   ((0, cpm - Cmid), (0, cpo - Cout))).astype(jnp.bfloat16)

    kernel = functools.partial(se_resnet_block_kernel,
                               wf=wf, shrink=S, n1=n1, n2=n2, cpo=cpo,
                               img_h=H, img_w=W, inv_hw=1.0 / float(H * W))

    # VMEM limit from the actual footprint (blocks double-buffered + temps),
    # with 2x margin; clamped so it also fits v7x's 64 MiB for small stages.
    vmem_est = (
        2 * n0 * cpi * 2 + 2 * n2 * cpo * 4
        + 2 * (3 * 3 * cpi * 2 * cpo * 2 + 3 * 3 * cpo * cpo * 2
               + 8 * cpo * 4 + cpo * cpm * 2 + cpm * cpo * 2)
        + (n1 + 2 * wf) * 3 * cpi * 2          # slab1 (bf16)
        + n1 * 2 * cpo * 4                     # conv1+shortcut accumulator
        + n1 * cpo * (4 + 2)                   # a1 f32 + bf16
        + (n2 + 2 * wf) * 3 * cpo * 2          # slab2 (bf16)
        + 5 * n2 * cpo * 4                     # out2 / sc / scaled / result
        + (n1 + n2) * LANE * 4)                # in-kernel masks (lane-padded)
    vmem_limit = int(min(max(2 * vmem_est + (8 << 20), 32 << 20), 120 << 20))

    out_flat = pl.pallas_call(
        kernel,
        out_shape=jax.ShapeDtypeStruct((B, n2, cpo), jnp.float32),
        grid_spec=pltpu.PrefetchScalarGridSpec(
            num_scalar_prefetch=0,
            grid=(B,),
            in_specs=[
                pl.BlockSpec((1, n0, cpi), lambda b: (b, 0, 0)),
                pl.BlockSpec((3, 3 * cpi, 2 * cpo), lambda b: (0, 0, 0)),
                pl.BlockSpec((3, 3 * cpo, cpo), lambda b: (0, 0, 0)),
                pl.BlockSpec((8, cpo), lambda b: (0, 0)),
                pl.BlockSpec((cpo, cpm), lambda b: (0, 0)),
                pl.BlockSpec((cpm, cpo), lambda b: (0, 0)),
            ],
            out_specs=pl.BlockSpec((1, n2, cpo), lambda b: (b, 0, 0)),
        ),
        compiler_params=pltpu.CompilerParams(
            dimension_semantics=("parallel",),
            vmem_limit_bytes=vmem_limit),
    )(x_flat, w1f, w2, bn_pack, wse1, wse2)

    # Strip channel/halo padding (layout plumbing on the lane-dense slab).
    out = out_flat[:, :Hp * wf, :Cout].reshape(B, Hp, wf, Cout)
    out = out[:, 1:H + 1, 1:W + 1, :]
    return jnp.transpose(out, (0, 3, 1, 2))


# ---------------- pure-JAX reference (matches PyTorch eval semantics) --------
def reference(x, params):
    eps = 1e-5
    dn = ("NCHW", "OIHW", "NCHW")

    def bn(z, g, b, m, v):
        g, b, m, v = (a[None, :, None, None] for a in (g, b, m, v))
        return (z - m) / jnp.sqrt(v + eps) * g + b

    out = lax.conv_general_dilated(x, params["w1"], (1, 1),
                                   ((1, 1), (1, 1)), dimension_numbers=dn)
    out = jax.nn.relu(bn(out, params["bn1_gamma"], params["bn1_beta"],
                         params["bn1_mean"], params["bn1_var"]))
    out = lax.conv_general_dilated(out, params["w2"], (1, 1),
                                   ((1, 1), (1, 1)), dimension_numbers=dn)
    out = bn(out, params["bn2_gamma"], params["bn2_beta"],
             params["bn2_mean"], params["bn2_var"])
    y = jnp.mean(out, axis=(2, 3))                        # (B, Cout)
    h = y @ params["fc1"].T
    w = jax.nn.sigmoid(h @ params["fc2"].T)
    out = out * w[:, :, None, None]
    sc = lax.conv_general_dilated(x, params["wsc"], (1, 1),
                                  ((0, 0), (0, 0)), dimension_numbers=dn)
    sc = bn(sc, params["bnsc_gamma"], params["bnsc_beta"],
            params["bnsc_mean"], params["bnsc_var"])
    return jax.nn.relu(out + sc)


if __name__ == "__main__":
    B, Cin, Cout, H, W = 2, 4, 8, 16, 16
    keys = jax.random.split(jax.random.PRNGKey(0), 20)

    def n(i, shape, scale=0.1):
        return scale * jax.random.normal(keys[i], shape, jnp.float32)

    params = {
        "w1": n(0, (Cout, Cin, 3, 3)),
        "bn1_gamma": 1.0 + n(1, (Cout,)),
        "bn1_beta": n(2, (Cout,)),
        "bn1_mean": n(3, (Cout,)),
        "bn1_var": 1.0 + 0.1 * jnp.abs(jax.random.normal(keys[4], (Cout,))),
        "w2": n(5, (Cout, Cout, 3, 3)),
        "bn2_gamma": 1.0 + n(6, (Cout,)),
        "bn2_beta": n(7, (Cout,)),
        "bn2_mean": n(8, (Cout,)),
        "bn2_var": 1.0 + 0.1 * jnp.abs(jax.random.normal(keys[9], (Cout,))),
        "fc1": n(10, (Cout // 2, Cout)),      # nn.Linear(Cout, Cout//2).weight
        "fc2": n(11, (Cout, Cout // 2)),      # nn.Linear(Cout//2, Cout).weight
        "wsc": n(12, (Cout, Cin, 1, 1)),      # 1x1 projection shortcut conv
        "bnsc_gamma": 1.0 + n(13, (Cout,)),
        "bnsc_beta": n(14, (Cout,)),
        "bnsc_mean": n(15, (Cout,)),
        "bnsc_var": 1.0 + 0.1 * jnp.abs(jax.random.normal(keys[16], (Cout,))),
    }
    x = jax.random.normal(keys[17], (B, Cin, H, W), jnp.float32)

    out = jax.block_until_ready(se_resnet_block_2d(x, params))
    ref = jax.block_until_ready(reference(x, params))
    assert out.shape == (B, Cout, H, W), out.shape

    err = float(jnp.max(jnp.abs(out - ref)))
    ref_mag = float(jnp.max(jnp.abs(ref)))
    # bf16 activations + bf16 MXU operands with f32 accumulation.
    assert err <= 3e-2 * max(1.0, ref_mag), (
        f"max abs err {err} (ref max {ref_mag})")
    print("KERNEL_OK")
</pallas_src>

<mosaic_0001>
module attributes {stable_mosaic.version = 11 : i64} {
  func.func @se_resnet_block_kernel(%arg0: i32, %arg1: memref<1x424x128xbf16, #tpu.memory_space<vmem>>, %arg2: memref<3x384x256xbf16, #tpu.memory_space<vmem>>, %arg3: memref<3x384x128xbf16, #tpu.memory_space<vmem>>, %arg4: memref<8x128xf32, #tpu.memory_space<vmem>>, %arg5: memref<128x128xbf16, #tpu.memory_space<vmem>>, %arg6: memref<128x128xbf16, #tpu.memory_space<vmem>>, %arg7: memref<1x328x128xf32, #tpu.memory_space<vmem>>) attributes {dimension_semantics = [#tpu.dimension_semantics<parallel>], iteration_bounds = array<i64: 2>, scalar_prefetch = 0 : i64, scratch_operands = 0 : i64, tpu.core_type = #tpu.core_type<tc>, window_params = [{transform_indices = @transform_0, window_bounds = array<i64: 1, 424, 128>}, {pipeline_mode = #tpu.pipeline_mode<synchronous>, transform_indices = @transform_1, window_bounds = array<i64: 3, 384, 256>}, {pipeline_mode = #tpu.pipeline_mode<synchronous>, transform_indices = @transform_2, window_bounds = array<i64: 3, 384, 128>}, {pipeline_mode = #tpu.pipeline_mode<synchronous>, transform_indices = @transform_3, window_bounds = array<i64: 8, 128>}, {pipeline_mode = #tpu.pipeline_mode<synchronous>, transform_indices = @transform_4, window_bounds = array<i64: 128, 128>}, {pipeline_mode = #tpu.pipeline_mode<synchronous>, transform_indices = @transform_5, window_bounds = array<i64: 128, 128>}, {transform_indices = @transform_6, window_bounds = array<i64: 1, 328, 128>}]} {
    %c0 = arith.constant 0 : index
    %c0_0 = arith.constant 0 : index
    %c0_1 = arith.constant 0 : index
    %0 = vector.load %arg1[%c0, %c0_0, %c0_1] : memref<1x424x128xbf16, #tpu.memory_space<vmem>>, vector<1x424x128xbf16>
    %1 = vector.shape_cast %0 : vector<1x424x128xbf16> to vector<424x128xbf16>
    %c0_2 = arith.constant 0 : index
    %c0_3 = arith.constant 0 : index
    %2 = vector.load %arg4[%c0_2, %c0_3] : memref<8x128xf32, #tpu.memory_space<vmem>>, vector<8x128xf32>
    %3 = vector.extract_strided_slice %2 {offsets = [0, 0], sizes = [1, 128], strides = [1, 1]} : vector<8x128xf32> to vector<1x128xf32>
    %4 = vector.extract_strided_slice %2 {offsets = [1, 0], sizes = [1, 128], strides = [1, 1]} : vector<8x128xf32> to vector<1x128xf32>
    %5 = vector.extract_strided_slice %2 {offsets = [2, 0], sizes = [1, 128], strides = [1, 1]} : vector<8x128xf32> to vector<1x128xf32>
    %6 = vector.extract_strided_slice %2 {offsets = [3, 0], sizes = [1, 128], strides = [1, 1]} : vector<8x128xf32> to vector<1x128xf32>
    %7 = vector.extract_strided_slice %2 {offsets = [4, 0], sizes = [1, 128], strides = [1, 1]} : vector<8x128xf32> to vector<1x128xf32>
    %8 = vector.extract_strided_slice %2 {offsets = [5, 0], sizes = [1, 128], strides = [1, 1]} : vector<8x128xf32> to vector<1x128xf32>
    %9 = vector.extract_strided_slice %1 {offsets = [5, 0], sizes = [412, 128], strides = [1, 1]} : vector<424x128xbf16> to vector<412x128xbf16>
    %10 = vector.extract_strided_slice %1 {offsets = [6, 0], sizes = [412, 128], strides = [1, 1]} : vector<424x128xbf16> to vector<412x128xbf16>
    %11 = vector.extract_strided_slice %1 {offsets = [7, 0], sizes = [412, 128], strides = [1, 1]} : vector<424x128xbf16> to vector<412x128xbf16>
    %12 = tpu.concatenate %9, %10, %11 in 1 : vector<412x128xbf16>, vector<412x128xbf16>, vector<412x128xbf16> -> vector<412x384xbf16>
    %13 = vector.extract_strided_slice %12 {offsets = [0, 0], sizes = [376, 384], strides = [1, 1]} : vector<412x384xbf16> to vector<376x384xbf16>
    %c0_4 = arith.constant 0 : index
    %c0_5 = arith.constant 0 : index
    %c0_6 = arith.constant 0 : index
    %14 = vector.load %arg2[%c0_4, %c0_5, %c0_6] : memref<3x384x256xbf16, #tpu.memory_space<vmem>>, vector<1x384x256xbf16>
    %15 = vector.shape_cast %14 : vector<1x384x256xbf16> to vector<384x256xbf16>
    %cst = arith.constant dense<0.000000e+00> : vector<376x256xf32>
    %16 = tpu.matmul %13, %15, %cst {dimension_numbers = #tpu.dot_dimension_numbers<[1], [0], [0], [1], [0, 0, 1, 1], [], []>} : vector<376x384xbf16>, vector<384x256xbf16>, vector<376x256xf32> -> vector<376x256xf32>
    %17 = vector.extract_strided_slice %12 {offsets = [18, 0], sizes = [376, 384], strides = [1, 1]} : vector<412x384xbf16> to vector<376x384xbf16>
    %c1 = arith.constant 1 : index
    %c0_7 = arith.constant 0 : index
    %c0_8 = arith.constant 0 : index
    %18 = vector.load %arg2[%c1, %c0_7, %c0_8] : memref<3x384x256xbf16, #tpu.memory_space<vmem>>, vector<1x384x256xbf16>
    %19 = vector.shape_cast %18 : vector<1x384x256xbf16> to vector<384x256xbf16>
    %cst_9 = arith.constant dense<0.000000e+00> : vector<376x256xf32>
    %20 = tpu.matmul %17, %19, %cst_9 {dimension_numbers = #tpu.dot_dimension_numbers<[1], [0], [0], [1], [0, 0, 1, 1], [], []>} : vector<376x384xbf16>, vector<384x256xbf16>, vector<376x256xf32> -> vector<376x256xf32>
    %21 = arith.addf %16, %20 : vector<376x256xf32>
    %22 = vector.extract_strided_slice %12 {offsets = [36, 0], sizes = [376, 384], strides = [1, 1]} : vector<412x384xbf16> to vector<376x384xbf16>
    %c2 = arith.constant 2 : index
    %c0_10 = arith.constant 0 : index
    %c0_11 = arith.constant 0 : index
    %23 = vector.load %arg2[%c2, %c0_10, %c0_11] : memref<3x384x256xbf16, #tpu.memory_space<vmem>>, vector<1x384x256xbf16>
    %24 = vector.shape_cast %23 : vector<1x384x256xbf16> to vector<384x256xbf16>
    %cst_12 = arith.constant dense<0.000000e+00> : vector<376x256xf32>
    %25 = tpu.matmul %22, %24, %cst_12 {dimension_numbers = #tpu.dot_dimension_numbers<[1], [0], [0], [1], [0, 0, 1, 1], [], []>} : vector<376x384xbf16>, vector<384x256xbf16>, vector<376x256xf32> -> vector<376x256xf32>
    %26 = arith.addf %21, %25 : vector<376x256xf32>
    %27 = tpu.iota {dimensions = array<i32: 0>} : vector<376x1xi32>
    %28 = arith.sitofp %27 : vector<376x1xi32> to vector<376x1xf32>
    %cst_13 = arith.constant -2.400000e+01 : f32
    %29 = vector.broadcast %cst_13 : f32 to vector<376x1xf32>
    %30 = arith.addf %28, %29 : vector<376x1xf32>
    %cst_14 = arith.constant 5.000000e-01 : f32
    %31 = vector.broadcast %cst_14 : f32 to vector<376x1xf32>
    %32 = arith.addf %30, %31 : vector<376x1xf32>
    %cst_15 = arith.constant 0.055555556 : f32
    %33 = vector.broadcast %cst_15 : f32 to vector<376x1xf32>
    %34 = arith.mulf %32, %33 : vector<376x1xf32>
    %35 = math.floor %34 : vector<376x1xf32>
    %cst_16 = arith.constant 1.800000e+01 : f32
    %36 = vector.broadcast %cst_16 : f32 to vector<376x1xf32>
    %37 = arith.mulf %35, %36 : vector<376x1xf32>
    %38 = arith.subf %30, %37 : vector<376x1xf32>
    %cst_17 = arith.constant 1.000000e+00 : f32
    %39 = vector.broadcast %cst_17 : f32 to vector<376x1xf32>
    %40 = arith.cmpf oge, %35, %39 : vector<376x1xf32>
    %cst_18 = arith.constant 1.600000e+01 : f32
    %41 = vector.broadcast %cst_18 : f32 to vector<376x1xf32>
    %42 = arith.cmpf ole, %35, %41 : vector<376x1xf32>
    %43 = arith.andi %40, %42 : vector<376x1xi1>
    %cst_19 = arith.constant 1.000000e+00 : f32
    %44 = vector.broadcast %cst_19 : f32 to vector<376x1xf32>
    %45 = arith.cmpf oge, %38, %44 : vector<376x1xf32>
    %46 = arith.andi %43, %45 : vector<376x1xi1>
    %cst_20 = arith.constant 1.600000e+01 : f32
    %47 = vector.broadcast %cst_20 : f32 to vector<376x1xf32>
    %48 = arith.cmpf ole, %38, %47 : vector<376x1xf32>
    %49 = arith.andi %46, %48 : vector<376x1xi1>
    %50 = arith.extui %49 : vector<376x1xi1> to vector<376x1xi32>
    %51 = arith.sitofp %50 : vector<376x1xi32> to vector<376x1xf32>
    %52 = vector.extract_strided_slice %26 {offsets = [0, 0], sizes = [376, 128], strides = [1, 1]} : vector<376x256xf32> to vector<376x128xf32>
    %53 = vector.broadcast %3 : vector<1x128xf32> to vector<376x128xf32>
    %54 = arith.mulf %52, %53 : vector<376x128xf32>
    %55 = vector.broadcast %4 : vector<1x128xf32> to vector<376x128xf32>
    %56 = arith.addf %54, %55 : vector<376x128xf32>
    %cst_21 = arith.constant 0.000000e+00 : f32
    %57 = vector.broadcast %cst_21 : f32 to vector<376x128xf32>
    %58 = arith.maximumf %56, %57 : vector<376x128xf32>
    %59 = vector.broadcast %51 : vector<376x1xf32> to vector<376x128xf32>
    %60 = arith.mulf %58, %59 : vector<376x128xf32>
    %61 = vector.extract_strided_slice %26 {offsets = [24, 128], sizes = [328, 128], strides = [1, 1]} : vector<376x256xf32> to vector<328x128xf32>
    %62 = vector.broadcast %7 : vector<1x128xf32> to vector<328x128xf32>
    %63 = arith.mulf %61, %62 : vector<328x128xf32>
    %64 = vector.broadcast %8 : vector<1x128xf32> to vector<328x128xf32>
    %65 = arith.addf %63, %64 : vector<328x128xf32>
    %66 = arith.truncf %60 : vector<376x128xf32> to vector<376x128xbf16>
    %67 = vector.extract_strided_slice %66 {offsets = [5, 0], sizes = [364, 128], strides = [1, 1]} : vector<376x128xbf16> to vector<364x128xbf16>
    %68 = vector.extract_strided_slice %66 {offsets = [6, 0], sizes = [364, 128], strides = [1, 1]} : vector<376x128xbf16> to vector<364x128xbf16>
    %69 = vector.extract_strided_slice %66 {offsets = [7, 0], sizes = [364, 128], strides = [1, 1]} : vector<376x128xbf16> to vector<364x128xbf16>
    %70 = tpu.concatenate %67, %68, %69 in 1 : vector<364x128xbf16>, vector<364x128xbf16>, vector<364x128xbf16> -> vector<364x384xbf16>
    %71 = vector.extract_strided_slice %70 {offsets = [0, 0], sizes = [328, 384], strides = [1, 1]} : vector<364x384xbf16> to vector<328x384xbf16>
    %c0_22 = arith.constant 0 : index
    %c0_23 = arith.constant 0 : index
    %c0_24 = arith.constant 0 : index
    %72 = vector.load %arg3[%c0_22, %c0_23, %c0_24] : memref<3x384x128xbf16, #tpu.memory_space<vmem>>, vector<1x384x128xbf16>
    %73 = vector.shape_cast %72 : vector<1x384x128xbf16> to vector<384x128xbf16>
    %cst_25 = arith.constant dense<0.000000e+00> : vector<328x128xf32>
    %74 = tpu.matmul %71, %73, %cst_25 {dimension_numbers = #tpu.dot_dimension_numbers<[1], [0], [0], [1], [0, 0, 1, 1], [], []>} : vector<328x384xbf16>, vector<384x128xbf16>, vector<328x128xf32> -> vector<328x128xf32>
    %75 = vector.extract_strided_slice %70 {offsets = [18, 0], sizes = [328, 384], strides = [1, 1]} : vector<364x384xbf16> to vector<328x384xbf16>
    %c1_26 = arith.constant 1 : index
    %c0_27 = arith.constant 0 : index
    %c0_28 = arith.constant 0 : index
    %76 = vector.load %arg3[%c1_26, %c0_27, %c0_28] : memref<3x384x128xbf16, #tpu.memory_space<vmem>>, vector<1x384x128xbf16>
    %77 = vector.shape_cast %76 : vector<1x384x128xbf16> to vector<384x128xbf16>
    %cst_29 = arith.constant dense<0.000000e+00> : vector<328x128xf32>
    %78 = tpu.matmul %75, %77, %cst_29 {dimension_numbers = #tpu.dot_dimension_numbers<[1], [0], [0], [1], [0, 0, 1, 1], [], []>} : vector<328x384xbf16>, vector<384x128xbf16>, vector<328x128xf32> -> vector<328x128xf32>
    %79 = arith.addf %74, %78 : vector<328x128xf32>
    %80 = vector.extract_strided_slice %70 {offsets = [36, 0], sizes = [328, 384], strides = [1, 1]} : vector<364x384xbf16> to vector<328x384xbf16>
    %c2_30 = arith.constant 2 : index
    %c0_31 = arith.constant 0 : index
    %c0_32 = arith.constant 0 : index
    %81 = vector.load %arg3[%c2_30, %c0_31, %c0_32] : memref<3x384x128xbf16, #tpu.memory_space<vmem>>, vector<1x384x128xbf16>
    %82 = vector.shape_cast %81 : vector<1x384x128xbf16> to vector<384x128xbf16>
    %cst_33 = arith.constant dense<0.000000e+00> : vector<328x128xf32>
    %83 = tpu.matmul %80, %82, %cst_33 {dimension_numbers = #tpu.dot_dimension_numbers<[1], [0], [0], [1], [0, 0, 1, 1], [], []>} : vector<328x384xbf16>, vector<384x128xbf16>, vector<328x128xf32> -> vector<328x128xf32>
    %84 = arith.addf %79, %83 : vector<328x128xf32>
    %85 = vector.broadcast %5 : vector<1x128xf32> to vector<328x128xf32>
    %86 = arith.mulf %84, %85 : vector<328x128xf32>
    %87 = vector.broadcast %6 : vector<1x128xf32> to vector<328x128xf32>
    %88 = arith.addf %86, %87 : vector<328x128xf32>
    %89 = tpu.iota {dimensions = array<i32: 0>} : vector<328x1xi32>
    %90 = arith.sitofp %89 : vector<328x1xi32> to vector<328x1xf32>
    %cst_34 = arith.constant 0.000000e+00 : f32
    %91 = vector.broadcast %cst_34 : f32 to vector<328x1xf32>
    %92 = arith.addf %90, %91 : vector<328x1xf32>
    %cst_35 = arith.constant 5.000000e-01 : f32
    %93 = vector.broadcast %cst_35 : f32 to vector<328x1xf32>
    %94 = arith.addf %92, %93 : vector<328x1xf32>
    %cst_36 = arith.constant 0.055555556 : f32
    %95 = vector.broadcast %cst_36 : f32 to vector<328x1xf32>
    %96 = arith.mulf %94, %95 : vector<328x1xf32>
    %97 = math.floor %96 : vector<328x1xf32>
    %cst_37 = arith.constant 1.800000e+01 : f32
    %98 = vector.broadcast %cst_37 : f32 to vector<328x1xf32>
    %99 = arith.mulf %97, %98 : vector<328x1xf32>
    %100 = arith.subf %92, %99 : vector<328x1xf32>
    %cst_38 = arith.constant 1.000000e+00 : f32
    %101 = vector.broadcast %cst_38 : f32 to vector<328x1xf32>
    %102 = arith.cmpf oge, %97, %101 : vector<328x1xf32>
    %cst_39 = arith.constant 1.600000e+01 : f32
    %103 = vector.broadcast %cst_39 : f32 to vector<328x1xf32>
    %104 = arith.cmpf ole, %97, %103 : vector<328x1xf32>
    %105 = arith.andi %102, %104 : vector<328x1xi1>
    %cst_40 = arith.constant 1.000000e+00 : f32
    %106 = vector.broadcast %cst_40 : f32 to vector<328x1xf32>
    %107 = arith.cmpf oge, %100, %106 : vector<328x1xf32>
    %108 = arith.andi %105, %107 : vector<328x1xi1>
    %cst_41 = arith.constant 1.600000e+01 : f32
    %109 = vector.broadcast %cst_41 : f32 to vector<328x1xf32>
    %110 = arith.cmpf ole, %100, %109 : vector<328x1xf32>
    %111 = arith.andi %108, %110 : vector<328x1xi1>
    %112 = arith.extui %111 : vector<328x1xi1> to vector<328x1xi32>
    %113 = arith.sitofp %112 : vector<328x1xi32> to vector<328x1xf32>
    %114 = vector.broadcast %113 : vector<328x1xf32> to vector<328x128xf32>
    %115 = arith.mulf %88, %114 : vector<328x128xf32>
    %cst_42 = arith.constant dense<0.000000e+00> : vector<128xf32>
    %116 = vector.multi_reduction <add>, %115, %cst_42 [0] : vector<328x128xf32> to vector<128xf32>
    %117 = vector.shape_cast %116 : vector<128xf32> to vector<1x128xf32>
    %cst_43 = arith.constant 3.906250e-03 : f32
    %118 = vector.broadcast %cst_43 : f32 to vector<1x128xf32>
    %119 = arith.mulf %117, %118 : vector<1x128xf32>
    %120 = arith.truncf %119 : vector<1x128xf32> to vector<1x128xbf16>
    %c0_44 = arith.constant 0 : index
    %c0_45 = arith.constant 0 : index
    %121 = vector.load %arg5[%c0_44, %c0_45] : memref<128x128xbf16, #tpu.memory_space<vmem>>, vector<128x128xbf16>
    %cst_46 = arith.constant dense<0.000000e+00> : vector<1x128xf32>
    %122 = tpu.matmul %120, %121, %cst_46 {dimension_numbers = #tpu.dot_dimension_numbers<[1], [0], [0], [1], [0, 0, 1, 1], [], []>} : vector<1x128xbf16>, vector<128x128xbf16>, vector<1x128xf32> -> vector<1x128xf32>
    %123 = arith.truncf %122 : vector<1x128xf32> to vector<1x128xbf16>
    %c0_47 = arith.constant 0 : index
    %c0_48 = arith.constant 0 : index
    %124 = vector.load %arg6[%c0_47, %c0_48] : memref<128x128xbf16, #tpu.memory_space<vmem>>, vector<128x128xbf16>
    %cst_49 = arith.constant dense<0.000000e+00> : vector<1x128xf32>
    %125 = tpu.matmul %123, %124, %cst_49 {dimension_numbers = #tpu.dot_dimension_numbers<[1], [0], [0], [1], [0, 0, 1, 1], [], []>} : vector<1x128xbf16>, vector<128x128xbf16>, vector<1x128xf32> -> vector<1x128xf32>
    %126 = arith.negf %125 : vector<1x128xf32>
    %127 = math.exp %126 : vector<1x128xf32>
    %cst_50 = arith.constant 1.000000e+00 : f32
    %128 = vector.broadcast %cst_50 : f32 to vector<1x128xf32>
    %129 = arith.addf %128, %127 : vector<1x128xf32>
    %130 = arith.divf %128, %129 : vector<1x128xf32>
    %131 = vector.broadcast %130 : vector<1x128xf32> to vector<328x128xf32>
    %132 = arith.mulf %88, %131 : vector<328x128xf32>
    %133 = arith.addf %132, %65 : vector<328x128xf32>
    %cst_51 = arith.constant 0.000000e+00 : f32
    %134 = vector.broadcast %cst_51 : f32 to vector<328x128xf32>
    %135 = arith.maximumf %133, %134 : vector<328x128xf32>
    %c0_52 = arith.constant 0 : index
    %c0_53 = arith.constant 0 : index
    %c0_54 = arith.constant 0 : index
    %136 = vector.load %arg7[%c0_52, %c0_53, %c0_54] : memref<1x328x128xf32, #tpu.memory_space<vmem>>, vector<1x328x128xf32>
    %137 = vector.shape_cast %136 : vector<1x328x128xf32> to vector<328x128xf32>
    %138 = vector.shape_cast %135 : vector<328x128xf32> to vector<1x328x128xf32>
    tpu.vector_store %arg7[%c0_52, %c0_53, %c0_54], %138 {strides = array<i32>} : memref<1x328x128xf32, #tpu.memory_space<vmem>>, vector<1x328x128xf32>,
    return
  }
  func.func @transform_0(%arg0: i32) -> (i32, i32, i32) {
    %c0_i32 = arith.constant 0 : i32
    %c0_i32_0 = arith.constant 0 : i32
    %c0_i32_1 = arith.constant 0 : i32
    return %arg0, %c0_i32, %c0_i32_0 : i32, i32, i32
  }
  func.func @transform_1(%arg0: i32) -> (i32, i32, i32) {
    %c0_i32 = arith.constant 0 : i32
    %c0_i32_0 = arith.constant 0 : i32
    %c0_i32_1 = arith.constant 0 : i32
    %c0_i32_2 = arith.constant 0 : i32
    return %c0_i32, %c0_i32_0, %c0_i32_1 : i32, i32, i32
  }
  func.func @transform_2(%arg0: i32) -> (i32, i32, i32) {
    %c0_i32 = arith.constant 0 : i32
    %c0_i32_0 = arith.constant 0 : i32
    %c0_i32_1 = arith.constant 0 : i32
    %c0_i32_2 = arith.constant 0 : i32
    return %c0_i32, %c0_i32_0, %c0_i32_1 : i32, i32, i32
  }
  func.func @transform_3(%arg0: i32) -> (i32, i32) {
    %c0_i32 = arith.constant 0 : i32
    %c0_i32_0 = arith.constant 0 : i32
    %c0_i32_1 = arith.constant 0 : i32
    return %c0_i32, %c0_i32_0 : i32, i32
  }
  func.func @transform_4(%arg0: i32) -> (i32, i32) {
    %c0_i32 = arith.constant 0 : i32
    %c0_i32_0 = arith.constant 0 : i32
    %c0_i32_1 = arith.constant 0 : i32
    return %c0_i32, %c0_i32_0 : i32, i32
  }
  func.func @transform_5(%arg0: i32) -> (i32, i32) {
    %c0_i32 = arith.constant 0 : i32
    %c0_i32_0 = arith.constant 0 : i32
    %c0_i32_1 = arith.constant 0 : i32
    return %c0_i32, %c0_i32_0 : i32, i32
  }
  func.func @transform_6(%arg0: i32) -> (i32, i32, i32) {
    %c0_i32 = arith.constant 0 : i32
    %c0_i32_0 = arith.constant 0 : i32
    %c0_i32_1 = arith.constant 0 : i32
    return %arg0, %c0_i32, %c0_i32_0 : i32, i32, i32
  }
}

</mosaic_0001>

<llo_original>
// kernel: tpu_custom_call.1
$region0: #{tpu_custom_call.1}
  #allocation0 [shape = 'u32[]', space=smem, size = 0x4, offset = 0x4, fixed_abs, tag = 'smem constant byte address 0x4 - core index']
  #allocation1 [shape = 'u32[144,128]{1,0:T(1,128)}', space=vmem, size = 0x12000, scoped, tag = 'internal scratch']
  %s0 = inlined_call_operand.hbm [shape: bf16[2,424,128], index: 0, kind: input, shape index: {}]
  %s1 = inlined_call_operand.hbm [shape: bf16[3,384,256], index: 1, kind: input, shape index: {}]
  %s2 = inlined_call_operand.hbm [shape: bf16[3,384,128], index: 2, kind: input, shape index: {}]
  %s3 = inlined_call_operand.vmem [shape: f32[8,128], index: 3, kind: input, shape index: {}]
  %s4 = inlined_call_operand.hbm [shape: bf16[128,128], index: 4, kind: input, shape index: {}]
  %s5 = inlined_call_operand.hbm [shape: bf16[128,128], index: 5, kind: input, shape index: {}]
  %s6 = inlined_call_operand.hbm [shape: f32[2,328,128], index: 6, kind: output, shape index: {}]
  %s7 = sld [smem:[#allocation0]]
  $region77: #{tpu_custom_call.1} parent=0
    _
  %s9 = ssub.s32 1, %s7
  %s10 = scalar_select 0, %s9, %s7
  $region1: #{tpu_custom_call.1} parent=0
    #allocation2 [shape = 'u8[217088]{0}', space=vmem, size = 0x35000, scoped, tag = 'input window, operand 0']
    #allocation3 [shape = 's32[2]{0}', space=sflag, size = 0x8, scoped, tag = 'scoped memory for tpu_custom_call.1']
    #allocation4 [shape = 's32[2]{0}', space=sflag, size = 0x8, scoped, tag = 'scoped memory for tpu_custom_call.1']
    #allocation5 [shape = 'u8[589824]{0}', space=vmem, size = 0x90000, scoped, tag = 'input window, operand 1, single buffered']
    #allocation6 [shape = 's32[1]{0}', space=sflag, size = 0x4, scoped, tag = 'scoped memory for tpu_custom_call.1']
    #allocation7 [shape = 'u8[294912]{0}', space=vmem, size = 0x48000, scoped, tag = 'input window, operand 2, single buffered']
    #allocation8 [shape = 'u8[32768]{0}', space=vmem, size = 0x8000, scoped, tag = 'input window, operand 4, single buffered']
    #allocation9 [shape = 's32[1]{0}', space=sflag, size = 0x4, scoped, tag = 'scoped memory for tpu_custom_call.1']
    #allocation10 [shape = 'u8[32768]{0}', space=vmem, size = 0x8000, scoped, tag = 'input window, operand 5, single buffered']
    #allocation11 [shape = 'u8[335872]{0}', space=vmem, size = 0x52000, scoped, tag = 'output window, operand 0']
    %11 = vsyncpa [#allocation3], 0
    %s12 = scalar_lea.sflag [#allocation3], 1
    %13 = vsyncpa %s12, 0
    %14 = vsyncpa [#allocation6], 0
    %15 = vsyncpa [#allocation9], 0
    %16 = vsyncpa [#allocation4], 0
    %s17 = scalar_lea.sflag [#allocation4], 1
    %18 = vsyncpa %s17, 0
    loop: start=0, step=1, limit=4
    $region2: #{tpu_custom_call.1} parent=1 // loop_pre_header
      _
    $region3: #{tpu_custom_call.1} parent=1 // loop_header
      %s20 = sphi 0, %s24
      %p21 = scmp.ge.s32.totalorder %s20, 4
      %s30 = sphi 0, %s32
      %s33 = sphi 0, %s30
      %s34 = sphi 0, %s33
      %s50 = sphi 0, %s34
      %s54 = sphi 0, %s54
      %s56 = sphi 0, %s54
      %s57 = sphi 0, %s56
      %s71 = sphi 0, %s57
      %s75 = sphi 0, %s75
      %s77 = sphi 0, %s75
      %s78 = sphi 0, %s77
      %s92 = sphi 0, %s78
      %s96 = sphi 0, %s96
      %s98 = sphi 0, %s96
      %s99 = sphi 0, %s98
      %s113 = sphi 0, %s99
      %s117 = sphi 0, %s117
      %s119 = sphi 0, %s117
      %s120 = sphi 0, %s119
      %s134 = sphi 0, %s120
      %s138 = sphi 0, %s138
      %s140 = sphi 0, %s138
      %s141 = sphi 0, %s140
      %s155 = sphi 0, %s141
      %s161 = sphi 0, %s163
      %s164 = sphi 0, %s161
      %s165 = sphi 0, %s164
      %s181 = sphi 0, %s165
    $region4: #{tpu_custom_call.1} parent=1 // loop_header_branch
      %23 = sbr.rel (%p21) target = $region8
    $region5: #{tpu_custom_call.1} parent=1 // loop_body
      %s25 = ssub.s32 %s20, 1
      %s26 = ssub.s32 %s20, 2
      %s27 = sadd.s32 %s20, 1
      %s28 = ssub.s32 %s20, %s27
      %p29 = scmp.eq.s32.totalorder %s28, 0
      %s31 = sadd.s32 %s30, 1
      %s32 = scalar_select %p29, %s30, %s31
      %p35 = pneg %p29
      %p36 = scmp.eq.s32.totalorder %s20, 1
      %p37 = por %p35, %p36
      %p38 = scmp.ne.s32.totalorder %s30, %s33
      %p39 = scmp.eq.s32.totalorder %s20, 0
      %p40 = por %p38, %p39
      %p41 = scmp.ne.s32.totalorder %s30, %s33
      %p42 = scmp.eq.s32.totalorder %s25, 1
      %p43 = por %p41, %p42
      %p44 = scmp.ne.s32.totalorder %s33, %s34
      %p45 = scmp.eq.s32.totalorder %s25, 0
      %p46 = por %p44, %p45
      %p47 = scmp.ne.s32.totalorder %s33, %s34
      %p48 = scmp.eq.s32.totalorder %s26, 1
      %p49 = por %p47, %p48
      %p51 = scmp.ne.s32.totalorder %s34, %s50
      %p52 = scmp.eq.s32.totalorder %s26, 0
      %p53 = por %p51, %p52
      %s55 = sadd.s32 %s54, 1
      %p58 = scmp.eq.s32.totalorder %s20, 1
      %p59 = scmp.ne.s32.totalorder %s54, %s56
      %p60 = scmp.eq.s32.totalorder %s20, 0
      %p61 = por %p59, %p60
      %p62 = scmp.ne.s32.totalorder %s54, %s56
      %p63 = scmp.eq.s32.totalorder %s25, 1
      %p64 = por %p62, %p63
      %p65 = scmp.ne.s32.totalorder %s56, %s57
      %p66 = scmp.eq.s32.totalorder %s25, 0
      %p67 = por %p65, %p66
      %p68 = scmp.ne.s32.totalorder %s56, %s57
      %p69 = scmp.eq.s32.totalorder %s26, 1
      %p70 = por %p68, %p69
      %p72 = scmp.ne.s32.totalorder %s57, %s71
      %p73 = scmp.eq.s32.totalorder %s26, 0
      %p74 = por %p72, %p73
      %s76 = sadd.s32 %s75, 1
      %p79 = scmp.eq.s32.totalorder %s20, 1
      %p80 = scmp.ne.s32.totalorder %s75, %s77
      %p81 = scmp.eq.s32.totalorder %s20, 0
      %p82 = por %p80, %p81
      %p83 = scmp.ne.s32.totalorder %s75, %s77
      %p84 = scmp.eq.s32.totalorder %s25, 1
      %p85 = por %p83, %p84
      %p86 = scmp.ne.s32.totalorder %s77, %s78
      %p87 = scmp.eq.s32.totalorder %s25, 0
      %p88 = por %p86, %p87
      %p89 = scmp.ne.s32.totalorder %s77, %s78
      %p90 = scmp.eq.s32.totalorder %s26, 1
      %p91 = por %p89, %p90
      %p93 = scmp.ne.s32.totalorder %s78, %s92
      %p94 = scmp.eq.s32.totalorder %s26, 0
      %p95 = por %p93, %p94
      %s97 = sadd.s32 %s96, 1
      %p100 = scmp.eq.s32.totalorder %s20, 1
      %p101 = scmp.ne.s32.totalorder %s96, %s98
      %p102 = scmp.eq.s32.totalorder %s20, 0
      %p103 = por %p101, %p102
      %p104 = scmp.ne.s32.totalorder %s96, %s98
      %p105 = scmp.eq.s32.totalorder %s25, 1
      %p106 = por %p104, %p105
      %p107 = scmp.ne.s32.totalorder %s98, %s99
      %p108 = scmp.eq.s32.totalorder %s25, 0
      %p109 = por %p107, %p108
      %p110 = scmp.ne.s32.totalorder %s98, %s99
      %p111 = scmp.eq.s32.totalorder %s26, 1
      %p112 = por %p110, %p111
      %p114 = scmp.ne.s32.totalorder %s99, %s113
      %p115 = scmp.eq.s32.totalorder %s26, 0
      %p116 = por %p114, %p115
      %s118 = sadd.s32 %s117, 1
      %p121 = scmp.eq.s32.totalorder %s20, 1
      %p122 = scmp.ne.s32.totalorder %s117, %s119
      %p123 = scmp.eq.s32.totalorder %s20, 0
      %p124 = por %p122, %p123
      %p125 = scmp.ne.s32.totalorder %s117, %s119
      %p126 = scmp.eq.s32.totalorder %s25, 1
      %p127 = por %p125, %p126
      %p128 = scmp.ne.s32.totalorder %s119, %s120
      %p129 = scmp.eq.s32.totalorder %s25, 0
      %p130 = por %p128, %p129
      %p131 = scmp.ne.s32.totalorder %s119, %s120
      %p132 = scmp.eq.s32.totalorder %s26, 1
      %p133 = por %p131, %p132
      %p135 = scmp.ne.s32.totalorder %s120, %s134
      %p136 = scmp.eq.s32.totalorder %s26, 0
      %p137 = por %p135, %p136
      %s139 = sadd.s32 %s138, 1
      %p142 = scmp.eq.s32.totalorder %s20, 1
      %p143 = scmp.ne.s32.totalorder %s138, %s140
      %p144 = scmp.eq.s32.totalorder %s20, 0
      %p145 = por %p143, %p144
      %p146 = scmp.ne.s32.totalorder %s138, %s140
      %p147 = scmp.eq.s32.totalorder %s25, 1
      %p148 = por %p146, %p147
      %p149 = scmp.ne.s32.totalorder %s140, %s141
      %p150 = scmp.eq.s32.totalorder %s25, 0
      %p151 = por %p149, %p150
      %p152 = scmp.ne.s32.totalorder %s140, %s141
      %p153 = scmp.eq.s32.totalorder %s26, 1
      %p154 = por %p152, %p153
      %p156 = scmp.ne.s32.totalorder %s141, %s155
      %p157 = scmp.eq.s32.totalorder %s26, 0
      %p158 = por %p156, %p157
      %s159 = ssub.s32 %s20, %s27
      %p160 = scmp.eq.s32.totalorder %s159, 0
      %s162 = sadd.s32 %s161, 1
      %s163 = scalar_select %p160, %s161, %s162
      %p166 = pneg %p160
      %p167 = scmp.eq.s32.totalorder %s20, 1
      %p168 = por %p166, %p167
      %p169 = scmp.ne.s32.totalorder %s161, %s164
      %p170 = scmp.eq.s32.totalorder %s20, 0
      %p171 = por %p169, %p170
      %p172 = scmp.ne.s32.totalorder %s161, %s164
      %p173 = scmp.eq.s32.totalorder %s25, 1
      %p174 = por %p172, %p173
      %p175 = scmp.ne.s32.totalorder %s164, %s165
      %p176 = scmp.eq.s32.totalorder %s25, 0
      %p177 = por %p175, %p176
      %p178 = scmp.ne.s32.totalorder %s164, %s165
      %p179 = scmp.eq.s32.totalorder %s26, 1
      %p180 = por %p178, %p179
      %p182 = scmp.ne.s32.totalorder %s165, %s181
      %p183 = scmp.eq.s32.totalorder %s26, 0
      %p184 = por %p182, %p183
      %p185 = scmp.le.s32.totalorder 1, %s20
      %p186 = scmp.lt.s32.totalorder %s20, 3
      %p187 = pnand %p185, %p186
      %p188 = pneg %p187
      // Predicated region
      $region9: #{tpu_custom_call.1} parent=5 // pred_check
        _
      $region10: #{tpu_custom_call.1} parent=5 // pred_check_branch
        %190 = sbr.rel (%p187) target = $region12
      $region11: #{tpu_custom_call.1} parent=5 // pred_region
        %s191 = ssub.s32 %s20, 1
        // Predicated region
        $region13: #{tpu_custom_call.1} parent=11 // pred_check
          %p192 = pneg %p67
        $region14: #{tpu_custom_call.1} parent=11 // pred_check_branch
          %194 = sbr.rel (%p192) target = $region16
        $region15: #{tpu_custom_call.1} parent=11 // pred_region
          %s196 = ssub.s32 18432, 18432
          %197 = vsyncadd [#allocation6], %s196
          %s198 = sshll.u32 [#allocation5], 4
          %s199 = int_to_ptr.vmem [resolvable:$true] %s198
          %204 = dma.hbm_to_vmem [thread:$0]  %s1, 18432, %s199, [#allocation6], 128, 128, 8
        $region16: #{tpu_custom_call.1} parent=11 // pred_fallthru
          _
        // Predicated region
        $region17: #{tpu_custom_call.1} parent=11 // pred_check
          %p205 = pneg %p88
        $region18: #{tpu_custom_call.1} parent=11 // pred_check_branch
          %207 = sbr.rel (%p205) target = $region20
        $region19: #{tpu_custom_call.1} parent=11 // pred_region
          %s209 = ssub.s32 9216, 9216
          %210 = vsyncadd [#allocation6], %s209
          %s211 = sshll.u32 [#allocation7], 4
          %s212 = int_to_ptr.vmem [resolvable:$true] %s211
          %217 = dma.hbm_to_vmem [thread:$0]  %s2, 9216, %s212, [#allocation6], 64, 64, 4
        $region20: #{tpu_custom_call.1} parent=11 // pred_fallthru
          _
        // Predicated region
        $region21: #{tpu_custom_call.1} parent=11 // pred_check
          %p218 = pneg %p109
        $region22: #{tpu_custom_call.1} parent=11 // pred_check_branch
          %220 = sbr.rel (%p218) target = $region24
        $region23: #{tpu_custom_call.1} parent=11 // pred_region
          _
        $region24: #{tpu_custom_call.1} parent=11 // pred_fallthru
          _
        // Predicated region
        $region25: #{tpu_custom_call.1} parent=11 // pred_check
          %p221 = pneg %p130
        $region26: #{tpu_custom_call.1} parent=11 // pred_check_branch
          %223 = sbr.rel (%p221) target = $region28
        $region27: #{tpu_custom_call.1} parent=11 // pred_region
          %s225 = ssub.s32 1024, 1024
          %226 = vsyncadd [#allocation9], %s225
          %s227 = sshll.u32 [#allocation8], 4
          %s228 = int_to_ptr.vmem [resolvable:$true] %s227
          %233 = dma.hbm_to_vmem [thread:$0]  %s4, 1024, %s228, [#allocation9], 64, 64, 4
        $region28: #{tpu_custom_call.1} parent=11 // pred_fallthru
          _
        // Predicated region
        $region29: #{tpu_custom_call.1} parent=11 // pred_check
          %p234 = pneg %p151
        $region30: #{tpu_custom_call.1} parent=11 // pred_check_branch
          %236 = sbr.rel (%p234) target = $region32
        $region31: #{tpu_custom_call.1} parent=11 // pred_region
          %s238 = ssub.s32 1024, 1024
          %239 = vsyncadd [#allocation9], %s238
          %s240 = sshll.u32 [#allocation10], 4
          %s241 = int_to_ptr.vmem [resolvable:$true] %s240
          %246 = dma.hbm_to_vmem [thread:$0]  %s5, 1024, %s241, [#allocation9], 64, 64, 4
        $region32: #{tpu_custom_call.1} parent=11 // pred_fallthru
          _
      $region12: #{tpu_custom_call.1} parent=5 // pred_fallthru
        _
      %p247 = scmp.lt.s32.totalorder %s20, 2
      // Predicated region
      $region33: #{tpu_custom_call.1} parent=5 // pred_check
        %p248 = pneg %p247
      $region34: #{tpu_custom_call.1} parent=5 // pred_check_branch
        %250 = sbr.rel (%p248) target = $region36
      $region35: #{tpu_custom_call.1} parent=5 // pred_region
        // Predicated region
        $region37: #{tpu_custom_call.1} parent=35 // pred_check
          %p251 = pneg %p40
        $region38: #{tpu_custom_call.1} parent=35 // pred_check_branch
          %253 = sbr.rel (%p251) target = $region40
        $region39: #{tpu_custom_call.1} parent=35 // pred_region
          %s254 = sand.u32 %s30, 1
          %s255 = scalar_lea.sflag [#allocation3], %s254
          %s256 = sand.u32 %s30, 1
          %s257 = smul.addr %s256, 212
          %s258 = scalar_lea.vmem [#allocation2], %s257
          %s260 = ssub.s32 3392, 3392
          %261 = vsyncadd %s255, %s260
          %s262 = smul.addr %s20, 53
          %s263 = smul.addr %s262, 64
          %s264 = scalar_lea.hbm %s0, %s263
          %s265 = sshll.u32 %s258, 4
          %s266 = int_to_ptr.vmem [resolvable:$true] %s265
          %271 = dma.hbm_to_vmem [thread:$0]  %s264, 3392, %s266, %s255, 64, 64, 4
        $region40: #{tpu_custom_call.1} parent=35 // pred_fallthru
          _
      $region36: #{tpu_custom_call.1} parent=5 // pred_fallthru
        _
      %p272 = scmp.le.s32.totalorder 1, %s20
      %p273 = scmp.lt.s32.totalorder %s20, 3
      %p274 = pnand %p272, %p273
      %p275 = pneg %p274
      // Predicated region
      $region41: #{tpu_custom_call.1} parent=5 // pred_check
        _
      $region42: #{tpu_custom_call.1} parent=5 // pred_check_branch
        %277 = sbr.rel (%p274) target = $region44
      $region43: #{tpu_custom_call.1} parent=5 // pred_region
        %s278 = ssub.s32 %s20, 1
        %s279 = sand.u32 %s33, 1
        %s280 = scalar_lea.sflag [#allocation3], %s279
        %s281 = sand.u32 %s33, 1
        %s282 = smul.addr %s281, 212
        %s283 = scalar_lea.vmem [#allocation2], %s282
        // Predicated region
        $region45: #{tpu_custom_call.1} parent=43 // pred_check
          %p284 = pneg %p46
        $region46: #{tpu_custom_call.1} parent=43 // pred_check_branch
          %286 = sbr.rel (%p284) target = $region48
        $region47: #{tpu_custom_call.1} parent=43 // pred_region
          %287 = dma.done %s280, 3392
        $region48: #{tpu_custom_call.1} parent=43 // pred_fallthru
          _
        // Predicated region
        $region49: #{tpu_custom_call.1} parent=43 // pred_check
          %p288 = pneg %p67
        $region50: #{tpu_custom_call.1} parent=43 // pred_check_branch
          %290 = sbr.rel (%p288) target = $region52
        $region51: #{tpu_custom_call.1} parent=43 // pred_region
          %291 = dma.done [#allocation6], 18432
        $region52: #{tpu_custom_call.1} parent=43 // pred_fallthru
          _
        // Predicated region
        $region53: #{tpu_custom_call.1} parent=43 // pred_check
          %p292 = pneg %p88
        $region54: #{tpu_custom_call.1} parent=43 // pred_check_branch
          %294 = sbr.rel (%p292) target = $region56
        $region55: #{tpu_custom_call.1} parent=43 // pred_region
          %295 = dma.done [#allocation6], 9216
        $region56: #{tpu_custom_call.1} parent=43 // pred_fallthru
          _
        // Predicated region
        $region57: #{tpu_custom_call.1} parent=43 // pred_check
          %p296 = pneg %p130
        $region58: #{tpu_custom_call.1} parent=43 // pred_check_branch
          %298 = sbr.rel (%p296) target = $region60
        $region59: #{tpu_custom_call.1} parent=43 // pred_region
          %299 = dma.done [#allocation9], 1024
        $region60: #{tpu_custom_call.1} parent=43 // pred_fallthru
          _
        // Predicated region
        $region61: #{tpu_custom_call.1} parent=43 // pred_check
          %p300 = pneg %p151
        $region62: #{tpu_custom_call.1} parent=43 // pred_check_branch
          %302 = sbr.rel (%p300) target = $region64
        $region63: #{tpu_custom_call.1} parent=43 // pred_region
          %303 = dma.done [#allocation9], 1024
        $region64: #{tpu_custom_call.1} parent=43 // pred_fallthru
          _
        %s304 = sand.u32 %s33, 1
        %s305 = scalar_lea.sflag [#allocation3], %s304
        %s306 = sand.u32 %s33, 1
        %s307 = smul.addr %s306, 212
        %s308 = scalar_lea.vmem [#allocation2], %s307
        %p309 = pneg %p46
        %p310 = pneg %p43
        %p311 = pneg %p67
        %p312 = pneg %p64
        %p313 = pneg %p88
        %p314 = pneg %p85
        %p315 = pneg %p109
        %p316 = pneg %p106
        %p317 = pneg %p130
        %p318 = pneg %p127
        %p319 = pneg %p151
        %p320 = pneg %p148
        %p321 = pneg %p177
        %p322 = pneg %p174
        %s323 = sand.u32 %s164, 1
        %s324 = scalar_lea.sflag [#allocation4], %s323
        %s325 = sand.u32 %s164, 1
        %s326 = smul.addr %s325, 328
        %s327 = scalar_lea.vmem [#allocation11], %s326
        %v329 = vld [vmem:[%s283] sm:$0xf]
        %v330 = vld [vmem:[%s283 + $0x4] sm:$0xf]
        %v331 = vld [vmem:[%s283 + $0x8] sm:$0xf]
        %v332 = vld [vmem:[%s283 + $0xc] sm:$0xf]
        %v333 = vld [vmem:[%s283 + $0x10] sm:$0xf]
        %v334 = vld [vmem:[%s283 + $0x14] sm:$0xf]
        %v335 = vld [vmem:[%s283 + $0x18] sm:$0xf]
        %v336 = vld [vmem:[%s283 + $0x1c] sm:$0xf]
        %v337 = vld [vmem:[%s283 + $0x20] sm:$0xf]
        %v338 = vld [vmem:[%s283 + $0x24] sm:$0xf]
        %v339 = vld [vmem:[%s283 + $0x28] sm:$0xf]
        %v340 = vld [vmem:[%s283 + $0x2c] sm:$0xf]
        %v341 = vld [vmem:[%s283 + $0x30] sm:$0xf]
        %v342 = vld [vmem:[%s283 + $0x34] sm:$0xf]
        %v343 = vld [vmem:[%s283 + $0x38] sm:$0xf]
        %v344 = vld [vmem:[%s283 + $0x3c] sm:$0xf]
        %v345 = vld [vmem:[%s283 + $0x40] sm:$0xf]
        %v346 = vld [vmem:[%s283 + $0x44] sm:$0xf]
        %v347 = vld [vmem:[%s283 + $0x48] sm:$0xf]
        %v348 = vld [vmem:[%s283 + $0x4c] sm:$0xf]
        %v349 = vld [vmem:[%s283 + $0x50] sm:$0xf]
        %v350 = vld [vmem:[%s283 + $0x54] sm:$0xf]
        %v351 = vld [vmem:[%s283 + $0x58] sm:$0xf]
        %v352 = vld [vmem:[%s283 + $0x5c] sm:$0xf]
        %v353 = vld [vmem:[%s283 + $0x60] sm:$0xf]
        %v354 = vld [vmem:[%s283 + $0x64] sm:$0xf]
        %v355 = vld [vmem:[%s283 + $0x68] sm:$0xf]
        %v356 = vld [vmem:[%s283 + $0x6c] sm:$0xf]
        %v357 = vld [vmem:[%s283 + $0x70] sm:$0xf]
        %v358 = vld [vmem:[%s283 + $0x74] sm:$0xf]
        %v359 = vld [vmem:[%s283 + $0x78] sm:$0xf]
        %v360 = vld [vmem:[%s283 + $0x7c] sm:$0xf]
        %v361 = vld [vmem:[%s283 + $0x80] sm:$0xf]
        %v362 = vld [vmem:[%s283 + $0x84] sm:$0xf]
        %v363 = vld [vmem:[%s283 + $0x88] sm:$0xf]
        %v364 = vld [vmem:[%s283 + $0x8c] sm:$0xf]
        %v365 = vld [vmem:[%s283 + $0x90] sm:$0xf]
        %v366 = vld [vmem:[%s283 + $0x94] sm:$0xf]
        %v367 = vld [vmem:[%s283 + $0x98] sm:$0xf]
        %v368 = vld [vmem:[%s283 + $0x9c] sm:$0xf]
        %v369 = vld [vmem:[%s283 + $0xa0] sm:$0xf]
        %v370 = vld [vmem:[%s283 + $0xa4] sm:$0xf]
        %v371 = vld [vmem:[%s283 + $0xa8] sm:$0xf]
        %v372 = vld [vmem:[%s283 + $0xac] sm:$0xf]
        %v373 = vld [vmem:[%s283 + $0xb0] sm:$0xf]
        %v374 = vld [vmem:[%s283 + $0xb4] sm:$0xf]
        %v375 = vld [vmem:[%s283 + $0xb8] sm:$0xf]
        %v376 = vld [vmem:[%s283 + $0xbc] sm:$0xf]
        %v377 = vld [vmem:[%s283 + $0xc0] sm:$0xf]
        %v378 = vld [vmem:[%s283 + $0xc4] sm:$0xf]
        %v379 = vld [vmem:[%s283 + $0xc8] sm:$0xf]
        %v380 = vld [vmem:[%s283 + $0xcc] sm:$0xf]
        %v381 = vld [vmem:[%s283 + $0xd0] sm:$0xf]
        %v382 = vld [vmem:[%s3] sm:$0xff]
        %v436 = vunpack.c.l.b16 %v329
        %v437 = vunpack.c.l.b16 %v330
        %v438 = vunpack.c.l.b16 %v331
        %v439 = vunpack.c.l.b16 %v332
        %v440 = vunpack.c.l.b16 %v333
        %v441 = vunpack.c.l.b16 %v334
        %v442 = vunpack.c.l.b16 %v335
        %v443 = vunpack.c.l.b16 %v336
        %v444 = vunpack.c.l.b16 %v337
        %v445 = vunpack.c.l.b16 %v338
        %v446 = vunpack.c.l.b16 %v339
        %v447 = vunpack.c.l.b16 %v340
        %v448 = vunpack.c.l.b16 %v341
        %v449 = vunpack.c.l.b16 %v342
        %v450 = vunpack.c.l.b16 %v343
        %v451 = vunpack.c.l.b16 %v344
        %v452 = vunpack.c.l.b16 %v345
        %v453 = vunpack.c.l.b16 %v346
        %v454 = vunpack.c.l.b16 %v347
        %v455 = vunpack.c.l.b16 %v348
        %v456 = vunpack.c.l.b16 %v349
        %v457 = vunpack.c.l.b16 %v350
        %v458 = vunpack.c.l.b16 %v351
        %v459 = vunpack.c.l.b16 %v352
        %v460 = vunpack.c.l.b16 %v353
        %v461 = vunpack.c.l.b16 %v354
        %v462 = vunpack.c.l.b16 %v355
        %v463 = vunpack.c.l.b16 %v356
        %v464 = vunpack.c.l.b16 %v357
        %v465 = vunpack.c.l.b16 %v358
        %v466 = vunpack.c.l.b16 %v359
        %v467 = vunpack.c.l.b16 %v360
        %v468 = vunpack.c.l.b16 %v361
        %v469 = vunpack.c.l.b16 %v362
        %v470 = vunpack.c.l.b16 %v363
        %v471 = vunpack.c.l.b16 %v364
        %v472 = vunpack.c.l.b16 %v365
        %v473 = vunpack.c.l.b16 %v366
        %v474 = vunpack.c.l.b16 %v367
        %v475 = vunpack.c.l.b16 %v368
        %v476 = vunpack.c.l.b16 %v369
        %v477 = vunpack.c.l.b16 %v370
        %v478 = vunpack.c.l.b16 %v371
        %v479 = vunpack.c.l.b16 %v372
        %v480 = vunpack.c.l.b16 %v373
        %v481 = vunpack.c.l.b16 %v374
        %v482 = vunpack.c.l.b16 %v375
        %v483 = vunpack.c.l.b16 %v376
        %v484 = vunpack.c.l.b16 %v377
        %v485 = vunpack.c.l.b16 %v378
        %v486 = vunpack.c.l.b16 %v379
        %v487 = vunpack.c.l.b16 %v380
        %v488 = vunpack.c.l.b16 %v381
        %v489 = vpack.c.b16 %v437, %v436
        %v490 = vpack.c.b16 %v439, %v438
        %v491 = vpack.c.b16 %v441, %v440
        %v492 = vpack.c.b16 %v443, %v442
        %v493 = vpack.c.b16 %v445, %v444
        %v494 = vpack.c.b16 %v447, %v446
        %v495 = vpack.c.b16 %v449, %v448
        %v496 = vpack.c.b16 %v451, %v450
        %v497 = vpack.c.b16 %v453, %v452
        %v498 = vpack.c.b16 %v455, %v454
        %v499 = vpack.c.b16 %v457, %v456
        %v500 = vpack.c.b16 %v459, %v458
        %v501 = vpack.c.b16 %v461, %v460
        %v502 = vpack.c.b16 %v463, %v462
        %v503 = vpack.c.b16 %v465, %v464
        %v504 = vpack.c.b16 %v467, %v466
        %v505 = vpack.c.b16 %v469, %v468
        %v506 = vpack.c.b16 %v471, %v470
        %v507 = vpack.c.b16 %v473, %v472
        %v508 = vpack.c.b16 %v475, %v474
        %v509 = vpack.c.b16 %v477, %v476
        %v510 = vpack.c.b16 %v479, %v478
        %v511 = vpack.c.b16 %v481, %v480
        %v512 = vpack.c.b16 %v483, %v482
        %v513 = vpack.c.b16 %v485, %v484
        %v514 = vpack.c.b16 %v487, %v486
        %v515 = vpack.c.b16 %v488, %v488
        %vm516 = vsmask.f32 7424
        %v518 = vshrl.u32 %v489, 16
        %v520 = vshll.u32 %v489, 16
        %v522 = vrot.slane %v520, 1
        %v523 = vor.u32 %v518, %v522
        %v525 = vshll.u32 %v490, 16
        %v527 = vrot.slane %v525, 1
        %v528 = vsel %vm516, %v523, %v527
        %v529 = vshrl.u32 %v490, 16
        %v531 = vor.u32 %v529, %v527
        %v533 = vshll.u32 %v491, 16
        %v535 = vrot.slane %v533, 1
        %v536 = vsel %vm516, %v531, %v535
        %v537 = vshrl.u32 %v491, 16
        %v539 = vor.u32 %v537, %v535
        %v541 = vshll.u32 %v492, 16
        %v543 = vrot.slane %v541, 1
        %v544 = vsel %vm516, %v539, %v543
        %v545 = vshrl.u32 %v492, 16
        %v547 = vor.u32 %v545, %v543
        %v549 = vshll.u32 %v493, 16
        %v551 = vrot.slane %v549, 1
        %v552 = vsel %vm516, %v547, %v551
        %v553 = vshrl.u32 %v493, 16
        %v555 = vor.u32 %v553, %v551
        %v557 = vshll.u32 %v494, 16
        %v559 = vrot.slane %v557, 1
        %v560 = vsel %vm516, %v555, %v559
        %v561 = vshrl.u32 %v494, 16
        %v563 = vor.u32 %v561, %v559
        %v565 = vshll.u32 %v495, 16
        %v567 = vrot.slane %v565, 1
        %v568 = vsel %vm516, %v563, %v567
        %v569 = vshrl.u32 %v495, 16
        %v571 = vor.u32 %v569, %v567
        %v573 = vshll.u32 %v496, 16
        %v575 = vrot.slane %v573, 1
        %v576 = vsel %vm516, %v571, %v575
        %v577 = vshrl.u32 %v496, 16
        %v579 = vor.u32 %v577, %v575
        %v581 = vshll.u32 %v497, 16
        %v583 = vrot.slane %v581, 1
        %v584 = vsel %vm516, %v579, %v583
        %v585 = vshrl.u32 %v497, 16
        %v587 = vor.u32 %v585, %v583
        %v589 = vshll.u32 %v498, 16
        %v591 = vrot.slane %v589, 1
        %v592 = vsel %vm516, %v587, %v591
        %v593 = vshrl.u32 %v498, 16
        %v595 = vor.u32 %v593, %v591
        %v597 = vshll.u32 %v499, 16
        %v599 = vrot.slane %v597, 1
        %v600 = vsel %vm516, %v595, %v599
        %v601 = vshrl.u32 %v499, 16
        %v603 = vor.u32 %v601, %v599
        %v605 = vshll.u32 %v500, 16
        %v607 = vrot.slane %v605, 1
        %v608 = vsel %vm516, %v603, %v607
        %v609 = vshrl.u32 %v500, 16
        %v611 = vor.u32 %v609, %v607
        %v613 = vshll.u32 %v501, 16
        %v615 = vrot.slane %v613, 1
        %v616 = vsel %vm516, %v611, %v615
        %v617 = vshrl.u32 %v501, 16
        %v619 = vor.u32 %v617, %v615
        %v621 = vshll.u32 %v502, 16
        %v623 = vrot.slane %v621, 1
        %v624 = vsel %vm516, %v619, %v623
        %v625 = vshrl.u32 %v502, 16
        %v627 = vor.u32 %v625, %v623
        %v629 = vshll.u32 %v503, 16
        %v631 = vrot.slane %v629, 1
        %v632 = vsel %vm516, %v627, %v631
        %v633 = vshrl.u32 %v503, 16
        %v635 = vor.u32 %v633, %v631
        %v637 = vshll.u32 %v504, 16
        %v639 = vrot.slane %v637, 1
        %v640 = vsel %vm516, %v635, %v639
        %v641 = vshrl.u32 %v504, 16
        %v643 = vor.u32 %v641, %v639
        %v645 = vshll.u32 %v505, 16
        %v647 = vrot.slane %v645, 1
        %v648 = vsel %vm516, %v643, %v647
        %v649 = vshrl.u32 %v505, 16
        %v651 = vor.u32 %v649, %v647
        %v653 = vshll.u32 %v506, 16
        %v655 = vrot.slane %v653, 1
        %v656 = vsel %vm516, %v651, %v655
        %v657 = vshrl.u32 %v506, 16
        %v659 = vor.u32 %v657, %v655
        %v661 = vshll.u32 %v507, 16
        %v663 = vrot.slane %v661, 1
        %v664 = vsel %vm516, %v659, %v663
        %v665 = vshrl.u32 %v507, 16
        %v667 = vor.u32 %v665, %v663
        %v669 = vshll.u32 %v508, 16
        %v671 = vrot.slane %v669, 1
        %v672 = vsel %vm516, %v667, %v671
        %v673 = vshrl.u32 %v508, 16
        %v675 = vor.u32 %v673, %v671
        %v677 = vshll.u32 %v509, 16
        %v679 = vrot.slane %v677, 1
        %v680 = vsel %vm516, %v675, %v679
        %v681 = vshrl.u32 %v509, 16
        %v683 = vor.u32 %v681, %v679
        %v685 = vshll.u32 %v510, 16
        %v687 = vrot.slane %v685, 1
        %v688 = vsel %vm516, %v683, %v687
        %v689 = vshrl.u32 %v510, 16
        %v691 = vor.u32 %v689, %v687
        %v693 = vshll.u32 %v511, 16
        %v695 = vrot.slane %v693, 1
        %v696 = vsel %vm516, %v691, %v695
        %v697 = vshrl.u32 %v511, 16
        %v699 = vor.u32 %v697, %v695
        %v701 = vshll.u32 %v512, 16
        %v703 = vrot.slane %v701, 1
        %v704 = vsel %vm516, %v699, %v703
        %v705 = vshrl.u32 %v512, 16
        %v707 = vor.u32 %v705, %v703
        %v709 = vshll.u32 %v513, 16
        %v711 = vrot.slane %v709, 1
        %v712 = vsel %vm516, %v707, %v711
        %v713 = vshrl.u32 %v513, 16
        %v715 = vor.u32 %v713, %v711
        %v717 = vshll.u32 %v514, 16
        %v719 = vrot.slane %v717, 1
        %v720 = vsel %vm516, %v715, %v719
        %v721 = vshrl.u32 %v514, 16
        %v723 = vor.u32 %v721, %v719
        %v725 = vshll.u32 %v515, 16
        %v727 = vrot.slane %v725, 1
        %v728 = vsel %vm516, %v723, %v727
        %v729 = vshrl.u32 %v515, 16
        %vm731 = vcmask 1046528
        %v732 = vrot.slane %v489, 1
        %v733 = vrot.slane %v490, 1
        %v734 = vsel %vm731, %v732, %v733
        %v735 = vrot.slane %v491, 1
        %v736 = vsel %vm731, %v733, %v735
        %v737 = vrot.slane %v492, 1
        %v738 = vsel %vm731, %v735, %v737
        %v739 = vrot.slane %v493, 1
        %v740 = vsel %vm731, %v737, %v739
        %v741 = vrot.slane %v494, 1
        %v742 = vsel %vm731, %v739, %v741
        %v743 = vrot.slane %v495, 1
        %v744 = vsel %vm731, %v741, %v743
        %v745 = vrot.slane %v496, 1
        %v746 = vsel %vm731, %v743, %v745
        %v747 = vrot.slane %v497, 1
        %v748 = vsel %vm731, %v745, %v747
        %v749 = vrot.slane %v498, 1
        %v750 = vsel %vm731, %v747, %v749
        %v751 = vrot.slane %v499, 1
        %v752 = vsel %vm731, %v749, %v751
        %v753 = vrot.slane %v500, 1
        %v754 = vsel %vm731, %v751, %v753
        %v755 = vrot.slane %v501, 1
        %v756 = vsel %vm731, %v753, %v755
        %v757 = vrot.slane %v502, 1
        %v758 = vsel %vm731, %v755, %v757
        %v759 = vrot.slane %v503, 1
        %v760 = vsel %vm731, %v757, %v759
        %v761 = vrot.slane %v504, 1
        %v762 = vsel %vm731, %v759, %v761
        %v763 = vrot.slane %v505, 1
        %v764 = vsel %vm731, %v761, %v763
        %v765 = vrot.slane %v506, 1
        %v766 = vsel %vm731, %v763, %v765
        %v767 = vrot.slane %v507, 1
        %v768 = vsel %vm731, %v765, %v767
        %v769 = vrot.slane %v508, 1
        %v770 = vsel %vm731, %v767, %v769
        %v771 = vrot.slane %v509, 1
        %v772 = vsel %vm731, %v769, %v771
        %v773 = vrot.slane %v510, 1
        %v774 = vsel %vm731, %v771, %v773
        %v775 = vrot.slane %v511, 1
        %v776 = vsel %vm731, %v773, %v775
        %v777 = vrot.slane %v512, 1
        %v778 = vsel %vm731, %v775, %v777
        %v779 = vrot.slane %v513, 1
        %v780 = vsel %vm731, %v777, %v779
        %v781 = vrot.slane %v514, 1
        %v782 = vsel %vm731, %v779, %v781
        %v783 = vrot.slane %v515, 1
        %v784 = vsel %vm731, %v781, %v783
        %v785 = vld [vmem:[#allocation5] sm:$0xff]
        %v786 = vld [vmem:[#allocation5 + $0x8] sm:$0xff]
        %v787 = vld [vmem:[#allocation5 + $0x10] sm:$0xff]
        %v788 = vld [vmem:[#allocation5 + $0x18] sm:$0xff]
        %v789 = vld [vmem:[#allocation5 + $0x20] sm:$0xff]
        %v790 = vld [vmem:[#allocation5 + $0x28] sm:$0xff]
        %v791 = vld [vmem:[#allocation5 + $0x30] sm:$0xff]
        %v792 = vld [vmem:[#allocation5 + $0x38] sm:$0xff]
        %v793 = vld [vmem:[#allocation5 + $0x40] sm:$0xff]
        %v794 = vld [vmem:[#allocation5 + $0x48] sm:$0xff]
        %v795 = vld [vmem:[#allocation5 + $0x50] sm:$0xff]
        %v796 = vld [vmem:[#allocation5 + $0x58] sm:$0xff]
        %v797 = vld [vmem:[#allocation5 + $0x60] sm:$0xff]
        %v798 = vld [vmem:[#allocation5 + $0x68] sm:$0xff]
        %v799 = vld [vmem:[#allocation5 + $0x70] sm:$0xff]
        %v800 = vld [vmem:[#allocation5 + $0x78] sm:$0xff]
        %v801 = vld [vmem:[#allocation5 + $0x80] sm:$0xff]
        %v802 = vld [vmem:[#allocation5 + $0x88] sm:$0xff]
        %v803 = vld [vmem:[#allocation5 + $0x90] sm:$0xff]
        %v804 = vld [vmem:[#allocation5 + $0x98] sm:$0xff]
        %v805 = vld [vmem:[#allocation5 + $0xa0] sm:$0xff]
        %v806 = vld [vmem:[#allocation5 + $0xa8] sm:$0xff]
        %v807 = vld [vmem:[#allocation5 + $0xb0] sm:$0xff]
        %v808 = vld [vmem:[#allocation5 + $0xb8] sm:$0xff]
        %v809 = vld [vmem:[#allocation5 + $0xc0] sm:$0xff]
        %v810 = vld [vmem:[#allocation5 + $0xc8] sm:$0xff]
        %v811 = vld [vmem:[#allocation5 + $0xd0] sm:$0xff]
        %v812 = vld [vmem:[#allocation5 + $0xd8] sm:$0xff]
        %v813 = vld [vmem:[#allocation5 + $0xe0] sm:$0xff]
        %v814 = vld [vmem:[#allocation5 + $0xe8] sm:$0xff]
        %v815 = vld [vmem:[#allocation5 + $0xf0] sm:$0xff]
        %v816 = vld [vmem:[#allocation5 + $0xf8] sm:$0xff]
        %v817 = vld [vmem:[#allocation5 + $0x100] sm:$0xff]
        %v818 = vld [vmem:[#allocation5 + $0x108] sm:$0xff]
        %v819 = vld [vmem:[#allocation5 + $0x110] sm:$0xff]
        %v820 = vld [vmem:[#allocation5 + $0x118] sm:$0xff]
        %v821 = vld [vmem:[#allocation5 + $0x120] sm:$0xff]
        %v822 = vld [vmem:[#allocation5 + $0x128] sm:$0xff]
        %v823 = vld [vmem:[#allocation5 + $0x130] sm:$0xff]
        %v824 = vld [vmem:[#allocation5 + $0x138] sm:$0xff]
        %v825 = vld [vmem:[#allocation5 + $0x140] sm:$0xff]
        %v826 = vld [vmem:[#allocation5 + $0x148] sm:$0xff]
        %v827 = vld [vmem:[#allocation5 + $0x150] sm:$0xff]
        %v828 = vld [vmem:[#allocation5 + $0x158] sm:$0xff]
        %v829 = vld [vmem:[#allocation5 + $0x160] sm:$0xff]
        %v830 = vld [vmem:[#allocation5 + $0x168] sm:$0xff]
        %v831 = vld [vmem:[#allocation5 + $0x170] sm:$0xff]
        %v832 = vld [vmem:[#allocation5 + $0x178] sm:$0xff]
        %s833 = scalar_lea.vmem [#allocation5], 384
        %v834 = vld [vmem:[%s833] sm:$0xff]
        %v835 = vld [vmem:[%s833 + $0x8] sm:$0xff]
        %v836 = vld [vmem:[%s833 + $0x10] sm:$0xff]
        %v837 = vld [vmem:[%s833 + $0x18] sm:$0xff]
        %v838 = vld [vmem:[%s833 + $0x20] sm:$0xff]
        %v839 = vld [vmem:[%s833 + $0x28] sm:$0xff]
        %v840 = vld [vmem:[%s833 + $0x30] sm:$0xff]
        %v841 = vld [vmem:[%s833 + $0x38] sm:$0xff]
        %v842 = vld [vmem:[%s833 + $0x40] sm:$0xff]
        %v843 = vld [vmem:[%s833 + $0x48] sm:$0xff]
        %v844 = vld [vmem:[%s833 + $0x50] sm:$0xff]
        %v845 = vld [vmem:[%s833 + $0x58] sm:$0xff]
        %v846 = vld [vmem:[%s833 + $0x60] sm:$0xff]
        %v847 = vld [vmem:[%s833 + $0x68] sm:$0xff]
        %v848 = vld [vmem:[%s833 + $0x70] sm:$0xff]
        %v849 = vld [vmem:[%s833 + $0x78] sm:$0xff]
        %v850 = vld [vmem:[%s833 + $0x80] sm:$0xff]
        %v851 = vld [vmem:[%s833 + $0x88] sm:$0xff]
        %v852 = vld [vmem:[%s833 + $0x90] sm:$0xff]
        %v853 = vld [vmem:[%s833 + $0x98] sm:$0xff]
        %v854 = vld [vmem:[%s833 + $0xa0] sm:$0xff]
        %v855 = vld [vmem:[%s833 + $0xa8] sm:$0xff]
        %v856 = vld [vmem:[%s833 + $0xb0] sm:$0xff]
        %v857 = vld [vmem:[%s833 + $0xb8] sm:$0xff]
        %v858 = vld [vmem:[%s833 + $0xc0] sm:$0xff]
        %v859 = vld [vmem:[%s833 + $0xc8] sm:$0xff]
        %v860 = vld [vmem:[%s833 + $0xd0] sm:$0xff]
        %v861 = vld [vmem:[%s833 + $0xd8] sm:$0xff]
        %v862 = vld [vmem:[%s833 + $0xe0] sm:$0xff]
        %v863 = vld [vmem:[%s833 + $0xe8] sm:$0xff]
        %v864 = vld [vmem:[%s833 + $0xf0] sm:$0xff]
        %v865 = vld [vmem:[%s833 + $0xf8] sm:$0xff]
        %v866 = vld [vmem:[%s833 + $0x100] sm:$0xff]
        %v867 = vld [vmem:[%s833 + $0x108] sm:$0xff]
        %v868 = vld [vmem:[%s833 + $0x110] sm:$0xff]
        %v869 = vld [vmem:[%s833 + $0x118] sm:$0xff]
        %v870 = vld [vmem:[%s833 + $0x120] sm:$0xff]
        %v871 = vld [vmem:[%s833 + $0x128] sm:$0xff]
        %v872 = vld [vmem:[%s833 + $0x130] sm:$0xff]
        %v873 = vld [vmem:[%s833 + $0x138] sm:$0xff]
        %v874 = vld [vmem:[%s833 + $0x140] sm:$0xff]
        %v875 = vld [vmem:[%s833 + $0x148] sm:$0xff]
        %v876 = vld [vmem:[%s833 + $0x150] sm:$0xff]
        %v877 = vld [vmem:[%s833 + $0x158] sm:$0xff]
        %v878 = vld [vmem:[%s833 + $0x160] sm:$0xff]
        %v879 = vld [vmem:[%s833 + $0x168] sm:$0xff]
        %v880 = vld [vmem:[%s833 + $0x170] sm:$0xff]
        %v881 = vld [vmem:[%s833 + $0x178] sm:$0xff]
        %vm882 = vsmask.f32 4352
        %v883 = vrot.slane %v529, 3
        %v884 = vrot.slane %v525, 4
        %v885 = vor.u32 %v883, %v884
        %v886 = vrot.slane %v537, 3
        %v887 = vrot.slane %v533, 4
        %v888 = vor.u32 %v886, %v887
        %v889 = vsel %vm882, %v885, %v888
        %v891 = vshrl.u32 %v536, 16
        %v893 = vrot.slane %v891, 3
        %v894 = vshll.u32 %v536, 16
        %v896 = vrot.slane %v894, 4
        %v897 = vor.u32 %v893, %v896
        %v899 = vshrl.u32 %v544, 16
        %v901 = vrot.slane %v899, 3
        %v902 = vshll.u32 %v544, 16
        %v904 = vrot.slane %v902, 4
        %v905 = vor.u32 %v901, %v904
        %v906 = vsel %vm882, %v897, %v905
        %v908 = vshrl.u32 %v736, 16
        %v910 = vrot.slane %v908, 3
        %v911 = vshll.u32 %v736, 16
        %v913 = vrot.slane %v911, 4
        %v914 = vor.u32 %v910, %v913
        %v916 = vshrl.u32 %v738, 16
        %v918 = vrot.slane %v916, 3
        %v919 = vshll.u32 %v738, 16
        %v921 = vrot.slane %v919, 4
        %v922 = vor.u32 %v918, %v921
        %v923 = vsel %vm882, %v914, %v922
        %v924 = vrot.slane %v545, 3
        %v925 = vrot.slane %v541, 4
        %v926 = vor.u32 %v924, %v925
        %v927 = vsel %vm882, %v888, %v926
        %v929 = vshrl.u32 %v552, 16
        %v931 = vrot.slane %v929, 3
        %v932 = vshll.u32 %v552, 16
        %v934 = vrot.slane %v932, 4
        %v935 = vor.u32 %v931, %v934
        %v936 = vsel %vm882, %v905, %v935
        %v938 = vshrl.u32 %v740, 16
        %v940 = vrot.slane %v938, 3
        %v941 = vshll.u32 %v740, 16
        %v943 = vrot.slane %v941, 4
        %v944 = vor.u32 %v940, %v943
        %v945 = vsel %vm882, %v922, %v944
        %v946 = vrot.slane %v553, 3
        %v947 = vrot.slane %v549, 4
        %v948 = vor.u32 %v946, %v947
        %v949 = vsel %vm882, %v926, %v948
        %v951 = vshrl.u32 %v560, 16
        %v953 = vrot.slane %v951, 3
        %v954 = vshll.u32 %v560, 16
        %v956 = vrot.slane %v954, 4
        %v957 = vor.u32 %v953, %v956
        %v958 = vsel %vm882, %v935, %v957
        %v960 = vshrl.u32 %v742, 16
        %v962 = vrot.slane %v960, 3
        %v963 = vshll.u32 %v742, 16
        %v965 = vrot.slane %v963, 4
        %v966 = vor.u32 %v962, %v965
        %v967 = vsel %vm882, %v944, %v966
        %v968 = vrot.slane %v561, 3
        %v969 = vrot.slane %v557, 4
        %v970 = vor.u32 %v968, %v969
        %v971 = vsel %vm882, %v948, %v970
        %v973 = vshrl.u32 %v568, 16
        %v975 = vrot.slane %v973, 3
        %v976 = vshll.u32 %v568, 16
        %v978 = vrot.slane %v976, 4
        %v979 = vor.u32 %v975, %v978
        %v980 = vsel %vm882, %v957, %v979
        %v982 = vshrl.u32 %v744, 16
        %v984 = vrot.slane %v982, 3
        %v985 = vshll.u32 %v744, 16
        %v987 = vrot.slane %v985, 4
        %v988 = vor.u32 %v984, %v987
        %v989 = vsel %vm882, %v966, %v988
        %v990 = vrot.slane %v569, 3
        %v991 = vrot.slane %v565, 4
        %v992 = vor.u32 %v990, %v991
        %v993 = vsel %vm882, %v970, %v992
        %v995 = vshrl.u32 %v576, 16
        %v997 = vrot.slane %v995, 3
        %v998 = vshll.u32 %v576, 16
        %v1000 = vrot.slane %v998, 4
        %v1001 = vor.u32 %v997, %v1000
        %v1002 = vsel %vm882, %v979, %v1001
        %v1004 = vshrl.u32 %v746, 16
        %v1006 = vrot.slane %v1004, 3
        %v1007 = vshll.u32 %v746, 16
        %v1009 = vrot.slane %v1007, 4
        %v1010 = vor.u32 %v1006, %v1009
        %v1011 = vsel %vm882, %v988, %v1010
        %v1012 = vrot.slane %v577, 3
        %v1013 = vrot.slane %v573, 4
        %v1014 = vor.u32 %v1012, %v1013
        %v1015 = vsel %vm882, %v992, %v1014
        %v1017 = vshrl.u32 %v584, 16
        %v1019 = vrot.slane %v1017, 3
        %v1020 = vshll.u32 %v584, 16
        %v1022 = vrot.slane %v1020, 4
        %v1023 = vor.u32 %v1019, %v1022
        %v1024 = vsel %vm882, %v1001, %v1023
        %v1026 = vshrl.u32 %v748, 16
        %v1028 = vrot.slane %v1026, 3
        %v1029 = vshll.u32 %v748, 16
        %v1031 = vrot.slane %v1029, 4
        %v1032 = vor.u32 %v1028, %v1031
        %v1033 = vsel %vm882, %v1010, %v1032
        %v1034 = vrot.slane %v585, 3
        %v1035 = vrot.slane %v581, 4
        %v1036 = vor.u32 %v1034, %v1035
        %v1037 = vsel %vm882, %v1014, %v1036
        %v1039 = vshrl.u32 %v592, 16
        %v1041 = vrot.slane %v1039, 3
        %v1042 = vshll.u32 %v592, 16
        %v1044 = vrot.slane %v1042, 4
        %v1045 = vor.u32 %v1041, %v1044
        %v1046 = vsel %vm882, %v1023, %v1045
        %v1048 = vshrl.u32 %v750, 16
        %v1050 = vrot.slane %v1048, 3
        %v1051 = vshll.u32 %v750, 16
        %v1053 = vrot.slane %v1051, 4
        %v1054 = vor.u32 %v1050, %v1053
        %v1055 = vsel %vm882, %v1032, %v1054
        %v1056 = vrot.slane %v593, 3
        %v1057 = vrot.slane %v589, 4
        %v1058 = vor.u32 %v1056, %v1057
        %v1059 = vsel %vm882, %v1036, %v1058
        %v1061 = vshrl.u32 %v600, 16
        %v1063 = vrot.slane %v1061, 3
        %v1064 = vshll.u32 %v600, 16
        %v1066 = vrot.slane %v1064, 4
        %v1067 = vor.u32 %v1063, %v1066
        %v1068 = vsel %vm882, %v1045, %v1067
        %v1070 = vshrl.u32 %v752, 16
        %v1072 = vrot.slane %v1070, 3
        %v1073 = vshll.u32 %v752, 16
        %v1075 = vrot.slane %v1073, 4
        %v1076 = vor.u32 %v1072, %v1075
        %v1077 = vsel %vm882, %v1054, %v1076
        %v1078 = vrot.slane %v601, 3
        %v1079 = vrot.slane %v597, 4
        %v1080 = vor.u32 %v1078, %v1079
        %v1081 = vsel %vm882, %v1058, %v1080
        %v1083 = vshrl.u32 %v608, 16
        %v1085 = vrot.slane %v1083, 3
        %v1086 = vshll.u32 %v608, 16
        %v1088 = vrot.slane %v1086, 4
        %v1089 = vor.u32 %v1085, %v1088
        %v1090 = vsel %vm882, %v1067, %v1089
        %v1092 = vshrl.u32 %v754, 16
        %v1094 = vrot.slane %v1092, 3
        %v1095 = vshll.u32 %v754, 16
        %v1097 = vrot.slane %v1095, 4
        %v1098 = vor.u32 %v1094, %v1097
        %v1099 = vsel %vm882, %v1076, %v1098
        %v1100 = vrot.slane %v609, 3
        %v1101 = vrot.slane %v605, 4
        %v1102 = vor.u32 %v1100, %v1101
        %v1103 = vsel %vm882, %v1080, %v1102
        %v1105 = vshrl.u32 %v616, 16
        %v1107 = vrot.slane %v1105, 3
        %v1108 = vshll.u32 %v616, 16
        %v1110 = vrot.slane %v1108, 4
        %v1111 = vor.u32 %v1107, %v1110
        %v1112 = vsel %vm882, %v1089, %v1111
        %v1114 = vshrl.u32 %v756, 16
        %v1116 = vrot.slane %v1114, 3
        %v1117 = vshll.u32 %v756, 16
        %v1119 = vrot.slane %v1117, 4
        %v1120 = vor.u32 %v1116, %v1119
        %v1121 = vsel %vm882, %v1098, %v1120
        %v1122 = vrot.slane %v617, 3
        %v1123 = vrot.slane %v613, 4
        %v1124 = vor.u32 %v1122, %v1123
        %v1125 = vsel %vm882, %v1102, %v1124
        %v1127 = vshrl.u32 %v624, 16
        %v1129 = vrot.slane %v1127, 3
        %v1130 = vshll.u32 %v624, 16
        %v1132 = vrot.slane %v1130, 4
        %v1133 = vor.u32 %v1129, %v1132
        %v1134 = vsel %vm882, %v1111, %v1133
        %v1136 = vshrl.u32 %v758, 16
        %v1138 = vrot.slane %v1136, 3
        %v1139 = vshll.u32 %v758, 16
        %v1141 = vrot.slane %v1139, 4
        %v1142 = vor.u32 %v1138, %v1141
        %v1143 = vsel %vm882, %v1120, %v1142
        %v1144 = vrot.slane %v625, 3
        %v1145 = vrot.slane %v621, 4
        %v1146 = vor.u32 %v1144, %v1145
        %v1147 = vsel %vm882, %v1124, %v1146
        %v1149 = vshrl.u32 %v632, 16
        %v1151 = vrot.slane %v1149, 3
        %v1152 = vshll.u32 %v632, 16
        %v1154 = vrot.slane %v1152, 4
        %v1155 = vor.u32 %v1151, %v1154
        %v1156 = vsel %vm882, %v1133, %v1155
        %v1158 = vshrl.u32 %v760, 16
        %v1160 = vrot.slane %v1158, 3
        %v1161 = vshll.u32 %v760, 16
        %v1163 = vrot.slane %v1161, 4
        %v1164 = vor.u32 %v1160, %v1163
        %v1165 = vsel %vm882, %v1142, %v1164
        %v1166 = vrot.slane %v633, 3
        %v1167 = vrot.slane %v629, 4
        %v1168 = vor.u32 %v1166, %v1167
        %v1169 = vsel %vm882, %v1146, %v1168
        %v1171 = vshrl.u32 %v640, 16
        %v1173 = vrot.slane %v1171, 3
        %v1174 = vshll.u32 %v640, 16
        %v1176 = vrot.slane %v1174, 4
        %v1177 = vor.u32 %v1173, %v1176
        %v1178 = vsel %vm882, %v1155, %v1177
        %v1180 = vshrl.u32 %v762, 16
        %v1182 = vrot.slane %v1180, 3
        %v1183 = vshll.u32 %v762, 16
        %v1185 = vrot.slane %v1183, 4
        %v1186 = vor.u32 %v1182, %v1185
        %v1187 = vsel %vm882, %v1164, %v1186
        %v1188 = vrot.slane %v641, 3
        %v1189 = vrot.slane %v637, 4
        %v1190 = vor.u32 %v1188, %v1189
        %v1191 = vsel %vm882, %v1168, %v1190
        %v1193 = vshrl.u32 %v648, 16
        %v1195 = vrot.slane %v1193, 3
        %v1196 = vshll.u32 %v648, 16
        %v1198 = vrot.slane %v1196, 4
        %v1199 = vor.u32 %v1195, %v1198
        %v1200 = vsel %vm882, %v1177, %v1199
        %v1202 = vshrl.u32 %v764, 16
        %v1204 = vrot.slane %v1202, 3
        %v1205 = vshll.u32 %v764, 16
        %v1207 = vrot.slane %v1205, 4
        %v1208 = vor.u32 %v1204, %v1207
        %v1209 = vsel %vm882, %v1186, %v1208
        %v1210 = vrot.slane %v649, 3
        %v1211 = vrot.slane %v645, 4
        %v1212 = vor.u32 %v1210, %v1211
        %v1213 = vsel %vm882, %v1190, %v1212
        %v1215 = vshrl.u32 %v656, 16
        %v1217 = vrot.slane %v1215, 3
        %v1218 = vshll.u32 %v656, 16
        %v1220 = vrot.slane %v1218, 4
        %v1221 = vor.u32 %v1217, %v1220
        %v1222 = vsel %vm882, %v1199, %v1221
        %v1224 = vshrl.u32 %v766, 16
        %v1226 = vrot.slane %v1224, 3
        %v1227 = vshll.u32 %v766, 16
        %v1229 = vrot.slane %v1227, 4
        %v1230 = vor.u32 %v1226, %v1229
        %v1231 = vsel %vm882, %v1208, %v1230
        %v1232 = vrot.slane %v657, 3
        %v1233 = vrot.slane %v653, 4
        %v1234 = vor.u32 %v1232, %v1233
        %v1235 = vsel %vm882, %v1212, %v1234
        %v1237 = vshrl.u32 %v664, 16
        %v1239 = vrot.slane %v1237, 3
        %v1240 = vshll.u32 %v664, 16
        %v1242 = vrot.slane %v1240, 4
        %v1243 = vor.u32 %v1239, %v1242
        %v1244 = vsel %vm882, %v1221, %v1243
        %v1246 = vshrl.u32 %v768, 16
        %v1248 = vrot.slane %v1246, 3
        %v1249 = vshll.u32 %v768, 16
        %v1251 = vrot.slane %v1249, 4
        %v1252 = vor.u32 %v1248, %v1251
        %v1253 = vsel %vm882, %v1230, %v1252
        %v1254 = vrot.slane %v665, 3
        %v1255 = vrot.slane %v661, 4
        %v1256 = vor.u32 %v1254, %v1255
        %v1257 = vsel %vm882, %v1234, %v1256
        %v1259 = vshrl.u32 %v672, 16
        %v1261 = vrot.slane %v1259, 3
        %v1262 = vshll.u32 %v672, 16
        %v1264 = vrot.slane %v1262, 4
        %v1265 = vor.u32 %v1261, %v1264
        %v1266 = vsel %vm882, %v1243, %v1265
        %v1268 = vshrl.u32 %v770, 16
        %v1270 = vrot.slane %v1268, 3
        %v1271 = vshll.u32 %v770, 16
        %v1273 = vrot.slane %v1271, 4
        %v1274 = vor.u32 %v1270, %v1273
        %v1275 = vsel %vm882, %v1252, %v1274
        %v1276 = vrot.slane %v673, 3
        %v1277 = vrot.slane %v669, 4
        %v1278 = vor.u32 %v1276, %v1277
        %v1279 = vsel %vm882, %v1256, %v1278
        %v1281 = vshrl.u32 %v680, 16
        %v1283 = vrot.slane %v1281, 3
        %v1284 = vshll.u32 %v680, 16
        %v1286 = vrot.slane %v1284, 4
        %v1287 = vor.u32 %v1283, %v1286
        %v1288 = vsel %vm882, %v1265, %v1287
        %v1290 = vshrl.u32 %v772, 16
        %v1292 = vrot.slane %v1290, 3
        %v1293 = vshll.u32 %v772, 16
        %v1295 = vrot.slane %v1293, 4
        %v1296 = vor.u32 %v1292, %v1295
        %v1297 = vsel %vm882, %v1274, %v1296
        %v1298 = vrot.slane %v681, 3
        %v1299 = vrot.slane %v677, 4
        %v1300 = vor.u32 %v1298, %v1299
        %v1301 = vsel %vm882, %v1278, %v1300
        %v1303 = vshrl.u32 %v688, 16
        %v1305 = vrot.slane %v1303, 3
        %v1306 = vshll.u32 %v688, 16
        %v1308 = vrot.slane %v1306, 4
        %v1309 = vor.u32 %v1305, %v1308
        %v1310 = vsel %vm882, %v1287, %v1309
        %v1312 = vshrl.u32 %v774, 16
        %v1314 = vrot.slane %v1312, 3
        %v1315 = vshll.u32 %v774, 16
        %v1317 = vrot.slane %v1315, 4
        %v1318 = vor.u32 %v1314, %v1317
        %v1319 = vsel %vm882, %v1296, %v1318
        %v1320 = vrot.slane %v689, 3
        %v1321 = vrot.slane %v685, 4
        %v1322 = vor.u32 %v1320, %v1321
        %v1323 = vsel %vm882, %v1300, %v1322
        %v1325 = vshrl.u32 %v696, 16
        %v1327 = vrot.slane %v1325, 3
        %v1328 = vshll.u32 %v696, 16
        %v1330 = vrot.slane %v1328, 4
        %v1331 = vor.u32 %v1327, %v1330
        %v1332 = vsel %vm882, %v1309, %v1331
        %v1334 = vshrl.u32 %v776, 16
        %v1336 = vrot.slane %v1334, 3
        %v1337 = vshll.u32 %v776, 16
        %v1339 = vrot.slane %v1337, 4
        %v1340 = vor.u32 %v1336, %v1339
        %v1341 = vsel %vm882, %v1318, %v1340
        %v1342 = vrot.slane %v697, 3
        %v1343 = vrot.slane %v693, 4
        %v1344 = vor.u32 %v1342, %v1343
        %v1345 = vsel %vm882, %v1322, %v1344
        %v1347 = vshrl.u32 %v704, 16
        %v1349 = vrot.slane %v1347, 3
        %v1350 = vshll.u32 %v704, 16
        %v1352 = vrot.slane %v1350, 4
        %v1353 = vor.u32 %v1349, %v1352
        %v1354 = vsel %vm882, %v1331, %v1353
        %v1356 = vshrl.u32 %v778, 16
        %v1358 = vrot.slane %v1356, 3
        %v1359 = vshll.u32 %v778, 16
        %v1361 = vrot.slane %v1359, 4
        %v1362 = vor.u32 %v1358, %v1361
        %v1363 = vsel %vm882, %v1340, %v1362
        %v1364 = vrot.slane %v705, 3
        %v1365 = vrot.slane %v701, 4
        %v1366 = vor.u32 %v1364, %v1365
        %v1367 = vsel %vm882, %v1344, %v1366
        %v1369 = vshrl.u32 %v712, 16
        %v1371 = vrot.slane %v1369, 3
        %v1372 = vshll.u32 %v712, 16
        %v1374 = vrot.slane %v1372, 4
        %v1375 = vor.u32 %v1371, %v1374
        %v1376 = vsel %vm882, %v1353, %v1375
        %v1378 = vshrl.u32 %v780, 16
        %v1380 = vrot.slane %v1378, 3
        %v1381 = vshll.u32 %v780, 16
        %v1383 = vrot.slane %v1381, 4
        %v1384 = vor.u32 %v1380, %v1383
        %v1385 = vsel %vm882, %v1362, %v1384
        %v1386 = vrot.slane %v713, 3
        %v1387 = vrot.slane %v709, 4
        %v1388 = vor.u32 %v1386, %v1387
        %v1389 = vsel %vm882, %v1366, %v1388
        %v1391 = vshrl.u32 %v720, 16
        %v1393 = vrot.slane %v1391, 3
        %v1394 = vshll.u32 %v720, 16
        %v1396 = vrot.slane %v1394, 4
        %v1397 = vor.u32 %v1393, %v1396
        %v1398 = vsel %vm882, %v1375, %v1397
        %v1400 = vshrl.u32 %v782, 16
        %v1402 = vrot.slane %v1400, 3
        %v1403 = vshll.u32 %v782, 16
        %v1405 = vrot.slane %v1403, 4
        %v1406 = vor.u32 %v1402, %v1405
        %v1407 = vsel %vm882, %v1384, %v1406
        %v1528 = vunpack.c.l.b16 %v834
        %v1529 = vunpack.c.h.b16 %v834
        %v1530 = vunpack.c.l.b16 %v835
        %v1531 = vunpack.c.h.b16 %v835
        %v1532 = vunpack.c.l.b16 %v836
        %v1533 = vunpack.c.h.b16 %v836
        %v1534 = vunpack.c.l.b16 %v837
        %v1535 = vunpack.c.h.b16 %v837
        %v1536 = vunpack.c.l.b16 %v838
        %v1537 = vunpack.c.h.b16 %v838
        %v1538 = vunpack.c.l.b16 %v839
        %v1539 = vunpack.c.h.b16 %v839
        %v1540 = vunpack.c.l.b16 %v840
        %v1541 = vunpack.c.h.b16 %v840
        %v1542 = vunpack.c.l.b16 %v841
        %v1543 = vunpack.c.h.b16 %v841
        %v1544 = vunpack.c.l.b16 %v842
        %v1545 = vunpack.c.h.b16 %v842
        %v1546 = vunpack.c.l.b16 %v843
        %v1547 = vunpack.c.h.b16 %v843
        %v1548 = vunpack.c.l.b16 %v844
        %v1549 = vunpack.c.h.b16 %v844
        %v1550 = vunpack.c.l.b16 %v845
        %v1551 = vunpack.c.h.b16 %v845
        %v1552 = vunpack.c.l.b16 %v846
        %v1553 = vunpack.c.h.b16 %v846
        %v1554 = vunpack.c.l.b16 %v847
        %v1555 = vunpack.c.h.b16 %v847
        %v1556 = vunpack.c.l.b16 %v848
        %v1557 = vunpack.c.h.b16 %v848
        %v1558 = vunpack.c.l.b16 %v849
        %v1559 = vunpack.c.h.b16 %v849
        %v1560 = vunpack.c.l.b16 %v850
        %v1561 = vunpack.c.h.b16 %v850
        %v1562 = vunpack.c.l.b16 %v851
        %v1563 = vunpack.c.h.b16 %v851
        %v1564 = vunpack.c.l.b16 %v852
        %v1565 = vunpack.c.h.b16 %v852
        %v1566 = vunpack.c.l.b16 %v853
        %v1567 = vunpack.c.h.b16 %v853
        %v1568 = vunpack.c.l.b16 %v854
        %v1569 = vunpack.c.h.b16 %v854
        %v1570 = vunpack.c.l.b16 %v855
        %v1571 = vunpack.c.h.b16 %v855
        %v1572 = vunpack.c.l.b16 %v856
        %v1573 = vunpack.c.h.b16 %v856
        %v1574 = vunpack.c.l.b16 %v857
        %v1575 = vunpack.c.h.b16 %v857
        %v1576 = vunpack.c.l.b16 %v858
        %v1577 = vunpack.c.h.b16 %v858
        %v1578 = vunpack.c.l.b16 %v859
        %v1579 = vunpack.c.h.b16 %v859
        %v1580 = vunpack.c.l.b16 %v860
        %v1581 = vunpack.c.h.b16 %v860
        %v1582 = vunpack.c.l.b16 %v861
        %v1583 = vunpack.c.h.b16 %v861
        %v1584 = vunpack.c.l.b16 %v862
        %v1585 = vunpack.c.h.b16 %v862
        %v1586 = vunpack.c.l.b16 %v863
        %v1587 = vunpack.c.h.b16 %v863
        %v1588 = vunpack.c.l.b16 %v864
        %v1589 = vunpack.c.h.b16 %v864
        %v1590 = vunpack.c.l.b16 %v865
        %v1591 = vunpack.c.h.b16 %v865
        %v1592 = vunpack.c.l.b16 %v866
        %v1593 = vunpack.c.h.b16 %v866
        %v1594 = vunpack.c.l.b16 %v867
        %v1595 = vunpack.c.h.b16 %v867
        %v1596 = vunpack.c.l.b16 %v868
        %v1597 = vunpack.c.h.b16 %v868
        %v1598 = vunpack.c.l.b16 %v869
        %v1599 = vunpack.c.h.b16 %v869
        %v1600 = vunpack.c.l.b16 %v870
        %v1601 = vunpack.c.h.b16 %v870
        %v1602 = vunpack.c.l.b16 %v871
        %v1603 = vunpack.c.h.b16 %v871
        %v1604 = vunpack.c.l.b16 %v872
        %v1605 = vunpack.c.h.b16 %v872
        %v1606 = vunpack.c.l.b16 %v873
        %v1607 = vunpack.c.h.b16 %v873
        %v1608 = vunpack.c.l.b16 %v874
        %v1609 = vunpack.c.h.b16 %v874
        %v1610 = vunpack.c.l.b16 %v875
        %v1611 = vunpack.c.h.b16 %v875
        %v1612 = vunpack.c.l.b16 %v876
        %v1613 = vunpack.c.h.b16 %v876
        %v1614 = vunpack.c.l.b16 %v877
        %v1615 = vunpack.c.h.b16 %v877
        %v1616 = vunpack.c.l.b16 %v878
        %v1617 = vunpack.c.h.b16 %v878
        %v1618 = vunpack.c.l.b16 %v879
        %v1619 = vunpack.c.h.b16 %v879
        %v1620 = vunpack.c.l.b16 %v880
        %v1621 = vunpack.c.h.b16 %v880
        %v1622 = vunpack.c.l.b16 %v881
        %v1623 = vunpack.c.h.b16 %v881
        %v1624 = vpack.c.b16 %v1530, %v1528
        %v1625 = vpack.c.b16 %v1531, %v1529
        %v1626 = vpack.c.b16 %v1534, %v1532
        %v1627 = vpack.c.b16 %v1535, %v1533
        %v1628 = vpack.c.b16 %v1538, %v1536
        %v1629 = vpack.c.b16 %v1539, %v1537
        %v1630 = vpack.c.b16 %v1542, %v1540
        %v1631 = vpack.c.b16 %v1543, %v1541
        %v1632 = vpack.c.b16 %v1546, %v1544
        %v1633 = vpack.c.b16 %v1547, %v1545
        %v1634 = vpack.c.b16 %v1550, %v1548
        %v1635 = vpack.c.b16 %v1551, %v1549
        %v1636 = vpack.c.b16 %v1554, %v1552
        %v1637 = vpack.c.b16 %v1555, %v1553
        %v1638 = vpack.c.b16 %v1558, %v1556
        %v1639 = vpack.c.b16 %v1559, %v1557
        %v1640 = vpack.c.b16 %v1562, %v1560
        %v1641 = vpack.c.b16 %v1563, %v1561
        %v1642 = vpack.c.b16 %v1566, %v1564
        %v1643 = vpack.c.b16 %v1567, %v1565
        %v1644 = vpack.c.b16 %v1570, %v1568
        %v1645 = vpack.c.b16 %v1571, %v1569
        %v1646 = vpack.c.b16 %v1574, %v1572
        %v1647 = vpack.c.b16 %v1575, %v1573
        %v1648 = vpack.c.b16 %v1578, %v1576
        %v1649 = vpack.c.b16 %v1579, %v1577
        %v1650 = vpack.c.b16 %v1582, %v1580
        %v1651 = vpack.c.b16 %v1583, %v1581
        %v1652 = vpack.c.b16 %v1586, %v1584
        %v1653 = vpack.c.b16 %v1587, %v1585
        %v1654 = vpack.c.b16 %v1590, %v1588
        %v1655 = vpack.c.b16 %v1591, %v1589
        %v1656 = vpack.c.b16 %v1594, %v1592
        %v1657 = vpack.c.b16 %v1595, %v1593
        %v1658 = vpack.c.b16 %v1598, %v1596
        %v1659 = vpack.c.b16 %v1599, %v1597
        %v1660 = vpack.c.b16 %v1602, %v1600
        %v1661 = vpack.c.b16 %v1603, %v1601
        %v1662 = vpack.c.b16 %v1606, %v1604
        %v1663 = vpack.c.b16 %v1607, %v1605
        %v1664 = vpack.c.b16 %v1610, %v1608
        %v1665 = vpack.c.b16 %v1611, %v1609
        %v1666 = vpack.c.b16 %v1614, %v1612
        %v1667 = vpack.c.b16 %v1615, %v1613
        %v1668 = vpack.c.b16 %v1618, %v1616
        %v1669 = vpack.c.b16 %v1619, %v1617
        %v1670 = vpack.c.b16 %v1622, %v1620
        %v1671 = vpack.c.b16 %v1623, %v1621
        %1720 = vmatprep.subr.bf16.mxu0 %v1625
        %1721 = vmatpush1.bf16.msra.mxu0 %v1624
        %1722 = vmatprep.subr.bf16.mxu0 %v1627
        %1723 = vmatpush1.bf16.msra.mxu0 %v1626
        %1724 = vmatprep.subr.bf16.mxu0 %v1629
        %1725 = vmatpush1.bf16.msra.mxu0 %v1628
        %1726 = vmatprep.subr.bf16.mxu0 %v1631
        %1727 = vmatpush1.bf16.msra.mxu0 %v1630
        %1728 = vmatprep.subr.bf16.mxu0 %v1633
        %1729 = vmatpush1.bf16.msra.mxu0 %v1632
        %1730 = vmatprep.subr.bf16.mxu0 %v1635
        %1731 = vmatpush1.bf16.msra.mxu0 %v1634
        %1732 = vmatprep.subr.bf16.mxu0 %v1637
        %1733 = vmatpush1.bf16.msra.mxu0 %v1636
        %1734 = vmatprep.subr.bf16.mxu0 %v1639
        %1735 = vmatpush1.bf16.msra.mxu0 %v1638
        %1736 = vmatprep.subr.bf16.mxu0 %v1641
        %1737 = vmatpush1.bf16.msra.mxu0 %v1640
        %1738 = vmatprep.subr.bf16.mxu0 %v1643
        %1739 = vmatpush1.bf16.msra.mxu0 %v1642
        %1740 = vmatprep.subr.bf16.mxu0 %v1645
        %1741 = vmatpush1.bf16.msra.mxu0 %v1644
        %1742 = vmatprep.subr.bf16.mxu0 %v1647
        %1743 = vmatpush1.bf16.msra.mxu0 %v1646
        %1744 = vmatprep.subr.bf16.mxu0 %v1649
        %1745 = vmatpush1.bf16.msra.mxu0 %v1648
        %1746 = vmatprep.subr.bf16.mxu0 %v1651
        %1747 = vmatpush1.bf16.msra.mxu0 %v1650
        %1748 = vmatprep.subr.bf16.mxu0 %v1653
        %1749 = vmatpush1.bf16.msra.mxu0 %v1652
        %1750 = vmatprep.subr.bf16.mxu0 %v1655
        %1751 = vmatpush1.bf16.msra.mxu0 %v1654
        %1752 = vmatprep.mubr.bf16.mxu0 %v906
        %1753 = vmatmul.mubr.bf16.gmra.mrb[0].mxu0 %v889
        %v1754 = vpop.f32.mrb[0].mxu0
        %v1755 = vadd.f32 0.0, %v1754
        %v1756 = vpop.f32.mrb[0].mxu0
        %v1757 = vpop.f32.mrb[0].mxu0
        %v1758 = vadd.f32 0.0, %v1757
        %v1759 = vpop.f32.mrb[0].mxu0
        %1760 = vmatprep.mubr.bf16.mxu0 %v936
        %1761 = vmatmul.mubr.bf16.gmra.mrb[0].mxu0 %v927
        %v1762 = vpop.f32.mrb[0].mxu0
        %v1763 = vadd.f32 0.0, %v1762
        %v1764 = vpop.f32.mrb[0].mxu0
        %v1765 = vpop.f32.mrb[0].mxu0
        %v1766 = vadd.f32 0.0, %v1765
        %v1767 = vpop.f32.mrb[0].mxu0
        %v1768 = vadd.f32 0.0, %v1767
        %1769 = vmatprep.mubr.bf16.mxu0 %v958
        %1770 = vmatmul.mubr.bf16.gmra.mrb[0].mxu0 %v949
        %v1771 = vpop.f32.mrb[0].mxu0
        %v1772 = vadd.f32 0.0, %v1771
        %v1773 = vpop.f32.mrb[0].mxu0
        %v1774 = vadd.f32 0.0, %v1773
        %v1775 = vpop.f32.mrb[0].mxu0
        %v1776 = vadd.f32 0.0, %v1775
        %v1777 = vpop.f32.mrb[0].mxu0
        %v1778 = vadd.f32 0.0, %v1777
        %1779 = vmatprep.mubr.bf16.mxu0 %v980
        %1780 = vmatmul.mubr.bf16.gmra.mrb[0].mxu0 %v971
        %v1781 = vpop.f32.mrb[0].mxu0
        %v1782 = vadd.f32 0.0, %v1781
        %v1783 = vpop.f32.mrb[0].mxu0
        %v1784 = vadd.f32 0.0, %v1783
        %v1785 = vpop.f32.mrb[0].mxu0
        %v1786 = vadd.f32 0.0, %v1785
        %v1787 = vpop.f32.mrb[0].mxu0
        %v1788 = vadd.f32 0.0, %v1787
        %1789 = vmatprep.mubr.bf16.mxu0 %v1002
        %1790 = vmatmul.mubr.bf16.gmra.mrb[0].mxu0 %v993
        %v1791 = vpop.f32.mrb[0].mxu0
        %v1792 = vadd.f32 0.0, %v1791
        %v1793 = vpop.f32.mrb[0].mxu0
        %v1794 = vadd.f32 0.0, %v1793
        %v1795 = vpop.f32.mrb[0].mxu0
        %v1796 = vadd.f32 0.0, %v1795
        %v1797 = vpop.f32.mrb[0].mxu0
        %v1798 = vadd.f32 0.0, %v1797
        %1799 = vmatprep.mubr.bf16.mxu0 %v1024
        %1800 = vmatmul.mubr.bf16.gmra.mrb[0].mxu0 %v1015
        %v1801 = vpop.f32.mrb[0].mxu0
        %v1802 = vadd.f32 0.0, %v1801
        %v1803 = vpop.f32.mrb[0].mxu0
        %v1804 = vadd.f32 0.0, %v1803
        %v1805 = vpop.f32.mrb[0].mxu0
        %v1806 = vadd.f32 0.0, %v1805
        %v1807 = vpop.f32.mrb[0].mxu0
        %v1808 = vadd.f32 0.0, %v1807
        %1809 = vmatprep.mubr.bf16.mxu0 %v1046
        %1810 = vmatmul.mubr.bf16.gmra.mrb[0].mxu0 %v1037
        %v1811 = vpop.f32.mrb[0].mxu0
        %v1812 = vadd.f32 0.0, %v1811
        %v1813 = vpop.f32.mrb[0].mxu0
        %v1814 = vadd.f32 0.0, %v1813
        %v1815 = vpop.f32.mrb[0].mxu0
        %v1816 = vadd.f32 0.0, %v1815
        %v1817 = vpop.f32.mrb[0].mxu0
        %v1818 = vadd.f32 0.0, %v1817
        %1819 = vmatprep.mubr.bf16.mxu0 %v1068
        %1820 = vmatmul.mubr.bf16.gmra.mrb[0].mxu0 %v1059
        %v1821 = vpop.f32.mrb[0].mxu0
        %v1822 = vadd.f32 0.0, %v1821
        %v1823 = vpop.f32.mrb[0].mxu0
        %v1824 = vadd.f32 0.0, %v1823
        %v1825 = vpop.f32.mrb[0].mxu0
        %v1826 = vadd.f32 0.0, %v1825
        %v1827 = vpop.f32.mrb[0].mxu0
        %v1828 = vadd.f32 0.0, %v1827
        %1829 = vmatprep.mubr.bf16.mxu0 %v1090
        %1830 = vmatmul.mubr.bf16.gmra.mrb[0].mxu0 %v1081
        %v1831 = vpop.f32.mrb[0].mxu0
        %v1832 = vadd.f32 0.0, %v1831
        %v1833 = vpop.f32.mrb[0].mxu0
        %v1834 = vadd.f32 0.0, %v1833
        %v1835 = vpop.f32.mrb[0].mxu0
        %v1836 = vadd.f32 0.0, %v1835
        %v1837 = vpop.f32.mrb[0].mxu0
        %v1838 = vadd.f32 0.0, %v1837
        %1839 = vmatprep.mubr.bf16.mxu0 %v1112
        %1840 = vmatmul.mubr.bf16.gmra.mrb[0].mxu0 %v1103
        %v1841 = vpop.f32.mrb[0].mxu0
        %v1842 = vadd.f32 0.0, %v1841
        %v1843 = vpop.f32.mrb[0].mxu0
        %v1844 = vadd.f32 0.0, %v1843
        %v1845 = vpop.f32.mrb[0].mxu0
        %v1846 = vadd.f32 0.0, %v1845
        %v1847 = vpop.f32.mrb[0].mxu0
        %v1848 = vadd.f32 0.0, %v1847
        %1849 = vmatprep.mubr.bf16.mxu0 %v1134
        %1850 = vmatmul.mubr.bf16.gmra.mrb[0].mxu0 %v1125
        %v1851 = vpop.f32.mrb[0].mxu0
        %v1852 = vadd.f32 0.0, %v1851
        %v1853 = vpop.f32.mrb[0].mxu0
        %v1854 = vadd.f32 0.0, %v1853
        %v1855 = vpop.f32.mrb[0].mxu0
        %v1856 = vadd.f32 0.0, %v1855
        %v1857 = vpop.f32.mrb[0].mxu0
        %v1858 = vadd.f32 0.0, %v1857
        %1859 = vmatprep.mubr.bf16.mxu0 %v1156
        %1860 = vmatmul.mubr.bf16.gmra.mrb[0].mxu0 %v1147
        %v1861 = vpop.f32.mrb[0].mxu0
        %v1862 = vadd.f32 0.0, %v1861
        %v1863 = vpop.f32.mrb[0].mxu0
        %v1864 = vadd.f32 0.0, %v1863
        %v1865 = vpop.f32.mrb[0].mxu0
        %v1866 = vadd.f32 0.0, %v1865
        %v1867 = vpop.f32.mrb[0].mxu0
        %v1868 = vadd.f32 0.0, %v1867
        %1869 = vmatprep.mubr.bf16.mxu0 %v1178
        %1870 = vmatmul.mubr.bf16.gmra.mrb[0].mxu0 %v1169
        %v1871 = vpop.f32.mrb[0].mxu0
        %v1872 = vadd.f32 0.0, %v1871
        %v1873 = vpop.f32.mrb[0].mxu0
        %v1874 = vadd.f32 0.0, %v1873
        %v1875 = vpop.f32.mrb[0].mxu0
        %v1876 = vadd.f32 0.0, %v1875
        %v1877 = vpop.f32.mrb[0].mxu0
        %v1878 = vadd.f32 0.0, %v1877
        %1879 = vmatprep.mubr.bf16.mxu0 %v1200
        %1880 = vmatmul.mubr.bf16.gmra.mrb[0].mxu0 %v1191
        %v1881 = vpop.f32.mrb[0].mxu0
        %v1882 = vadd.f32 0.0, %v1881
        %v1883 = vpop.f32.mrb[0].mxu0
        %v1884 = vadd.f32 0.0, %v1883
        %v1885 = vpop.f32.mrb[0].mxu0
        %v1886 = vadd.f32 0.0, %v1885
        %v1887 = vpop.f32.mrb[0].mxu0
        %v1888 = vadd.f32 0.0, %v1887
        %1889 = vmatprep.mubr.bf16.mxu0 %v1222
        %1890 = vmatmul.mubr.bf16.gmra.mrb[0].mxu0 %v1213
        %v1891 = vpop.f32.mrb[0].mxu0
        %v1892 = vadd.f32 0.0, %v1891
        %v1893 = vpop.f32.mrb[0].mxu0
        %v1894 = vadd.f32 0.0, %v1893
        %v1895 = vpop.f32.mrb[0].mxu0
        %v1896 = vadd.f32 0.0, %v1895
        %v1897 = vpop.f32.mrb[0].mxu0
        %v1898 = vadd.f32 0.0, %v1897
        %1899 = vmatprep.mubr.bf16.mxu0 %v1244
        %1900 = vmatmul.mubr.bf16.gmra.mrb[0].mxu0 %v1235
        %v1901 = vpop.f32.mrb[0].mxu0
        %v1902 = vadd.f32 0.0, %v1901
        %v1903 = vpop.f32.mrb[0].mxu0
        %v1904 = vadd.f32 0.0, %v1903
        %v1905 = vpop.f32.mrb[0].mxu0
        %v1906 = vadd.f32 0.0, %v1905
        %v1907 = vpop.f32.mrb[0].mxu0
        %v1908 = vadd.f32 0.0, %v1907
        %1909 = vmatprep.mubr.bf16.mxu0 %v1266
        %1910 = vmatmul.mubr.bf16.gmra.mrb[0].mxu0 %v1257
        %v1911 = vpop.f32.mrb[0].mxu0
        %v1912 = vadd.f32 0.0, %v1911
        %v1913 = vpop.f32.mrb[0].mxu0
        %v1914 = vadd.f32 0.0, %v1913
        %v1915 = vpop.f32.mrb[0].mxu0
        %v1916 = vadd.f32 0.0, %v1915
        %v1917 = vpop.f32.mrb[0].mxu0
        %v1918 = vadd.f32 0.0, %v1917
        %1919 = vmatprep.mubr.bf16.mxu0 %v1288
        %1920 = vmatmul.mubr.bf16.gmra.mrb[0].mxu0 %v1279
        %v1921 = vpop.f32.mrb[0].mxu0
        %v1922 = vadd.f32 0.0, %v1921
        %v1923 = vpop.f32.mrb[0].mxu0
        %v1924 = vadd.f32 0.0, %v1923
        %v1925 = vpop.f32.mrb[0].mxu0
        %v1926 = vadd.f32 0.0, %v1925
        %v1927 = vpop.f32.mrb[0].mxu0
        %v1928 = vadd.f32 0.0, %v1927
        %1929 = vmatprep.mubr.bf16.mxu0 %v1310
        %1930 = vmatmul.mubr.bf16.gmra.mrb[0].mxu0 %v1301
        %v1931 = vpop.f32.mrb[0].mxu0
        %v1932 = vadd.f32 0.0, %v1931
        %v1933 = vpop.f32.mrb[0].mxu0
        %v1934 = vadd.f32 0.0, %v1933
        %v1935 = vpop.f32.mrb[0].mxu0
        %v1936 = vadd.f32 0.0, %v1935
        %v1937 = vpop.f32.mrb[0].mxu0
        %v1938 = vadd.f32 0.0, %v1937
        %1939 = vmatprep.mubr.bf16.mxu0 %v1332
        %1940 = vmatmul.mubr.bf16.gmra.mrb[0].mxu0 %v1323
        %v1941 = vpop.f32.mrb[0].mxu0
        %v1942 = vadd.f32 0.0, %v1941
        %v1943 = vpop.f32.mrb[0].mxu0
        %v1944 = vadd.f32 0.0, %v1943
        %v1945 = vpop.f32.mrb[0].mxu0
        %v1946 = vadd.f32 0.0, %v1945
        %v1947 = vpop.f32.mrb[0].mxu0
        %v1948 = vadd.f32 0.0, %v1947
        %1949 = vmatprep.mubr.bf16.mxu0 %v1354
        %1950 = vmatmul.mubr.bf16.gmra.mrb[0].mxu0 %v1345
        %v1951 = vpop.f32.mrb[0].mxu0
        %v1952 = vadd.f32 0.0, %v1951
        %v1953 = vpop.f32.mrb[0].mxu0
        %v1954 = vadd.f32 0.0, %v1953
        %v1955 = vpop.f32.mrb[0].mxu0
        %v1956 = vadd.f32 0.0, %v1955
        %v1957 = vpop.f32.mrb[0].mxu0
        %v1958 = vadd.f32 0.0, %v1957
        %1959 = vmatprep.mubr.bf16.mxu0 %v1376
        %1960 = vmatmul.mubr.bf16.gmra.mrb[0].mxu0 %v1367
        %v1961 = vpop.f32.mrb[0].mxu0
        %v1962 = vadd.f32 0.0, %v1961
        %v1963 = vpop.f32.mrb[0].mxu0
        %v1964 = vadd.f32 0.0, %v1963
        %v1965 = vpop.f32.mrb[0].mxu0
        %v1966 = vadd.f32 0.0, %v1965
        %v1967 = vpop.f32.mrb[0].mxu0
        %v1968 = vadd.f32 0.0, %v1967
        %1969 = vmatprep.mubr.bf16.mxu0 %v1398
        %1970 = vmatmul.mubr.bf16.gmra.mrb[0].mxu0 %v1389
        %v1971 = vpop.f32.mrb[0].mxu0
        %v1972 = vadd.f32 0.0, %v1971
        %v1973 = vpop.f32.mrb[0].mxu0
        %v1974 = vpop.f32.mrb[0].mxu0
        %v1975 = vadd.f32 0.0, %v1974
        %v1976 = vpop.f32.mrb[0].mxu0
        %1977 = vmatprep.mubr.bf16.mxu0 %v1397
        %1978 = vmatmul.mubr.bf16.gmra.mrb[0].mxu0 %v1388
        %v1979 = vpop.f32.mrb[0].mxu0
        %v1980 = vadd.f32 0.0, %v1979
        %v1981 = vpop.f32.mrb[0].mxu0
        %v1982 = vpop.f32.mrb[0].mxu0
        %v1983 = vpop.f32.mrb[0].mxu0
        %1984 = vdwg.mxu0
        %1985 = vmatprep.subr.bf16.mxu0 %v1657
        %1986 = vmatpush1.bf16.msra.mxu0 %v1656
        %1987 = vmatprep.subr.bf16.mxu0 %v1659
        %1988 = vmatpush1.bf16.msra.mxu0 %v1658
        %1989 = vmatprep.subr.bf16.mxu0 %v1661
        %1990 = vmatpush1.bf16.msra.mxu0 %v1660
        %1991 = vmatprep.subr.bf16.mxu0 %v1663
        %1992 = vmatpush1.bf16.msra.mxu0 %v1662
        %1993 = vmatprep.subr.bf16.mxu0 %v1665
        %1994 = vmatpush1.bf16.msra.mxu0 %v1664
        %1995 = vmatprep.subr.bf16.mxu0 %v1667
        %1996 = vmatpush1.bf16.msra.mxu0 %v1666
        %1997 = vmatprep.subr.bf16.mxu0 %v1669
        %1998 = vmatpush1.bf16.msra.mxu0 %v1668
        %1999 = vmatprep.subr.bf16.mxu0 %v1671
        %2000 = vmatpush1.bf16.msra.mxu0 %v1670
        %2001 = vmatprep.subr.bf16.mxu0 0
        %2002 = vmatpush1.bf16.msra.mxu0 0
        %2003 = vmatprep.subr.bf16.mxu0 0
        %2004 = vmatpush1.bf16.msra.mxu0 0
        %2005 = vmatprep.subr.bf16.mxu0 0
        %2006 = vmatpush1.bf16.msra.mxu0 0
        %2007 = vmatprep.subr.bf16.mxu0 0
        %2008 = vmatpush1.bf16.msra.mxu0 0
        %2009 = vmatprep.subr.bf16.mxu0 0
        %2010 = vmatpush1.bf16.msra.mxu0 0
        %2011 = vmatprep.subr.bf16.mxu0 0
        %2012 = vmatpush1.bf16.msra.mxu0 0
        %2013 = vmatprep.subr.bf16.mxu0 0
        %2014 = vmatpush1.bf16.msra.mxu0 0
        %2015 = vmatprep.subr.bf16.mxu0 0
        %2016 = vmatpush1.bf16.msra.mxu0 0
        %2017 = vmatprep.mubr.bf16.mxu0 0
        %2018 = vmatmul.mubr.bf16.gmra.mrb[0].mxu0 %v923
        %v2019 = vpop.f32.mrb[0].mxu0
        %v2020 = vadd.f32 %v1755, %v2019
        %v2021 = vpop.f32.mrb[0].mxu0
        %v2022 = vpop.f32.mrb[0].mxu0
        %v2023 = vadd.f32 %v1758, %v2022
        %v2024 = vpop.f32.mrb[0].mxu0
        %2025 = vmatprep.mubr.bf16.mxu0 0
        %2026 = vmatmul.mubr.bf16.gmra.mrb[0].mxu0 %v945
        %v2027 = vpop.f32.mrb[0].mxu0
        %v2028 = vadd.f32 %v1763, %v2027
        %v2029 = vpop.f32.mrb[0].mxu0
        %v2030 = vpop.f32.mrb[0].mxu0
        %v2031 = vadd.f32 %v1766, %v2030
        %v2032 = vpop.f32.mrb[0].mxu0
        %v2033 = vadd.f32 %v1768, %v2032
        %2034 = vmatprep.mubr.bf16.mxu0 0
        %2035 = vmatmul.mubr.bf16.gmra.mrb[0].mxu0 %v967
        %v2036 = vpop.f32.mrb[0].mxu0
        %v2037 = vadd.f32 %v1772, %v2036
        %v2038 = vpop.f32.mrb[0].mxu0
        %v2039 = vadd.f32 %v1774, %v2038
        %v2040 = vpop.f32.mrb[0].mxu0
        %v2041 = vadd.f32 %v1776, %v2040
        %v2042 = vpop.f32.mrb[0].mxu0
        %v2043 = vadd.f32 %v1778, %v2042
        %2044 = vmatprep.mubr.bf16.mxu0 0
        %2045 = vmatmul.mubr.bf16.gmra.mrb[0].mxu0 %v989
        %v2046 = vpop.f32.mrb[0].mxu0
        %v2047 = vadd.f32 %v1782, %v2046
        %v2048 = vpop.f32.mrb[0].mxu0
        %v2049 = vadd.f32 %v1784, %v2048
        %v2050 = vpop.f32.mrb[0].mxu0
        %v2051 = vadd.f32 %v1786, %v2050
        %v2052 = vpop.f32.mrb[0].mxu0
        %v2053 = vadd.f32 %v1788, %v2052
        %2054 = vmatprep.mubr.bf16.mxu0 0
        %2055 = vmatmul.mubr.bf16.gmra.mrb[0].mxu0 %v1011
        %v2056 = vpop.f32.mrb[0].mxu0
        %v2057 = vadd.f32 %v1792, %v2056
        %v2058 = vpop.f32.mrb[0].mxu0
        %v2059 = vadd.f32 %v1794, %v2058
        %v2060 = vpop.f32.mrb[0].mxu0
        %v2061 = vadd.f32 %v1796, %v2060
        %v2062 = vpop.f32.mrb[0].mxu0
        %v2063 = vadd.f32 %v1798, %v2062
        %2064 = vmatprep.mubr.bf16.mxu0 0
        %2065 = vmatmul.mubr.bf16.gmra.mrb[0].mxu0 %v1033
        %v2066 = vpop.f32.mrb[0].mxu0
        %v2067 = vadd.f32 %v1802, %v2066
        %v2068 = vpop.f32.mrb[0].mxu0
        %v2069 = vadd.f32 %v1804, %v2068
        %v2070 = vpop.f32.mrb[0].mxu0
        %v2071 = vadd.f32 %v1806, %v2070
        %v2072 = vpop.f32.mrb[0].mxu0
        %v2073 = vadd.f32 %v1808, %v2072
        %2074 = vmatprep.mubr.bf16.mxu0 0
        %2075 = vmatmul.mubr.bf16.gmra.mrb[0].mxu0 %v1055
        %v2076 = vpop.f32.mrb[0].mxu0
        %v2077 = vadd.f32 %v1812, %v2076
        %v2078 = vpop.f32.mrb[0].mxu0
        %v2079 = vadd.f32 %v1814, %v2078
        %v2080 = vpop.f32.mrb[0].mxu0
        %v2081 = vadd.f32 %v1816, %v2080
        %v2082 = vpop.f32.mrb[0].mxu0
        %v2083 = vadd.f32 %v1818, %v2082
        %2084 = vmatprep.mubr.bf16.mxu0 0
        %2085 = vmatmul.mubr.bf16.gmra.mrb[0].mxu0 %v1077
        %v2086 = vpop.f32.mrb[0].mxu0
        %v2087 = vadd.f32 %v1822, %v2086
        %v2088 = vpop.f32.mrb[0].mxu0
        %v2089 = vadd.f32 %v1824, %v2088
        %v2090 = vpop.f32.mrb[0].mxu0
        %v2091 = vadd.f32 %v1826, %v2090
        %v2092 = vpop.f32.mrb[0].mxu0
        %v2093 = vadd.f32 %v1828, %v2092
        %2094 = vmatprep.mubr.bf16.mxu0 0
        %2095 = vmatmul.mubr.bf16.gmra.mrb[0].mxu0 %v1099
        %v2096 = vpop.f32.mrb[0].mxu0
        %v2097 = vadd.f32 %v1832, %v2096
        %v2098 = vpop.f32.mrb[0].mxu0
        %v2099 = vadd.f32 %v1834, %v2098
        %v2100 = vpop.f32.mrb[0].mxu0
        %v2101 = vadd.f32 %v1836, %v2100
        %v2102 = vpop.f32.mrb[0].mxu0
        %v2103 = vadd.f32 %v1838, %v2102
        %2104 = vmatprep.mubr.bf16.mxu0 0
        %2105 = vmatmul.mubr.bf16.gmra.mrb[0].mxu0 %v1121
        %v2106 = vpop.f32.mrb[0].mxu0
        %v2107 = vadd.f32 %v1842, %v2106
        %v2108 = vpop.f32.mrb[0].mxu0
        %v2109 = vadd.f32 %v1844, %v2108
        %v2110 = vpop.f32.mrb[0].mxu0
        %v2111 = vadd.f32 %v1846, %v2110
        %v2112 = vpop.f32.mrb[0].mxu0
        %v2113 = vadd.f32 %v1848, %v2112
        %2114 = vmatprep.mubr.bf16.mxu0 0
        %2115 = vmatmul.mubr.bf16.gmra.mrb[0].mxu0 %v1143
        %v2116 = vpop.f32.mrb[0].mxu0
        %v2117 = vadd.f32 %v1852, %v2116
        %v2118 = vpop.f32.mrb[0].mxu0
        %v2119 = vadd.f32 %v1854, %v2118
        %v2120 = vpop.f32.mrb[0].mxu0
        %v2121 = vadd.f32 %v1856, %v2120
        %v2122 = vpop.f32.mrb[0].mxu0
        %v2123 = vadd.f32 %v1858, %v2122
        %2124 = vmatprep.mubr.bf16.mxu0 0
        %2125 = vmatmul.mubr.bf16.gmra.mrb[0].mxu0 %v1165
        %v2126 = vpop.f32.mrb[0].mxu0
        %v2127 = vadd.f32 %v1862, %v2126
        %v2128 = vpop.f32.mrb[0].mxu0
        %v2129 = vadd.f32 %v1864, %v2128
        %v2130 = vpop.f32.mrb[0].mxu0
        %v2131 = vadd.f32 %v1866, %v2130
        %v2132 = vpop.f32.mrb[0].mxu0
        %v2133 = vadd.f32 %v1868, %v2132
        %2134 = vmatprep.mubr.bf16.mxu0 0
        %2135 = vmatmul.mubr.bf16.gmra.mrb[0].mxu0 %v1187
        %v2136 = vpop.f32.mrb[0].mxu0
        %v2137 = vadd.f32 %v1872, %v2136
        %v2138 = vpop.f32.mrb[0].mxu0
        %v2139 = vadd.f32 %v1874, %v2138
        %v2140 = vpop.f32.mrb[0].mxu0
        %v2141 = vadd.f32 %v1876, %v2140
        %v2142 = vpop.f32.mrb[0].mxu0
        %v2143 = vadd.f32 %v1878, %v2142
        %2144 = vmatprep.mubr.bf16.mxu0 0
        %2145 = vmatmul.mubr.bf16.gmra.mrb[0].mxu0 %v1209
        %v2146 = vpop.f32.mrb[0].mxu0
        %v2147 = vadd.f32 %v1882, %v2146
        %v2148 = vpop.f32.mrb[0].mxu0
        %v2149 = vadd.f32 %v1884, %v2148
        %v2150 = vpop.f32.mrb[0].mxu0
        %v2151 = vadd.f32 %v1886, %v2150
        %v2152 = vpop.f32.mrb[0].mxu0
        %v2153 = vadd.f32 %v1888, %v2152
        %2154 = vmatprep.mubr.bf16.mxu0 0
        %2155 = vmatmul.mubr.bf16.gmra.mrb[0].mxu0 %v1231
        %v2156 = vpop.f32.mrb[0].mxu0
        %v2157 = vadd.f32 %v1892, %v2156
        %v2158 = vpop.f32.mrb[0].mxu0
        %v2159 = vadd.f32 %v1894, %v2158
        %v2160 = vpop.f32.mrb[0].mxu0
        %v2161 = vadd.f32 %v1896, %v2160
        %v2162 = vpop.f32.mrb[0].mxu0
        %v2163 = vadd.f32 %v1898, %v2162
        %2164 = vmatprep.mubr.bf16.mxu0 0
        %2165 = vmatmul.mubr.bf16.gmra.mrb[0].mxu0 %v1253
        %v2166 = vpop.f32.mrb[0].mxu0
        %v2167 = vadd.f32 %v1902, %v2166
        %v2168 = vpop.f32.mrb[0].mxu0
        %v2169 = vadd.f32 %v1904, %v2168
        %v2170 = vpop.f32.mrb[0].mxu0
        %v2171 = vadd.f32 %v1906, %v2170
        %v2172 = vpop.f32.mrb[0].mxu0
        %v2173 = vadd.f32 %v1908, %v2172
        %2174 = vmatprep.mubr.bf16.mxu0 0
        %2175 = vmatmul.mubr.bf16.gmra.mrb[0].mxu0 %v1275
        %v2176 = vpop.f32.mrb[0].mxu0
        %v2177 = vadd.f32 %v1912, %v2176
        %v2178 = vpop.f32.mrb[0].mxu0
        %v2179 = vadd.f32 %v1914, %v2178
        %v2180 = vpop.f32.mrb[0].mxu0
        %v2181 = vadd.f32 %v1916, %v2180
        %v2182 = vpop.f32.mrb[0].mxu0
        %v2183 = vadd.f32 %v1918, %v2182
        %2184 = vmatprep.mubr.bf16.mxu0 0
        %2185 = vmatmul.mubr.bf16.gmra.mrb[0].mxu0 %v1297
        %v2186 = vpop.f32.mrb[0].mxu0
        %v2187 = vadd.f32 %v1922, %v2186
        %v2188 = vpop.f32.mrb[0].mxu0
        %v2189 = vadd.f32 %v1924, %v2188
        %v2190 = vpop.f32.mrb[0].mxu0
        %v2191 = vadd.f32 %v1926, %v2190
        %v2192 = vpop.f32.mrb[0].mxu0
        %v2193 = vadd.f32 %v1928, %v2192
        %2194 = vmatprep.mubr.bf16.mxu0 0
        %2195 = vmatmul.mubr.bf16.gmra.mrb[0].mxu0 %v1319
        %v2196 = vpop.f32.mrb[0].mxu0
        %v2197 = vadd.f32 %v1932, %v2196
        %v2198 = vpop.f32.mrb[0].mxu0
        %v2199 = vadd.f32 %v1934, %v2198
        %v2200 = vpop.f32.mrb[0].mxu0
        %v2201 = vadd.f32 %v1936, %v2200
        %v2202 = vpop.f32.mrb[0].mxu0
        %v2203 = vadd.f32 %v1938, %v2202
        %2204 = vmatprep.mubr.bf16.mxu0 0
        %2205 = vmatmul.mubr.bf16.gmra.mrb[0].mxu0 %v1341
        %v2206 = vpop.f32.mrb[0].mxu0
        %v2207 = vadd.f32 %v1942, %v2206
        %v2208 = vpop.f32.mrb[0].mxu0
        %v2209 = vadd.f32 %v1944, %v2208
        %v2210 = vpop.f32.mrb[0].mxu0
        %v2211 = vadd.f32 %v1946, %v2210
        %v2212 = vpop.f32.mrb[0].mxu0
        %v2213 = vadd.f32 %v1948, %v2212
        %2214 = vmatprep.mubr.bf16.mxu0 0
        %2215 = vmatmul.mubr.bf16.gmra.mrb[0].mxu0 %v1363
        %v2216 = vpop.f32.mrb[0].mxu0
        %v2217 = vadd.f32 %v1952, %v2216
        %v2218 = vpop.f32.mrb[0].mxu0
        %v2219 = vadd.f32 %v1954, %v2218
        %v2220 = vpop.f32.mrb[0].mxu0
        %v2221 = vadd.f32 %v1956, %v2220
        %v2222 = vpop.f32.mrb[0].mxu0
        %v2223 = vadd.f32 %v1958, %v2222
        %2224 = vmatprep.mubr.bf16.mxu0 0
        %2225 = vmatmul.mubr.bf16.gmra.mrb[0].mxu0 %v1385
        %v2226 = vpop.f32.mrb[0].mxu0
        %v2227 = vadd.f32 %v1962, %v2226
        %v2228 = vpop.f32.mrb[0].mxu0
        %v2229 = vadd.f32 %v1964, %v2228
        %v2230 = vpop.f32.mrb[0].mxu0
        %v2231 = vadd.f32 %v1966, %v2230
        %v2232 = vpop.f32.mrb[0].mxu0
        %v2233 = vadd.f32 %v1968, %v2232
        %2234 = vmatprep.mubr.bf16.mxu0 0
        %2235 = vmatmul.mubr.bf16.gmra.mrb[0].mxu0 %v1407
        %v2236 = vpop.f32.mrb[0].mxu0
        %v2237 = vadd.f32 %v1972, %v2236
        %v2238 = vpop.f32.mrb[0].mxu0
        %v2239 = vpop.f32.mrb[0].mxu0
        %v2240 = vadd.f32 %v1975, %v2239
        %v2241 = vpop.f32.mrb[0].mxu0
        %2242 = vmatprep.mubr.bf16.mxu0 0
        %2243 = vmatmul.mubr.bf16.gmra.mrb[0].mxu0 %v1406
        %v2244 = vpop.f32.mrb[0].mxu0
        %v2245 = vadd.f32 %v1980, %v2244
        %v2246 = vpop.f32.mrb[0].mxu0
        %v2247 = vpop.f32.mrb[0].mxu0
        %v2248 = vpop.f32.mrb[0].mxu0
        %2249 = vdwg.mxu0
        %vm2250 = vsmask.f32 5376
        %v2251 = vrot.slane %v518, 2
        %v2252 = vrot.slane %v520, 3
        %v2253 = vor.u32 %v2251, %v2252
        %v2254 = vrot.slane %v529, 2
        %v2255 = vrot.slane %v525, 3
        %v2256 = vor.u32 %v2254, %v2255
        %v2257 = vsel %vm2250, %v2253, %v2256
        %v2259 = vshrl.u32 %v528, 16
        %v2261 = vrot.slane %v2259, 2
        %v2262 = vshll.u32 %v528, 16
        %v2264 = vrot.slane %v2262, 3
        %v2265 = vor.u32 %v2261, %v2264
        %v2266 = vrot.slane %v891, 2
        %v2267 = vrot.slane %v894, 3
        %v2268 = vor.u32 %v2266, %v2267
        %v2269 = vsel %vm2250, %v2265, %v2268
        %v2271 = vshrl.u32 %v734, 16
        %v2273 = vrot.slane %v2271, 2
        %v2274 = vshll.u32 %v734, 16
        %v2276 = vrot.slane %v2274, 3
        %v2277 = vor.u32 %v2273, %v2276
        %v2278 = vrot.slane %v908, 2
        %v2279 = vrot.slane %v911, 3
        %v2280 = vor.u32 %v2278, %v2279
        %v2281 = vsel %vm2250, %v2277, %v2280
        %v2282 = vrot.slane %v537, 2
        %v2283 = vrot.slane %v533, 3
        %v2284 = vor.u32 %v2282, %v2283
        %v2285 = vsel %vm2250, %v2256, %v2284
        %v2286 = vrot.slane %v899, 2
        %v2287 = vrot.slane %v902, 3
        %v2288 = vor.u32 %v2286, %v2287
        %v2289 = vsel %vm2250, %v2268, %v2288
        %v2290 = vrot.slane %v916, 2
        %v2291 = vrot.slane %v919, 3
        %v2292 = vor.u32 %v2290, %v2291
        %v2293 = vsel %vm2250, %v2280, %v2292
        %v2294 = vrot.slane %v545, 2
        %v2295 = vrot.slane %v541, 3
        %v2296 = vor.u32 %v2294, %v2295
        %v2297 = vsel %vm2250, %v2284, %v2296
        %v2298 = vrot.slane %v929, 2
        %v2299 = vrot.slane %v932, 3
        %v2300 = vor.u32 %v2298, %v2299
        %v2301 = vsel %vm2250, %v2288, %v2300
        %v2302 = vrot.slane %v938, 2
        %v2303 = vrot.slane %v941, 3
        %v2304 = vor.u32 %v2302, %v2303
        %v2305 = vsel %vm2250, %v2292, %v2304
        %v2306 = vrot.slane %v553, 2
        %v2307 = vrot.slane %v549, 3
        %v2308 = vor.u32 %v2306, %v2307
        %v2309 = vsel %vm2250, %v2296, %v2308
        %v2310 = vrot.slane %v951, 2
        %v2311 = vrot.slane %v954, 3
        %v2312 = vor.u32 %v2310, %v2311
        %v2313 = vsel %vm2250, %v2300, %v2312
        %v2314 = vrot.slane %v960, 2
        %v2315 = vrot.slane %v963, 3
        %v2316 = vor.u32 %v2314, %v2315
        %v2317 = vsel %vm2250, %v2304, %v2316
        %v2318 = vrot.slane %v561, 2
        %v2319 = vrot.slane %v557, 3
        %v2320 = vor.u32 %v2318, %v2319
        %v2321 = vsel %vm2250, %v2308, %v2320
        %v2322 = vrot.slane %v973, 2
        %v2323 = vrot.slane %v976, 3
        %v2324 = vor.u32 %v2322, %v2323
        %v2325 = vsel %vm2250, %v2312, %v2324
        %v2326 = vrot.slane %v982, 2
        %v2327 = vrot.slane %v985, 3
        %v2328 = vor.u32 %v2326, %v2327
        %v2329 = vsel %vm2250, %v2316, %v2328
        %v2330 = vrot.slane %v569, 2
        %v2331 = vrot.slane %v565, 3
        %v2332 = vor.u32 %v2330, %v2331
        %v2333 = vsel %vm2250, %v2320, %v2332
        %v2334 = vrot.slane %v995, 2
        %v2335 = vrot.slane %v998, 3
        %v2336 = vor.u32 %v2334, %v2335
        %v2337 = vsel %vm2250, %v2324, %v2336
        %v2338 = vrot.slane %v1004, 2
        %v2339 = vrot.slane %v1007, 3
        %v2340 = vor.u32 %v2338, %v2339
        %v2341 = vsel %vm2250, %v2328, %v2340
        %v2342 = vrot.slane %v577, 2
        %v2343 = vrot.slane %v573, 3
        %v2344 = vor.u32 %v2342, %v2343
        %v2345 = vsel %vm2250, %v2332, %v2344
        %v2346 = vrot.slane %v1017, 2
        %v2347 = vrot.slane %v1020, 3
        %v2348 = vor.u32 %v2346, %v2347
        %v2349 = vsel %vm2250, %v2336, %v2348
        %v2350 = vrot.slane %v1026, 2
        %v2351 = vrot.slane %v1029, 3
        %v2352 = vor.u32 %v2350, %v2351
        %v2353 = vsel %vm2250, %v2340, %v2352
        %v2354 = vrot.slane %v585, 2
        %v2355 = vrot.slane %v581, 3
        %v2356 = vor.u32 %v2354, %v2355
        %v2357 = vsel %vm2250, %v2344, %v2356
        %v2358 = vrot.slane %v1039, 2
        %v2359 = vrot.slane %v1042, 3
        %v2360 = vor.u32 %v2358, %v2359
        %v2361 = vsel %vm2250, %v2348, %v2360
        %v2362 = vrot.slane %v1048, 2
        %v2363 = vrot.slane %v1051, 3
        %v2364 = vor.u32 %v2362, %v2363
        %v2365 = vsel %vm2250, %v2352, %v2364
        %v2366 = vrot.slane %v593, 2
        %v2367 = vrot.slane %v589, 3
        %v2368 = vor.u32 %v2366, %v2367
        %v2369 = vsel %vm2250, %v2356, %v2368
        %v2370 = vrot.slane %v1061, 2
        %v2371 = vrot.slane %v1064, 3
        %v2372 = vor.u32 %v2370, %v2371
        %v2373 = vsel %vm2250, %v2360, %v2372
        %v2374 = vrot.slane %v1070, 2
        %v2375 = vrot.slane %v1073, 3
        %v2376 = vor.u32 %v2374, %v2375
        %v2377 = vsel %vm2250, %v2364, %v2376
        %v2378 = vrot.slane %v601, 2
        %v2379 = vrot.slane %v597, 3
        %v2380 = vor.u32 %v2378, %v2379
        %v2381 = vsel %vm2250, %v2368, %v2380
        %v2382 = vrot.slane %v1083, 2
        %v2383 = vrot.slane %v1086, 3
        %v2384 = vor.u32 %v2382, %v2383
        %v2385 = vsel %vm2250, %v2372, %v2384
        %v2386 = vrot.slane %v1092, 2
        %v2387 = vrot.slane %v1095, 3
        %v2388 = vor.u32 %v2386, %v2387
        %v2389 = vsel %vm2250, %v2376, %v2388
        %v2390 = vrot.slane %v609, 2
        %v2391 = vrot.slane %v605, 3
        %v2392 = vor.u32 %v2390, %v2391
        %v2393 = vsel %vm2250, %v2380, %v2392
        %v2394 = vrot.slane %v1105, 2
        %v2395 = vrot.slane %v1108, 3
        %v2396 = vor.u32 %v2394, %v2395
        %v2397 = vsel %vm2250, %v2384, %v2396
        %v2398 = vrot.slane %v1114, 2
        %v2399 = vrot.slane %v1117, 3
        %v2400 = vor.u32 %v2398, %v2399
        %v2401 = vsel %vm2250, %v2388, %v2400
        %v2402 = vrot.slane %v617, 2
        %v2403 = vrot.slane %v613, 3
        %v2404 = vor.u32 %v2402, %v2403
        %v2405 = vsel %vm2250, %v2392, %v2404
        %v2406 = vrot.slane %v1127, 2
        %v2407 = vrot.slane %v1130, 3
        %v2408 = vor.u32 %v2406, %v2407
        %v2409 = vsel %vm2250, %v2396, %v2408
        %v2410 = vrot.slane %v1136, 2
        %v2411 = vrot.slane %v1139, 3
        %v2412 = vor.u32 %v2410, %v2411
        %v2413 = vsel %vm2250, %v2400, %v2412
        %v2414 = vrot.slane %v625, 2
        %v2415 = vrot.slane %v621, 3
        %v2416 = vor.u32 %v2414, %v2415
        %v2417 = vsel %vm2250, %v2404, %v2416
        %v2418 = vrot.slane %v1149, 2
        %v2419 = vrot.slane %v1152, 3
        %v2420 = vor.u32 %v2418, %v2419
        %v2421 = vsel %vm2250, %v2408, %v2420
        %v2422 = vrot.slane %v1158, 2
        %v2423 = vrot.slane %v1161, 3
        %v2424 = vor.u32 %v2422, %v2423
        %v2425 = vsel %vm2250, %v2412, %v2424
        %v2426 = vrot.slane %v633, 2
        %v2427 = vrot.slane %v629, 3
        %v2428 = vor.u32 %v2426, %v2427
        %v2429 = vsel %vm2250, %v2416, %v2428
        %v2430 = vrot.slane %v1171, 2
        %v2431 = vrot.slane %v1174, 3
        %v2432 = vor.u32 %v2430, %v2431
        %v2433 = vsel %vm2250, %v2420, %v2432
        %v2434 = vrot.slane %v1180, 2
        %v2435 = vrot.slane %v1183, 3
        %v2436 = vor.u32 %v2434, %v2435
        %v2437 = vsel %vm2250, %v2424, %v2436
        %v2438 = vrot.slane %v641, 2
        %v2439 = vrot.slane %v637, 3
        %v2440 = vor.u32 %v2438, %v2439
        %v2441 = vsel %vm2250, %v2428, %v2440
        %v2442 = vrot.slane %v1193, 2
        %v2443 = vrot.slane %v1196, 3
        %v2444 = vor.u32 %v2442, %v2443
        %v2445 = vsel %vm2250, %v2432, %v2444
        %v2446 = vrot.slane %v1202, 2
        %v2447 = vrot.slane %v1205, 3
        %v2448 = vor.u32 %v2446, %v2447
        %v2449 = vsel %vm2250, %v2436, %v2448
        %v2450 = vrot.slane %v649, 2
        %v2451 = vrot.slane %v645, 3
        %v2452 = vor.u32 %v2450, %v2451
        %v2453 = vsel %vm2250, %v2440, %v2452
        %v2454 = vrot.slane %v1215, 2
        %v2455 = vrot.slane %v1218, 3
        %v2456 = vor.u32 %v2454, %v2455
        %v2457 = vsel %vm2250, %v2444, %v2456
        %v2458 = vrot.slane %v1224, 2
        %v2459 = vrot.slane %v1227, 3
        %v2460 = vor.u32 %v2458, %v2459
        %v2461 = vsel %vm2250, %v2448, %v2460
        %v2462 = vrot.slane %v657, 2
        %v2463 = vrot.slane %v653, 3
        %v2464 = vor.u32 %v2462, %v2463
        %v2465 = vsel %vm2250, %v2452, %v2464
        %v2466 = vrot.slane %v1237, 2
        %v2467 = vrot.slane %v1240, 3
        %v2468 = vor.u32 %v2466, %v2467
        %v2469 = vsel %vm2250, %v2456, %v2468
        %v2470 = vrot.slane %v1246, 2
        %v2471 = vrot.slane %v1249, 3
        %v2472 = vor.u32 %v2470, %v2471
        %v2473 = vsel %vm2250, %v2460, %v2472
        %v2474 = vrot.slane %v665, 2
        %v2475 = vrot.slane %v661, 3
        %v2476 = vor.u32 %v2474, %v2475
        %v2477 = vsel %vm2250, %v2464, %v2476
        %v2478 = vrot.slane %v1259, 2
        %v2479 = vrot.slane %v1262, 3
        %v2480 = vor.u32 %v2478, %v2479
        %v2481 = vsel %vm2250, %v2468, %v2480
        %v2482 = vrot.slane %v1268, 2
        %v2483 = vrot.slane %v1271, 3
        %v2484 = vor.u32 %v2482, %v2483
        %v2485 = vsel %vm2250, %v2472, %v2484
        %v2486 = vrot.slane %v673, 2
        %v2487 = vrot.slane %v669, 3
        %v2488 = vor.u32 %v2486, %v2487
        %v2489 = vsel %vm2250, %v2476, %v2488
        %v2490 = vrot.slane %v1281, 2
        %v2491 = vrot.slane %v1284, 3
        %v2492 = vor.u32 %v2490, %v2491
        %v2493 = vsel %vm2250, %v2480, %v2492
        %v2494 = vrot.slane %v1290, 2
        %v2495 = vrot.slane %v1293, 3
        %v2496 = vor.u32 %v2494, %v2495
        %v2497 = vsel %vm2250, %v2484, %v2496
        %v2498 = vrot.slane %v681, 2
        %v2499 = vrot.slane %v677, 3
        %v2500 = vor.u32 %v2498, %v2499
        %v2501 = vsel %vm2250, %v2488, %v2500
        %v2502 = vrot.slane %v1303, 2
        %v2503 = vrot.slane %v1306, 3
        %v2504 = vor.u32 %v2502, %v2503
        %v2505 = vsel %vm2250, %v2492, %v2504
        %v2506 = vrot.slane %v1312, 2
        %v2507 = vrot.slane %v1315, 3
        %v2508 = vor.u32 %v2506, %v2507
        %v2509 = vsel %vm2250, %v2496, %v2508
        %v2510 = vrot.slane %v689, 2
        %v2511 = vrot.slane %v685, 3
        %v2512 = vor.u32 %v2510, %v2511
        %v2513 = vsel %vm2250, %v2500, %v2512
        %v2514 = vrot.slane %v1325, 2
        %v2515 = vrot.slane %v1328, 3
        %v2516 = vor.u32 %v2514, %v2515
        %v2517 = vsel %vm2250, %v2504, %v2516
        %v2518 = vrot.slane %v1334, 2
        %v2519 = vrot.slane %v1337, 3
        %v2520 = vor.u32 %v2518, %v2519
        %v2521 = vsel %vm2250, %v2508, %v2520
        %v2522 = vrot.slane %v697, 2
        %v2523 = vrot.slane %v693, 3
        %v2524 = vor.u32 %v2522, %v2523
        %v2525 = vsel %vm2250, %v2512, %v2524
        %v2526 = vrot.slane %v1347, 2
        %v2527 = vrot.slane %v1350, 3
        %v2528 = vor.u32 %v2526, %v2527
        %v2529 = vsel %vm2250, %v2516, %v2528
        %v2530 = vrot.slane %v1356, 2
        %v2531 = vrot.slane %v1359, 3
        %v2532 = vor.u32 %v2530, %v2531
        %v2533 = vsel %vm2250, %v2520, %v2532
        %v2534 = vrot.slane %v705, 2
        %v2535 = vrot.slane %v701, 3
        %v2536 = vor.u32 %v2534, %v2535
        %v2537 = vsel %vm2250, %v2524, %v2536
        %v2538 = vrot.slane %v1369, 2
        %v2539 = vrot.slane %v1372, 3
        %v2540 = vor.u32 %v2538, %v2539
        %v2541 = vsel %vm2250, %v2528, %v2540
        %v2542 = vrot.slane %v1378, 2
        %v2543 = vrot.slane %v1381, 3
        %v2544 = vor.u32 %v2542, %v2543
        %v2545 = vsel %vm2250, %v2532, %v2544
        %v2666 = vunpack.c.l.b16 %v785
        %v2667 = vunpack.c.h.b16 %v785
        %v2668 = vunpack.c.l.b16 %v786
        %v2669 = vunpack.c.h.b16 %v786
        %v2670 = vunpack.c.l.b16 %v787
        %v2671 = vunpack.c.h.b16 %v787
        %v2672 = vunpack.c.l.b16 %v788
        %v2673 = vunpack.c.h.b16 %v788
        %v2674 = vunpack.c.l.b16 %v789
        %v2675 = vunpack.c.h.b16 %v789
        %v2676 = vunpack.c.l.b16 %v790
        %v2677 = vunpack.c.h.b16 %v790
        %v2678 = vunpack.c.l.b16 %v791
        %v2679 = vunpack.c.h.b16 %v791
        %v2680 = vunpack.c.l.b16 %v792
        %v2681 = vunpack.c.h.b16 %v792
        %v2682 = vunpack.c.l.b16 %v793
        %v2683 = vunpack.c.h.b16 %v793
        %v2684 = vunpack.c.l.b16 %v794
        %v2685 = vunpack.c.h.b16 %v794
        %v2686 = vunpack.c.l.b16 %v795
        %v2687 = vunpack.c.h.b16 %v795
        %v2688 = vunpack.c.l.b16 %v796
        %v2689 = vunpack.c.h.b16 %v796
        %v2690 = vunpack.c.l.b16 %v797
        %v2691 = vunpack.c.h.b16 %v797
        %v2692 = vunpack.c.l.b16 %v798
        %v2693 = vunpack.c.h.b16 %v798
        %v2694 = vunpack.c.l.b16 %v799
        %v2695 = vunpack.c.h.b16 %v799
        %v2696 = vunpack.c.l.b16 %v800
        %v2697 = vunpack.c.h.b16 %v800
        %v2698 = vunpack.c.l.b16 %v801
        %v2699 = vunpack.c.h.b16 %v801
        %v2700 = vunpack.c.l.b16 %v802
        %v2701 = vunpack.c.h.b16 %v802
        %v2702 = vunpack.c.l.b16 %v803
        %v2703 = vunpack.c.h.b16 %v803
        %v2704 = vunpack.c.l.b16 %v804
        %v2705 = vunpack.c.h.b16 %v804
        %v2706 = vunpack.c.l.b16 %v805
        %v2707 = vunpack.c.h.b16 %v805
        %v2708 = vunpack.c.l.b16 %v806
        %v2709 = vunpack.c.h.b16 %v806
        %v2710 = vunpack.c.l.b16 %v807
        %v2711 = vunpack.c.h.b16 %v807
        %v2712 = vunpack.c.l.b16 %v808
        %v2713 = vunpack.c.h.b16 %v808
        %v2714 = vunpack.c.l.b16 %v809
        %v2715 = vunpack.c.h.b16 %v809
        %v2716 = vunpack.c.l.b16 %v810
        %v2717 = vunpack.c.h.b16 %v810
        %v2718 = vunpack.c.l.b16 %v811
        %v2719 = vunpack.c.h.b16 %v811
        %v2720 = vunpack.c.l.b16 %v812
        %v2721 = vunpack.c.h.b16 %v812
        %v2722 = vunpack.c.l.b16 %v813
        %v2723 = vunpack.c.h.b16 %v813
        %v2724 = vunpack.c.l.b16 %v814
        %v2725 = vunpack.c.h.b16 %v814
        %v2726 = vunpack.c.l.b16 %v815
        %v2727 = vunpack.c.h.b16 %v815
        %v2728 = vunpack.c.l.b16 %v816
        %v2729 = vunpack.c.h.b16 %v816
        %v2730 = vunpack.c.l.b16 %v817
        %v2731 = vunpack.c.h.b16 %v817
        %v2732 = vunpack.c.l.b16 %v818
        %v2733 = vunpack.c.h.b16 %v818
        %v2734 = vunpack.c.l.b16 %v819
        %v2735 = vunpack.c.h.b16 %v819
        %v2736 = vunpack.c.l.b16 %v820
        %v2737 = vunpack.c.h.b16 %v820
        %v2738 = vunpack.c.l.b16 %v821
        %v2739 = vunpack.c.h.b16 %v821
        %v2740 = vunpack.c.l.b16 %v822
        %v2741 = vunpack.c.h.b16 %v822
        %v2742 = vunpack.c.l.b16 %v823
        %v2743 = vunpack.c.h.b16 %v823
        %v2744 = vunpack.c.l.b16 %v824
        %v2745 = vunpack.c.h.b16 %v824
        %v2746 = vunpack.c.l.b16 %v825
        %v2747 = vunpack.c.h.b16 %v825
        %v2748 = vunpack.c.l.b16 %v826
        %v2749 = vunpack.c.h.b16 %v826
        %v2750 = vunpack.c.l.b16 %v827
        %v2751 = vunpack.c.h.b16 %v827
        %v2752 = vunpack.c.l.b16 %v828
        %v2753 = vunpack.c.h.b16 %v828
        %v2754 = vunpack.c.l.b16 %v829
        %v2755 = vunpack.c.h.b16 %v829
        %v2756 = vunpack.c.l.b16 %v830
        %v2757 = vunpack.c.h.b16 %v830
        %v2758 = vunpack.c.l.b16 %v831
        %v2759 = vunpack.c.h.b16 %v831
        %v2760 = vunpack.c.l.b16 %v832
        %v2761 = vunpack.c.h.b16 %v832
        %v2762 = vpack.c.b16 %v2668, %v2666
        %v2763 = vpack.c.b16 %v2669, %v2667
        %v2764 = vpack.c.b16 %v2672, %v2670
        %v2765 = vpack.c.b16 %v2673, %v2671
        %v2766 = vpack.c.b16 %v2676, %v2674
        %v2767 = vpack.c.b16 %v2677, %v2675
        %v2768 = vpack.c.b16 %v2680, %v2678
        %v2769 = vpack.c.b16 %v2681, %v2679
        %v2770 = vpack.c.b16 %v2684, %v2682
        %v2771 = vpack.c.b16 %v2685, %v2683
        %v2772 = vpack.c.b16 %v2688, %v2686
        %v2773 = vpack.c.b16 %v2689, %v2687
        %v2774 = vpack.c.b16 %v2692, %v2690
        %v2775 = vpack.c.b16 %v2693, %v2691
        %v2776 = vpack.c.b16 %v2696, %v2694
        %v2777 = vpack.c.b16 %v2697, %v2695
        %v2778 = vpack.c.b16 %v2700, %v2698
        %v2779 = vpack.c.b16 %v2701, %v2699
        %v2780 = vpack.c.b16 %v2704, %v2702
        %v2781 = vpack.c.b16 %v2705, %v2703
        %v2782 = vpack.c.b16 %v2708, %v2706
        %v2783 = vpack.c.b16 %v2709, %v2707
        %v2784 = vpack.c.b16 %v2712, %v2710
        %v2785 = vpack.c.b16 %v2713, %v2711
        %v2786 = vpack.c.b16 %v2716, %v2714
        %v2787 = vpack.c.b16 %v2717, %v2715
        %v2788 = vpack.c.b16 %v2720, %v2718
        %v2789 = vpack.c.b16 %v2721, %v2719
        %v2790 = vpack.c.b16 %v2724, %v2722
        %v2791 = vpack.c.b16 %v2725, %v2723
        %v2792 = vpack.c.b16 %v2728, %v2726
        %v2793 = vpack.c.b16 %v2729, %v2727
        %v2794 = vpack.c.b16 %v2732, %v2730
        %v2795 = vpack.c.b16 %v2733, %v2731
        %v2796 = vpack.c.b16 %v2736, %v2734
        %v2797 = vpack.c.b16 %v2737, %v2735
        %v2798 = vpack.c.b16 %v2740, %v2738
        %v2799 = vpack.c.b16 %v2741, %v2739
        %v2800 = vpack.c.b16 %v2744, %v2742
        %v2801 = vpack.c.b16 %v2745, %v2743
        %v2802 = vpack.c.b16 %v2748, %v2746
        %v2803 = vpack.c.b16 %v2749, %v2747
        %v2804 = vpack.c.b16 %v2752, %v2750
        %v2805 = vpack.c.b16 %v2753, %v2751
        %v2806 = vpack.c.b16 %v2756, %v2754
        %v2807 = vpack.c.b16 %v2757, %v2755
        %v2808 = vpack.c.b16 %v2760, %v2758
        %v2809 = vpack.c.b16 %v2761, %v2759
        %2858 = vmatprep.subr.bf16.mxu0 %v2763
        %2859 = vmatpush1.bf16.msra.mxu0 %v2762
        %2860 = vmatprep.subr.bf16.mxu0 %v2765
        %2861 = vmatpush1.bf16.msra.mxu0 %v2764
        %2862 = vmatprep.subr.bf16.mxu0 %v2767
        %2863 = vmatpush1.bf16.msra.mxu0 %v2766
        %2864 = vmatprep.subr.bf16.mxu0 %v2769
        %2865 = vmatpush1.bf16.msra.mxu0 %v2768
        %2866 = vmatprep.subr.bf16.mxu0 %v2771
        %2867 = vmatpush1.bf16.msra.mxu0 %v2770
        %2868 = vmatprep.subr.bf16.mxu0 %v2773
        %2869 = vmatpush1.bf16.msra.mxu0 %v2772
        %2870 = vmatprep.subr.bf16.mxu0 %v2775
        %2871 = vmatpush1.bf16.msra.mxu0 %v2774
        %2872 = vmatprep.subr.bf16.mxu0 %v2777
        %2873 = vmatpush1.bf16.msra.mxu0 %v2776
        %2874 = vmatprep.subr.bf16.mxu0 %v2779
        %2875 = vmatpush1.bf16.msra.mxu0 %v2778
        %2876 = vmatprep.subr.bf16.mxu0 %v2781
        %2877 = vmatpush1.bf16.msra.mxu0 %v2780
        %2878 = vmatprep.subr.bf16.mxu0 %v2783
        %2879 = vmatpush1.bf16.msra.mxu0 %v2782
        %2880 = vmatprep.subr.bf16.mxu0 %v2785
        %2881 = vmatpush1.bf16.msra.mxu0 %v2784
        %2882 = vmatprep.subr.bf16.mxu0 %v2787
        %2883 = vmatpush1.bf16.msra.mxu0 %v2786
        %2884 = vmatprep.subr.bf16.mxu0 %v2789
        %2885 = vmatpush1.bf16.msra.mxu0 %v2788
        %2886 = vmatprep.subr.bf16.mxu0 %v2791
        %2887 = vmatpush1.bf16.msra.mxu0 %v2790
        %2888 = vmatprep.subr.bf16.mxu0 %v2793
        %2889 = vmatpush1.bf16.msra.mxu0 %v2792
        %2890 = vmatprep.mubr.bf16.mxu0 %v2269
        %2891 = vmatmul.mubr.bf16.gmra.mrb[0].mxu0 %v2257
        %v2892 = vpop.f32.mrb[0].mxu0
        %v2893 = vadd.f32 %v2020, %v2892
        %v2894 = vpop.f32.mrb[0].mxu0
        %v2895 = vpop.f32.mrb[0].mxu0
        %v2896 = vadd.f32 %v2023, %v2895
        %v2897 = vpop.f32.mrb[0].mxu0
        %2898 = vmatprep.mubr.bf16.mxu0 %v2289
        %2899 = vmatmul.mubr.bf16.gmra.mrb[0].mxu0 %v2285
        %v2900 = vpop.f32.mrb[0].mxu0
        %v2901 = vadd.f32 %v2028, %v2900
        %v2902 = vpop.f32.mrb[0].mxu0
        %v2903 = vpop.f32.mrb[0].mxu0
        %v2904 = vadd.f32 %v2031, %v2903
        %v2905 = vpop.f32.mrb[0].mxu0
        %v2906 = vadd.f32 %v2033, %v2905
        %2907 = vmatprep.mubr.bf16.mxu0 %v2301
        %2908 = vmatmul.mubr.bf16.gmra.mrb[0].mxu0 %v2297
        %v2909 = vpop.f32.mrb[0].mxu0
        %v2910 = vadd.f32 %v2037, %v2909
        %v2911 = vpop.f32.mrb[0].mxu0
        %v2912 = vadd.f32 %v2039, %v2911
        %v2913 = vpop.f32.mrb[0].mxu0
        %v2914 = vadd.f32 %v2041, %v2913
        %v2915 = vpop.f32.mrb[0].mxu0
        %v2916 = vadd.f32 %v2043, %v2915
        %2917 = vmatprep.mubr.bf16.mxu0 %v2313
        %2918 = vmatmul.mubr.bf16.gmra.mrb[0].mxu0 %v2309
        %v2919 = vpop.f32.mrb[0].mxu0
        %v2920 = vadd.f32 %v2047, %v2919
        %v2921 = vpop.f32.mrb[0].mxu0
        %v2922 = vadd.f32 %v2049, %v2921
        %v2923 = vpop.f32.mrb[0].mxu0
        %v2924 = vadd.f32 %v2051, %v2923
        %v2925 = vpop.f32.mrb[0].mxu0
        %v2926 = vadd.f32 %v2053, %v2925
        %2927 = vmatprep.mubr.bf16.mxu0 %v2325
        %2928 = vmatmul.mubr.bf16.gmra.mrb[0].mxu0 %v2321
        %v2929 = vpop.f32.mrb[0].mxu0
        %v2930 = vadd.f32 %v2057, %v2929
        %v2931 = vpop.f32.mrb[0].mxu0
        %v2932 = vadd.f32 %v2059, %v2931
        %v2933 = vpop.f32.mrb[0].mxu0
        %v2934 = vadd.f32 %v2061, %v2933
        %v2935 = vpop.f32.mrb[0].mxu0
        %v2936 = vadd.f32 %v2063, %v2935
        %2937 = vmatprep.mubr.bf16.mxu0 %v2337
        %2938 = vmatmul.mubr.bf16.gmra.mrb[0].mxu0 %v2333
        %v2939 = vpop.f32.mrb[0].mxu0
        %v2940 = vadd.f32 %v2067, %v2939
        %v2941 = vpop.f32.mrb[0].mxu0
        %v2942 = vadd.f32 %v2069, %v2941
        %v2943 = vpop.f32.mrb[0].mxu0
        %v2944 = vadd.f32 %v2071, %v2943
        %v2945 = vpop.f32.mrb[0].mxu0
        %v2946 = vadd.f32 %v2073, %v2945
        %2947 = vmatprep.mubr.bf16.mxu0 %v2349
        %2948 = vmatmul.mubr.bf16.gmra.mrb[0].mxu0 %v2345
        %v2949 = vpop.f32.mrb[0].mxu0
        %v2950 = vadd.f32 %v2077, %v2949
        %v2951 = vpop.f32.mrb[0].mxu0
        %v2952 = vadd.f32 %v2079, %v2951
        %v2953 = vpop.f32.mrb[0].mxu0
        %v2954 = vadd.f32 %v2081, %v2953
        %v2955 = vpop.f32.mrb[0].mxu0
        %v2956 = vadd.f32 %v2083, %v2955
        %2957 = vmatprep.mubr.bf16.mxu0 %v2361
        %2958 = vmatmul.mubr.bf16.gmra.mrb[0].mxu0 %v2357
        %v2959 = vpop.f32.mrb[0].mxu0
        %v2960 = vadd.f32 %v2087, %v2959
        %v2961 = vpop.f32.mrb[0].mxu0
        %v2962 = vadd.f32 %v2089, %v2961
        %v2963 = vpop.f32.mrb[0].mxu0
        %v2964 = vadd.f32 %v2091, %v2963
        %v2965 = vpop.f32.mrb[0].mxu0
        %v2966 = vadd.f32 %v2093, %v2965
        %2967 = vmatprep.mubr.bf16.mxu0 %v2373
        %2968 = vmatmul.mubr.bf16.gmra.mrb[0].mxu0 %v2369
        %v2969 = vpop.f32.mrb[0].mxu0
        %v2970 = vadd.f32 %v2097, %v2969
        %v2971 = vpop.f32.mrb[0].mxu0
        %v2972 = vadd.f32 %v2099, %v2971
        %v2973 = vpop.f32.mrb[0].mxu0
        %v2974 = vadd.f32 %v2101, %v2973
        %v2975 = vpop.f32.mrb[0].mxu0
        %v2976 = vadd.f32 %v2103, %v2975
        %2977 = vmatprep.mubr.bf16.mxu0 %v2385
        %2978 = vmatmul.mubr.bf16.gmra.mrb[0].mxu0 %v2381
        %v2979 = vpop.f32.mrb[0].mxu0
        %v2980 = vadd.f32 %v2107, %v2979
        %v2981 = vpop.f32.mrb[0].mxu0
        %v2982 = vadd.f32 %v2109, %v2981
        %v2983 = vpop.f32.mrb[0].mxu0
        %v2984 = vadd.f32 %v2111, %v2983
        %v2985 = vpop.f32.mrb[0].mxu0
        %v2986 = vadd.f32 %v2113, %v2985
        %2987 = vmatprep.mubr.bf16.mxu0 %v2397
        %2988 = vmatmul.mubr.bf16.gmra.mrb[0].mxu0 %v2393
        %v2989 = vpop.f32.mrb[0].mxu0
        %v2990 = vadd.f32 %v2117, %v2989
        %v2991 = vpop.f32.mrb[0].mxu0
        %v2992 = vadd.f32 %v2119, %v2991
        %v2993 = vpop.f32.mrb[0].mxu0
        %v2994 = vadd.f32 %v2121, %v2993
        %v2995 = vpop.f32.mrb[0].mxu0
        %v2996 = vadd.f32 %v2123, %v2995
        %2997 = vmatprep.mubr.bf16.mxu0 %v2409
        %2998 = vmatmul.mubr.bf16.gmra.mrb[0].mxu0 %v2405
        %v2999 = vpop.f32.mrb[0].mxu0
        %v3000 = vadd.f32 %v2127, %v2999
        %v3001 = vpop.f32.mrb[0].mxu0
        %v3002 = vadd.f32 %v2129, %v3001
        %v3003 = vpop.f32.mrb[0].mxu0
        %v3004 = vadd.f32 %v2131, %v3003
        %v3005 = vpop.f32.mrb[0].mxu0
        %v3006 = vadd.f32 %v2133, %v3005
        %3007 = vmatprep.mubr.bf16.mxu0 %v2421
        %3008 = vmatmul.mubr.bf16.gmra.mrb[0].mxu0 %v2417
        %v3009 = vpop.f32.mrb[0].mxu0
        %v3010 = vadd.f32 %v2137, %v3009
        %v3011 = vpop.f32.mrb[0].mxu0
        %v3012 = vadd.f32 %v2139, %v3011
        %v3013 = vpop.f32.mrb[0].mxu0
        %v3014 = vadd.f32 %v2141, %v3013
        %v3015 = vpop.f32.mrb[0].mxu0
        %v3016 = vadd.f32 %v2143, %v3015
        %3017 = vmatprep.mubr.bf16.mxu0 %v2433
        %3018 = vmatmul.mubr.bf16.gmra.mrb[0].mxu0 %v2429
        %v3019 = vpop.f32.mrb[0].mxu0
        %v3020 = vadd.f32 %v2147, %v3019
        %v3021 = vpop.f32.mrb[0].mxu0
        %v3022 = vadd.f32 %v2149, %v3021
        %v3023 = vpop.f32.mrb[0].mxu0
        %v3024 = vadd.f32 %v2151, %v3023
        %v3025 = vpop.f32.mrb[0].mxu0
        %v3026 = vadd.f32 %v2153, %v3025
        %3027 = vmatprep.mubr.bf16.mxu0 %v2445
        %3028 = vmatmul.mubr.bf16.gmra.mrb[0].mxu0 %v2441
        %v3029 = vpop.f32.mrb[0].mxu0
        %v3030 = vadd.f32 %v2157, %v3029
        %v3031 = vpop.f32.mrb[0].mxu0
        %v3032 = vadd.f32 %v2159, %v3031
        %v3033 = vpop.f32.mrb[0].mxu0
        %v3034 = vadd.f32 %v2161, %v3033
        %v3035 = vpop.f32.mrb[0].mxu0
        %v3036 = vadd.f32 %v2163, %v3035
        %3037 = vmatprep.mubr.bf16.mxu0 %v2457
        %3038 = vmatmul.mubr.bf16.gmra.mrb[0].mxu0 %v2453
        %v3039 = vpop.f32.mrb[0].mxu0
        %v3040 = vadd.f32 %v2167, %v3039
        %v3041 = vpop.f32.mrb[0].mxu0
        %v3042 = vadd.f32 %v2169, %v3041
        %v3043 = vpop.f32.mrb[0].mxu0
        %v3044 = vadd.f32 %v2171, %v3043
        %v3045 = vpop.f32.mrb[0].mxu0
        %v3046 = vadd.f32 %v2173, %v3045
        %3047 = vmatprep.mubr.bf16.mxu0 %v2469
        %3048 = vmatmul.mubr.bf16.gmra.mrb[0].mxu0 %v2465
        %v3049 = vpop.f32.mrb[0].mxu0
        %v3050 = vadd.f32 %v2177, %v3049
        %v3051 = vpop.f32.mrb[0].mxu0
        %v3052 = vadd.f32 %v2179, %v3051
        %v3053 = vpop.f32.mrb[0].mxu0
        %v3054 = vadd.f32 %v2181, %v3053
        %v3055 = vpop.f32.mrb[0].mxu0
        %v3056 = vadd.f32 %v2183, %v3055
        %3057 = vmatprep.mubr.bf16.mxu0 %v2481
        %3058 = vmatmul.mubr.bf16.gmra.mrb[0].mxu0 %v2477
        %v3059 = vpop.f32.mrb[0].mxu0
        %v3060 = vadd.f32 %v2187, %v3059
        %v3061 = vpop.f32.mrb[0].mxu0
        %v3062 = vadd.f32 %v2189, %v3061
        %v3063 = vpop.f32.mrb[0].mxu0
        %v3064 = vadd.f32 %v2191, %v3063
        %v3065 = vpop.f32.mrb[0].mxu0
        %v3066 = vadd.f32 %v2193, %v3065
        %3067 = vmatprep.mubr.bf16.mxu0 %v2493
        %3068 = vmatmul.mubr.bf16.gmra.mrb[0].mxu0 %v2489
        %v3069 = vpop.f32.mrb[0].mxu0
        %v3070 = vadd.f32 %v2197, %v3069
        %v3071 = vpop.f32.mrb[0].mxu0
        %v3072 = vadd.f32 %v2199, %v3071
        %v3073 = vpop.f32.mrb[0].mxu0
        %v3074 = vadd.f32 %v2201, %v3073
        %v3075 = vpop.f32.mrb[0].mxu0
        %v3076 = vadd.f32 %v2203, %v3075
        %3077 = vmatprep.mubr.bf16.mxu0 %v2505
        %3078 = vmatmul.mubr.bf16.gmra.mrb[0].mxu0 %v2501
        %v3079 = vpop.f32.mrb[0].mxu0
        %v3080 = vadd.f32 %v2207, %v3079
        %v3081 = vpop.f32.mrb[0].mxu0
        %v3082 = vadd.f32 %v2209, %v3081
        %v3083 = vpop.f32.mrb[0].mxu0
        %v3084 = vadd.f32 %v2211, %v3083
        %v3085 = vpop.f32.mrb[0].mxu0
        %v3086 = vadd.f32 %v2213, %v3085
        %3087 = vmatprep.mubr.bf16.mxu0 %v2517
        %3088 = vmatmul.mubr.bf16.gmra.mrb[0].mxu0 %v2513
        %v3089 = vpop.f32.mrb[0].mxu0
        %v3090 = vadd.f32 %v2217, %v3089
        %v3091 = vpop.f32.mrb[0].mxu0
        %v3092 = vadd.f32 %v2219, %v3091
        %v3093 = vpop.f32.mrb[0].mxu0
        %v3094 = vadd.f32 %v2221, %v3093
        %v3095 = vpop.f32.mrb[0].mxu0
        %v3096 = vadd.f32 %v2223, %v3095
        %3097 = vmatprep.mubr.bf16.mxu0 %v2529
        %3098 = vmatmul.mubr.bf16.gmra.mrb[0].mxu0 %v2525
        %v3099 = vpop.f32.mrb[0].mxu0
        %v3100 = vadd.f32 %v2227, %v3099
        %v3101 = vpop.f32.mrb[0].mxu0
        %v3102 = vadd.f32 %v2229, %v3101
        %v3103 = vpop.f32.mrb[0].mxu0
        %v3104 = vadd.f32 %v2231, %v3103
        %v3105 = vpop.f32.mrb[0].mxu0
        %v3106 = vadd.f32 %v2233, %v3105
        %3107 = vmatprep.mubr.bf16.mxu0 %v2541
        %3108 = vmatmul.mubr.bf16.gmra.mrb[0].mxu0 %v2537
        %v3109 = vpop.f32.mrb[0].mxu0
        %v3110 = vadd.f32 %v2237, %v3109
        %v3111 = vpop.f32.mrb[0].mxu0
        %v3112 = vpop.f32.mrb[0].mxu0
        %v3113 = vadd.f32 %v2240, %v3112
        %v3114 = vpop.f32.mrb[0].mxu0
        %3115 = vmatprep.mubr.bf16.mxu0 %v2540
        %3116 = vmatmul.mubr.bf16.gmra.mrb[0].mxu0 %v2536
        %v3117 = vpop.f32.mrb[0].mxu0
        %v3118 = vadd.f32 %v2245, %v3117
        %v3119 = vpop.f32.mrb[0].mxu0
        %v3120 = vpop.f32.mrb[0].mxu0
        %v3121 = vpop.f32.mrb[0].mxu0
        %3122 = vdwg.mxu0
        %3123 = vmatprep.subr.bf16.mxu0 %v2795
        %3124 = vmatpush1.bf16.msra.mxu0 %v2794
        %3125 = vmatprep.subr.bf16.mxu0 %v2797
        %3126 = vmatpush1.bf16.msra.mxu0 %v2796
        %3127 = vmatprep.subr.bf16.mxu0 %v2799
        %3128 = vmatpush1.bf16.msra.mxu0 %v2798
        %3129 = vmatprep.subr.bf16.mxu0 %v2801
        %3130 = vmatpush1.bf16.msra.mxu0 %v2800
        %3131 = vmatprep.subr.bf16.mxu0 %v2803
        %3132 = vmatpush1.bf16.msra.mxu0 %v2802
        %3133 = vmatprep.subr.bf16.mxu0 %v2805
        %3134 = vmatpush1.bf16.msra.mxu0 %v2804
        %3135 = vmatprep.subr.bf16.mxu0 %v2807
        %3136 = vmatpush1.bf16.msra.mxu0 %v2806
        %3137 = vmatprep.subr.bf16.mxu0 %v2809
        %3138 = vmatpush1.bf16.msra.mxu0 %v2808
        %3139 = vmatprep.subr.bf16.mxu0 0
        %3140 = vmatpush1.bf16.msra.mxu0 0
        %3141 = vmatprep.subr.bf16.mxu0 0
        %3142 = vmatpush1.bf16.msra.mxu0 0
        %3143 = vmatprep.subr.bf16.mxu0 0
        %3144 = vmatpush1.bf16.msra.mxu0 0
        %3145 = vmatprep.subr.bf16.mxu0 0
        %3146 = vmatpush1.bf16.msra.mxu0 0
        %3147 = vmatprep.subr.bf16.mxu0 0
        %3148 = vmatpush1.bf16.msra.mxu0 0
        %3149 = vmatprep.subr.bf16.mxu0 0
        %3150 = vmatpush1.bf16.msra.mxu0 0
        %3151 = vmatprep.subr.bf16.mxu0 0
        %3152 = vmatpush1.bf16.msra.mxu0 0
        %3153 = vmatprep.subr.bf16.mxu0 0
        %3154 = vmatpush1.bf16.msra.mxu0 0
        %3155 = vmatprep.mubr.bf16.mxu0 0
        %3156 = vmatmul.mubr.bf16.gmra.mrb[0].mxu0 %v2281
        %v3157 = vpop.f32.mrb[0].mxu0
        %v3158 = vadd.f32 %v2893, %v3157
        %v3159 = vpop.f32.mrb[0].mxu0
        %v3160 = vpop.f32.mrb[0].mxu0
        %v3161 = vadd.f32 %v2896, %v3160
        %v3162 = vpop.f32.mrb[0].mxu0
        %3163 = vmatprep.mubr.bf16.mxu0 0
        %3164 = vmatmul.mubr.bf16.gmra.mrb[0].mxu0 %v2293
        %v3165 = vpop.f32.mrb[0].mxu0
        %v3166 = vadd.f32 %v2901, %v3165
        %v3167 = vpop.f32.mrb[0].mxu0
        %v3168 = vpop.f32.mrb[0].mxu0
        %v3169 = vadd.f32 %v2904, %v3168
        %v3170 = vpop.f32.mrb[0].mxu0
        %v3171 = vadd.f32 %v2906, %v3170
        %3172 = vmatprep.mubr.bf16.mxu0 0
        %3173 = vmatmul.mubr.bf16.gmra.mrb[0].mxu0 %v2305
        %v3174 = vpop.f32.mrb[0].mxu0
        %v3175 = vadd.f32 %v2910, %v3174
        %v3176 = vpop.f32.mrb[0].mxu0
        %v3177 = vadd.f32 %v2912, %v3176
        %v3178 = vpop.f32.mrb[0].mxu0
        %v3179 = vadd.f32 %v2914, %v3178
        %v3180 = vpop.f32.mrb[0].mxu0
        %v3181 = vadd.f32 %v2916, %v3180
        %3182 = vmatprep.mubr.bf16.mxu0 0
        %3183 = vmatmul.mubr.bf16.gmra.mrb[0].mxu0 %v2317
        %v3184 = vpop.f32.mrb[0].mxu0
        %v3185 = vadd.f32 %v2920, %v3184
        %v3186 = vpop.f32.mrb[0].mxu0
        %v3187 = vadd.f32 %v2922, %v3186
        %v3188 = vpop.f32.mrb[0].mxu0
        %v3189 = vadd.f32 %v2924, %v3188
        %v3190 = vpop.f32.mrb[0].mxu0
        %v3191 = vadd.f32 %v2926, %v3190
        %3192 = vmatprep.mubr.bf16.mxu0 0
        %3193 = vmatmul.mubr.bf16.gmra.mrb[0].mxu0 %v2329
        %v3194 = vpop.f32.mrb[0].mxu0
        %v3195 = vadd.f32 %v2930, %v3194
        %v3196 = vpop.f32.mrb[0].mxu0
        %v3197 = vadd.f32 %v2932, %v3196
        %v3198 = vpop.f32.mrb[0].mxu0
        %v3199 = vadd.f32 %v2934, %v3198
        %v3200 = vpop.f32.mrb[0].mxu0
        %v3201 = vadd.f32 %v2936, %v3200
        %3202 = vmatprep.mubr.bf16.mxu0 0
        %3203 = vmatmul.mubr.bf16.gmra.mrb[0].mxu0 %v2341
        %v3204 = vpop.f32.mrb[0].mxu0
        %v3205 = vadd.f32 %v2940, %v3204
        %v3206 = vpop.f32.mrb[0].mxu0
        %v3207 = vadd.f32 %v2942, %v3206
        %v3208 = vpop.f32.mrb[0].mxu0
        %v3209 = vadd.f32 %v2944, %v3208
        %v3210 = vpop.f32.mrb[0].mxu0
        %v3211 = vadd.f32 %v2946, %v3210
        %3212 = vmatprep.mubr.bf16.mxu0 0
        %3213 = vmatmul.mubr.bf16.gmra.mrb[0].mxu0 %v2353
        %v3214 = vpop.f32.mrb[0].mxu0
        %v3215 = vadd.f32 %v2950, %v3214
        %v3216 = vpop.f32.mrb[0].mxu0
        %v3217 = vadd.f32 %v2952, %v3216
        %v3218 = vpop.f32.mrb[0].mxu0
        %v3219 = vadd.f32 %v2954, %v3218
        %v3220 = vpop.f32.mrb[0].mxu0
        %v3221 = vadd.f32 %v2956, %v3220
        %3222 = vmatprep.mubr.bf16.mxu0 0
        %3223 = vmatmul.mubr.bf16.gmra.mrb[0].mxu0 %v2365
        %v3224 = vpop.f32.mrb[0].mxu0
        %v3225 = vadd.f32 %v2960, %v3224
        %v3226 = vpop.f32.mrb[0].mxu0
        %v3227 = vadd.f32 %v2962, %v3226
        %v3228 = vpop.f32.mrb[0].mxu0
        %v3229 = vadd.f32 %v2964, %v3228
        %v3230 = vpop.f32.mrb[0].mxu0
        %v3231 = vadd.f32 %v2966, %v3230
        %3232 = vmatprep.mubr.bf16.mxu0 0
        %3233 = vmatmul.mubr.bf16.gmra.mrb[0].mxu0 %v2377
        %v3234 = vpop.f32.mrb[0].mxu0
        %v3235 = vadd.f32 %v2970, %v3234
        %v3236 = vpop.f32.mrb[0].mxu0
        %v3237 = vadd.f32 %v2972, %v3236
        %v3238 = vpop.f32.mrb[0].mxu0
        %v3239 = vadd.f32 %v2974, %v3238
        %v3240 = vpop.f32.mrb[0].mxu0
        %v3241 = vadd.f32 %v2976, %v3240
        %3242 = vmatprep.mubr.bf16.mxu0 0
        %3243 = vmatmul.mubr.bf16.gmra.mrb[0].mxu0 %v2389
        %v3244 = vpop.f32.mrb[0].mxu0
        %v3245 = vadd.f32 %v2980, %v3244
        %v3246 = vpop.f32.mrb[0].mxu0
        %v3247 = vadd.f32 %v2982, %v3246
        %v3248 = vpop.f32.mrb[0].mxu0
        %v3249 = vadd.f32 %v2984, %v3248
        %v3250 = vpop.f32.mrb[0].mxu0
        %v3251 = vadd.f32 %v2986, %v3250
        %3252 = vmatprep.mubr.bf16.mxu0 0
        %3253 = vmatmul.mubr.bf16.gmra.mrb[0].mxu0 %v2401
        %v3254 = vpop.f32.mrb[0].mxu0
        %v3255 = vadd.f32 %v2990, %v3254
        %v3256 = vpop.f32.mrb[0].mxu0
        %v3257 = vadd.f32 %v2992, %v3256
        %v3258 = vpop.f32.mrb[0].mxu0
        %v3259 = vadd.f32 %v2994, %v3258
        %v3260 = vpop.f32.mrb[0].mxu0
        %v3261 = vadd.f32 %v2996, %v3260
        %3262 = vmatprep.mubr.bf16.mxu0 0
        %3263 = vmatmul.mubr.bf16.gmra.mrb[0].mxu0 %v2413
        %v3264 = vpop.f32.mrb[0].mxu0
        %v3265 = vadd.f32 %v3000, %v3264
        %v3266 = vpop.f32.mrb[0].mxu0
        %v3267 = vadd.f32 %v3002, %v3266
        %v3268 = vpop.f32.mrb[0].mxu0
        %v3269 = vadd.f32 %v3004, %v3268
        %v3270 = vpop.f32.mrb[0].mxu0
        %v3271 = vadd.f32 %v3006, %v3270
        %3272 = vmatprep.mubr.bf16.mxu0 0
        %3273 = vmatmul.mubr.bf16.gmra.mrb[0].mxu0 %v2425
        %v3274 = vpop.f32.mrb[0].mxu0
        %v3275 = vadd.f32 %v3010, %v3274
        %v3276 = vpop.f32.mrb[0].mxu0
        %v3277 = vadd.f32 %v3012, %v3276
        %v3278 = vpop.f32.mrb[0].mxu0
        %v3279 = vadd.f32 %v3014, %v3278
        %v3280 = vpop.f32.mrb[0].mxu0
        %v3281 = vadd.f32 %v3016, %v3280
        %3282 = vmatprep.mubr.bf16.mxu0 0
        %3283 = vmatmul.mubr.bf16.gmra.mrb[0].mxu0 %v2437
        %v3284 = vpop.f32.mrb[0].mxu0
        %v3285 = vadd.f32 %v3020, %v3284
        %v3286 = vpop.f32.mrb[0].mxu0
        %v3287 = vadd.f32 %v3022, %v3286
        %v3288 = vpop.f32.mrb[0].mxu0
        %v3289 = vadd.f32 %v3024, %v3288
        %v3290 = vpop.f32.mrb[0].mxu0
        %v3291 = vadd.f32 %v3026, %v3290
        %3292 = vmatprep.mubr.bf16.mxu0 0
        %3293 = vmatmul.mubr.bf16.gmra.mrb[0].mxu0 %v2449
        %v3294 = vpop.f32.mrb[0].mxu0
        %v3295 = vadd.f32 %v3030, %v3294
        %v3296 = vpop.f32.mrb[0].mxu0
        %v3297 = vadd.f32 %v3032, %v3296
        %v3298 = vpop.f32.mrb[0].mxu0
        %v3299 = vadd.f32 %v3034, %v3298
        %v3300 = vpop.f32.mrb[0].mxu0
        %v3301 = vadd.f32 %v3036, %v3300
        %3302 = vmatprep.mubr.bf16.mxu0 0
        %3303 = vmatmul.mubr.bf16.gmra.mrb[0].mxu0 %v2461
        %v3304 = vpop.f32.mrb[0].mxu0
        %v3305 = vadd.f32 %v3040, %v3304
        %v3306 = vpop.f32.mrb[0].mxu0
        %v3307 = vadd.f32 %v3042, %v3306
        %v3308 = vpop.f32.mrb[0].mxu0
        %v3309 = vadd.f32 %v3044, %v3308
        %v3310 = vpop.f32.mrb[0].mxu0
        %v3311 = vadd.f32 %v3046, %v3310
        %3312 = vmatprep.mubr.bf16.mxu0 0
        %3313 = vmatmul.mubr.bf16.gmra.mrb[0].mxu0 %v2473
        %v3314 = vpop.f32.mrb[0].mxu0
        %v3315 = vadd.f32 %v3050, %v3314
        %v3316 = vpop.f32.mrb[0].mxu0
        %v3317 = vadd.f32 %v3052, %v3316
        %v3318 = vpop.f32.mrb[0].mxu0
        %v3319 = vadd.f32 %v3054, %v3318
        %v3320 = vpop.f32.mrb[0].mxu0
        %v3321 = vadd.f32 %v3056, %v3320
        %3322 = vmatprep.mubr.bf16.mxu0 0
        %3323 = vmatmul.mubr.bf16.gmra.mrb[0].mxu0 %v2485
        %v3324 = vpop.f32.mrb[0].mxu0
        %v3325 = vadd.f32 %v3060, %v3324
        %v3326 = vpop.f32.mrb[0].mxu0
        %v3327 = vadd.f32 %v3062, %v3326
        %v3328 = vpop.f32.mrb[0].mxu0
        %v3329 = vadd.f32 %v3064, %v3328
        %v3330 = vpop.f32.mrb[0].mxu0
        %v3331 = vadd.f32 %v3066, %v3330
        %3332 = vmatprep.mubr.bf16.mxu0 0
        %3333 = vmatmul.mubr.bf16.gmra.mrb[0].mxu0 %v2497
        %v3334 = vpop.f32.mrb[0].mxu0
        %v3335 = vadd.f32 %v3070, %v3334
        %v3336 = vpop.f32.mrb[0].mxu0
        %v3337 = vadd.f32 %v3072, %v3336
        %v3338 = vpop.f32.mrb[0].mxu0
        %v3339 = vadd.f32 %v3074, %v3338
        %v3340 = vpop.f32.mrb[0].mxu0
        %v3341 = vadd.f32 %v3076, %v3340
        %3342 = vmatprep.mubr.bf16.mxu0 0
        %3343 = vmatmul.mubr.bf16.gmra.mrb[0].mxu0 %v2509
        %v3344 = vpop.f32.mrb[0].mxu0
        %v3345 = vadd.f32 %v3080, %v3344
        %v3346 = vpop.f32.mrb[0].mxu0
        %v3347 = vadd.f32 %v3082, %v3346
        %v3348 = vpop.f32.mrb[0].mxu0
        %v3349 = vadd.f32 %v3084, %v3348
        %v3350 = vpop.f32.mrb[0].mxu0
        %v3351 = vadd.f32 %v3086, %v3350
        %3352 = vmatprep.mubr.bf16.mxu0 0
        %3353 = vmatmul.mubr.bf16.gmra.mrb[0].mxu0 %v2521
        %v3354 = vpop.f32.mrb[0].mxu0
        %v3355 = vadd.f32 %v3090, %v3354
        %v3356 = vpop.f32.mrb[0].mxu0
        %v3357 = vadd.f32 %v3092, %v3356
        %v3358 = vpop.f32.mrb[0].mxu0
        %v3359 = vadd.f32 %v3094, %v3358
        %v3360 = vpop.f32.mrb[0].mxu0
        %v3361 = vadd.f32 %v3096, %v3360
        %3362 = vmatprep.mubr.bf16.mxu0 0
        %3363 = vmatmul.mubr.bf16.gmra.mrb[0].mxu0 %v2533
        %v3364 = vpop.f32.mrb[0].mxu0
        %v3365 = vadd.f32 %v3100, %v3364
        %v3366 = vpop.f32.mrb[0].mxu0
        %v3367 = vadd.f32 %v3102, %v3366
        %v3368 = vpop.f32.mrb[0].mxu0
        %v3369 = vadd.f32 %v3104, %v3368
        %v3370 = vpop.f32.mrb[0].mxu0
        %v3371 = vadd.f32 %v3106, %v3370
        %3372 = vmatprep.mubr.bf16.mxu0 0
        %3373 = vmatmul.mubr.bf16.gmra.mrb[0].mxu0 %v2545
        %v3374 = vpop.f32.mrb[0].mxu0
        %v3375 = vadd.f32 %v3110, %v3374
        %v3376 = vpop.f32.mrb[0].mxu0
        %v3377 = vpop.f32.mrb[0].mxu0
        %v3378 = vadd.f32 %v3113, %v3377
        %v3379 = vpop.f32.mrb[0].mxu0
        %3380 = vmatprep.mubr.bf16.mxu0 0
        %3381 = vmatmul.mubr.bf16.gmra.mrb[0].mxu0 %v2544
        %v3382 = vpop.f32.mrb[0].mxu0
        %v3383 = vadd.f32 %v3118, %v3382
        %v3384 = vpop.f32.mrb[0].mxu0
        %v3385 = vpop.f32.mrb[0].mxu0
        %v3386 = vpop.f32.mrb[0].mxu0
        %3387 = vdwg.mxu0
        %s3388 = scalar_lea.vmem [#allocation5], 768
        %v3389 = vld [vmem:[%s3388] sm:$0xff]
        %v3390 = vld [vmem:[%s3388 + $0x8] sm:$0xff]
        %v3391 = vld [vmem:[%s3388 + $0x10] sm:$0xff]
        %v3392 = vld [vmem:[%s3388 + $0x18] sm:$0xff]
        %v3393 = vld [vmem:[%s3388 + $0x20] sm:$0xff]
        %v3394 = vld [vmem:[%s3388 + $0x28] sm:$0xff]
        %v3395 = vld [vmem:[%s3388 + $0x30] sm:$0xff]
        %v3396 = vld [vmem:[%s3388 + $0x38] sm:$0xff]
        %v3397 = vld [vmem:[%s3388 + $0x40] sm:$0xff]
        %v3398 = vld [vmem:[%s3388 + $0x48] sm:$0xff]
        %v3399 = vld [vmem:[%s3388 + $0x50] sm:$0xff]
        %v3400 = vld [vmem:[%s3388 + $0x58] sm:$0xff]
        %v3401 = vld [vmem:[%s3388 + $0x60] sm:$0xff]
        %v3402 = vld [vmem:[%s3388 + $0x68] sm:$0xff]
        %v3403 = vld [vmem:[%s3388 + $0x70] sm:$0xff]
        %v3404 = vld [vmem:[%s3388 + $0x78] sm:$0xff]
        %v3405 = vld [vmem:[%s3388 + $0x80] sm:$0xff]
        %v3406 = vld [vmem:[%s3388 + $0x88] sm:$0xff]
        %v3407 = vld [vmem:[%s3388 + $0x90] sm:$0xff]
        %v3408 = vld [vmem:[%s3388 + $0x98] sm:$0xff]
        %v3409 = vld [vmem:[%s3388 + $0xa0] sm:$0xff]
        %v3410 = vld [vmem:[%s3388 + $0xa8] sm:$0xff]
        %v3411 = vld [vmem:[%s3388 + $0xb0] sm:$0xff]
        %v3412 = vld [vmem:[%s3388 + $0xb8] sm:$0xff]
        %v3413 = vld [vmem:[%s3388 + $0xc0] sm:$0xff]
        %v3414 = vld [vmem:[%s3388 + $0xc8] sm:$0xff]
        %v3415 = vld [vmem:[%s3388 + $0xd0] sm:$0xff]
        %v3416 = vld [vmem:[%s3388 + $0xd8] sm:$0xff]
        %v3417 = vld [vmem:[%s3388 + $0xe0] sm:$0xff]
        %v3418 = vld [vmem:[%s3388 + $0xe8] sm:$0xff]
        %v3419 = vld [vmem:[%s3388 + $0xf0] sm:$0xff]
        %v3420 = vld [vmem:[%s3388 + $0xf8] sm:$0xff]
        %v3421 = vld [vmem:[%s3388 + $0x100] sm:$0xff]
        %v3422 = vld [vmem:[%s3388 + $0x108] sm:$0xff]
        %v3423 = vld [vmem:[%s3388 + $0x110] sm:$0xff]
        %v3424 = vld [vmem:[%s3388 + $0x118] sm:$0xff]
        %v3425 = vld [vmem:[%s3388 + $0x120] sm:$0xff]
        %v3426 = vld [vmem:[%s3388 + $0x128] sm:$0xff]
        %v3427 = vld [vmem:[%s3388 + $0x130] sm:$0xff]
        %v3428 = vld [vmem:[%s3388 + $0x138] sm:$0xff]
        %v3429 = vld [vmem:[%s3388 + $0x140] sm:$0xff]
        %v3430 = vld [vmem:[%s3388 + $0x148] sm:$0xff]
        %v3431 = vld [vmem:[%s3388 + $0x150] sm:$0xff]
        %v3432 = vld [vmem:[%s3388 + $0x158] sm:$0xff]
        %v3433 = vld [vmem:[%s3388 + $0x160] sm:$0xff]
        %v3434 = vld [vmem:[%s3388 + $0x168] sm:$0xff]
        %v3435 = vld [vmem:[%s3388 + $0x170] sm:$0xff]
        %v3436 = vld [vmem:[%s3388 + $0x178] sm:$0xff]
        %vm3437 = vsmask.f32 3328
        %v3438 = vrot.slane %v537, 4
        %v3439 = vrot.slane %v533, 5
        %v3440 = vor.u32 %v3438, %v3439
        %v3441 = vrot.slane %v545, 4
        %v3442 = vrot.slane %v541, 5
        %v3443 = vor.u32 %v3441, %v3442
        %v3444 = vsel %vm3437, %v3440, %v3443
        %v3445 = vrot.slane %v899, 4
        %v3446 = vrot.slane %v902, 5
        %v3447 = vor.u32 %v3445, %v3446
        %v3448 = vrot.slane %v929, 4
        %v3449 = vrot.slane %v932, 5
        %v3450 = vor.u32 %v3448, %v3449
        %v3451 = vsel %vm3437, %v3447, %v3450
        %v3452 = vrot.slane %v916, 4
        %v3453 = vrot.slane %v919, 5
        %v3454 = vor.u32 %v3452, %v3453
        %v3455 = vrot.slane %v938, 4
        %v3456 = vrot.slane %v941, 5
        %v3457 = vor.u32 %v3455, %v3456
        %v3458 = vsel %vm3437, %v3454, %v3457
        %v3459 = vrot.slane %v553, 4
        %v3460 = vrot.slane %v549, 5
        %v3461 = vor.u32 %v3459, %v3460
        %v3462 = vsel %vm3437, %v3443, %v3461
        %v3463 = vrot.slane %v951, 4
        %v3464 = vrot.slane %v954, 5
        %v3465 = vor.u32 %v3463, %v3464
        %v3466 = vsel %vm3437, %v3450, %v3465
        %v3467 = vrot.slane %v960, 4
        %v3468 = vrot.slane %v963, 5
        %v3469 = vor.u32 %v3467, %v3468
        %v3470 = vsel %vm3437, %v3457, %v3469
        %v3471 = vrot.slane %v561, 4
        %v3472 = vrot.slane %v557, 5
        %v3473 = vor.u32 %v3471, %v3472
        %v3474 = vsel %vm3437, %v3461, %v3473
        %v3475 = vrot.slane %v973, 4
        %v3476 = vrot.slane %v976, 5
        %v3477 = vor.u32 %v3475, %v3476
        %v3478 = vsel %vm3437, %v3465, %v3477
        %v3479 = vrot.slane %v982, 4
        %v3480 = vrot.slane %v985, 5
        %v3481 = vor.u32 %v3479, %v3480
        %v3482 = vsel %vm3437, %v3469, %v3481
        %v3483 = vrot.slane %v569, 4
        %v3484 = vrot.slane %v565, 5
        %v3485 = vor.u32 %v3483, %v3484
        %v3486 = vsel %vm3437, %v3473, %v3485
        %v3487 = vrot.slane %v995, 4
        %v3488 = vrot.slane %v998, 5
        %v3489 = vor.u32 %v3487, %v3488
        %v3490 = vsel %vm3437, %v3477, %v3489
        %v3491 = vrot.slane %v1004, 4
        %v3492 = vrot.slane %v1007, 5
        %v3493 = vor.u32 %v3491, %v3492
        %v3494 = vsel %vm3437, %v3481, %v3493
        %v3495 = vrot.slane %v577, 4
        %v3496 = vrot.slane %v573, 5
        %v3497 = vor.u32 %v3495, %v3496
        %v3498 = vsel %vm3437, %v3485, %v3497
        %v3499 = vrot.slane %v1017, 4
        %v3500 = vrot.slane %v1020, 5
        %v3501 = vor.u32 %v3499, %v3500
        %v3502 = vsel %vm3437, %v3489, %v3501
        %v3503 = vrot.slane %v1026, 4
        %v3504 = vrot.slane %v1029, 5
        %v3505 = vor.u32 %v3503, %v3504
        %v3506 = vsel %vm3437, %v3493, %v3505
        %v3507 = vrot.slane %v585, 4
        %v3508 = vrot.slane %v581, 5
        %v3509 = vor.u32 %v3507, %v3508
        %v3510 = vsel %vm3437, %v3497, %v3509
        %v3511 = vrot.slane %v1039, 4
        %v3512 = vrot.slane %v1042, 5
        %v3513 = vor.u32 %v3511, %v3512
        %v3514 = vsel %vm3437, %v3501, %v3513
        %v3515 = vrot.slane %v1048, 4
        %v3516 = vrot.slane %v1051, 5
        %v3517 = vor.u32 %v3515, %v3516
        %v3518 = vsel %vm3437, %v3505, %v3517
        %v3519 = vrot.slane %v593, 4
        %v3520 = vrot.slane %v589, 5
        %v3521 = vor.u32 %v3519, %v3520
        %v3522 = vsel %vm3437, %v3509, %v3521
        %v3523 = vrot.slane %v1061, 4
        %v3524 = vrot.slane %v1064, 5
        %v3525 = vor.u32 %v3523, %v3524
        %v3526 = vsel %vm3437, %v3513, %v3525
        %v3527 = vrot.slane %v1070, 4
        %v3528 = vrot.slane %v1073, 5
        %v3529 = vor.u32 %v3527, %v3528
        %v3530 = vsel %vm3437, %v3517, %v3529
        %v3531 = vrot.slane %v601, 4
        %v3532 = vrot.slane %v597, 5
        %v3533 = vor.u32 %v3531, %v3532
        %v3534 = vsel %vm3437, %v3521, %v3533
        %v3535 = vrot.slane %v1083, 4
        %v3536 = vrot.slane %v1086, 5
        %v3537 = vor.u32 %v3535, %v3536
        %v3538 = vsel %vm3437, %v3525, %v3537
        %v3539 = vrot.slane %v1092, 4
        %v3540 = vrot.slane %v1095, 5
        %v3541 = vor.u32 %v3539, %v3540
        %v3542 = vsel %vm3437, %v3529, %v3541
        %v3543 = vrot.slane %v609, 4
        %v3544 = vrot.slane %v605, 5
        %v3545 = vor.u32 %v3543, %v3544
        %v3546 = vsel %vm3437, %v3533, %v3545
        %v3547 = vrot.slane %v1105, 4
        %v3548 = vrot.slane %v1108, 5
        %v3549 = vor.u32 %v3547, %v3548
        %v3550 = vsel %vm3437, %v3537, %v3549
        %v3551 = vrot.slane %v1114, 4
        %v3552 = vrot.slane %v1117, 5
        %v3553 = vor.u32 %v3551, %v3552
        %v3554 = vsel %vm3437, %v3541, %v3553
        %v3555 = vrot.slane %v617, 4
        %v3556 = vrot.slane %v613, 5
        %v3557 = vor.u32 %v3555, %v3556
        %v3558 = vsel %vm3437, %v3545, %v3557
        %v3559 = vrot.slane %v1127, 4
        %v3560 = vrot.slane %v1130, 5
        %v3561 = vor.u32 %v3559, %v3560
        %v3562 = vsel %vm3437, %v3549, %v3561
        %v3563 = vrot.slane %v1136, 4
        %v3564 = vrot.slane %v1139, 5
        %v3565 = vor.u32 %v3563, %v3564
        %v3566 = vsel %vm3437, %v3553, %v3565
        %v3567 = vrot.slane %v625, 4
        %v3568 = vrot.slane %v621, 5
        %v3569 = vor.u32 %v3567, %v3568
        %v3570 = vsel %vm3437, %v3557, %v3569
        %v3571 = vrot.slane %v1149, 4
        %v3572 = vrot.slane %v1152, 5
        %v3573 = vor.u32 %v3571, %v3572
        %v3574 = vsel %vm3437, %v3561, %v3573
        %v3575 = vrot.slane %v1158, 4
        %v3576 = vrot.slane %v1161, 5
        %v3577 = vor.u32 %v3575, %v3576
        %v3578 = vsel %vm3437, %v3565, %v3577
        %v3579 = vrot.slane %v633, 4
        %v3580 = vrot.slane %v629, 5
        %v3581 = vor.u32 %v3579, %v3580
        %v3582 = vsel %vm3437, %v3569, %v3581
        %v3583 = vrot.slane %v1171, 4
        %v3584 = vrot.slane %v1174, 5
        %v3585 = vor.u32 %v3583, %v3584
        %v3586 = vsel %vm3437, %v3573, %v3585
        %v3587 = vrot.slane %v1180, 4
        %v3588 = vrot.slane %v1183, 5
        %v3589 = vor.u32 %v3587, %v3588
        %v3590 = vsel %vm3437, %v3577, %v3589
        %v3591 = vrot.slane %v641, 4
        %v3592 = vrot.slane %v637, 5
        %v3593 = vor.u32 %v3591, %v3592
        %v3594 = vsel %vm3437, %v3581, %v3593
        %v3595 = vrot.slane %v1193, 4
        %v3596 = vrot.slane %v1196, 5
        %v3597 = vor.u32 %v3595, %v3596
        %v3598 = vsel %vm3437, %v3585, %v3597
        %v3599 = vrot.slane %v1202, 4
        %v3600 = vrot.slane %v1205, 5
        %v3601 = vor.u32 %v3599, %v3600
        %v3602 = vsel %vm3437, %v3589, %v3601
        %v3603 = vrot.slane %v649, 4
        %v3604 = vrot.slane %v645, 5
        %v3605 = vor.u32 %v3603, %v3604
        %v3606 = vsel %vm3437, %v3593, %v3605
        %v3607 = vrot.slane %v1215, 4
        %v3608 = vrot.slane %v1218, 5
        %v3609 = vor.u32 %v3607, %v3608
        %v3610 = vsel %vm3437, %v3597, %v3609
        %v3611 = vrot.slane %v1224, 4
        %v3612 = vrot.slane %v1227, 5
        %v3613 = vor.u32 %v3611, %v3612
        %v3614 = vsel %vm3437, %v3601, %v3613
        %v3615 = vrot.slane %v657, 4
        %v3616 = vrot.slane %v653, 5
        %v3617 = vor.u32 %v3615, %v3616
        %v3618 = vsel %vm3437, %v3605, %v3617
        %v3619 = vrot.slane %v1237, 4
        %v3620 = vrot.slane %v1240, 5
        %v3621 = vor.u32 %v3619, %v3620
        %v3622 = vsel %vm3437, %v3609, %v3621
        %v3623 = vrot.slane %v1246, 4
        %v3624 = vrot.slane %v1249, 5
        %v3625 = vor.u32 %v3623, %v3624
        %v3626 = vsel %vm3437, %v3613, %v3625
        %v3627 = vrot.slane %v665, 4
        %v3628 = vrot.slane %v661, 5
        %v3629 = vor.u32 %v3627, %v3628
        %v3630 = vsel %vm3437, %v3617, %v3629
        %v3631 = vrot.slane %v1259, 4
        %v3632 = vrot.slane %v1262, 5
        %v3633 = vor.u32 %v3631, %v3632
        %v3634 = vsel %vm3437, %v3621, %v3633
        %v3635 = vrot.slane %v1268, 4
        %v3636 = vrot.slane %v1271, 5
        %v3637 = vor.u32 %v3635, %v3636
        %v3638 = vsel %vm3437, %v3625, %v3637
        %v3639 = vrot.slane %v673, 4
        %v3640 = vrot.slane %v669, 5
        %v3641 = vor.u32 %v3639, %v3640
        %v3642 = vsel %vm3437, %v3629, %v3641
        %v3643 = vrot.slane %v1281, 4
        %v3644 = vrot.slane %v1284, 5
        %v3645 = vor.u32 %v3643, %v3644
        %v3646 = vsel %vm3437, %v3633, %v3645
        %v3647 = vrot.slane %v1290, 4
        %v3648 = vrot.slane %v1293, 5
        %v3649 = vor.u32 %v3647, %v3648
        %v3650 = vsel %vm3437, %v3637, %v3649
        %v3651 = vrot.slane %v681, 4
        %v3652 = vrot.slane %v677, 5
        %v3653 = vor.u32 %v3651, %v3652
        %v3654 = vsel %vm3437, %v3641, %v3653
        %v3655 = vrot.slane %v1303, 4
        %v3656 = vrot.slane %v1306, 5
        %v3657 = vor.u32 %v3655, %v3656
        %v3658 = vsel %vm3437, %v3645, %v3657
        %v3659 = vrot.slane %v1312, 4
        %v3660 = vrot.slane %v1315, 5
        %v3661 = vor.u32 %v3659, %v3660
        %v3662 = vsel %vm3437, %v3649, %v3661
        %v3663 = vrot.slane %v689, 4
        %v3664 = vrot.slane %v685, 5
        %v3665 = vor.u32 %v3663, %v3664
        %v3666 = vsel %vm3437, %v3653, %v3665
        %v3667 = vrot.slane %v1325, 4
        %v3668 = vrot.slane %v1328, 5
        %v3669 = vor.u32 %v3667, %v3668
        %v3670 = vsel %vm3437, %v3657, %v3669
        %v3671 = vrot.slane %v1334, 4
        %v3672 = vrot.slane %v1337, 5
        %v3673 = vor.u32 %v3671, %v3672
        %v3674 = vsel %vm3437, %v3661, %v3673
        %v3675 = vrot.slane %v697, 4
        %v3676 = vrot.slane %v693, 5
        %v3677 = vor.u32 %v3675, %v3676
        %v3678 = vsel %vm3437, %v3665, %v3677
        %v3679 = vrot.slane %v1347, 4
        %v3680 = vrot.slane %v1350, 5
        %v3681 = vor.u32 %v3679, %v3680
        %v3682 = vsel %vm3437, %v3669, %v3681
        %v3683 = vrot.slane %v1356, 4
        %v3684 = vrot.slane %v1359, 5
        %v3685 = vor.u32 %v3683, %v3684
        %v3686 = vsel %vm3437, %v3673, %v3685
        %v3687 = vrot.slane %v705, 4
        %v3688 = vrot.slane %v701, 5
        %v3689 = vor.u32 %v3687, %v3688
        %v3690 = vsel %vm3437, %v3677, %v3689
        %v3691 = vrot.slane %v1369, 4
        %v3692 = vrot.slane %v1372, 5
        %v3693 = vor.u32 %v3691, %v3692
        %v3694 = vsel %vm3437, %v3681, %v3693
        %v3695 = vrot.slane %v1378, 4
        %v3696 = vrot.slane %v1381, 5
        %v3697 = vor.u32 %v3695, %v3696
        %v3698 = vsel %vm3437, %v3685, %v3697
        %v3699 = vrot.slane %v713, 4
        %v3700 = vrot.slane %v709, 5
        %v3701 = vor.u32 %v3699, %v3700
        %v3702 = vsel %vm3437, %v3689, %v3701
        %v3703 = vrot.slane %v1391, 4
        %v3704 = vrot.slane %v1394, 5
        %v3705 = vor.u32 %v3703, %v3704
        %v3706 = vsel %vm3437, %v3693, %v3705
        %v3707 = vrot.slane %v1400, 4
        %v3708 = vrot.slane %v1403, 5
        %v3709 = vor.u32 %v3707, %v3708
        %v3710 = vsel %vm3437, %v3697, %v3709
        %v3711 = vrot.slane %v721, 4
        %v3712 = vrot.slane %v717, 5
        %v3713 = vor.u32 %v3711, %v3712
        %v3714 = vsel %vm3437, %v3701, %v3713
        %v3716 = vshrl.u32 %v728, 16
        %v3718 = vrot.slane %v3716, 4
        %v3719 = vshll.u32 %v728, 16
        %v3721 = vrot.slane %v3719, 5
        %v3722 = vor.u32 %v3718, %v3721
        %v3723 = vsel %vm3437, %v3705, %v3722
        %v3725 = vshrl.u32 %v784, 16
        %v3727 = vrot.slane %v3725, 4
        %v3728 = vshll.u32 %v784, 16
        %v3730 = vrot.slane %v3728, 5
        %v3731 = vor.u32 %v3727, %v3730
        %v3732 = vsel %vm3437, %v3709, %v3731
        %v3733 = vrot.slane %v725, 5
        %v3734 = vsel %vm3437, %v3713, %v3733
        %v3736 = vshll.u32 %v729, 16
        %v3738 = vrot.slane %v3736, 5
        %v3739 = vsel %vm3437, %v3722, %v3738
        %v3741 = vshll.u32 %v783, 16
        %v3743 = vrot.slane %v3741, 5
        %v3744 = vsel %vm3437, %v3731, %v3743
        %v3865 = vunpack.c.l.b16 %v3389
        %v3866 = vunpack.c.h.b16 %v3389
        %v3867 = vunpack.c.l.b16 %v3390
        %v3868 = vunpack.c.h.b16 %v3390
        %v3869 = vunpack.c.l.b16 %v3391
        %v3870 = vunpack.c.h.b16 %v3391
        %v3871 = vunpack.c.l.b16 %v3392
        %v3872 = vunpack.c.h.b16 %v3392
        %v3873 = vunpack.c.l.b16 %v3393
        %v3874 = vunpack.c.h.b16 %v3393
        %v3875 = vunpack.c.l.b16 %v3394
        %v3876 = vunpack.c.h.b16 %v3394
        %v3877 = vunpack.c.l.b16 %v3395
        %v3878 = vunpack.c.h.b16 %v3395
        %v3879 = vunpack.c.l.b16 %v3396
        %v3880 = vunpack.c.h.b16 %v3396
        %v3881 = vunpack.c.l.b16 %v3397
        %v3882 = vunpack.c.h.b16 %v3397
        %v3883 = vunpack.c.l.b16 %v3398
        %v3884 = vunpack.c.h.b16 %v3398
        %v3885 = vunpack.c.l.b16 %v3399
        %v3886 = vunpack.c.h.b16 %v3399
        %v3887 = vunpack.c.l.b16 %v3400
        %v3888 = vunpack.c.h.b16 %v3400
        %v3889 = vunpack.c.l.b16 %v3401
        %v3890 = vunpack.c.h.b16 %v3401
        %v3891 = vunpack.c.l.b16 %v3402
        %v3892 = vunpack.c.h.b16 %v3402
        %v3893 = vunpack.c.l.b16 %v3403
        %v3894 = vunpack.c.h.b16 %v3403
        %v3895 = vunpack.c.l.b16 %v3404
        %v3896 = vunpack.c.h.b16 %v3404
        %v3897 = vunpack.c.l.b16 %v3405
        %v3898 = vunpack.c.h.b16 %v3405
        %v3899 = vunpack.c.l.b16 %v3406
        %v3900 = vunpack.c.h.b16 %v3406
        %v3901 = vunpack.c.l.b16 %v3407
        %v3902 = vunpack.c.h.b16 %v3407
        %v3903 = vunpack.c.l.b16 %v3408
        %v3904 = vunpack.c.h.b16 %v3408
        %v3905 = vunpack.c.l.b16 %v3409
        %v3906 = vunpack.c.h.b16 %v3409
        %v3907 = vunpack.c.l.b16 %v3410
        %v3908 = vunpack.c.h.b16 %v3410
        %v3909 = vunpack.c.l.b16 %v3411
        %v3910 = vunpack.c.h.b16 %v3411
        %v3911 = vunpack.c.l.b16 %v3412
        %v3912 = vunpack.c.h.b16 %v3412
        %v3913 = vunpack.c.l.b16 %v3413
        %v3914 = vunpack.c.h.b16 %v3413
        %v3915 = vunpack.c.l.b16 %v3414
        %v3916 = vunpack.c.h.b16 %v3414
        %v3917 = vunpack.c.l.b16 %v3415
        %v3918 = vunpack.c.h.b16 %v3415
        %v3919 = vunpack.c.l.b16 %v3416
        %v3920 = vunpack.c.h.b16 %v3416
        %v3921 = vunpack.c.l.b16 %v3417
        %v3922 = vunpack.c.h.b16 %v3417
        %v3923 = vunpack.c.l.b16 %v3418
        %v3924 = vunpack.c.h.b16 %v3418
        %v3925 = vunpack.c.l.b16 %v3419
        %v3926 = vunpack.c.h.b16 %v3419
        %v3927 = vunpack.c.l.b16 %v3420
        %v3928 = vunpack.c.h.b16 %v3420
        %v3929 = vunpack.c.l.b16 %v3421
        %v3930 = vunpack.c.h.b16 %v3421
        %v3931 = vunpack.c.l.b16 %v3422
        %v3932 = vunpack.c.h.b16 %v3422
        %v3933 = vunpack.c.l.b16 %v3423
        %v3934 = vunpack.c.h.b16 %v3423
        %v3935 = vunpack.c.l.b16 %v3424
        %v3936 = vunpack.c.h.b16 %v3424
        %v3937 = vunpack.c.l.b16 %v3425
        %v3938 = vunpack.c.h.b16 %v3425
        %v3939 = vunpack.c.l.b16 %v3426
        %v3940 = vunpack.c.h.b16 %v3426
        %v3941 = vunpack.c.l.b16 %v3427
        %v3942 = vunpack.c.h.b16 %v3427
        %v3943 = vunpack.c.l.b16 %v3428
        %v3944 = vunpack.c.h.b16 %v3428
        %v3945 = vunpack.c.l.b16 %v3429
        %v3946 = vunpack.c.h.b16 %v3429
        %v3947 = vunpack.c.l.b16 %v3430
        %v3948 = vunpack.c.h.b16 %v3430
        %v3949 = vunpack.c.l.b16 %v3431
        %v3950 = vunpack.c.h.b16 %v3431
        %v3951 = vunpack.c.l.b16 %v3432
        %v3952 = vunpack.c.h.b16 %v3432
        %v3953 = vunpack.c.l.b16 %v3433
        %v3954 = vunpack.c.h.b16 %v3433
        %v3955 = vunpack.c.l.b16 %v3434
        %v3956 = vunpack.c.h.b16 %v3434
        %v3957 = vunpack.c.l.b16 %v3435
        %v3958 = vunpack.c.h.b16 %v3435
        %v3959 = vunpack.c.l.b16 %v3436
        %v3960 = vunpack.c.h.b16 %v3436
        %v3961 = vpack.c.b16 %v3867, %v3865
        %v3962 = vpack.c.b16 %v3868, %v3866
        %v3963 = vpack.c.b16 %v3871, %v3869
        %v3964 = vpack.c.b16 %v3872, %v3870
        %v3965 = vpack.c.b16 %v3875, %v3873
        %v3966 = vpack.c.b16 %v3876, %v3874
        %v3967 = vpack.c.b16 %v3879, %v3877
        %v3968 = vpack.c.b16 %v3880, %v3878
        %v3969 = vpack.c.b16 %v3883, %v3881
        %v3970 = vpack.c.b16 %v3884, %v3882
        %v3971 = vpack.c.b16 %v3887, %v3885
        %v3972 = vpack.c.b16 %v3888, %v3886
        %v3973 = vpack.c.b16 %v3891, %v3889
        %v3974 = vpack.c.b16 %v3892, %v3890
        %v3975 = vpack.c.b16 %v3895, %v3893
        %v3976 = vpack.c.b16 %v3896, %v3894
        %v3977 = vpack.c.b16 %v3899, %v3897
        %v3978 = vpack.c.b16 %v3900, %v3898
        %v3979 = vpack.c.b16 %v3903, %v3901
        %v3980 = vpack.c.b16 %v3904, %v3902
        %v3981 = vpack.c.b16 %v3907, %v3905
        %v3982 = vpack.c.b16 %v3908, %v3906
        %v3983 = vpack.c.b16 %v3911, %v3909
        %v3984 = vpack.c.b16 %v3912, %v3910
        %v3985 = vpack.c.b16 %v3915, %v3913
        %v3986 = vpack.c.b16 %v3916, %v3914
        %v3987 = vpack.c.b16 %v3919, %v3917
        %v3988 = vpack.c.b16 %v3920, %v3918
        %v3989 = vpack.c.b16 %v3923, %v3921
        %v3990 = vpack.c.b16 %v3924, %v3922
        %v3991 = vpack.c.b16 %v3927, %v3925
        %v3992 = vpack.c.b16 %v3928, %v3926
        %v3993 = vpack.c.b16 %v3931, %v3929
        %v3994 = vpack.c.b16 %v3932, %v3930
        %v3995 = vpack.c.b16 %v3935, %v3933
        %v3996 = vpack.c.b16 %v3936, %v3934
        %v3997 = vpack.c.b16 %v3939, %v3937
        %v3998 = vpack.c.b16 %v3940, %v3938
        %v3999 = vpack.c.b16 %v3943, %v3941
        %v4000 = vpack.c.b16 %v3944, %v3942
        %v4001 = vpack.c.b16 %v3947, %v3945
        %v4002 = vpack.c.b16 %v3948, %v3946
        %v4003 = vpack.c.b16 %v3951, %v3949
        %v4004 = vpack.c.b16 %v3952, %v3950
        %v4005 = vpack.c.b16 %v3955, %v3953
        %v4006 = vpack.c.b16 %v3956, %v3954
        %v4007 = vpack.c.b16 %v3959, %v3957
        %v4008 = vpack.c.b16 %v3960, %v3958
        %4057 = vmatprep.subr.bf16.mxu0 %v3962
        %4058 = vmatpush1.bf16.msra.mxu0 %v3961
        %4059 = vmatprep.subr.bf16.mxu0 %v3964
        %4060 = vmatpush1.bf16.msra.mxu0 %v3963
        %4061 = vmatprep.subr.bf16.mxu0 %v3966
        %4062 = vmatpush1.bf16.msra.mxu0 %v3965
        %4063 = vmatprep.subr.bf16.mxu0 %v3968
        %4064 = vmatpush1.bf16.msra.mxu0 %v3967
        %4065 = vmatprep.subr.bf16.mxu0 %v3970
        %4066 = vmatpush1.bf16.msra.mxu0 %v3969
        %4067 = vmatprep.subr.bf16.mxu0 %v3972
        %4068 = vmatpush1.bf16.msra.mxu0 %v3971
        %4069 = vmatprep.subr.bf16.mxu0 %v3974
        %4070 = vmatpush1.bf16.msra.mxu0 %v3973
        %4071 = vmatprep.subr.bf16.mxu0 %v3976
        %4072 = vmatpush1.bf16.msra.mxu0 %v3975
        %4073 = vmatprep.subr.bf16.mxu0 %v3978
        %4074 = vmatpush1.bf16.msra.mxu0 %v3977
        %4075 = vmatprep.subr.bf16.mxu0 %v3980
        %4076 = vmatpush1.bf16.msra.mxu0 %v3979
        %4077 = vmatprep.subr.bf16.mxu0 %v3982
        %4078 = vmatpush1.bf16.msra.mxu0 %v3981
        %4079 = vmatprep.subr.bf16.mxu0 %v3984
        %4080 = vmatpush1.bf16.msra.mxu0 %v3983
        %4081 = vmatprep.subr.bf16.mxu0 %v3986
        %4082 = vmatpush1.bf16.msra.mxu0 %v3985
        %4083 = vmatprep.subr.bf16.mxu0 %v3988
        %4084 = vmatpush1.bf16.msra.mxu0 %v3987
        %4085 = vmatprep.subr.bf16.mxu0 %v3990
        %4086 = vmatpush1.bf16.msra.mxu0 %v3989
        %4087 = vmatprep.subr.bf16.mxu0 %v3992
        %4088 = vmatpush1.bf16.msra.mxu0 %v3991
        %4089 = vmatprep.mubr.bf16.mxu0 %v3451
        %4090 = vmatmul.mubr.bf16.gmra.mrb[0].mxu0 %v3444
        %v4091 = vpop.f32.mrb[0].mxu0
        %v4092 = vadd.f32 0.0, %v4091
        %v4093 = vpop.f32.mrb[0].mxu0
        %v4094 = vpop.f32.mrb[0].mxu0
        %v4095 = vadd.f32 0.0, %v4094
        %v4096 = vpop.f32.mrb[0].mxu0
        %4097 = vmatprep.mubr.bf16.mxu0 %v3466
        %4098 = vmatmul.mubr.bf16.gmra.mrb[0].mxu0 %v3462
        %v4099 = vpop.f32.mrb[0].mxu0
        %v4100 = vadd.f32 0.0, %v4099
        %v4101 = vpop.f32.mrb[0].mxu0
        %v4102 = vpop.f32.mrb[0].mxu0
        %v4103 = vadd.f32 0.0, %v4102
        %v4104 = vpop.f32.mrb[0].mxu0
        %v4105 = vadd.f32 0.0, %v4104
        %4106 = vmatprep.mubr.bf16.mxu0 %v3478
        %4107 = vmatmul.mubr.bf16.gmra.mrb[0].mxu0 %v3474
        %v4108 = vpop.f32.mrb[0].mxu0
        %v4109 = vadd.f32 0.0, %v4108
        %v4110 = vpop.f32.mrb[0].mxu0
        %v4111 = vadd.f32 0.0, %v4110
        %v4112 = vpop.f32.mrb[0].mxu0
        %v4113 = vadd.f32 0.0, %v4112
        %v4114 = vpop.f32.mrb[0].mxu0
        %v4115 = vadd.f32 0.0, %v4114
        %4116 = vmatprep.mubr.bf16.mxu0 %v3490
        %4117 = vmatmul.mubr.bf16.gmra.mrb[0].mxu0 %v3486
        %v4118 = vpop.f32.mrb[0].mxu0
        %v4119 = vadd.f32 0.0, %v4118
        %v4120 = vpop.f32.mrb[0].mxu0
        %v4121 = vadd.f32 0.0, %v4120
        %v4122 = vpop.f32.mrb[0].mxu0
        %v4123 = vadd.f32 0.0, %v4122
        %v4124 = vpop.f32.mrb[0].mxu0
        %v4125 = vadd.f32 0.0, %v4124
        %4126 = vmatprep.mubr.bf16.mxu0 %v3502
        %4127 = vmatmul.mubr.bf16.gmra.mrb[0].mxu0 %v3498
        %v4128 = vpop.f32.mrb[0].mxu0
        %v4129 = vadd.f32 0.0, %v4128
        %v4130 = vpop.f32.mrb[0].mxu0
        %v4131 = vadd.f32 0.0, %v4130
        %v4132 = vpop.f32.mrb[0].mxu0
        %v4133 = vadd.f32 0.0, %v4132
        %v4134 = vpop.f32.mrb[0].mxu0
        %v4135 = vadd.f32 0.0, %v4134
        %4136 = vmatprep.mubr.bf16.mxu0 %v3514
        %4137 = vmatmul.mubr.bf16.gmra.mrb[0].mxu0 %v3510
        %v4138 = vpop.f32.mrb[0].mxu0
        %v4139 = vadd.f32 0.0, %v4138
        %v4140 = vpop.f32.mrb[0].mxu0
        %v4141 = vadd.f32 0.0, %v4140
        %v4142 = vpop.f32.mrb[0].mxu0
        %v4143 = vadd.f32 0.0, %v4142
        %v4144 = vpop.f32.mrb[0].mxu0
        %v4145 = vadd.f32 0.0, %v4144
        %4146 = vmatprep.mubr.bf16.mxu0 %v3526
        %4147 = vmatmul.mubr.bf16.gmra.mrb[0].mxu0 %v3522
        %v4148 = vpop.f32.mrb[0].mxu0
        %v4149 = vadd.f32 0.0, %v4148
        %v4150 = vpop.f32.mrb[0].mxu0
        %v4151 = vadd.f32 0.0, %v4150
        %v4152 = vpop.f32.mrb[0].mxu0
        %v4153 = vadd.f32 0.0, %v4152
        %v4154 = vpop.f32.mrb[0].mxu0
        %v4155 = vadd.f32 0.0, %v4154
        %4156 = vmatprep.mubr.bf16.mxu0 %v3538
        %4157 = vmatmul.mubr.bf16.gmra.mrb[0].mxu0 %v3534
        %v4158 = vpop.f32.mrb[0].mxu0
        %v4159 = vadd.f32 0.0, %v4158
        %v4160 = vpop.f32.mrb[0].mxu0
        %v4161 = vadd.f32 0.0, %v4160
        %v4162 = vpop.f32.mrb[0].mxu0
        %v4163 = vadd.f32 0.0, %v4162
        %v4164 = vpop.f32.mrb[0].mxu0
        %v4165 = vadd.f32 0.0, %v4164
        %4166 = vmatprep.mubr.bf16.mxu0 %v3550
        %4167 = vmatmul.mubr.bf16.gmra.mrb[0].mxu0 %v3546
        %v4168 = vpop.f32.mrb[0].mxu0
        %v4169 = vadd.f32 0.0, %v4168
        %v4170 = vpop.f32.mrb[0].mxu0
        %v4171 = vadd.f32 0.0, %v4170
        %v4172 = vpop.f32.mrb[0].mxu0
        %v4173 = vadd.f32 0.0, %v4172
        %v4174 = vpop.f32.mrb[0].mxu0
        %v4175 = vadd.f32 0.0, %v4174
        %4176 = vmatprep.mubr.bf16.mxu0 %v3562
        %4177 = vmatmul.mubr.bf16.gmra.mrb[0].mxu0 %v3558
        %v4178 = vpop.f32.mrb[0].mxu0
        %v4179 = vadd.f32 0.0, %v4178
        %v4180 = vpop.f32.mrb[0].mxu0
        %v4181 = vadd.f32 0.0, %v4180
        %v4182 = vpop.f32.mrb[0].mxu0
        %v4183 = vadd.f32 0.0, %v4182
        %v4184 = vpop.f32.mrb[0].mxu0
        %v4185 = vadd.f32 0.0, %v4184
        %4186 = vmatprep.mubr.bf16.mxu0 %v3574
        %4187 = vmatmul.mubr.bf16.gmra.mrb[0].mxu0 %v3570
        %v4188 = vpop.f32.mrb[0].mxu0
        %v4189 = vadd.f32 0.0, %v4188
        %v4190 = vpop.f32.mrb[0].mxu0
        %v4191 = vadd.f32 0.0, %v4190
        %v4192 = vpop.f32.mrb[0].mxu0
        %v4193 = vadd.f32 0.0, %v4192
        %v4194 = vpop.f32.mrb[0].mxu0
        %v4195 = vadd.f32 0.0, %v4194
        %4196 = vmatprep.mubr.bf16.mxu0 %v3586
        %4197 = vmatmul.mubr.bf16.gmra.mrb[0].mxu0 %v3582
        %v4198 = vpop.f32.mrb[0].mxu0
        %v4199 = vadd.f32 0.0, %v4198
        %v4200 = vpop.f32.mrb[0].mxu0
        %v4201 = vadd.f32 0.0, %v4200
        %v4202 = vpop.f32.mrb[0].mxu0
        %v4203 = vadd.f32 0.0, %v4202
        %v4204 = vpop.f32.mrb[0].mxu0
        %v4205 = vadd.f32 0.0, %v4204
        %4206 = vmatprep.mubr.bf16.mxu0 %v3598
        %4207 = vmatmul.mubr.bf16.gmra.mrb[0].mxu0 %v3594
        %v4208 = vpop.f32.mrb[0].mxu0
        %v4209 = vadd.f32 0.0, %v4208
        %v4210 = vpop.f32.mrb[0].mxu0
        %v4211 = vadd.f32 0.0, %v4210
        %v4212 = vpop.f32.mrb[0].mxu0
        %v4213 = vadd.f32 0.0, %v4212
        %v4214 = vpop.f32.mrb[0].mxu0
        %v4215 = vadd.f32 0.0, %v4214
        %4216 = vmatprep.mubr.bf16.mxu0 %v3610
        %4217 = vmatmul.mubr.bf16.gmra.mrb[0].mxu0 %v3606
        %v4218 = vpop.f32.mrb[0].mxu0
        %v4219 = vadd.f32 0.0, %v4218
        %v4220 = vpop.f32.mrb[0].mxu0
        %v4221 = vadd.f32 0.0, %v4220
        %v4222 = vpop.f32.mrb[0].mxu0
        %v4223 = vadd.f32 0.0, %v4222
        %v4224 = vpop.f32.mrb[0].mxu0
        %v4225 = vadd.f32 0.0, %v4224
        %4226 = vmatprep.mubr.bf16.mxu0 %v3622
        %4227 = vmatmul.mubr.bf16.gmra.mrb[0].mxu0 %v3618
        %v4228 = vpop.f32.mrb[0].mxu0
        %v4229 = vadd.f32 0.0, %v4228
        %v4230 = vpop.f32.mrb[0].mxu0
        %v4231 = vadd.f32 0.0, %v4230
        %v4232 = vpop.f32.mrb[0].mxu0
        %v4233 = vadd.f32 0.0, %v4232
        %v4234 = vpop.f32.mrb[0].mxu0
        %v4235 = vadd.f32 0.0, %v4234
        %4236 = vmatprep.mubr.bf16.mxu0 %v3634
        %4237 = vmatmul.mubr.bf16.gmra.mrb[0].mxu0 %v3630
        %v4238 = vpop.f32.mrb[0].mxu0
        %v4239 = vadd.f32 0.0, %v4238
        %v4240 = vpop.f32.mrb[0].mxu0
        %v4241 = vadd.f32 0.0, %v4240
        %v4242 = vpop.f32.mrb[0].mxu0
        %v4243 = vadd.f32 0.0, %v4242
        %v4244 = vpop.f32.mrb[0].mxu0
        %v4245 = vadd.f32 0.0, %v4244
        %4246 = vmatprep.mubr.bf16.mxu0 %v3646
        %4247 = vmatmul.mubr.bf16.gmra.mrb[0].mxu0 %v3642
        %v4248 = vpop.f32.mrb[0].mxu0
        %v4249 = vadd.f32 0.0, %v4248
        %v4250 = vpop.f32.mrb[0].mxu0
        %v4251 = vadd.f32 0.0, %v4250
        %v4252 = vpop.f32.mrb[0].mxu0
        %v4253 = vadd.f32 0.0, %v4252
        %v4254 = vpop.f32.mrb[0].mxu0
        %v4255 = vadd.f32 0.0, %v4254
        %4256 = vmatprep.mubr.bf16.mxu0 %v3658
        %4257 = vmatmul.mubr.bf16.gmra.mrb[0].mxu0 %v3654
        %v4258 = vpop.f32.mrb[0].mxu0
        %v4259 = vadd.f32 0.0, %v4258
        %v4260 = vpop.f32.mrb[0].mxu0
        %v4261 = vadd.f32 0.0, %v4260
        %v4262 = vpop.f32.mrb[0].mxu0
        %v4263 = vadd.f32 0.0, %v4262
        %v4264 = vpop.f32.mrb[0].mxu0
        %v4265 = vadd.f32 0.0, %v4264
        %4266 = vmatprep.mubr.bf16.mxu0 %v3670
        %4267 = vmatmul.mubr.bf16.gmra.mrb[0].mxu0 %v3666
        %v4268 = vpop.f32.mrb[0].mxu0
        %v4269 = vadd.f32 0.0, %v4268
        %v4270 = vpop.f32.mrb[0].mxu0
        %v4271 = vadd.f32 0.0, %v4270
        %v4272 = vpop.f32.mrb[0].mxu0
        %v4273 = vadd.f32 0.0, %v4272
        %v4274 = vpop.f32.mrb[0].mxu0
        %v4275 = vadd.f32 0.0, %v4274
        %4276 = vmatprep.mubr.bf16.mxu0 %v3682
        %4277 = vmatmul.mubr.bf16.gmra.mrb[0].mxu0 %v3678
        %v4278 = vpop.f32.mrb[0].mxu0
        %v4279 = vadd.f32 0.0, %v4278
        %v4280 = vpop.f32.mrb[0].mxu0
        %v4281 = vadd.f32 0.0, %v4280
        %v4282 = vpop.f32.mrb[0].mxu0
        %v4283 = vadd.f32 0.0, %v4282
        %v4284 = vpop.f32.mrb[0].mxu0
        %v4285 = vadd.f32 0.0, %v4284
        %4286 = vmatprep.mubr.bf16.mxu0 %v3694
        %4287 = vmatmul.mubr.bf16.gmra.mrb[0].mxu0 %v3690
        %v4288 = vpop.f32.mrb[0].mxu0
        %v4289 = vadd.f32 0.0, %v4288
        %v4290 = vpop.f32.mrb[0].mxu0
        %v4291 = vadd.f32 0.0, %v4290
        %v4292 = vpop.f32.mrb[0].mxu0
        %v4293 = vadd.f32 0.0, %v4292
        %v4294 = vpop.f32.mrb[0].mxu0
        %v4295 = vadd.f32 0.0, %v4294
        %4296 = vmatprep.mubr.bf16.mxu0 %v3706
        %4297 = vmatmul.mubr.bf16.gmra.mrb[0].mxu0 %v3702
        %v4298 = vpop.f32.mrb[0].mxu0
        %v4299 = vadd.f32 0.0, %v4298
        %v4300 = vpop.f32.mrb[0].mxu0
        %v4301 = vadd.f32 0.0, %v4300
        %v4302 = vpop.f32.mrb[0].mxu0
        %v4303 = vadd.f32 0.0, %v4302
        %v4304 = vpop.f32.mrb[0].mxu0
        %v4305 = vadd.f32 0.0, %v4304
        %4306 = vmatprep.mubr.bf16.mxu0 %v3723
        %4307 = vmatmul.mubr.bf16.gmra.mrb[0].mxu0 %v3714
        %v4308 = vpop.f32.mrb[0].mxu0
        %v4309 = vadd.f32 0.0, %v4308
        %v4310 = vpop.f32.mrb[0].mxu0
        %v4311 = vpop.f32.mrb[0].mxu0
        %v4312 = vadd.f32 0.0, %v4311
        %v4313 = vpop.f32.mrb[0].mxu0
        %4314 = vmatprep.mubr.bf16.mxu0 %v3739
        %4315 = vmatmul.mubr.bf16.gmra.mrb[0].mxu0 %v3734
        %v4316 = vpop.f32.mrb[0].mxu0
        %v4317 = vadd.f32 0.0, %v4316
        %v4318 = vpop.f32.mrb[0].mxu0
        %v4319 = vpop.f32.mrb[0].mxu0
        %v4320 = vpop.f32.mrb[0].mxu0
        %4321 = vdwg.mxu0
        %4322 = vmatprep.subr.bf16.mxu0 %v3994
        %4323 = vmatpush1.bf16.msra.mxu0 %v3993
        %4324 = vmatprep.subr.bf16.mxu0 %v3996
        %4325 = vmatpush1.bf16.msra.mxu0 %v3995
        %4326 = vmatprep.subr.bf16.mxu0 %v3998
        %4327 = vmatpush1.bf16.msra.mxu0 %v3997
        %4328 = vmatprep.subr.bf16.mxu0 %v4000
        %4329 = vmatpush1.bf16.msra.mxu0 %v3999
        %4330 = vmatprep.subr.bf16.mxu0 %v4002
        %4331 = vmatpush1.bf16.msra.mxu0 %v4001
        %4332 = vmatprep.subr.bf16.mxu0 %v4004
        %4333 = vmatpush1.bf16.msra.mxu0 %v4003
        %4334 = vmatprep.subr.bf16.mxu0 %v4006
        %4335 = vmatpush1.bf16.msra.mxu0 %v4005
        %4336 = vmatprep.subr.bf16.mxu0 %v4008
        %4337 = vmatpush1.bf16.msra.mxu0 %v4007
        %4338 = vmatprep.subr.bf16.mxu0 0
        %4339 = vmatpush1.bf16.msra.mxu0 0
        %4340 = vmatprep.subr.bf16.mxu0 0
        %4341 = vmatpush1.bf16.msra.mxu0 0
        %4342 = vmatprep.subr.bf16.mxu0 0
        %4343 = vmatpush1.bf16.msra.mxu0 0
        %4344 = vmatprep.subr.bf16.mxu0 0
        %4345 = vmatpush1.bf16.msra.mxu0 0
        %4346 = vmatprep.subr.bf16.mxu0 0
        %4347 = vmatpush1.bf16.msra.mxu0 0
        %4348 = vmatprep.subr.bf16.mxu0 0
        %4349 = vmatpush1.bf16.msra.mxu0 0
        %4350 = vmatprep.subr.bf16.mxu0 0
        %4351 = vmatpush1.bf16.msra.mxu0 0
        %4352 = vmatprep.subr.bf16.mxu0 0
        %4353 = vmatpush1.bf16.msra.mxu0 0
        %4354 = vmatprep.mubr.bf16.mxu0 0
        %4355 = vmatmul.mubr.bf16.gmra.mrb[0].mxu0 %v3458
        %v4356 = vpop.f32.mrb[0].mxu0
        %v4357 = vadd.f32 %v4092, %v4356
        %v4358 = vpop.f32.mrb[0].mxu0
        %v4359 = vpop.f32.mrb[0].mxu0
        %v4360 = vadd.f32 %v4095, %v4359
        %v4361 = vpop.f32.mrb[0].mxu0
        %4362 = vmatprep.mubr.bf16.mxu0 0
        %4363 = vmatmul.mubr.bf16.gmra.mrb[0].mxu0 %v3470
        %v4364 = vpop.f32.mrb[0].mxu0
        %v4365 = vadd.f32 %v4100, %v4364
        %v4366 = vpop.f32.mrb[0].mxu0
        %v4367 = vpop.f32.mrb[0].mxu0
        %v4368 = vadd.f32 %v4103, %v4367
        %v4369 = vpop.f32.mrb[0].mxu0
        %v4370 = vadd.f32 %v4105, %v4369
        %4371 = vmatprep.mubr.bf16.mxu0 0
        %4372 = vmatmul.mubr.bf16.gmra.mrb[0].mxu0 %v3482
        %v4373 = vpop.f32.mrb[0].mxu0
        %v4374 = vadd.f32 %v4109, %v4373
        %v4375 = vpop.f32.mrb[0].mxu0
        %v4376 = vadd.f32 %v4111, %v4375
        %v4377 = vpop.f32.mrb[0].mxu0
        %v4378 = vadd.f32 %v4113, %v4377
        %v4379 = vpop.f32.mrb[0].mxu0
        %v4380 = vadd.f32 %v4115, %v4379
        %4381 = vmatprep.mubr.bf16.mxu0 0
        %4382 = vmatmul.mubr.bf16.gmra.mrb[0].mxu0 %v3494
        %v4383 = vpop.f32.mrb[0].mxu0
        %v4384 = vadd.f32 %v4119, %v4383
        %v4385 = vpop.f32.mrb[0].mxu0
        %v4386 = vadd.f32 %v4121, %v4385
        %v4387 = vpop.f32.mrb[0].mxu0
        %v4388 = vadd.f32 %v4123, %v4387
        %v4389 = vpop.f32.mrb[0].mxu0
        %v4390 = vadd.f32 %v4125, %v4389
        %4391 = vmatprep.mubr.bf16.mxu0 0
        %4392 = vmatmul.mubr.bf16.gmra.mrb[0].mxu0 %v3506
        %v4393 = vpop.f32.mrb[0].mxu0
        %v4394 = vadd.f32 %v4129, %v4393
        %v4395 = vpop.f32.mrb[0].mxu0
        %v4396 = vadd.f32 %v4131, %v4395
        %v4397 = vpop.f32.mrb[0].mxu0
        %v4398 = vadd.f32 %v4133, %v4397
        %v4399 = vpop.f32.mrb[0].mxu0
        %v4400 = vadd.f32 %v4135, %v4399
        %4401 = vmatprep.mubr.bf16.mxu0 0
        %4402 = vmatmul.mubr.bf16.gmra.mrb[0].mxu0 %v3518
        %v4403 = vpop.f32.mrb[0].mxu0
        %v4404 = vadd.f32 %v4139, %v4403
        %v4405 = vpop.f32.mrb[0].mxu0
        %v4406 = vadd.f32 %v4141, %v4405
        %v4407 = vpop.f32.mrb[0].mxu0
        %v4408 = vadd.f32 %v4143, %v4407
        %v4409 = vpop.f32.mrb[0].mxu0
        %v4410 = vadd.f32 %v4145, %v4409
        %4411 = vmatprep.mubr.bf16.mxu0 0
        %4412 = vmatmul.mubr.bf16.gmra.mrb[0].mxu0 %v3530
        %v4413 = vpop.f32.mrb[0].mxu0
        %v4414 = vadd.f32 %v4149, %v4413
        %v4415 = vpop.f32.mrb[0].mxu0
        %v4416 = vadd.f32 %v4151, %v4415
        %v4417 = vpop.f32.mrb[0].mxu0
        %v4418 = vadd.f32 %v4153, %v4417
        %v4419 = vpop.f32.mrb[0].mxu0
        %v4420 = vadd.f32 %v4155, %v4419
        %4421 = vmatprep.mubr.bf16.mxu0 0
        %4422 = vmatmul.mubr.bf16.gmra.mrb[0].mxu0 %v3542
        %v4423 = vpop.f32.mrb[0].mxu0
        %v4424 = vadd.f32 %v4159, %v4423
        %v4425 = vpop.f32.mrb[0].mxu0
        %v4426 = vadd.f32 %v4161, %v4425
        %v4427 = vpop.f32.mrb[0].mxu0
        %v4428 = vadd.f32 %v4163, %v4427
        %v4429 = vpop.f32.mrb[0].mxu0
        %v4430 = vadd.f32 %v4165, %v4429
        %4431 = vmatprep.mubr.bf16.mxu0 0
        %4432 = vmatmul.mubr.bf16.gmra.mrb[0].mxu0 %v3554
        %v4433 = vpop.f32.mrb[0].mxu0
        %v4434 = vadd.f32 %v4169, %v4433
        %v4435 = vpop.f32.mrb[0].mxu0
        %v4436 = vadd.f32 %v4171, %v4435
        %v4437 = vpop.f32.mrb[0].mxu0
        %v4438 = vadd.f32 %v4173, %v4437
        %v4439 = vpop.f32.mrb[0].mxu0
        %v4440 = vadd.f32 %v4175, %v4439
        %4441 = vmatprep.mubr.bf16.mxu0 0
        %4442 = vmatmul.mubr.bf16.gmra.mrb[0].mxu0 %v3566
        %v4443 = vpop.f32.mrb[0].mxu0
        %v4444 = vadd.f32 %v4179, %v4443
        %v4445 = vpop.f32.mrb[0].mxu0
        %v4446 = vadd.f32 %v4181, %v4445
        %v4447 = vpop.f32.mrb[0].mxu0
        %v4448 = vadd.f32 %v4183, %v4447
        %v4449 = vpop.f32.mrb[0].mxu0
        %v4450 = vadd.f32 %v4185, %v4449
        %4451 = vmatprep.mubr.bf16.mxu0 0
        %4452 = vmatmul.mubr.bf16.gmra.mrb[0].mxu0 %v3578
        %v4453 = vpop.f32.mrb[0].mxu0
        %v4454 = vadd.f32 %v4189, %v4453
        %v4455 = vpop.f32.mrb[0].mxu0
        %v4456 = vadd.f32 %v4191, %v4455
        %v4457 = vpop.f32.mrb[0].mxu0
        %v4458 = vadd.f32 %v4193, %v4457
        %v4459 = vpop.f32.mrb[0].mxu0
        %v4460 = vadd.f32 %v4195, %v4459
        %4461 = vmatprep.mubr.bf16.mxu0 0
        %4462 = vmatmul.mubr.bf16.gmra.mrb[0].mxu0 %v3590
        %v4463 = vpop.f32.mrb[0].mxu0
        %v4464 = vadd.f32 %v4199, %v4463
        %v4465 = vpop.f32.mrb[0].mxu0
        %v4466 = vadd.f32 %v4201, %v4465
        %v4467 = vpop.f32.mrb[0].mxu0
        %v4468 = vadd.f32 %v4203, %v4467
        %v4469 = vpop.f32.mrb[0].mxu0
        %v4470 = vadd.f32 %v4205, %v4469
        %4471 = vmatprep.mubr.bf16.mxu0 0
        %4472 = vmatmul.mubr.bf16.gmra.mrb[0].mxu0 %v3602
        %v4473 = vpop.f32.mrb[0].mxu0
        %v4474 = vadd.f32 %v4209, %v4473
        %v4475 = vpop.f32.mrb[0].mxu0
        %v4476 = vadd.f32 %v4211, %v4475
        %v4477 = vpop.f32.mrb[0].mxu0
        %v4478 = vadd.f32 %v4213, %v4477
        %v4479 = vpop.f32.mrb[0].mxu0
        %v4480 = vadd.f32 %v4215, %v4479
        %4481 = vmatprep.mubr.bf16.mxu0 0
        %4482 = vmatmul.mubr.bf16.gmra.mrb[0].mxu0 %v3614
        %v4483 = vpop.f32.mrb[0].mxu0
        %v4484 = vadd.f32 %v4219, %v4483
        %v4485 = vpop.f32.mrb[0].mxu0
        %v4486 = vadd.f32 %v4221, %v4485
        %v4487 = vpop.f32.mrb[0].mxu0
        %v4488 = vadd.f32 %v4223, %v4487
        %v4489 = vpop.f32.mrb[0].mxu0
        %v4490 = vadd.f32 %v4225, %v4489
        %4491 = vmatprep.mubr.bf16.mxu0 0
        %4492 = vmatmul.mubr.bf16.gmra.mrb[0].mxu0 %v3626
        %v4493 = vpop.f32.mrb[0].mxu0
        %v4494 = vadd.f32 %v4229, %v4493
        %v4495 = vpop.f32.mrb[0].mxu0
        %v4496 = vadd.f32 %v4231, %v4495
        %v4497 = vpop.f32.mrb[0].mxu0
        %v4498 = vadd.f32 %v4233, %v4497
        %v4499 = vpop.f32.mrb[0].mxu0
        %v4500 = vadd.f32 %v4235, %v4499
        %4501 = vmatprep.mubr.bf16.mxu0 0
        %4502 = vmatmul.mubr.bf16.gmra.mrb[0].mxu0 %v3638
        %v4503 = vpop.f32.mrb[0].mxu0
        %v4504 = vadd.f32 %v4239, %v4503
        %v4505 = vpop.f32.mrb[0].mxu0
        %v4506 = vadd.f32 %v4241, %v4505
        %v4507 = vpop.f32.mrb[0].mxu0
        %v4508 = vadd.f32 %v4243, %v4507
        %v4509 = vpop.f32.mrb[0].mxu0
        %v4510 = vadd.f32 %v4245, %v4509
        %4511 = vmatprep.mubr.bf16.mxu0 0
        %4512 = vmatmul.mubr.bf16.gmra.mrb[0].mxu0 %v3650
        %v4513 = vpop.f32.mrb[0].mxu0
        %v4514 = vadd.f32 %v4249, %v4513
        %v4515 = vpop.f32.mrb[0].mxu0
        %v4516 = vadd.f32 %v4251, %v4515
        %v4517 = vpop.f32.mrb[0].mxu0
        %v4518 = vadd.f32 %v4253, %v4517
        %v4519 = vpop.f32.mrb[0].mxu0
        %v4520 = vadd.f32 %v4255, %v4519
        %4521 = vmatprep.mubr.bf16.mxu0 0
        %4522 = vmatmul.mubr.bf16.gmra.mrb[0].mxu0 %v3662
        %v4523 = vpop.f32.mrb[0].mxu0
        %v4524 = vadd.f32 %v4259, %v4523
        %v4525 = vpop.f32.mrb[0].mxu0
        %v4526 = vadd.f32 %v4261, %v4525
        %v4527 = vpop.f32.mrb[0].mxu0
        %v4528 = vadd.f32 %v4263, %v4527
        %v4529 = vpop.f32.mrb[0].mxu0
        %v4530 = vadd.f32 %v4265, %v4529
        %4531 = vmatprep.mubr.bf16.mxu0 0
        %4532 = vmatmul.mubr.bf16.gmra.mrb[0].mxu0 %v3674
        %v4533 = vpop.f32.mrb[0].mxu0
        %v4534 = vadd.f32 %v4269, %v4533
        %v4535 = vpop.f32.mrb[0].mxu0
        %v4536 = vadd.f32 %v4271, %v4535
        %v4537 = vpop.f32.mrb[0].mxu0
        %v4538 = vadd.f32 %v4273, %v4537
        %v4539 = vpop.f32.mrb[0].mxu0
        %v4540 = vadd.f32 %v4275, %v4539
        %4541 = vmatprep.mubr.bf16.mxu0 0
        %4542 = vmatmul.mubr.bf16.gmra.mrb[0].mxu0 %v3686
        %v4543 = vpop.f32.mrb[0].mxu0
        %v4544 = vadd.f32 %v4279, %v4543
        %v4545 = vpop.f32.mrb[0].mxu0
        %v4546 = vadd.f32 %v4281, %v4545
        %v4547 = vpop.f32.mrb[0].mxu0
        %v4548 = vadd.f32 %v4283, %v4547
        %v4549 = vpop.f32.mrb[0].mxu0
        %v4550 = vadd.f32 %v4285, %v4549
        %4551 = vmatprep.mubr.bf16.mxu0 0
        %4552 = vmatmul.mubr.bf16.gmra.mrb[0].mxu0 %v3698
        %v4553 = vpop.f32.mrb[0].mxu0
        %v4554 = vadd.f32 %v4289, %v4553
        %v4555 = vpop.f32.mrb[0].mxu0
        %v4556 = vadd.f32 %v4291, %v4555
        %v4557 = vpop.f32.mrb[0].mxu0
        %v4558 = vadd.f32 %v4293, %v4557
        %v4559 = vpop.f32.mrb[0].mxu0
        %v4560 = vadd.f32 %v4295, %v4559
        %4561 = vmatprep.mubr.bf16.mxu0 0
        %4562 = vmatmul.mubr.bf16.gmra.mrb[0].mxu0 %v3710
        %v4563 = vpop.f32.mrb[0].mxu0
        %v4564 = vadd.f32 %v4299, %v4563
        %v4565 = vpop.f32.mrb[0].mxu0
        %v4566 = vadd.f32 %v4301, %v4565
        %v4567 = vpop.f32.mrb[0].mxu0
        %v4568 = vadd.f32 %v4303, %v4567
        %v4569 = vpop.f32.mrb[0].mxu0
        %v4570 = vadd.f32 %v4305, %v4569
        %4571 = vmatprep.mubr.bf16.mxu0 0
        %4572 = vmatmul.mubr.bf16.gmra.mrb[0].mxu0 %v3732
        %v4573 = vpop.f32.mrb[0].mxu0
        %v4574 = vadd.f32 %v4309, %v4573
        %v4575 = vpop.f32.mrb[0].mxu0
        %v4576 = vpop.f32.mrb[0].mxu0
        %v4577 = vadd.f32 %v4312, %v4576
        %v4578 = vpop.f32.mrb[0].mxu0
        %4579 = vmatprep.mubr.bf16.mxu0 0
        %4580 = vmatmul.mubr.bf16.gmra.mrb[0].mxu0 %v3744
        %v4581 = vpop.f32.mrb[0].mxu0
        %v4582 = vadd.f32 %v4317, %v4581
        %v4583 = vpop.f32.mrb[0].mxu0
        %v4584 = vpop.f32.mrb[0].mxu0
        %v4585 = vpop.f32.mrb[0].mxu0
        %4586 = vdwg.mxu0
        %v4587 = vadd.f32 %v3158, %v4357
        %v4588 = vadd.f32 %v3161, %v4360
        %v4589 = vadd.f32 %v3166, %v4365
        %v4590 = vadd.f32 %v3169, %v4368
        %v4591 = vadd.f32 %v3171, %v4370
        %v4592 = vadd.f32 %v3175, %v4374
        %v4593 = vadd.f32 %v3177, %v4376
        %v4594 = vadd.f32 %v3179, %v4378
        %v4595 = vadd.f32 %v3181, %v4380
        %v4596 = vadd.f32 %v3185, %v4384
        %v4597 = vadd.f32 %v3187, %v4386
        %v4598 = vadd.f32 %v3189, %v4388
        %v4599 = vadd.f32 %v3191, %v4390
        %v4600 = vadd.f32 %v3195, %v4394
        %v4601 = vadd.f32 %v3197, %v4396
        %v4602 = vadd.f32 %v3199, %v4398
        %v4603 = vadd.f32 %v3201, %v4400
        %v4604 = vadd.f32 %v3205, %v4404
        %v4605 = vadd.f32 %v3207, %v4406
        %v4606 = vadd.f32 %v3209, %v4408
        %v4607 = vadd.f32 %v3211, %v4410
        %v4608 = vadd.f32 %v3215, %v4414
        %v4609 = vadd.f32 %v3217, %v4416
        %v4610 = vadd.f32 %v3219, %v4418
        %v4611 = vadd.f32 %v3221, %v4420
        %v4612 = vadd.f32 %v3225, %v4424
        %v4613 = vadd.f32 %v3227, %v4426
        %v4614 = vadd.f32 %v3229, %v4428
        %v4615 = vadd.f32 %v3231, %v4430
        %v4616 = vadd.f32 %v3235, %v4434
        %v4617 = vadd.f32 %v3237, %v4436
        %v4618 = vadd.f32 %v3239, %v4438
        %v4619 = vadd.f32 %v3241, %v4440
        %v4620 = vadd.f32 %v3245, %v4444
        %v4621 = vadd.f32 %v3247, %v4446
        %v4622 = vadd.f32 %v3249, %v4448
        %v4623 = vadd.f32 %v3251, %v4450
        %v4624 = vadd.f32 %v3255, %v4454
        %v4625 = vadd.f32 %v3257, %v4456
        %v4626 = vadd.f32 %v3259, %v4458
        %v4627 = vadd.f32 %v3261, %v4460
        %v4628 = vadd.f32 %v3265, %v4464
        %v4629 = vadd.f32 %v3267, %v4466
        %v4630 = vadd.f32 %v3269, %v4468
        %v4631 = vadd.f32 %v3271, %v4470
        %v4632 = vadd.f32 %v3275, %v4474
        %v4633 = vadd.f32 %v3277, %v4476
        %v4634 = vadd.f32 %v3279, %v4478
        %v4635 = vadd.f32 %v3281, %v4480
        %v4636 = vadd.f32 %v3285, %v4484
        %v4637 = vadd.f32 %v3287, %v4486
        %v4638 = vadd.f32 %v3289, %v4488
        %v4639 = vadd.f32 %v3291, %v4490
        %v4640 = vadd.f32 %v3295, %v4494
        %v4641 = vadd.f32 %v3297, %v4496
        %v4642 = vadd.f32 %v3299, %v4498
        %v4643 = vadd.f32 %v3301, %v4500
        %v4644 = vadd.f32 %v3305, %v4504
        %v4645 = vadd.f32 %v3307, %v4506
        %v4646 = vadd.f32 %v3309, %v4508
        %v4647 = vadd.f32 %v3311, %v4510
        %v4648 = vadd.f32 %v3315, %v4514
        %v4649 = vadd.f32 %v3317, %v4516
        %v4650 = vadd.f32 %v3319, %v4518
        %v4651 = vadd.f32 %v3321, %v4520
        %v4652 = vadd.f32 %v3325, %v4524
        %v4653 = vadd.f32 %v3327, %v4526
        %v4654 = vadd.f32 %v3329, %v4528
        %v4655 = vadd.f32 %v3331, %v4530
        %v4656 = vadd.f32 %v3335, %v4534
        %v4657 = vadd.f32 %v3337, %v4536
        %v4658 = vadd.f32 %v3339, %v4538
        %v4659 = vadd.f32 %v3341, %v4540
        %v4660 = vadd.f32 %v3345, %v4544
        %v4661 = vadd.f32 %v3347, %v4546
        %v4662 = vadd.f32 %v3349, %v4548
        %v4663 = vadd.f32 %v3351, %v4550
        %v4664 = vadd.f32 %v3355, %v4554
        %v4665 = vadd.f32 %v3357, %v4556
        %v4666 = vadd.f32 %v3359, %v4558
        %v4667 = vadd.f32 %v3361, %v4560
        %v4668 = vadd.f32 %v3365, %v4564
        %v4669 = vadd.f32 %v3367, %v4566
        %v4670 = vadd.f32 %v3369, %v4568
        %v4671 = vadd.f32 %v3371, %v4570
        %v4672 = vadd.f32 %v3375, %v4574
        %v4673 = vadd.f32 %v3378, %v4577
        %v4674 = vadd.f32 %v3383, %v4582
        %v4675 = vlaneseq
        %v4676 = vshrl.u32 %v4675, 7
        %v4677 = vadd.s32 %v4676, 8
        %v4678 = vadd.s32 %v4676, 16
        %v4679 = vadd.s32 %v4676, 24
        %v4680 = vadd.s32 %v4676, 32
        %v4681 = vadd.s32 %v4676, 40
        %v4682 = vadd.s32 %v4676, 48
        %v4683 = vadd.s32 %v4676, 56
        %v4684 = vadd.s32 %v4676, 64
        %v4685 = vadd.s32 %v4676, 72
        %v4686 = vadd.s32 %v4676, 80
        %v4687 = vadd.s32 %v4676, 88
        %v4688 = vadd.s32 %v4676, 96
        %v4689 = vadd.s32 %v4676, 104
        %v4690 = vadd.s32 %v4676, 112
        %v4691 = vadd.s32 %v4676, 120
        %v4692 = vadd.s32 %v4676, 128
        %v4693 = vadd.s32 %v4676, 136
        %v4694 = vadd.s32 %v4676, 144
        %v4695 = vadd.s32 %v4676, 152
        %v4696 = vadd.s32 %v4676, 160
        %v4697 = vadd.s32 %v4676, 168
        %v4698 = vadd.s32 %v4676, 176
        %v4699 = vadd.s32 %v4676, 184
        %v4700 = vadd.s32 %v4676, 192
        %v4701 = vadd.s32 %v4676, 200
        %v4702 = vadd.s32 %v4676, 208
        %v4703 = vadd.s32 %v4676, 216
        %v4704 = vadd.s32 %v4676, 224
        %v4705 = vadd.s32 %v4676, 232
        %v4706 = vadd.s32 %v4676, 240
        %v4707 = vadd.s32 %v4676, 248
        %v4708 = vadd.s32 %v4676, 256
        %v4709 = vadd.s32 %v4676, 264
        %v4710 = vadd.s32 %v4676, 272
        %v4711 = vadd.s32 %v4676, 280
        %v4712 = vadd.s32 %v4676, 288
        %v4713 = vadd.s32 %v4676, 296
        %v4714 = vadd.s32 %v4676, 304
        %v4715 = vadd.s32 %v4676, 312
        %v4716 = vadd.s32 %v4676, 320
        %v4717 = vadd.s32 %v4676, 328
        %v4718 = vadd.s32 %v4676, 336
        %v4719 = vadd.s32 %v4676, 344
        %v4720 = vadd.s32 %v4676, 352
        %v4721 = vadd.s32 %v4676, 360
        %v4722 = vadd.s32 %v4676, 368
        %v4723 = vcvt.s32.f32 %v4676
        %v4724 = vcvt.s32.f32 %v4677
        %v4725 = vcvt.s32.f32 %v4678
        %v4726 = vcvt.s32.f32 %v4679
        %v4727 = vcvt.s32.f32 %v4680
        %v4728 = vcvt.s32.f32 %v4681
        %v4729 = vcvt.s32.f32 %v4682
        %v4730 = vcvt.s32.f32 %v4683
        %v4731 = vcvt.s32.f32 %v4684
        %v4732 = vcvt.s32.f32 %v4685
        %v4733 = vcvt.s32.f32 %v4686
        %v4734 = vcvt.s32.f32 %v4687
        %v4735 = vcvt.s32.f32 %v4688
        %v4736 = vcvt.s32.f32 %v4689
        %v4737 = vcvt.s32.f32 %v4690
        %v4738 = vcvt.s32.f32 %v4691
        %v4739 = vcvt.s32.f32 %v4692
        %v4740 = vcvt.s32.f32 %v4693
        %v4741 = vcvt.s32.f32 %v4694
        %v4742 = vcvt.s32.f32 %v4695
        %v4743 = vcvt.s32.f32 %v4696
        %v4744 = vcvt.s32.f32 %v4697
        %v4745 = vcvt.s32.f32 %v4698
        %v4746 = vcvt.s32.f32 %v4699
        %v4747 = vcvt.s32.f32 %v4700
        %v4748 = vcvt.s32.f32 %v4701
        %v4749 = vcvt.s32.f32 %v4702
        %v4750 = vcvt.s32.f32 %v4703
        %v4751 = vcvt.s32.f32 %v4704
        %v4752 = vcvt.s32.f32 %v4705
        %v4753 = vcvt.s32.f32 %v4706
        %v4754 = vcvt.s32.f32 %v4707
        %v4755 = vcvt.s32.f32 %v4708
        %v4756 = vcvt.s32.f32 %v4709
        %v4757 = vcvt.s32.f32 %v4710
        %v4758 = vcvt.s32.f32 %v4711
        %v4759 = vcvt.s32.f32 %v4712
        %v4760 = vcvt.s32.f32 %v4713
        %v4761 = vcvt.s32.f32 %v4714
        %v4762 = vcvt.s32.f32 %v4715
        %v4763 = vcvt.s32.f32 %v4716
        %v4764 = vcvt.s32.f32 %v4717
        %v4765 = vcvt.s32.f32 %v4718
        %v4766 = vcvt.s32.f32 %v4719
        %v4767 = vcvt.s32.f32 %v4720
        %v4768 = vcvt.s32.f32 %v4721
        %v4769 = vcvt.s32.f32 %v4722
        %v4770 = vadd.f32 %v4723, -24.0
        %v4771 = vadd.f32 %v4724, -24.0
        %v4772 = vadd.f32 %v4725, -24.0
        %v4773 = vadd.f32 %v4726, -24.0
        %v4774 = vadd.f32 %v4727, -24.0
        %v4775 = vadd.f32 %v4728, -24.0
        %v4776 = vadd.f32 %v4729, -24.0
        %v4777 = vadd.f32 %v4730, -24.0
        %v4778 = vadd.f32 %v4731, -24.0
        %v4779 = vadd.f32 %v4732, -24.0
        %v4780 = vadd.f32 %v4733, -24.0
        %v4781 = vadd.f32 %v4734, -24.0
        %v4782 = vadd.f32 %v4735, -24.0
        %v4783 = vadd.f32 %v4736, -24.0
        %v4784 = vadd.f32 %v4737, -24.0
        %v4785 = vadd.f32 %v4738, -24.0
        %v4786 = vadd.f32 %v4739, -24.0
        %v4787 = vadd.f32 %v4740, -24.0
        %v4788 = vadd.f32 %v4741, -24.0
        %v4789 = vadd.f32 %v4742, -24.0
        %v4790 = vadd.f32 %v4743, -24.0
        %v4791 = vadd.f32 %v4744, -24.0
        %v4792 = vadd.f32 %v4745, -24.0
        %v4793 = vadd.f32 %v4746, -24.0
        %v4794 = vadd.f32 %v4747, -24.0
        %v4795 = vadd.f32 %v4748, -24.0
        %v4796 = vadd.f32 %v4749, -24.0
        %v4797 = vadd.f32 %v4750, -24.0
        %v4798 = vadd.f32 %v4751, -24.0
        %v4799 = vadd.f32 %v4752, -24.0
        %v4800 = vadd.f32 %v4753, -24.0
        %v4801 = vadd.f32 %v4754, -24.0
        %v4802 = vadd.f32 %v4755, -24.0
        %v4803 = vadd.f32 %v4756, -24.0
        %v4804 = vadd.f32 %v4757, -24.0
        %v4805 = vadd.f32 %v4758, -24.0
        %v4806 = vadd.f32 %v4759, -24.0
        %v4807 = vadd.f32 %v4760, -24.0
        %v4808 = vadd.f32 %v4761, -24.0
        %v4809 = vadd.f32 %v4762, -24.0
        %v4810 = vadd.f32 %v4763, -24.0
        %v4811 = vadd.f32 %v4764, -24.0
        %v4812 = vadd.f32 %v4765, -24.0
        %v4813 = vadd.f32 %v4766, -24.0
        %v4814 = vadd.f32 %v4767, -24.0
        %v4815 = vadd.f32 %v4768, -24.0
        %v4816 = vadd.f32 %v4769, -24.0
        %v4817 = vadd.f32 %v4770, 0.5
        %v4818 = vadd.f32 %v4771, 0.5
        %v4819 = vadd.f32 %v4772, 0.5
        %v4820 = vadd.f32 %v4773, 0.5
        %v4821 = vadd.f32 %v4774, 0.5
        %v4822 = vadd.f32 %v4775, 0.5
        %v4823 = vadd.f32 %v4776, 0.5
        %v4824 = vadd.f32 %v4777, 0.5
        %v4825 = vadd.f32 %v4778, 0.5
        %v4826 = vadd.f32 %v4779, 0.5
        %v4827 = vadd.f32 %v4780, 0.5
        %v4828 = vadd.f32 %v4781, 0.5
        %v4829 = vadd.f32 %v4782, 0.5
        %v4830 = vadd.f32 %v4783, 0.5
        %v4831 = vadd.f32 %v4784, 0.5
        %v4832 = vadd.f32 %v4785, 0.5
        %v4833 = vadd.f32 %v4786, 0.5
        %v4834 = vadd.f32 %v4787, 0.5
        %v4835 = vadd.f32 %v4788, 0.5
        %v4836 = vadd.f32 %v4789, 0.5
        %v4837 = vadd.f32 %v4790, 0.5
        %v4838 = vadd.f32 %v4791, 0.5
        %v4839 = vadd.f32 %v4792, 0.5
        %v4840 = vadd.f32 %v4793, 0.5
        %v4841 = vadd.f32 %v4794, 0.5
        %v4842 = vadd.f32 %v4795, 0.5
        %v4843 = vadd.f32 %v4796, 0.5
        %v4844 = vadd.f32 %v4797, 0.5
        %v4845 = vadd.f32 %v4798, 0.5
        %v4846 = vadd.f32 %v4799, 0.5
        %v4847 = vadd.f32 %v4800, 0.5
        %v4848 = vadd.f32 %v4801, 0.5
        %v4849 = vadd.f32 %v4802, 0.5
        %v4850 = vadd.f32 %v4803, 0.5
        %v4851 = vadd.f32 %v4804, 0.5
        %v4852 = vadd.f32 %v4805, 0.5
        %v4853 = vadd.f32 %v4806, 0.5
        %v4854 = vadd.f32 %v4807, 0.5
        %v4855 = vadd.f32 %v4808, 0.5
        %v4856 = vadd.f32 %v4809, 0.5
        %v4857 = vadd.f32 %v4810, 0.5
        %v4858 = vadd.f32 %v4811, 0.5
        %v4859 = vadd.f32 %v4812, 0.5
        %v4860 = vadd.f32 %v4813, 0.5
        %v4861 = vadd.f32 %v4814, 0.5
        %v4862 = vadd.f32 %v4815, 0.5
        %v4863 = vadd.f32 %v4816, 0.5
        %v4864 = vmul.f32 %v4817, 0.055555556
        %v4865 = vmul.f32 %v4818, 0.055555556
        %v4866 = vmul.f32 %v4819, 0.055555556
        %v4867 = vmul.f32 %v4820, 0.055555556
        %v4868 = vmul.f32 %v4821, 0.055555556
        %v4869 = vmul.f32 %v4822, 0.055555556
        %v4870 = vmul.f32 %v4823, 0.055555556
        %v4871 = vmul.f32 %v4824, 0.055555556
        %v4872 = vmul.f32 %v4825, 0.055555556
        %v4873 = vmul.f32 %v4826, 0.055555556
        %v4874 = vmul.f32 %v4827, 0.055555556
        %v4875 = vmul.f32 %v4828, 0.055555556
        %v4876 = vmul.f32 %v4829, 0.055555556
        %v4877 = vmul.f32 %v4830, 0.055555556
        %v4878 = vmul.f32 %v4831, 0.055555556
        %v4879 = vmul.f32 %v4832, 0.055555556
        %v4880 = vmul.f32 %v4833, 0.055555556
        %v4881 = vmul.f32 %v4834, 0.055555556
        %v4882 = vmul.f32 %v4835, 0.055555556
        %v4883 = vmul.f32 %v4836, 0.055555556
        %v4884 = vmul.f32 %v4837, 0.055555556
        %v4885 = vmul.f32 %v4838, 0.055555556
        %v4886 = vmul.f32 %v4839, 0.055555556
        %v4887 = vmul.f32 %v4840, 0.055555556
        %v4888 = vmul.f32 %v4841, 0.055555556
        %v4889 = vmul.f32 %v4842, 0.055555556
        %v4890 = vmul.f32 %v4843, 0.055555556
        %v4891 = vmul.f32 %v4844, 0.055555556
        %v4892 = vmul.f32 %v4845, 0.055555556
        %v4893 = vmul.f32 %v4846, 0.055555556
        %v4894 = vmul.f32 %v4847, 0.055555556
        %v4895 = vmul.f32 %v4848, 0.055555556
        %v4896 = vmul.f32 %v4849, 0.055555556
        %v4897 = vmul.f32 %v4850, 0.055555556
        %v4898 = vmul.f32 %v4851, 0.055555556
        %v4899 = vmul.f32 %v4852, 0.055555556
        %v4900 = vmul.f32 %v4853, 0.055555556
        %v4901 = vmul.f32 %v4854, 0.055555556
        %v4902 = vmul.f32 %v4855, 0.055555556
        %v4903 = vmul.f32 %v4856, 0.055555556
        %v4904 = vmul.f32 %v4857, 0.055555556
        %v4905 = vmul.f32 %v4858, 0.055555556
        %v4906 = vmul.f32 %v4859, 0.055555556
        %v4907 = vmul.f32 %v4860, 0.055555556
        %v4908 = vmul.f32 %v4861, 0.055555556
        %v4909 = vmul.f32 %v4862, 0.055555556
        %v4910 = vmul.f32 %v4863, 0.055555556
        %v4911 = vfloor.f32 %v4864
        %v4912 = vfloor.f32 %v4865
        %v4913 = vfloor.f32 %v4866
        %v4914 = vfloor.f32 %v4867
        %v4915 = vfloor.f32 %v4868
        %v4916 = vfloor.f32 %v4869
        %v4917 = vfloor.f32 %v4870
        %v4918 = vfloor.f32 %v4871
        %v4919 = vfloor.f32 %v4872
        %v4920 = vfloor.f32 %v4873
        %v4921 = vfloor.f32 %v4874
        %v4922 = vfloor.f32 %v4875
        %v4923 = vfloor.f32 %v4876
        %v4924 = vfloor.f32 %v4877
        %v4925 = vfloor.f32 %v4878
        %v4926 = vfloor.f32 %v4879
        %v4927 = vfloor.f32 %v4880
        %v4928 = vfloor.f32 %v4881
        %v4929 = vfloor.f32 %v4882
        %v4930 = vfloor.f32 %v4883
        %v4931 = vfloor.f32 %v4884
        %v4932 = vfloor.f32 %v4885
        %v4933 = vfloor.f32 %v4886
        %v4934 = vfloor.f32 %v4887
        %v4935 = vfloor.f32 %v4888
        %v4936 = vfloor.f32 %v4889
        %v4937 = vfloor.f32 %v4890
        %v4938 = vfloor.f32 %v4891
        %v4939 = vfloor.f32 %v4892
        %v4940 = vfloor.f32 %v4893
        %v4941 = vfloor.f32 %v4894
        %v4942 = vfloor.f32 %v4895
        %v4943 = vfloor.f32 %v4896
        %v4944 = vfloor.f32 %v4897
        %v4945 = vfloor.f32 %v4898
        %v4946 = vfloor.f32 %v4899
        %v4947 = vfloor.f32 %v4900
        %v4948 = vfloor.f32 %v4901
        %v4949 = vfloor.f32 %v4902
        %v4950 = vfloor.f32 %v4903
        %v4951 = vfloor.f32 %v4904
        %v4952 = vfloor.f32 %v4905
        %v4953 = vfloor.f32 %v4906
        %v4954 = vfloor.f32 %v4907
        %v4955 = vfloor.f32 %v4908
        %v4956 = vfloor.f32 %v4909
        %v4957 = vfloor.f32 %v4910
        %v4958 = vmul.f32 %v4911, 18.0
        %v4959 = vmul.f32 %v4912, 18.0
        %v4960 = vmul.f32 %v4913, 18.0
        %v4961 = vmul.f32 %v4914, 18.0
        %v4962 = vmul.f32 %v4915, 18.0
        %v4963 = vmul.f32 %v4916, 18.0
        %v4964 = vmul.f32 %v4917, 18.0
        %v4965 = vmul.f32 %v4918, 18.0
        %v4966 = vmul.f32 %v4919, 18.0
        %v4967 = vmul.f32 %v4920, 18.0
        %v4968 = vmul.f32 %v4921, 18.0
        %v4969 = vmul.f32 %v4922, 18.0
        %v4970 = vmul.f32 %v4923, 18.0
        %v4971 = vmul.f32 %v4924, 18.0
        %v4972 = vmul.f32 %v4925, 18.0
        %v4973 = vmul.f32 %v4926, 18.0
        %v4974 = vmul.f32 %v4927, 18.0
        %v4975 = vmul.f32 %v4928, 18.0
        %v4976 = vmul.f32 %v4929, 18.0
        %v4977 = vmul.f32 %v4930, 18.0
        %v4978 = vmul.f32 %v4931, 18.0
        %v4979 = vmul.f32 %v4932, 18.0
        %v4980 = vmul.f32 %v4933, 18.0
        %v4981 = vmul.f32 %v4934, 18.0
        %v4982 = vmul.f32 %v4935, 18.0
        %v4983 = vmul.f32 %v4936, 18.0
        %v4984 = vmul.f32 %v4937, 18.0
        %v4985 = vmul.f32 %v4938, 18.0
        %v4986 = vmul.f32 %v4939, 18.0
        %v4987 = vmul.f32 %v4940, 18.0
        %v4988 = vmul.f32 %v4941, 18.0
        %v4989 = vmul.f32 %v4942, 18.0
        %v4990 = vmul.f32 %v4943, 18.0
        %v4991 = vmul.f32 %v4944, 18.0
        %v4992 = vmul.f32 %v4945, 18.0
        %v4993 = vmul.f32 %v4946, 18.0
        %v4994 = vmul.f32 %v4947, 18.0
        %v4995 = vmul.f32 %v4948, 18.0
        %v4996 = vmul.f32 %v4949, 18.0
        %v4997 = vmul.f32 %v4950, 18.0
        %v4998 = vmul.f32 %v4951, 18.0
        %v4999 = vmul.f32 %v4952, 18.0
        %v5000 = vmul.f32 %v4953, 18.0
        %v5001 = vmul.f32 %v4954, 18.0
        %v5002 = vmul.f32 %v4955, 18.0
        %v5003 = vmul.f32 %v4956, 18.0
        %v5004 = vmul.f32 %v4957, 18.0
        %v5005 = vsub.f32 %v4770, %v4958
        %v5006 = vsub.f32 %v4771, %v4959
        %v5007 = vsub.f32 %v4772, %v4960
        %v5008 = vsub.f32 %v4773, %v4961
        %v5009 = vsub.f32 %v4774, %v4962
        %v5010 = vsub.f32 %v4775, %v4963
        %v5011 = vsub.f32 %v4776, %v4964
        %v5012 = vsub.f32 %v4777, %v4965
        %v5013 = vsub.f32 %v4778, %v4966
        %v5014 = vsub.f32 %v4779, %v4967
        %v5015 = vsub.f32 %v4780, %v4968
        %v5016 = vsub.f32 %v4781, %v4969
        %v5017 = vsub.f32 %v4782, %v4970
        %v5018 = vsub.f32 %v4783, %v4971
        %v5019 = vsub.f32 %v4784, %v4972
        %v5020 = vsub.f32 %v4785, %v4973
        %v5021 = vsub.f32 %v4786, %v4974
        %v5022 = vsub.f32 %v4787, %v4975
        %v5023 = vsub.f32 %v4788, %v4976
        %v5024 = vsub.f32 %v4789, %v4977
        %v5025 = vsub.f32 %v4790, %v4978
        %v5026 = vsub.f32 %v4791, %v4979
        %v5027 = vsub.f32 %v4792, %v4980
        %v5028 = vsub.f32 %v4793, %v4981
        %v5029 = vsub.f32 %v4794, %v4982
        %v5030 = vsub.f32 %v4795, %v4983
        %v5031 = vsub.f32 %v4796, %v4984
        %v5032 = vsub.f32 %v4797, %v4985
        %v5033 = vsub.f32 %v4798, %v4986
        %v5034 = vsub.f32 %v4799, %v4987
        %v5035 = vsub.f32 %v4800, %v4988
        %v5036 = vsub.f32 %v4801, %v4989
        %v5037 = vsub.f32 %v4802, %v4990
        %v5038 = vsub.f32 %v4803, %v4991
        %v5039 = vsub.f32 %v4804, %v4992
        %v5040 = vsub.f32 %v4805, %v4993
        %v5041 = vsub.f32 %v4806, %v4994
        %v5042 = vsub.f32 %v4807, %v4995
        %v5043 = vsub.f32 %v4808, %v4996
        %v5044 = vsub.f32 %v4809, %v4997
        %v5045 = vsub.f32 %v4810, %v4998
        %v5046 = vsub.f32 %v4811, %v4999
        %v5047 = vsub.f32 %v4812, %v5000
        %v5048 = vsub.f32 %v4813, %v5001
        %v5049 = vsub.f32 %v4814, %v5002
        %v5050 = vsub.f32 %v4815, %v5003
        %v5051 = vsub.f32 %v4816, %v5004
        %vm5052 = vcmp.ge.f32.partialorder %v4911, 1.0
        %vm5053 = vcmp.ge.f32.partialorder %v4912, 1.0
        %vm5054 = vcmp.ge.f32.partialorder %v4913, 1.0
        %vm5055 = vcmp.ge.f32.partialorder %v4914, 1.0
        %vm5056 = vcmp.ge.f32.partialorder %v4915, 1.0
        %vm5057 = vcmp.ge.f32.partialorder %v4916, 1.0
        %vm5058 = vcmp.ge.f32.partialorder %v4917, 1.0
        %vm5059 = vcmp.ge.f32.partialorder %v4918, 1.0
        %vm5060 = vcmp.ge.f32.partialorder %v4919, 1.0
        %vm5061 = vcmp.ge.f32.partialorder %v4920, 1.0
        %vm5062 = vcmp.ge.f32.partialorder %v4921, 1.0
        %vm5063 = vcmp.ge.f32.partialorder %v4922, 1.0
        %vm5064 = vcmp.ge.f32.partialorder %v4923, 1.0
        %vm5065 = vcmp.ge.f32.partialorder %v4924, 1.0
        %vm5066 = vcmp.ge.f32.partialorder %v4925, 1.0
        %vm5067 = vcmp.ge.f32.partialorder %v4926, 1.0
        %vm5068 = vcmp.ge.f32.partialorder %v4927, 1.0
        %vm5069 = vcmp.ge.f32.partialorder %v4928, 1.0
        %vm5070 = vcmp.ge.f32.partialorder %v4929, 1.0
        %vm5071 = vcmp.ge.f32.partialorder %v4930, 1.0
        %vm5072 = vcmp.ge.f32.partialorder %v4931, 1.0
        %vm5073 = vcmp.ge.f32.partialorder %v4932, 1.0
        %vm5074 = vcmp.ge.f32.partialorder %v4933, 1.0
        %vm5075 = vcmp.ge.f32.partialorder %v4934, 1.0
        %vm5076 = vcmp.ge.f32.partialorder %v4935, 1.0
        %vm5077 = vcmp.ge.f32.partialorder %v4936, 1.0
        %vm5078 = vcmp.ge.f32.partialorder %v4937, 1.0
        %vm5079 = vcmp.ge.f32.partialorder %v4938, 1.0
        %vm5080 = vcmp.ge.f32.partialorder %v4939, 1.0
        %vm5081 = vcmp.ge.f32.partialorder %v4940, 1.0
        %vm5082 = vcmp.ge.f32.partialorder %v4941, 1.0
        %vm5083 = vcmp.ge.f32.partialorder %v4942, 1.0
        %vm5084 = vcmp.ge.f32.partialorder %v4943, 1.0
        %vm5085 = vcmp.ge.f32.partialorder %v4944, 1.0
        %vm5086 = vcmp.ge.f32.partialorder %v4945, 1.0
        %vm5087 = vcmp.ge.f32.partialorder %v4946, 1.0
        %vm5088 = vcmp.ge.f32.partialorder %v4947, 1.0
        %vm5089 = vcmp.ge.f32.partialorder %v4948, 1.0
        %vm5090 = vcmp.ge.f32.partialorder %v4949, 1.0
        %vm5091 = vcmp.ge.f32.partialorder %v4950, 1.0
        %vm5092 = vcmp.ge.f32.partialorder %v4951, 1.0
        %vm5093 = vcmp.ge.f32.partialorder %v4952, 1.0
        %vm5094 = vcmp.ge.f32.partialorder %v4953, 1.0
        %vm5095 = vcmp.ge.f32.partialorder %v4954, 1.0
        %vm5096 = vcmp.ge.f32.partialorder %v4955, 1.0
        %vm5097 = vcmp.ge.f32.partialorder %v4956, 1.0
        %vm5098 = vcmp.ge.f32.partialorder %v4957, 1.0
        %vm5099 = vcmp.le.f32.partialorder %v4911, 16.0
        %vm5100 = vcmp.le.f32.partialorder %v4912, 16.0
        %vm5101 = vcmp.le.f32.partialorder %v4913, 16.0
        %vm5102 = vcmp.le.f32.partialorder %v4914, 16.0
        %vm5103 = vcmp.le.f32.partialorder %v4915, 16.0
        %vm5104 = vcmp.le.f32.partialorder %v4916, 16.0
        %vm5105 = vcmp.le.f32.partialorder %v4917, 16.0
        %vm5106 = vcmp.le.f32.partialorder %v4918, 16.0
        %vm5107 = vcmp.le.f32.partialorder %v4919, 16.0
        %vm5108 = vcmp.le.f32.partialorder %v4920, 16.0
        %vm5109 = vcmp.le.f32.partialorder %v4921, 16.0
        %vm5110 = vcmp.le.f32.partialorder %v4922, 16.0
        %vm5111 = vcmp.le.f32.partialorder %v4923, 16.0
        %vm5112 = vcmp.le.f32.partialorder %v4924, 16.0
        %vm5113 = vcmp.le.f32.partialorder %v4925, 16.0
        %vm5114 = vcmp.le.f32.partialorder %v4926, 16.0
        %vm5115 = vcmp.le.f32.partialorder %v4927, 16.0
        %vm5116 = vcmp.le.f32.partialorder %v4928, 16.0
        %vm5117 = vcmp.le.f32.partialorder %v4929, 16.0
        %vm5118 = vcmp.le.f32.partialorder %v4930, 16.0
        %vm5119 = vcmp.le.f32.partialorder %v4931, 16.0
        %vm5120 = vcmp.le.f32.partialorder %v4932, 16.0
        %vm5121 = vcmp.le.f32.partialorder %v4933, 16.0
        %vm5122 = vcmp.le.f32.partialorder %v4934, 16.0
        %vm5123 = vcmp.le.f32.partialorder %v4935, 16.0
        %vm5124 = vcmp.le.f32.partialorder %v4936, 16.0
        %vm5125 = vcmp.le.f32.partialorder %v4937, 16.0
        %vm5126 = vcmp.le.f32.partialorder %v4938, 16.0
        %vm5127 = vcmp.le.f32.partialorder %v4939, 16.0
        %vm5128 = vcmp.le.f32.partialorder %v4940, 16.0
        %vm5129 = vcmp.le.f32.partialorder %v4941, 16.0
        %vm5130 = vcmp.le.f32.partialorder %v4942, 16.0
        %vm5131 = vcmp.le.f32.partialorder %v4943, 16.0
        %vm5132 = vcmp.le.f32.partialorder %v4944, 16.0
        %vm5133 = vcmp.le.f32.partialorder %v4945, 16.0
        %vm5134 = vcmp.le.f32.partialorder %v4946, 16.0
        %vm5135 = vcmp.le.f32.partialorder %v4947, 16.0
        %vm5136 = vcmp.le.f32.partialorder %v4948, 16.0
        %vm5137 = vcmp.le.f32.partialorder %v4949, 16.0
        %vm5138 = vcmp.le.f32.partialorder %v4950, 16.0
        %vm5139 = vcmp.le.f32.partialorder %v4951, 16.0
        %vm5140 = vcmp.le.f32.partialorder %v4952, 16.0
        %vm5141 = vcmp.le.f32.partialorder %v4953, 16.0
        %vm5142 = vcmp.le.f32.partialorder %v4954, 16.0
        %vm5143 = vcmp.le.f32.partialorder %v4955, 16.0
        %vm5144 = vcmp.le.f32.partialorder %v4956, 16.0
        %vm5145 = vcmp.le.f32.partialorder %v4957, 16.0
        %vm5146 = vmand %vm5052, %vm5099
        %vm5147 = vmand %vm5053, %vm5100
        %vm5148 = vmand %vm5054, %vm5101
        %vm5149 = vmand %vm5055, %vm5102
        %vm5150 = vmand %vm5056, %vm5103
        %vm5151 = vmand %vm5057, %vm5104
        %vm5152 = vmand %vm5058, %vm5105
        %vm5153 = vmand %vm5059, %vm5106
        %vm5154 = vmand %vm5060, %vm5107
        %vm5155 = vmand %vm5061, %vm5108
        %vm5156 = vmand %vm5062, %vm5109
        %vm5157 = vmand %vm5063, %vm5110
        %vm5158 = vmand %vm5064, %vm5111
        %vm5159 = vmand %vm5065, %vm5112
        %vm5160 = vmand %vm5066, %vm5113
        %vm5161 = vmand %vm5067, %vm5114
        %vm5162 = vmand %vm5068, %vm5115
        %vm5163 = vmand %vm5069, %vm5116
        %vm5164 = vmand %vm5070, %vm5117
        %vm5165 = vmand %vm5071, %vm5118
        %vm5166 = vmand %vm5072, %vm5119
        %vm5167 = vmand %vm5073, %vm5120
        %vm5168 = vmand %vm5074, %vm5121
        %vm5169 = vmand %vm5075, %vm5122
        %vm5170 = vmand %vm5076, %vm5123
        %vm5171 = vmand %vm5077, %vm5124
        %vm5172 = vmand %vm5078, %vm5125
        %vm5173 = vmand %vm5079, %vm5126
        %vm5174 = vmand %vm5080, %vm5127
        %vm5175 = vmand %vm5081, %vm5128
        %vm5176 = vmand %vm5082, %vm5129
        %vm5177 = vmand %vm5083, %vm5130
        %vm5178 = vmand %vm5084, %vm5131
        %vm5179 = vmand %vm5085, %vm5132
        %vm5180 = vmand %vm5086, %vm5133
        %vm5181 = vmand %vm5087, %vm5134
        %vm5182 = vmand %vm5088, %vm5135
        %vm5183 = vmand %vm5089, %vm5136
        %vm5184 = vmand %vm5090, %vm5137
        %vm5185 = vmand %vm5091, %vm5138
        %vm5186 = vmand %vm5092, %vm5139
        %vm5187 = vmand %vm5093, %vm5140
        %vm5188 = vmand %vm5094, %vm5141
        %vm5189 = vmand %vm5095, %vm5142
        %vm5190 = vmand %vm5096, %vm5143
        %vm5191 = vmand %vm5097, %vm5144
        %vm5192 = vmand %vm5098, %vm5145
        %vm5193 = vcmp.ge.f32.partialorder %v5005, 1.0
        %vm5194 = vcmp.ge.f32.partialorder %v5006, 1.0
        %vm5195 = vcmp.ge.f32.partialorder %v5007, 1.0
        %vm5196 = vcmp.ge.f32.partialorder %v5008, 1.0
        %vm5197 = vcmp.ge.f32.partialorder %v5009, 1.0
        %vm5198 = vcmp.ge.f32.partialorder %v5010, 1.0
        %vm5199 = vcmp.ge.f32.partialorder %v5011, 1.0
        %vm5200 = vcmp.ge.f32.partialorder %v5012, 1.0
        %vm5201 = vcmp.ge.f32.partialorder %v5013, 1.0
        %vm5202 = vcmp.ge.f32.partialorder %v5014, 1.0
        %vm5203 = vcmp.ge.f32.partialorder %v5015, 1.0
        %vm5204 = vcmp.ge.f32.partialorder %v5016, 1.0
        %vm5205 = vcmp.ge.f32.partialorder %v5017, 1.0
        %vm5206 = vcmp.ge.f32.partialorder %v5018, 1.0
        %vm5207 = vcmp.ge.f32.partialorder %v5019, 1.0
        %vm5208 = vcmp.ge.f32.partialorder %v5020, 1.0
        %vm5209 = vcmp.ge.f32.partialorder %v5021, 1.0
        %vm5210 = vcmp.ge.f32.partialorder %v5022, 1.0
        %vm5211 = vcmp.ge.f32.partialorder %v5023, 1.0
        %vm5212 = vcmp.ge.f32.partialorder %v5024, 1.0
        %vm5213 = vcmp.ge.f32.partialorder %v5025, 1.0
        %vm5214 = vcmp.ge.f32.partialorder %v5026, 1.0
        %vm5215 = vcmp.ge.f32.partialorder %v5027, 1.0
        %vm5216 = vcmp.ge.f32.partialorder %v5028, 1.0
        %vm5217 = vcmp.ge.f32.partialorder %v5029, 1.0
        %vm5218 = vcmp.ge.f32.partialorder %v5030, 1.0
        %vm5219 = vcmp.ge.f32.partialorder %v5031, 1.0
        %vm5220 = vcmp.ge.f32.partialorder %v5032, 1.0
        %vm5221 = vcmp.ge.f32.partialorder %v5033, 1.0
        %vm5222 = vcmp.ge.f32.partialorder %v5034, 1.0
        %vm5223 = vcmp.ge.f32.partialorder %v5035, 1.0
        %vm5224 = vcmp.ge.f32.partialorder %v5036, 1.0
        %vm5225 = vcmp.ge.f32.partialorder %v5037, 1.0
        %vm5226 = vcmp.ge.f32.partialorder %v5038, 1.0
        %vm5227 = vcmp.ge.f32.partialorder %v5039, 1.0
        %vm5228 = vcmp.ge.f32.partialorder %v5040, 1.0
        %vm5229 = vcmp.ge.f32.partialorder %v5041, 1.0
        %vm5230 = vcmp.ge.f32.partialorder %v5042, 1.0
        %vm5231 = vcmp.ge.f32.partialorder %v5043, 1.0
        %vm5232 = vcmp.ge.f32.partialorder %v5044, 1.0
        %vm5233 = vcmp.ge.f32.partialorder %v5045, 1.0
        %vm5234 = vcmp.ge.f32.partialorder %v5046, 1.0
        %vm5235 = vcmp.ge.f32.partialorder %v5047, 1.0
        %vm5236 = vcmp.ge.f32.partialorder %v5048, 1.0
        %vm5237 = vcmp.ge.f32.partialorder %v5049, 1.0
        %vm5238 = vcmp.ge.f32.partialorder %v5050, 1.0
        %vm5239 = vcmp.ge.f32.partialorder %v5051, 1.0
        %vm5240 = vmand %vm5146, %vm5193
        %vm5241 = vmand %vm5147, %vm5194
        %vm5242 = vmand %vm5148, %vm5195
        %vm5243 = vmand %vm5149, %vm5196
        %vm5244 = vmand %vm5150, %vm5197
        %vm5245 = vmand %vm5151, %vm5198
        %vm5246 = vmand %vm5152, %vm5199
        %vm5247 = vmand %vm5153, %vm5200
        %vm5248 = vmand %vm5154, %vm5201
        %vm5249 = vmand %vm5155, %vm5202
        %vm5250 = vmand %vm5156, %vm5203
        %vm5251 = vmand %vm5157, %vm5204
        %vm5252 = vmand %vm5158, %vm5205
        %vm5253 = vmand %vm5159, %vm5206
        %vm5254 = vmand %vm5160, %vm5207
        %vm5255 = vmand %vm5161, %vm5208
        %vm5256 = vmand %vm5162, %vm5209
        %vm5257 = vmand %vm5163, %vm5210
        %vm5258 = vmand %vm5164, %vm5211
        %vm5259 = vmand %vm5165, %vm5212
        %vm5260 = vmand %vm5166, %vm5213
        %vm5261 = vmand %vm5167, %vm5214
        %vm5262 = vmand %vm5168, %vm5215
        %vm5263 = vmand %vm5169, %vm5216
        %vm5264 = vmand %vm5170, %vm5217
        %vm5265 = vmand %vm5171, %vm5218
        %vm5266 = vmand %vm5172, %vm5219
        %vm5267 = vmand %vm5173, %vm5220
        %vm5268 = vmand %vm5174, %vm5221
        %vm5269 = vmand %vm5175, %vm5222
        %vm5270 = vmand %vm5176, %vm5223
        %vm5271 = vmand %vm5177, %vm5224
        %vm5272 = vmand %vm5178, %vm5225
        %vm5273 = vmand %vm5179, %vm5226
        %vm5274 = vmand %vm5180, %vm5227
        %vm5275 = vmand %vm5181, %vm5228
        %vm5276 = vmand %vm5182, %vm5229
        %vm5277 = vmand %vm5183, %vm5230
        %vm5278 = vmand %vm5184, %vm5231
        %vm5279 = vmand %vm5185, %vm5232
        %vm5280 = vmand %vm5186, %vm5233
        %vm5281 = vmand %vm5187, %vm5234
        %vm5282 = vmand %vm5188, %vm5235
        %vm5283 = vmand %vm5189, %vm5236
        %vm5284 = vmand %vm5190, %vm5237
        %vm5285 = vmand %vm5191, %vm5238
        %vm5286 = vmand %vm5192, %vm5239
        %vm5287 = vcmp.le.f32.partialorder %v5005, 16.0
        %vm5288 = vcmp.le.f32.partialorder %v5006, 16.0
        %vm5289 = vcmp.le.f32.partialorder %v5007, 16.0
        %vm5290 = vcmp.le.f32.partialorder %v5008, 16.0
        %vm5291 = vcmp.le.f32.partialorder %v5009, 16.0
        %vm5292 = vcmp.le.f32.partialorder %v5010, 16.0
        %vm5293 = vcmp.le.f32.partialorder %v5011, 16.0
        %vm5294 = vcmp.le.f32.partialorder %v5012, 16.0
        %vm5295 = vcmp.le.f32.partialorder %v5013, 16.0
        %vm5296 = vcmp.le.f32.partialorder %v5014, 16.0
        %vm5297 = vcmp.le.f32.partialorder %v5015, 16.0
        %vm5298 = vcmp.le.f32.partialorder %v5016, 16.0
        %vm5299 = vcmp.le.f32.partialorder %v5017, 16.0
        %vm5300 = vcmp.le.f32.partialorder %v5018, 16.0
        %vm5301 = vcmp.le.f32.partialorder %v5019, 16.0
        %vm5302 = vcmp.le.f32.partialorder %v5020, 16.0
        %vm5303 = vcmp.le.f32.partialorder %v5021, 16.0
        %vm5304 = vcmp.le.f32.partialorder %v5022, 16.0
        %vm5305 = vcmp.le.f32.partialorder %v5023, 16.0
        %vm5306 = vcmp.le.f32.partialorder %v5024, 16.0
        %vm5307 = vcmp.le.f32.partialorder %v5025, 16.0
        %vm5308 = vcmp.le.f32.partialorder %v5026, 16.0
        %vm5309 = vcmp.le.f32.partialorder %v5027, 16.0
        %vm5310 = vcmp.le.f32.partialorder %v5028, 16.0
        %vm5311 = vcmp.le.f32.partialorder %v5029, 16.0
        %vm5312 = vcmp.le.f32.partialorder %v5030, 16.0
        %vm5313 = vcmp.le.f32.partialorder %v5031, 16.0
        %vm5314 = vcmp.le.f32.partialorder %v5032, 16.0
        %vm5315 = vcmp.le.f32.partialorder %v5033, 16.0
        %vm5316 = vcmp.le.f32.partialorder %v5034, 16.0
        %vm5317 = vcmp.le.f32.partialorder %v5035, 16.0
        %vm5318 = vcmp.le.f32.partialorder %v5036, 16.0
        %vm5319 = vcmp.le.f32.partialorder %v5037, 16.0
        %vm5320 = vcmp.le.f32.partialorder %v5038, 16.0
        %vm5321 = vcmp.le.f32.partialorder %v5039, 16.0
        %vm5322 = vcmp.le.f32.partialorder %v5040, 16.0
        %vm5323 = vcmp.le.f32.partialorder %v5041, 16.0
        %vm5324 = vcmp.le.f32.partialorder %v5042, 16.0
        %vm5325 = vcmp.le.f32.partialorder %v5043, 16.0
        %vm5326 = vcmp.le.f32.partialorder %v5044, 16.0
        %vm5327 = vcmp.le.f32.partialorder %v5045, 16.0
        %vm5328 = vcmp.le.f32.partialorder %v5046, 16.0
        %vm5329 = vcmp.le.f32.partialorder %v5047, 16.0
        %vm5330 = vcmp.le.f32.partialorder %v5048, 16.0
        %vm5331 = vcmp.le.f32.partialorder %v5049, 16.0
        %vm5332 = vcmp.le.f32.partialorder %v5050, 16.0
        %vm5333 = vcmp.le.f32.partialorder %v5051, 16.0
        %vm5334 = vmand %vm5240, %vm5287
        %vm5335 = vmand %vm5241, %vm5288
        %vm5336 = vmand %vm5242, %vm5289
        %vm5337 = vmand %vm5243, %vm5290
        %vm5338 = vmand %vm5244, %vm5291
        %vm5339 = vmand %vm5245, %vm5292
        %vm5340 = vmand %vm5246, %vm5293
        %vm5341 = vmand %vm5247, %vm5294
        %vm5342 = vmand %vm5248, %vm5295
        %vm5343 = vmand %vm5249, %vm5296
        %vm5344 = vmand %vm5250, %vm5297
        %vm5345 = vmand %vm5251, %vm5298
        %vm5346 = vmand %vm5252, %vm5299
        %vm5347 = vmand %vm5253, %vm5300
        %vm5348 = vmand %vm5254, %vm5301
        %vm5349 = vmand %vm5255, %vm5302
        %vm5350 = vmand %vm5256, %vm5303
        %vm5351 = vmand %vm5257, %vm5304
        %vm5352 = vmand %vm5258, %vm5305
        %vm5353 = vmand %vm5259, %vm5306
        %vm5354 = vmand %vm5260, %vm5307
        %vm5355 = vmand %vm5261, %vm5308
        %vm5356 = vmand %vm5262, %vm5309
        %vm5357 = vmand %vm5263, %vm5310
        %vm5358 = vmand %vm5264, %vm5311
        %vm5359 = vmand %vm5265, %vm5312
        %vm5360 = vmand %vm5266, %vm5313
        %vm5361 = vmand %vm5267, %vm5314
        %vm5362 = vmand %vm5268, %vm5315
        %vm5363 = vmand %vm5269, %vm5316
        %vm5364 = vmand %vm5270, %vm5317
        %vm5365 = vmand %vm5271, %vm5318
        %vm5366 = vmand %vm5272, %vm5319
        %vm5367 = vmand %vm5273, %vm5320
        %vm5368 = vmand %vm5274, %vm5321
        %vm5369 = vmand %vm5275, %vm5322
        %vm5370 = vmand %vm5276, %vm5323
        %vm5371 = vmand %vm5277, %vm5324
        %vm5372 = vmand %vm5278, %vm5325
        %vm5373 = vmand %vm5279, %vm5326
        %vm5374 = vmand %vm5280, %vm5327
        %vm5375 = vmand %vm5281, %vm5328
        %vm5376 = vmand %vm5282, %vm5329
        %vm5377 = vmand %vm5283, %vm5330
        %vm5378 = vmand %vm5284, %vm5331
        %vm5379 = vmand %vm5285, %vm5332
        %vm5380 = vmand %vm5286, %vm5333
        %v5381 = vsel %vm5334, 1, 0
        %v5382 = vsel %vm5335, 1, 0
        %v5383 = vsel %vm5336, 1, 0
        %v5384 = vsel %vm5337, 1, 0
        %v5385 = vsel %vm5338, 1, 0
        %v5386 = vsel %vm5339, 1, 0
        %v5387 = vsel %vm5340, 1, 0
        %v5388 = vsel %vm5341, 1, 0
        %v5389 = vsel %vm5342, 1, 0
        %v5390 = vsel %vm5343, 1, 0
        %v5391 = vsel %vm5344, 1, 0
        %v5392 = vsel %vm5345, 1, 0
        %v5393 = vsel %vm5346, 1, 0
        %v5394 = vsel %vm5347, 1, 0
        %v5395 = vsel %vm5348, 1, 0
        %v5396 = vsel %vm5349, 1, 0
        %v5397 = vsel %vm5350, 1, 0
        %v5398 = vsel %vm5351, 1, 0
        %v5399 = vsel %vm5352, 1, 0
        %v5400 = vsel %vm5353, 1, 0
        %v5401 = vsel %vm5354, 1, 0
        %v5402 = vsel %vm5355, 1, 0
        %v5403 = vsel %vm5356, 1, 0
        %v5404 = vsel %vm5357, 1, 0
        %v5405 = vsel %vm5358, 1, 0
        %v5406 = vsel %vm5359, 1, 0
        %v5407 = vsel %vm5360, 1, 0
        %v5408 = vsel %vm5361, 1, 0
        %v5409 = vsel %vm5362, 1, 0
        %v5410 = vsel %vm5363, 1, 0
        %v5411 = vsel %vm5364, 1, 0
        %v5412 = vsel %vm5365, 1, 0
        %v5413 = vsel %vm5366, 1, 0
        %v5414 = vsel %vm5367, 1, 0
        %v5415 = vsel %vm5368, 1, 0
        %v5416 = vsel %vm5369, 1, 0
        %v5417 = vsel %vm5370, 1, 0
        %v5418 = vsel %vm5371, 1, 0
        %v5419 = vsel %vm5372, 1, 0
        %v5420 = vsel %vm5373, 1, 0
        %v5421 = vsel %vm5374, 1, 0
        %v5422 = vsel %vm5375, 1, 0
        %v5423 = vsel %vm5376, 1, 0
        %v5424 = vsel %vm5377, 1, 0
        %v5425 = vsel %vm5378, 1, 0
        %v5426 = vsel %vm5379, 1, 0
        %v5427 = vsel %vm5380, 1, 0
        %v5428 = vcvt.s32.f32 %v5381
        %v5429 = vcvt.s32.f32 %v5382
        %v5430 = vcvt.s32.f32 %v5383
        %v5431 = vcvt.s32.f32 %v5384
        %v5432 = vcvt.s32.f32 %v5385
        %v5433 = vcvt.s32.f32 %v5386
        %v5434 = vcvt.s32.f32 %v5387
        %v5435 = vcvt.s32.f32 %v5388
        %v5436 = vcvt.s32.f32 %v5389
        %v5437 = vcvt.s32.f32 %v5390
        %v5438 = vcvt.s32.f32 %v5391
        %v5439 = vcvt.s32.f32 %v5392
        %v5440 = vcvt.s32.f32 %v5393
        %v5441 = vcvt.s32.f32 %v5394
        %v5442 = vcvt.s32.f32 %v5395
        %v5443 = vcvt.s32.f32 %v5396
        %v5444 = vcvt.s32.f32 %v5397
        %v5445 = vcvt.s32.f32 %v5398
        %v5446 = vcvt.s32.f32 %v5399
        %v5447 = vcvt.s32.f32 %v5400
        %v5448 = vcvt.s32.f32 %v5401
        %v5449 = vcvt.s32.f32 %v5402
        %v5450 = vcvt.s32.f32 %v5403
        %v5451 = vcvt.s32.f32 %v5404
        %v5452 = vcvt.s32.f32 %v5405
        %v5453 = vcvt.s32.f32 %v5406
        %v5454 = vcvt.s32.f32 %v5407
        %v5455 = vcvt.s32.f32 %v5408
        %v5456 = vcvt.s32.f32 %v5409
        %v5457 = vcvt.s32.f32 %v5410
        %v5458 = vcvt.s32.f32 %v5411
        %v5459 = vcvt.s32.f32 %v5412
        %v5460 = vcvt.s32.f32 %v5413
        %v5461 = vcvt.s32.f32 %v5414
        %v5462 = vcvt.s32.f32 %v5415
        %v5463 = vcvt.s32.f32 %v5416
        %v5464 = vcvt.s32.f32 %v5417
        %v5465 = vcvt.s32.f32 %v5418
        %v5466 = vcvt.s32.f32 %v5419
        %v5467 = vcvt.s32.f32 %v5420
        %v5468 = vcvt.s32.f32 %v5421
        %v5469 = vcvt.s32.f32 %v5422
        %v5470 = vcvt.s32.f32 %v5423
        %v5471 = vcvt.s32.f32 %v5424
        %v5472 = vcvt.s32.f32 %v5425
        %v5473 = vcvt.s32.f32 %v5426
        %v5474 = vcvt.s32.f32 %v5427
        %v5475 = vlaneseq
        %v5476 = vshrl.u32 %v5475, 7
        %v5477 = vsub.s32 0, %v5476
        %v5478 = vrot.slane %v382, %v5477
        %v5479 = vmul.f32 %v4587, %v5478
        %v5480 = vmul.f32 %v4588, %v5478
        %v5481 = vmul.f32 %v4589, %v5478
        %v5482 = vmul.f32 %v4590, %v5478
        %v5483 = vmul.f32 %v4592, %v5478
        %v5484 = vmul.f32 %v4594, %v5478
        %v5485 = vmul.f32 %v4596, %v5478
        %v5486 = vmul.f32 %v4598, %v5478
        %v5487 = vmul.f32 %v4600, %v5478
        %v5488 = vmul.f32 %v4602, %v5478
        %v5489 = vmul.f32 %v4604, %v5478
        %v5490 = vmul.f32 %v4606, %v5478
        %v5491 = vmul.f32 %v4608, %v5478
        %v5492 = vmul.f32 %v4610, %v5478
        %v5493 = vmul.f32 %v4612, %v5478
        %v5494 = vmul.f32 %v4614, %v5478
        %v5495 = vmul.f32 %v4616, %v5478
        %v5496 = vmul.f32 %v4618, %v5478
        %v5497 = vmul.f32 %v4620, %v5478
        %v5498 = vmul.f32 %v4622, %v5478
        %v5499 = vmul.f32 %v4624, %v5478
        %v5500 = vmul.f32 %v4626, %v5478
        %v5501 = vmul.f32 %v4628, %v5478
        %v5502 = vmul.f32 %v4630, %v5478
        %v5503 = vmul.f32 %v4632, %v5478
        %v5504 = vmul.f32 %v4634, %v5478
        %v5505 = vmul.f32 %v4636, %v5478
        %v5506 = vmul.f32 %v4638, %v5478
        %v5507 = vmul.f32 %v4640, %v5478
        %v5508 = vmul.f32 %v4642, %v5478
        %v5509 = vmul.f32 %v4644, %v5478
        %v5510 = vmul.f32 %v4646, %v5478
        %v5511 = vmul.f32 %v4648, %v5478
        %v5512 = vmul.f32 %v4650, %v5478
        %v5513 = vmul.f32 %v4652, %v5478
        %v5514 = vmul.f32 %v4654, %v5478
        %v5515 = vmul.f32 %v4656, %v5478
        %v5516 = vmul.f32 %v4658, %v5478
        %v5517 = vmul.f32 %v4660, %v5478
        %v5518 = vmul.f32 %v4662, %v5478
        %v5519 = vmul.f32 %v4664, %v5478
        %v5520 = vmul.f32 %v4666, %v5478
        %v5521 = vmul.f32 %v4668, %v5478
        %v5522 = vmul.f32 %v4670, %v5478
        %v5523 = vmul.f32 %v4672, %v5478
        %v5524 = vmul.f32 %v4673, %v5478
        %v5525 = vmul.f32 %v4674, %v5478
        %v5526 = vlaneseq
        %v5527 = vshrl.u32 %v5526, 7
        %v5528 = vsub.s32 1, %v5527
        %v5529 = vrot.slane %v382, %v5528
        %v5530 = vadd.f32 %v5479, %v5529
        %v5531 = vadd.f32 %v5480, %v5529
        %v5532 = vadd.f32 %v5481, %v5529
        %v5533 = vadd.f32 %v5482, %v5529
        %v5534 = vadd.f32 %v5483, %v5529
        %v5535 = vadd.f32 %v5484, %v5529
        %v5536 = vadd.f32 %v5485, %v5529
        %v5537 = vadd.f32 %v5486, %v5529
        %v5538 = vadd.f32 %v5487, %v5529
        %v5539 = vadd.f32 %v5488, %v5529
        %v5540 = vadd.f32 %v5489, %v5529
        %v5541 = vadd.f32 %v5490, %v5529
        %v5542 = vadd.f32 %v5491, %v5529
        %v5543 = vadd.f32 %v5492, %v5529
        %v5544 = vadd.f32 %v5493, %v5529
        %v5545 = vadd.f32 %v5494, %v5529
        %v5546 = vadd.f32 %v5495, %v5529
        %v5547 = vadd.f32 %v5496, %v5529
        %v5548 = vadd.f32 %v5497, %v5529
        %v5549 = vadd.f32 %v5498, %v5529
        %v5550 = vadd.f32 %v5499, %v5529
        %v5551 = vadd.f32 %v5500, %v5529
        %v5552 = vadd.f32 %v5501, %v5529
        %v5553 = vadd.f32 %v5502, %v5529
        %v5554 = vadd.f32 %v5503, %v5529
        %v5555 = vadd.f32 %v5504, %v5529
        %v5556 = vadd.f32 %v5505, %v5529
        %v5557 = vadd.f32 %v5506, %v5529
        %v5558 = vadd.f32 %v5507, %v5529
        %v5559 = vadd.f32 %v5508, %v5529
        %v5560 = vadd.f32 %v5509, %v5529
        %v5561 = vadd.f32 %v5510, %v5529
        %v5562 = vadd.f32 %v5511, %v5529
        %v5563 = vadd.f32 %v5512, %v5529
        %v5564 = vadd.f32 %v5513, %v5529
        %v5565 = vadd.f32 %v5514, %v5529
        %v5566 = vadd.f32 %v5515, %v5529
        %v5567 = vadd.f32 %v5516, %v5529
        %v5568 = vadd.f32 %v5517, %v5529
        %v5569 = vadd.f32 %v5518, %v5529
        %v5570 = vadd.f32 %v5519, %v5529
        %v5571 = vadd.f32 %v5520, %v5529
        %v5572 = vadd.f32 %v5521, %v5529
        %v5573 = vadd.f32 %v5522, %v5529
        %v5574 = vadd.f32 %v5523, %v5529
        %v5575 = vadd.f32 %v5524, %v5529
        %v5576 = vadd.f32 %v5525, %v5529
        %v5577 = vmax.f32 %v5530, 0.0
        %v5578 = vmax.f32 %v5531, 0.0
        %v5579 = vmax.f32 %v5532, 0.0
        %v5580 = vmax.f32 %v5533, 0.0
        %v5581 = vmax.f32 %v5534, 0.0
        %v5582 = vmax.f32 %v5535, 0.0
        %v5583 = vmax.f32 %v5536, 0.0
        %v5584 = vmax.f32 %v5537, 0.0
        %v5585 = vmax.f32 %v5538, 0.0
        %v5586 = vmax.f32 %v5539, 0.0
        %v5587 = vmax.f32 %v5540, 0.0
        %v5588 = vmax.f32 %v5541, 0.0
        %v5589 = vmax.f32 %v5542, 0.0
        %v5590 = vmax.f32 %v5543, 0.0
        %v5591 = vmax.f32 %v5544, 0.0
        %v5592 = vmax.f32 %v5545, 0.0
        %v5593 = vmax.f32 %v5546, 0.0
        %v5594 = vmax.f32 %v5547, 0.0
        %v5595 = vmax.f32 %v5548, 0.0
        %v5596 = vmax.f32 %v5549, 0.0
        %v5597 = vmax.f32 %v5550, 0.0
        %v5598 = vmax.f32 %v5551, 0.0
        %v5599 = vmax.f32 %v5552, 0.0
        %v5600 = vmax.f32 %v5553, 0.0
        %v5601 = vmax.f32 %v5554, 0.0
        %v5602 = vmax.f32 %v5555, 0.0
        %v5603 = vmax.f32 %v5556, 0.0
        %v5604 = vmax.f32 %v5557, 0.0
        %v5605 = vmax.f32 %v5558, 0.0
        %v5606 = vmax.f32 %v5559, 0.0
        %v5607 = vmax.f32 %v5560, 0.0
        %v5608 = vmax.f32 %v5561, 0.0
        %v5609 = vmax.f32 %v5562, 0.0
        %v5610 = vmax.f32 %v5563, 0.0
        %v5611 = vmax.f32 %v5564, 0.0
        %v5612 = vmax.f32 %v5565, 0.0
        %v5613 = vmax.f32 %v5566, 0.0
        %v5614 = vmax.f32 %v5567, 0.0
        %v5615 = vmax.f32 %v5568, 0.0
        %v5616 = vmax.f32 %v5569, 0.0
        %v5617 = vmax.f32 %v5570, 0.0
        %v5618 = vmax.f32 %v5571, 0.0
        %v5619 = vmax.f32 %v5572, 0.0
        %v5620 = vmax.f32 %v5573, 0.0
        %v5621 = vmax.f32 %v5574, 0.0
        %v5622 = vmax.f32 %v5575, 0.0
        %v5623 = vmax.f32 %v5576, 0.0
        %v5624 = vmul.f32 %v5577, %v5428
        %v5625 = vmul.f32 %v5578, %v5429
        %v5626 = vmul.f32 %v5579, %v5430
        %v5627 = vmul.f32 %v5580, %v5431
        %v5628 = vmul.f32 %v5581, %v5432
        %v5629 = vmul.f32 %v5582, %v5433
        %v5630 = vmul.f32 %v5583, %v5434
        %v5631 = vmul.f32 %v5584, %v5435
        %v5632 = vmul.f32 %v5585, %v5436
        %v5633 = vmul.f32 %v5586, %v5437
        %v5634 = vmul.f32 %v5587, %v5438
        %v5635 = vmul.f32 %v5588, %v5439
        %v5636 = vmul.f32 %v5589, %v5440
        %v5637 = vmul.f32 %v5590, %v5441
        %v5638 = vmul.f32 %v5591, %v5442
        %v5639 = vmul.f32 %v5592, %v5443
        %v5640 = vmul.f32 %v5593, %v5444
        %v5641 = vmul.f32 %v5594, %v5445
        %v5642 = vmul.f32 %v5595, %v5446
        %v5643 = vmul.f32 %v5596, %v5447
        %v5644 = vmul.f32 %v5597, %v5448
        %v5645 = vmul.f32 %v5598, %v5449
        %v5646 = vmul.f32 %v5599, %v5450
        %v5647 = vmul.f32 %v5600, %v5451
        %v5648 = vmul.f32 %v5601, %v5452
        %v5649 = vmul.f32 %v5602, %v5453
        %v5650 = vmul.f32 %v5603, %v5454
        %v5651 = vmul.f32 %v5604, %v5455
        %v5652 = vmul.f32 %v5605, %v5456
        %v5653 = vmul.f32 %v5606, %v5457
        %v5654 = vmul.f32 %v5607, %v5458
        %v5655 = vmul.f32 %v5608, %v5459
        %v5656 = vmul.f32 %v5609, %v5460
        %v5657 = vmul.f32 %v5610, %v5461
        %v5658 = vmul.f32 %v5611, %v5462
        %v5659 = vmul.f32 %v5612, %v5463
        %v5660 = vmul.f32 %v5613, %v5464
        %v5661 = vmul.f32 %v5614, %v5465
        %v5662 = vmul.f32 %v5615, %v5466
        %v5663 = vmul.f32 %v5616, %v5467
        %v5664 = vmul.f32 %v5617, %v5468
        %v5665 = vmul.f32 %v5618, %v5469
        %v5666 = vmul.f32 %v5619, %v5470
        %v5667 = vmul.f32 %v5620, %v5471
        %v5668 = vmul.f32 %v5621, %v5472
        %v5669 = vmul.f32 %v5622, %v5473
        %v5670 = vmul.f32 %v5623, %v5474
        %v5671 = vlaneseq
        %v5672 = vshrl.u32 %v5671, 7
        %v5673 = vsub.s32 4, %v5672
        %v5674 = vrot.slane %v382, %v5673
        %v5675 = vmul.f32 %v4591, %v5674
        %v5676 = vmul.f32 %v4593, %v5674
        %v5677 = vmul.f32 %v4595, %v5674
        %v5678 = vmul.f32 %v4597, %v5674
        %v5679 = vmul.f32 %v4599, %v5674
        %v5680 = vmul.f32 %v4601, %v5674
        %v5681 = vmul.f32 %v4603, %v5674
        %v5682 = vmul.f32 %v4605, %v5674
        %v5683 = vmul.f32 %v4607, %v5674
        %v5684 = vmul.f32 %v4609, %v5674
        %v5685 = vmul.f32 %v4611, %v5674
        %v5686 = vmul.f32 %v4613, %v5674
        %v5687 = vmul.f32 %v4615, %v5674
        %v5688 = vmul.f32 %v4617, %v5674
        %v5689 = vmul.f32 %v4619, %v5674
        %v5690 = vmul.f32 %v4621, %v5674
        %v5691 = vmul.f32 %v4623, %v5674
        %v5692 = vmul.f32 %v4625, %v5674
        %v5693 = vmul.f32 %v4627, %v5674
        %v5694 = vmul.f32 %v4629, %v5674
        %v5695 = vmul.f32 %v4631, %v5674
        %v5696 = vmul.f32 %v4633, %v5674
        %v5697 = vmul.f32 %v4635, %v5674
        %v5698 = vmul.f32 %v4637, %v5674
        %v5699 = vmul.f32 %v4639, %v5674
        %v5700 = vmul.f32 %v4641, %v5674
        %v5701 = vmul.f32 %v4643, %v5674
        %v5702 = vmul.f32 %v4645, %v5674
        %v5703 = vmul.f32 %v4647, %v5674
        %v5704 = vmul.f32 %v4649, %v5674
        %v5705 = vmul.f32 %v4651, %v5674
        %v5706 = vmul.f32 %v4653, %v5674
        %v5707 = vmul.f32 %v4655, %v5674
        %v5708 = vmul.f32 %v4657, %v5674
        %v5709 = vmul.f32 %v4659, %v5674
        %v5710 = vmul.f32 %v4661, %v5674
        %v5711 = vmul.f32 %v4663, %v5674
        %v5712 = vmul.f32 %v4665, %v5674
        %v5713 = vmul.f32 %v4667, %v5674
        %v5714 = vmul.f32 %v4669, %v5674
        %v5715 = vmul.f32 %v4671, %v5674
        %v5716 = vlaneseq
        %v5717 = vshrl.u32 %v5716, 7
        %v5718 = vsub.s32 5, %v5717
        %v5719 = vrot.slane %v382, %v5718
        %v5720 = vadd.f32 %v5675, %v5719
        %v5721 = vadd.f32 %v5676, %v5719
        %v5722 = vadd.f32 %v5677, %v5719
        %v5723 = vadd.f32 %v5678, %v5719
        %v5724 = vadd.f32 %v5679, %v5719
        %v5725 = vadd.f32 %v5680, %v5719
        %v5726 = vadd.f32 %v5681, %v5719
        %v5727 = vadd.f32 %v5682, %v5719
        %v5728 = vadd.f32 %v5683, %v5719
        %v5729 = vadd.f32 %v5684, %v5719
        %v5730 = vadd.f32 %v5685, %v5719
        %v5731 = vadd.f32 %v5686, %v5719
        %v5732 = vadd.f32 %v5687, %v5719
        %v5733 = vadd.f32 %v5688, %v5719
        %v5734 = vadd.f32 %v5689, %v5719
        %v5735 = vadd.f32 %v5690, %v5719
        %v5736 = vadd.f32 %v5691, %v5719
        %v5737 = vadd.f32 %v5692, %v5719
        %v5738 = vadd.f32 %v5693, %v5719
        %v5739 = vadd.f32 %v5694, %v5719
        %v5740 = vadd.f32 %v5695, %v5719
        %v5741 = vadd.f32 %v5696, %v5719
        %v5742 = vadd.f32 %v5697, %v5719
        %v5743 = vadd.f32 %v5698, %v5719
        %v5744 = vadd.f32 %v5699, %v5719
        %v5745 = vadd.f32 %v5700, %v5719
        %v5746 = vadd.f32 %v5701, %v5719
        %v5747 = vadd.f32 %v5702, %v5719
        %v5748 = vadd.f32 %v5703, %v5719
        %v5749 = vadd.f32 %v5704, %v5719
        %v5750 = vadd.f32 %v5705, %v5719
        %v5751 = vadd.f32 %v5706, %v5719
        %v5752 = vadd.f32 %v5707, %v5719
        %v5753 = vadd.f32 %v5708, %v5719
        %v5754 = vadd.f32 %v5709, %v5719
        %v5755 = vadd.f32 %v5710, %v5719
        %v5756 = vadd.f32 %v5711, %v5719
        %v5757 = vadd.f32 %v5712, %v5719
        %v5758 = vadd.f32 %v5713, %v5719
        %v5759 = vadd.f32 %v5714, %v5719
        %v5760 = vadd.f32 %v5715, %v5719
        %v5761 = vpack.c.bf16 %v5625, %v5624
        %v5762 = vpack.c.bf16 %v5627, %v5626
        %v5763 = vpack.c.bf16 %v5629, %v5628
        %v5764 = vpack.c.bf16 %v5631, %v5630
        %v5765 = vpack.c.bf16 %v5633, %v5632
        %v5766 = vpack.c.bf16 %v5635, %v5634
        %v5767 = vpack.c.bf16 %v5637, %v5636
        %v5768 = vpack.c.bf16 %v5639, %v5638
        %v5769 = vpack.c.bf16 %v5641, %v5640
        %v5770 = vpack.c.bf16 %v5643, %v5642
        %v5771 = vpack.c.bf16 %v5645, %v5644
        %v5772 = vpack.c.bf16 %v5647, %v5646
        %v5773 = vpack.c.bf16 %v5649, %v5648
        %v5774 = vpack.c.bf16 %v5651, %v5650
        %v5775 = vpack.c.bf16 %v5653, %v5652
        %v5776 = vpack.c.bf16 %v5655, %v5654
        %v5777 = vpack.c.bf16 %v5657, %v5656
        %v5778 = vpack.c.bf16 %v5659, %v5658
        %v5779 = vpack.c.bf16 %v5661, %v5660
        %v5780 = vpack.c.bf16 %v5663, %v5662
        %v5781 = vpack.c.bf16 %v5665, %v5664
        %v5782 = vpack.c.bf16 %v5667, %v5666
        %v5783 = vpack.c.bf16 %v5669, %v5668
        %v5784 = vpack.c.bf16 %v5670, %v5670
        %v5786 = vshrl.u32 %v5761, 16
        %v5788 = vshll.u32 %v5761, 16
        %v5790 = vrot.slane %v5788, 1
        %v5791 = vor.u32 %v5786, %v5790
        %v5793 = vshll.u32 %v5762, 16
        %v5795 = vrot.slane %v5793, 1
        %v5796 = vsel %vm516, %v5791, %v5795
        %v5797 = vshrl.u32 %v5762, 16
        %v5799 = vor.u32 %v5797, %v5795
        %v5801 = vshll.u32 %v5763, 16
        %v5803 = vrot.slane %v5801, 1
        %v5804 = vsel %vm516, %v5799, %v5803
        %v5805 = vshrl.u32 %v5763, 16
        %v5807 = vor.u32 %v5805, %v5803
        %v5809 = vshll.u32 %v5764, 16
        %v5811 = vrot.slane %v5809, 1
        %v5812 = vsel %vm516, %v5807, %v5811
        %v5813 = vshrl.u32 %v5764, 16
        %v5815 = vor.u32 %v5813, %v5811
        %v5817 = vshll.u32 %v5765, 16
        %v5819 = vrot.slane %v5817, 1
        %v5820 = vsel %vm516, %v5815, %v5819
        %v5821 = vshrl.u32 %v5765, 16
        %v5823 = vor.u32 %v5821, %v5819
        %v5825 = vshll.u32 %v5766, 16
        %v5827 = vrot.slane %v5825, 1
        %v5828 = vsel %vm516, %v5823, %v5827
        %v5829 = vshrl.u32 %v5766, 16
        %v5831 = vor.u32 %v5829, %v5827
        %v5833 = vshll.u32 %v5767, 16
        %v5835 = vrot.slane %v5833, 1
        %v5836 = vsel %vm516, %v5831, %v5835
        %v5837 = vshrl.u32 %v5767, 16
        %v5839 = vor.u32 %v5837, %v5835
        %v5841 = vshll.u32 %v5768, 16
        %v5843 = vrot.slane %v5841, 1
        %v5844 = vsel %vm516, %v5839, %v5843
        %v5845 = vshrl.u32 %v5768, 16
        %v5847 = vor.u32 %v5845, %v5843
        %v5849 = vshll.u32 %v5769, 16
        %v5851 = vrot.slane %v5849, 1
        %v5852 = vsel %vm516, %v5847, %v5851
        %v5853 = vshrl.u32 %v5769, 16
        %v5855 = vor.u32 %v5853, %v5851
        %v5857 = vshll.u32 %v5770, 16
        %v5859 = vrot.slane %v5857, 1
        %v5860 = vsel %vm516, %v5855, %v5859
        %v5861 = vshrl.u32 %v5770, 16
        %v5863 = vor.u32 %v5861, %v5859
        %v5865 = vshll.u32 %v5771, 16
        %v5867 = vrot.slane %v5865, 1
        %v5868 = vsel %vm516, %v5863, %v5867
        %v5869 = vshrl.u32 %v5771, 16
        %v5871 = vor.u32 %v5869, %v5867
        %v5873 = vshll.u32 %v5772, 16
        %v5875 = vrot.slane %v5873, 1
        %v5876 = vsel %vm516, %v5871, %v5875
        %v5877 = vshrl.u32 %v5772, 16
        %v5879 = vor.u32 %v5877, %v5875
        %v5881 = vshll.u32 %v5773, 16
        %v5883 = vrot.slane %v5881, 1
        %v5884 = vsel %vm516, %v5879, %v5883
        %v5885 = vshrl.u32 %v5773, 16
        %v5887 = vor.u32 %v5885, %v5883
        %v5889 = vshll.u32 %v5774, 16
        %v5891 = vrot.slane %v5889, 1
        %v5892 = vsel %vm516, %v5887, %v5891
        %v5893 = vshrl.u32 %v5774, 16
        %v5895 = vor.u32 %v5893, %v5891
        %v5897 = vshll.u32 %v5775, 16
        %v5899 = vrot.slane %v5897, 1
        %v5900 = vsel %vm516, %v5895, %v5899
        %v5901 = vshrl.u32 %v5775, 16
        %v5903 = vor.u32 %v5901, %v5899
        %v5905 = vshll.u32 %v5776, 16
        %v5907 = vrot.slane %v5905, 1
        %v5908 = vsel %vm516, %v5903, %v5907
        %v5909 = vshrl.u32 %v5776, 16
        %v5911 = vor.u32 %v5909, %v5907
        %v5913 = vshll.u32 %v5777, 16
        %v5915 = vrot.slane %v5913, 1
        %v5916 = vsel %vm516, %v5911, %v5915
        %v5917 = vshrl.u32 %v5777, 16
        %v5919 = vor.u32 %v5917, %v5915
        %v5921 = vshll.u32 %v5778, 16
        %v5923 = vrot.slane %v5921, 1
        %v5924 = vsel %vm516, %v5919, %v5923
        %v5925 = vshrl.u32 %v5778, 16
        %v5927 = vor.u32 %v5925, %v5923
        %v5929 = vshll.u32 %v5779, 16
        %v5931 = vrot.slane %v5929, 1
        %v5932 = vsel %vm516, %v5927, %v5931
        %v5933 = vshrl.u32 %v5779, 16
        %v5935 = vor.u32 %v5933, %v5931
        %v5937 = vshll.u32 %v5780, 16
        %v5939 = vrot.slane %v5937, 1
        %v5940 = vsel %vm516, %v5935, %v5939
        %v5941 = vshrl.u32 %v5780, 16
        %v5943 = vor.u32 %v5941, %v5939
        %v5945 = vshll.u32 %v5781, 16
        %v5947 = vrot.slane %v5945, 1
        %v5948 = vsel %vm516, %v5943, %v5947
        %v5949 = vshrl.u32 %v5781, 16
        %v5951 = vor.u32 %v5949, %v5947
        %v5953 = vshll.u32 %v5782, 16
        %v5955 = vrot.slane %v5953, 1
        %v5956 = vsel %vm516, %v5951, %v5955
        %v5957 = vshrl.u32 %v5782, 16
        %v5959 = vor.u32 %v5957, %v5955
        %v5961 = vshll.u32 %v5783, 16
        %v5963 = vrot.slane %v5961, 1
        %v5964 = vsel %vm516, %v5959, %v5963
        %v5965 = vshrl.u32 %v5783, 16
        %v5967 = vor.u32 %v5965, %v5963
        %v5969 = vshll.u32 %v5784, 16
        %v5971 = vrot.slane %v5969, 1
        %v5972 = vsel %vm516, %v5967, %v5971
        %v5973 = vshrl.u32 %v5784, 16
        %v5999 = vrot.slane %v5761, 1
        %v6000 = vrot.slane %v5762, 1
        %v6001 = vsel %vm731, %v5999, %v6000
        %v6002 = vrot.slane %v5763, 1
        %v6003 = vsel %vm731, %v6000, %v6002
        %v6004 = vrot.slane %v5764, 1
        %v6005 = vsel %vm731, %v6002, %v6004
        %v6006 = vrot.slane %v5765, 1
        %v6007 = vsel %vm731, %v6004, %v6006
        %v6008 = vrot.slane %v5766, 1
        %v6009 = vsel %vm731, %v6006, %v6008
        %v6010 = vrot.slane %v5767, 1
        %v6011 = vsel %vm731, %v6008, %v6010
        %v6012 = vrot.slane %v5768, 1
        %v6013 = vsel %vm731, %v6010, %v6012
        %v6014 = vrot.slane %v5769, 1
        %v6015 = vsel %vm731, %v6012, %v6014
        %v6016 = vrot.slane %v5770, 1
        %v6017 = vsel %vm731, %v6014, %v6016
        %v6018 = vrot.slane %v5771, 1
        %v6019 = vsel %vm731, %v6016, %v6018
        %v6020 = vrot.slane %v5772, 1
        %v6021 = vsel %vm731, %v6018, %v6020
        %v6022 = vrot.slane %v5773, 1
        %v6023 = vsel %vm731, %v6020, %v6022
        %v6024 = vrot.slane %v5774, 1
        %v6025 = vsel %vm731, %v6022, %v6024
        %v6026 = vrot.slane %v5775, 1
        %v6027 = vsel %vm731, %v6024, %v6026
        %v6028 = vrot.slane %v5776, 1
        %v6029 = vsel %vm731, %v6026, %v6028
        %v6030 = vrot.slane %v5777, 1
        %v6031 = vsel %vm731, %v6028, %v6030
        %v6032 = vrot.slane %v5778, 1
        %v6033 = vsel %vm731, %v6030, %v6032
        %v6034 = vrot.slane %v5779, 1
        %v6035 = vsel %vm731, %v6032, %v6034
        %v6036 = vrot.slane %v5780, 1
        %v6037 = vsel %vm731, %v6034, %v6036
        %v6038 = vrot.slane %v5781, 1
        %v6039 = vsel %vm731, %v6036, %v6038
        %v6040 = vrot.slane %v5782, 1
        %v6041 = vsel %vm731, %v6038, %v6040
        %v6042 = vrot.slane %v5783, 1
        %v6043 = vsel %vm731, %v6040, %v6042
        %v6044 = vrot.slane %v5784, 1
        %v6045 = vsel %vm731, %v6042, %v6044
        %v6046 = vld [vmem:[#allocation7] sm:$0xf]
        %v6047 = vld [vmem:[#allocation7 + $0x4] sm:$0xf]
        %v6048 = vld [vmem:[#allocation7 + $0x8] sm:$0xf]
        %v6049 = vld [vmem:[#allocation7 + $0xc] sm:$0xf]
        %v6050 = vld [vmem:[#allocation7 + $0x10] sm:$0xf]
        %v6051 = vld [vmem:[#allocation7 + $0x14] sm:$0xf]
        %v6052 = vld [vmem:[#allocation7 + $0x18] sm:$0xf]
        %v6053 = vld [vmem:[#allocation7 + $0x1c] sm:$0xf]
        %v6054 = vld [vmem:[#allocation7 + $0x20] sm:$0xf]
        %v6055 = vld [vmem:[#allocation7 + $0x24] sm:$0xf]
        %v6056 = vld [vmem:[#allocation7 + $0x28] sm:$0xf]
        %v6057 = vld [vmem:[#allocation7 + $0x2c] sm:$0xf]
        %v6058 = vld [vmem:[#allocation7 + $0x30] sm:$0xf]
        %v6059 = vld [vmem:[#allocation7 + $0x34] sm:$0xf]
        %v6060 = vld [vmem:[#allocation7 + $0x38] sm:$0xf]
        %v6061 = vld [vmem:[#allocation7 + $0x3c] sm:$0xf]
        %v6062 = vld [vmem:[#allocation7 + $0x40] sm:$0xf]
        %v6063 = vld [vmem:[#allocation7 + $0x44] sm:$0xf]
        %v6064 = vld [vmem:[#allocation7 + $0x48] sm:$0xf]
        %v6065 = vld [vmem:[#allocation7 + $0x4c] sm:$0xf]
        %v6066 = vld [vmem:[#allocation7 + $0x50] sm:$0xf]
        %v6067 = vld [vmem:[#allocation7 + $0x54] sm:$0xf]
        %v6068 = vld [vmem:[#allocation7 + $0x58] sm:$0xf]
        %v6069 = vld [vmem:[#allocation7 + $0x5c] sm:$0xf]
        %v6070 = vld [vmem:[#allocation7 + $0x60] sm:$0xf]
        %v6071 = vld [vmem:[#allocation7 + $0x64] sm:$0xf]
        %v6072 = vld [vmem:[#allocation7 + $0x68] sm:$0xf]
        %v6073 = vld [vmem:[#allocation7 + $0x6c] sm:$0xf]
        %v6074 = vld [vmem:[#allocation7 + $0x70] sm:$0xf]
        %v6075 = vld [vmem:[#allocation7 + $0x74] sm:$0xf]
        %v6076 = vld [vmem:[#allocation7 + $0x78] sm:$0xf]
        %v6077 = vld [vmem:[#allocation7 + $0x7c] sm:$0xf]
        %v6078 = vld [vmem:[#allocation7 + $0x80] sm:$0xf]
        %v6079 = vld [vmem:[#allocation7 + $0x84] sm:$0xf]
        %v6080 = vld [vmem:[#allocation7 + $0x88] sm:$0xf]
        %v6081 = vld [vmem:[#allocation7 + $0x8c] sm:$0xf]
        %v6082 = vld [vmem:[#allocation7 + $0x90] sm:$0xf]
        %v6083 = vld [vmem:[#allocation7 + $0x94] sm:$0xf]
        %v6084 = vld [vmem:[#allocation7 + $0x98] sm:$0xf]
        %v6085 = vld [vmem:[#allocation7 + $0x9c] sm:$0xf]
        %v6086 = vld [vmem:[#allocation7 + $0xa0] sm:$0xf]
        %v6087 = vld [vmem:[#allocation7 + $0xa4] sm:$0xf]
        %v6088 = vld [vmem:[#allocation7 + $0xa8] sm:$0xf]
        %v6089 = vld [vmem:[#allocation7 + $0xac] sm:$0xf]
        %v6090 = vld [vmem:[#allocation7 + $0xb0] sm:$0xf]
        %v6091 = vld [vmem:[#allocation7 + $0xb4] sm:$0xf]
        %v6092 = vld [vmem:[#allocation7 + $0xb8] sm:$0xf]
        %v6093 = vld [vmem:[#allocation7 + $0xbc] sm:$0xf]
        %s6094 = scalar_lea.vmem [#allocation7], 192
        %v6095 = vld [vmem:[%s6094] sm:$0xf]
        %v6096 = vld [vmem:[%s6094 + $0x4] sm:$0xf]
        %v6097 = vld [vmem:[%s6094 + $0x8] sm:$0xf]
        %v6098 = vld [vmem:[%s6094 + $0xc] sm:$0xf]
        %v6099 = vld [vmem:[%s6094 + $0x10] sm:$0xf]
        %v6100 = vld [vmem:[%s6094 + $0x14] sm:$0xf]
        %v6101 = vld [vmem:[%s6094 + $0x18] sm:$0xf]
        %v6102 = vld [vmem:[%s6094 + $0x1c] sm:$0xf]
        %v6103 = vld [vmem:[%s6094 + $0x20] sm:$0xf]
        %v6104 = vld [vmem:[%s6094 + $0x24] sm:$0xf]
        %v6105 = vld [vmem:[%s6094 + $0x28] sm:$0xf]
        %v6106 = vld [vmem:[%s6094 + $0x2c] sm:$0xf]
        %v6107 = vld [vmem:[%s6094 + $0x30] sm:$0xf]
        %v6108 = vld [vmem:[%s6094 + $0x34] sm:$0xf]
        %v6109 = vld [vmem:[%s6094 + $0x38] sm:$0xf]
        %v6110 = vld [vmem:[%s6094 + $0x3c] sm:$0xf]
        %v6111 = vld [vmem:[%s6094 + $0x40] sm:$0xf]
        %v6112 = vld [vmem:[%s6094 + $0x44] sm:$0xf]
        %v6113 = vld [vmem:[%s6094 + $0x48] sm:$0xf]
        %v6114 = vld [vmem:[%s6094 + $0x4c] sm:$0xf]
        %v6115 = vld [vmem:[%s6094 + $0x50] sm:$0xf]
        %v6116 = vld [vmem:[%s6094 + $0x54] sm:$0xf]
        %v6117 = vld [vmem:[%s6094 + $0x58] sm:$0xf]
        %v6118 = vld [vmem:[%s6094 + $0x5c] sm:$0xf]
        %v6119 = vld [vmem:[%s6094 + $0x60] sm:$0xf]
        %v6120 = vld [vmem:[%s6094 + $0x64] sm:$0xf]
        %v6121 = vld [vmem:[%s6094 + $0x68] sm:$0xf]
        %v6122 = vld [vmem:[%s6094 + $0x6c] sm:$0xf]
        %v6123 = vld [vmem:[%s6094 + $0x70] sm:$0xf]
        %v6124 = vld [vmem:[%s6094 + $0x74] sm:$0xf]
        %v6125 = vld [vmem:[%s6094 + $0x78] sm:$0xf]
        %v6126 = vld [vmem:[%s6094 + $0x7c] sm:$0xf]
        %v6127 = vld [vmem:[%s6094 + $0x80] sm:$0xf]
        %v6128 = vld [vmem:[%s6094 + $0x84] sm:$0xf]
        %v6129 = vld [vmem:[%s6094 + $0x88] sm:$0xf]
        %v6130 = vld [vmem:[%s6094 + $0x8c] sm:$0xf]
        %v6131 = vld [vmem:[%s6094 + $0x90] sm:$0xf]
        %v6132 = vld [vmem:[%s6094 + $0x94] sm:$0xf]
        %v6133 = vld [vmem:[%s6094 + $0x98] sm:$0xf]
        %v6134 = vld [vmem:[%s6094 + $0x9c] sm:$0xf]
        %v6135 = vld [vmem:[%s6094 + $0xa0] sm:$0xf]
        %v6136 = vld [vmem:[%s6094 + $0xa4] sm:$0xf]
        %v6137 = vld [vmem:[%s6094 + $0xa8] sm:$0xf]
        %v6138 = vld [vmem:[%s6094 + $0xac] sm:$0xf]
        %v6139 = vld [vmem:[%s6094 + $0xb0] sm:$0xf]
        %v6140 = vld [vmem:[%s6094 + $0xb4] sm:$0xf]
        %v6141 = vld [vmem:[%s6094 + $0xb8] sm:$0xf]
        %v6142 = vld [vmem:[%s6094 + $0xbc] sm:$0xf]
        %v6143 = vrot.slane %v5797, 3
        %v6144 = vrot.slane %v5793, 4
        %v6145 = vor.u32 %v6143, %v6144
        %v6146 = vrot.slane %v5805, 3
        %v6147 = vrot.slane %v5801, 4
        %v6148 = vor.u32 %v6146, %v6147
        %v6149 = vsel %vm882, %v6145, %v6148
        %v6151 = vshrl.u32 %v5804, 16
        %v6153 = vrot.slane %v6151, 3
        %v6154 = vshll.u32 %v5804, 16
        %v6156 = vrot.slane %v6154, 4
        %v6157 = vor.u32 %v6153, %v6156
        %v6159 = vshrl.u32 %v5812, 16
        %v6161 = vrot.slane %v6159, 3
        %v6162 = vshll.u32 %v5812, 16
        %v6164 = vrot.slane %v6162, 4
        %v6165 = vor.u32 %v6161, %v6164
        %v6166 = vsel %vm882, %v6157, %v6165
        %v6168 = vshrl.u32 %v6003, 16
        %v6170 = vrot.slane %v6168, 3
        %v6171 = vshll.u32 %v6003, 16
        %v6173 = vrot.slane %v6171, 4
        %v6174 = vor.u32 %v6170, %v6173
        %v6176 = vshrl.u32 %v6005, 16
        %v6178 = vrot.slane %v6176, 3
        %v6179 = vshll.u32 %v6005, 16
        %v6181 = vrot.slane %v6179, 4
        %v6182 = vor.u32 %v6178, %v6181
        %v6183 = vsel %vm882, %v6174, %v6182
        %v6184 = vrot.slane %v5813, 3
        %v6185 = vrot.slane %v5809, 4
        %v6186 = vor.u32 %v6184, %v6185
        %v6187 = vsel %vm882, %v6148, %v6186
        %v6189 = vshrl.u32 %v5820, 16
        %v6191 = vrot.slane %v6189, 3
        %v6192 = vshll.u32 %v5820, 16
        %v6194 = vrot.slane %v6192, 4
        %v6195 = vor.u32 %v6191, %v6194
        %v6196 = vsel %vm882, %v6165, %v6195
        %v6198 = vshrl.u32 %v6007, 16
        %v6200 = vrot.slane %v6198, 3
        %v6201 = vshll.u32 %v6007, 16
        %v6203 = vrot.slane %v6201, 4
        %v6204 = vor.u32 %v6200, %v6203
        %v6205 = vsel %vm882, %v6182, %v6204
        %v6206 = vrot.slane %v5821, 3
        %v6207 = vrot.slane %v5817, 4
        %v6208 = vor.u32 %v6206, %v6207
        %v6209 = vsel %vm882, %v6186, %v6208
        %v6211 = vshrl.u32 %v5828, 16
        %v6213 = vrot.slane %v6211, 3
        %v6214 = vshll.u32 %v5828, 16
        %v6216 = vrot.slane %v6214, 4
        %v6217 = vor.u32 %v6213, %v6216
        %v6218 = vsel %vm882, %v6195, %v6217
        %v6220 = vshrl.u32 %v6009, 16
        %v6222 = vrot.slane %v6220, 3
        %v6223 = vshll.u32 %v6009, 16
        %v6225 = vrot.slane %v6223, 4
        %v6226 = vor.u32 %v6222, %v6225
        %v6227 = vsel %vm882, %v6204, %v6226
        %v6228 = vrot.slane %v5829, 3
        %v6229 = vrot.slane %v5825, 4
        %v6230 = vor.u32 %v6228, %v6229
        %v6231 = vsel %vm882, %v6208, %v6230
        %v6233 = vshrl.u32 %v5836, 16
        %v6235 = vrot.slane %v6233, 3
        %v6236 = vshll.u32 %v5836, 16
        %v6238 = vrot.slane %v6236, 4
        %v6239 = vor.u32 %v6235, %v6238
        %v6240 = vsel %vm882, %v6217, %v6239
        %v6242 = vshrl.u32 %v6011, 16
        %v6244 = vrot.slane %v6242, 3
        %v6245 = vshll.u32 %v6011, 16
        %v6247 = vrot.slane %v6245, 4
        %v6248 = vor.u32 %v6244, %v6247
        %v6249 = vsel %vm882, %v6226, %v6248
        %v6250 = vrot.slane %v5837, 3
        %v6251 = vrot.slane %v5833, 4
        %v6252 = vor.u32 %v6250, %v6251
        %v6253 = vsel %vm882, %v6230, %v6252
        %v6255 = vshrl.u32 %v5844, 16
        %v6257 = vrot.slane %v6255, 3
        %v6258 = vshll.u32 %v5844, 16
        %v6260 = vrot.slane %v6258, 4
        %v6261 = vor.u32 %v6257, %v6260
        %v6262 = vsel %vm882, %v6239, %v6261
        %v6264 = vshrl.u32 %v6013, 16
        %v6266 = vrot.slane %v6264, 3
        %v6267 = vshll.u32 %v6013, 16
        %v6269 = vrot.slane %v6267, 4
        %v6270 = vor.u32 %v6266, %v6269
        %v6271 = vsel %vm882, %v6248, %v6270
        %v6272 = vrot.slane %v5845, 3
        %v6273 = vrot.slane %v5841, 4
        %v6274 = vor.u32 %v6272, %v6273
        %v6275 = vsel %vm882, %v6252, %v6274
        %v6277 = vshrl.u32 %v5852, 16
        %v6279 = vrot.slane %v6277, 3
        %v6280 = vshll.u32 %v5852, 16
        %v6282 = vrot.slane %v6280, 4
        %v6283 = vor.u32 %v6279, %v6282
        %v6284 = vsel %vm882, %v6261, %v6283
        %v6286 = vshrl.u32 %v6015, 16
        %v6288 = vrot.slane %v6286, 3
        %v6289 = vshll.u32 %v6015, 16
        %v6291 = vrot.slane %v6289, 4
        %v6292 = vor.u32 %v6288, %v6291
        %v6293 = vsel %vm882, %v6270, %v6292
        %v6294 = vrot.slane %v5853, 3
        %v6295 = vrot.slane %v5849, 4
        %v6296 = vor.u32 %v6294, %v6295
        %v6297 = vsel %vm882, %v6274, %v6296
        %v6299 = vshrl.u32 %v5860, 16
        %v6301 = vrot.slane %v6299, 3
        %v6302 = vshll.u32 %v5860, 16
        %v6304 = vrot.slane %v6302, 4
        %v6305 = vor.u32 %v6301, %v6304
        %v6306 = vsel %vm882, %v6283, %v6305
        %v6308 = vshrl.u32 %v6017, 16
        %v6310 = vrot.slane %v6308, 3
        %v6311 = vshll.u32 %v6017, 16
        %v6313 = vrot.slane %v6311, 4
        %v6314 = vor.u32 %v6310, %v6313
        %v6315 = vsel %vm882, %v6292, %v6314
        %v6316 = vrot.slane %v5861, 3
        %v6317 = vrot.slane %v5857, 4
        %v6318 = vor.u32 %v6316, %v6317
        %v6319 = vsel %vm882, %v6296, %v6318
        %v6321 = vshrl.u32 %v5868, 16
        %v6323 = vrot.slane %v6321, 3
        %v6324 = vshll.u32 %v5868, 16
        %v6326 = vrot.slane %v6324, 4
        %v6327 = vor.u32 %v6323, %v6326
        %v6328 = vsel %vm882, %v6305, %v6327
        %v6330 = vshrl.u32 %v6019, 16
        %v6332 = vrot.slane %v6330, 3
        %v6333 = vshll.u32 %v6019, 16
        %v6335 = vrot.slane %v6333, 4
        %v6336 = vor.u32 %v6332, %v6335
        %v6337 = vsel %vm882, %v6314, %v6336
        %v6338 = vrot.slane %v5869, 3
        %v6339 = vrot.slane %v5865, 4
        %v6340 = vor.u32 %v6338, %v6339
        %v6341 = vsel %vm882, %v6318, %v6340
        %v6343 = vshrl.u32 %v5876, 16
        %v6345 = vrot.slane %v6343, 3
        %v6346 = vshll.u32 %v5876, 16
        %v6348 = vrot.slane %v6346, 4
        %v6349 = vor.u32 %v6345, %v6348
        %v6350 = vsel %vm882, %v6327, %v6349
        %v6352 = vshrl.u32 %v6021, 16
        %v6354 = vrot.slane %v6352, 3
        %v6355 = vshll.u32 %v6021, 16
        %v6357 = vrot.slane %v6355, 4
        %v6358 = vor.u32 %v6354, %v6357
        %v6359 = vsel %vm882, %v6336, %v6358
        %v6360 = vrot.slane %v5877, 3
        %v6361 = vrot.slane %v5873, 4
        %v6362 = vor.u32 %v6360, %v6361
        %v6363 = vsel %vm882, %v6340, %v6362
        %v6365 = vshrl.u32 %v5884, 16
        %v6367 = vrot.slane %v6365, 3
        %v6368 = vshll.u32 %v5884, 16
        %v6370 = vrot.slane %v6368, 4
        %v6371 = vor.u32 %v6367, %v6370
        %v6372 = vsel %vm882, %v6349, %v6371
        %v6374 = vshrl.u32 %v6023, 16
        %v6376 = vrot.slane %v6374, 3
        %v6377 = vshll.u32 %v6023, 16
        %v6379 = vrot.slane %v6377, 4
        %v6380 = vor.u32 %v6376, %v6379
        %v6381 = vsel %vm882, %v6358, %v6380
        %v6382 = vrot.slane %v5885, 3
        %v6383 = vrot.slane %v5881, 4
        %v6384 = vor.u32 %v6382, %v6383
        %v6385 = vsel %vm882, %v6362, %v6384
        %v6387 = vshrl.u32 %v5892, 16
        %v6389 = vrot.slane %v6387, 3
        %v6390 = vshll.u32 %v5892, 16
        %v6392 = vrot.slane %v6390, 4
        %v6393 = vor.u32 %v6389, %v6392
        %v6394 = vsel %vm882, %v6371, %v6393
        %v6396 = vshrl.u32 %v6025, 16
        %v6398 = vrot.slane %v6396, 3
        %v6399 = vshll.u32 %v6025, 16
        %v6401 = vrot.slane %v6399, 4
        %v6402 = vor.u32 %v6398, %v6401
        %v6403 = vsel %vm882, %v6380, %v6402
        %v6404 = vrot.slane %v5893, 3
        %v6405 = vrot.slane %v5889, 4
        %v6406 = vor.u32 %v6404, %v6405
        %v6407 = vsel %vm882, %v6384, %v6406
        %v6409 = vshrl.u32 %v5900, 16
        %v6411 = vrot.slane %v6409, 3
        %v6412 = vshll.u32 %v5900, 16
        %v6414 = vrot.slane %v6412, 4
        %v6415 = vor.u32 %v6411, %v6414
        %v6416 = vsel %vm882, %v6393, %v6415
        %v6418 = vshrl.u32 %v6027, 16
        %v6420 = vrot.slane %v6418, 3
        %v6421 = vshll.u32 %v6027, 16
        %v6423 = vrot.slane %v6421, 4
        %v6424 = vor.u32 %v6420, %v6423
        %v6425 = vsel %vm882, %v6402, %v6424
        %v6426 = vrot.slane %v5901, 3
        %v6427 = vrot.slane %v5897, 4
        %v6428 = vor.u32 %v6426, %v6427
        %v6429 = vsel %vm882, %v6406, %v6428
        %v6431 = vshrl.u32 %v5908, 16
        %v6433 = vrot.slane %v6431, 3
        %v6434 = vshll.u32 %v5908, 16
        %v6436 = vrot.slane %v6434, 4
        %v6437 = vor.u32 %v6433, %v6436
        %v6438 = vsel %vm882, %v6415, %v6437
        %v6440 = vshrl.u32 %v6029, 16
        %v6442 = vrot.slane %v6440, 3
        %v6443 = vshll.u32 %v6029, 16
        %v6445 = vrot.slane %v6443, 4
        %v6446 = vor.u32 %v6442, %v6445
        %v6447 = vsel %vm882, %v6424, %v6446
        %v6448 = vrot.slane %v5909, 3
        %v6449 = vrot.slane %v5905, 4
        %v6450 = vor.u32 %v6448, %v6449
        %v6451 = vsel %vm882, %v6428, %v6450
        %v6453 = vshrl.u32 %v5916, 16
        %v6455 = vrot.slane %v6453, 3
        %v6456 = vshll.u32 %v5916, 16
        %v6458 = vrot.slane %v6456, 4
        %v6459 = vor.u32 %v6455, %v6458
        %v6460 = vsel %vm882, %v6437, %v6459
        %v6462 = vshrl.u32 %v6031, 16
        %v6464 = vrot.slane %v6462, 3
        %v6465 = vshll.u32 %v6031, 16
        %v6467 = vrot.slane %v6465, 4
        %v6468 = vor.u32 %v6464, %v6467
        %v6469 = vsel %vm882, %v6446, %v6468
        %v6470 = vrot.slane %v5917, 3
        %v6471 = vrot.slane %v5913, 4
        %v6472 = vor.u32 %v6470, %v6471
        %v6473 = vsel %vm882, %v6450, %v6472
        %v6475 = vshrl.u32 %v5924, 16
        %v6477 = vrot.slane %v6475, 3
        %v6478 = vshll.u32 %v5924, 16
        %v6480 = vrot.slane %v6478, 4
        %v6481 = vor.u32 %v6477, %v6480
        %v6482 = vsel %vm882, %v6459, %v6481
        %v6484 = vshrl.u32 %v6033, 16
        %v6486 = vrot.slane %v6484, 3
        %v6487 = vshll.u32 %v6033, 16
        %v6489 = vrot.slane %v6487, 4
        %v6490 = vor.u32 %v6486, %v6489
        %v6491 = vsel %vm882, %v6468, %v6490
        %v6492 = vrot.slane %v5925, 3
        %v6493 = vrot.slane %v5921, 4
        %v6494 = vor.u32 %v6492, %v6493
        %v6495 = vsel %vm882, %v6472, %v6494
        %v6497 = vshrl.u32 %v5932, 16
        %v6499 = vrot.slane %v6497, 3
        %v6500 = vshll.u32 %v5932, 16
        %v6502 = vrot.slane %v6500, 4
        %v6503 = vor.u32 %v6499, %v6502
        %v6504 = vsel %vm882, %v6481, %v6503
        %v6506 = vshrl.u32 %v6035, 16
        %v6508 = vrot.slane %v6506, 3
        %v6509 = vshll.u32 %v6035, 16
        %v6511 = vrot.slane %v6509, 4
        %v6512 = vor.u32 %v6508, %v6511
        %v6513 = vsel %vm882, %v6490, %v6512
        %v6514 = vrot.slane %v5933, 3
        %v6515 = vrot.slane %v5929, 4
        %v6516 = vor.u32 %v6514, %v6515
        %v6517 = vsel %vm882, %v6494, %v6516
        %v6519 = vshrl.u32 %v5940, 16
        %v6521 = vrot.slane %v6519, 3
        %v6522 = vshll.u32 %v5940, 16
        %v6524 = vrot.slane %v6522, 4
        %v6525 = vor.u32 %v6521, %v6524
        %v6526 = vsel %vm882, %v6503, %v6525
        %v6528 = vshrl.u32 %v6037, 16
        %v6530 = vrot.slane %v6528, 3
        %v6531 = vshll.u32 %v6037, 16
        %v6533 = vrot.slane %v6531, 4
        %v6534 = vor.u32 %v6530, %v6533
        %v6535 = vsel %vm882, %v6512, %v6534
        %v6536 = vrot.slane %v5941, 3
        %v6537 = vrot.slane %v5937, 4
        %v6538 = vor.u32 %v6536, %v6537
        %v6539 = vsel %vm882, %v6516, %v6538
        %v6541 = vshrl.u32 %v5948, 16
        %v6543 = vrot.slane %v6541, 3
        %v6544 = vshll.u32 %v5948, 16
        %v6546 = vrot.slane %v6544, 4
        %v6547 = vor.u32 %v6543, %v6546
        %v6548 = vsel %vm882, %v6525, %v6547
        %v6550 = vshrl.u32 %v6039, 16
        %v6552 = vrot.slane %v6550, 3
        %v6553 = vshll.u32 %v6039, 16
        %v6555 = vrot.slane %v6553, 4
        %v6556 = vor.u32 %v6552, %v6555
        %v6557 = vsel %vm882, %v6534, %v6556
        %v6558 = vrot.slane %v5949, 3
        %v6559 = vrot.slane %v5945, 4
        %v6560 = vor.u32 %v6558, %v6559
        %v6561 = vsel %vm882, %v6538, %v6560
        %v6563 = vshrl.u32 %v5956, 16
        %v6565 = vrot.slane %v6563, 3
        %v6566 = vshll.u32 %v5956, 16
        %v6568 = vrot.slane %v6566, 4
        %v6569 = vor.u32 %v6565, %v6568
        %v6570 = vsel %vm882, %v6547, %v6569
        %v6572 = vshrl.u32 %v6041, 16
        %v6574 = vrot.slane %v6572, 3
        %v6575 = vshll.u32 %v6041, 16
        %v6577 = vrot.slane %v6575, 4
        %v6578 = vor.u32 %v6574, %v6577
        %v6579 = vsel %vm882, %v6556, %v6578
        %v6580 = vrot.slane %v5957, 3
        %v6581 = vrot.slane %v5953, 4
        %v6582 = vor.u32 %v6580, %v6581
        %v6583 = vsel %vm882, %v6560, %v6582
        %v6585 = vshrl.u32 %v5964, 16
        %v6587 = vrot.slane %v6585, 3
        %v6588 = vshll.u32 %v5964, 16
        %v6590 = vrot.slane %v6588, 4
        %v6591 = vor.u32 %v6587, %v6590
        %v6592 = vsel %vm882, %v6569, %v6591
        %v6594 = vshrl.u32 %v6043, 16
        %v6596 = vrot.slane %v6594, 3
        %v6597 = vshll.u32 %v6043, 16
        %v6599 = vrot.slane %v6597, 4
        %v6600 = vor.u32 %v6596, %v6599
        %v6601 = vsel %vm882, %v6578, %v6600
        %v6713 = vunpack.c.l.b16 %v6095
        %v6714 = vunpack.c.l.b16 %v6096
        %v6715 = vunpack.c.l.b16 %v6097
        %v6716 = vunpack.c.l.b16 %v6098
        %v6717 = vunpack.c.l.b16 %v6099
        %v6718 = vunpack.c.l.b16 %v6100
        %v6719 = vunpack.c.l.b16 %v6101
        %v6720 = vunpack.c.l.b16 %v6102
        %v6721 = vunpack.c.l.b16 %v6103
        %v6722 = vunpack.c.l.b16 %v6104
        %v6723 = vunpack.c.l.b16 %v6105
        %v6724 = vunpack.c.l.b16 %v6106
        %v6725 = vunpack.c.l.b16 %v6107
        %v6726 = vunpack.c.l.b16 %v6108
        %v6727 = vunpack.c.l.b16 %v6109
        %v6728 = vunpack.c.l.b16 %v6110
        %v6729 = vunpack.c.l.b16 %v6111
        %v6730 = vunpack.c.l.b16 %v6112
        %v6731 = vunpack.c.l.b16 %v6113
        %v6732 = vunpack.c.l.b16 %v6114
        %v6733 = vunpack.c.l.b16 %v6115
        %v6734 = vunpack.c.l.b16 %v6116
        %v6735 = vunpack.c.l.b16 %v6117
        %v6736 = vunpack.c.l.b16 %v6118
        %v6737 = vunpack.c.l.b16 %v6119
        %v6738 = vunpack.c.l.b16 %v6120
        %v6739 = vunpack.c.l.b16 %v6121
        %v6740 = vunpack.c.l.b16 %v6122
        %v6741 = vunpack.c.l.b16 %v6123
        %v6742 = vunpack.c.l.b16 %v6124
        %v6743 = vunpack.c.l.b16 %v6125
        %v6744 = vunpack.c.l.b16 %v6126
        %v6745 = vunpack.c.l.b16 %v6127
        %v6746 = vunpack.c.l.b16 %v6128
        %v6747 = vunpack.c.l.b16 %v6129
        %v6748 = vunpack.c.l.b16 %v6130
        %v6749 = vunpack.c.l.b16 %v6131
        %v6750 = vunpack.c.l.b16 %v6132
        %v6751 = vunpack.c.l.b16 %v6133
        %v6752 = vunpack.c.l.b16 %v6134
        %v6753 = vunpack.c.l.b16 %v6135
        %v6754 = vunpack.c.l.b16 %v6136
        %v6755 = vunpack.c.l.b16 %v6137
        %v6756 = vunpack.c.l.b16 %v6138
        %v6757 = vunpack.c.l.b16 %v6139
        %v6758 = vunpack.c.l.b16 %v6140
        %v6759 = vunpack.c.l.b16 %v6141
        %v6760 = vunpack.c.l.b16 %v6142
        %v6761 = vpack.c.b16 %v6714, %v6713
        %v6762 = vpack.c.b16 %v6716, %v6715
        %v6763 = vpack.c.b16 %v6718, %v6717
        %v6764 = vpack.c.b16 %v6720, %v6719
        %v6765 = vpack.c.b16 %v6722, %v6721
        %v6766 = vpack.c.b16 %v6724, %v6723
        %v6767 = vpack.c.b16 %v6726, %v6725
        %v6768 = vpack.c.b16 %v6728, %v6727
        %v6769 = vpack.c.b16 %v6730, %v6729
        %v6770 = vpack.c.b16 %v6732, %v6731
        %v6771 = vpack.c.b16 %v6734, %v6733
        %v6772 = vpack.c.b16 %v6736, %v6735
        %v6773 = vpack.c.b16 %v6738, %v6737
        %v6774 = vpack.c.b16 %v6740, %v6739
        %v6775 = vpack.c.b16 %v6742, %v6741
        %v6776 = vpack.c.b16 %v6744, %v6743
        %v6777 = vpack.c.b16 %v6746, %v6745
        %v6778 = vpack.c.b16 %v6748, %v6747
        %v6779 = vpack.c.b16 %v6750, %v6749
        %v6780 = vpack.c.b16 %v6752, %v6751
        %v6781 = vpack.c.b16 %v6754, %v6753
        %v6782 = vpack.c.b16 %v6756, %v6755
        %v6783 = vpack.c.b16 %v6758, %v6757
        %v6784 = vpack.c.b16 %v6760, %v6759
        %6809 = vmatprep.subr.bf16.mxu0 0
        %6810 = vmatpush1.bf16.msra.mxu0 %v6761
        %6811 = vmatprep.subr.bf16.mxu0 0
        %6812 = vmatpush1.bf16.msra.mxu0 %v6762
        %6813 = vmatprep.subr.bf16.mxu0 0
        %6814 = vmatpush1.bf16.msra.mxu0 %v6763
        %6815 = vmatprep.subr.bf16.mxu0 0
        %6816 = vmatpush1.bf16.msra.mxu0 %v6764
        %6817 = vmatprep.subr.bf16.mxu0 0
        %6818 = vmatpush1.bf16.msra.mxu0 %v6765
        %6819 = vmatprep.subr.bf16.mxu0 0
        %6820 = vmatpush1.bf16.msra.mxu0 %v6766
        %6821 = vmatprep.subr.bf16.mxu0 0
        %6822 = vmatpush1.bf16.msra.mxu0 %v6767
        %6823 = vmatprep.subr.bf16.mxu0 0
        %6824 = vmatpush1.bf16.msra.mxu0 %v6768
        %6825 = vmatprep.subr.bf16.mxu0 0
        %6826 = vmatpush1.bf16.msra.mxu0 %v6769
        %6827 = vmatprep.subr.bf16.mxu0 0
        %6828 = vmatpush1.bf16.msra.mxu0 %v6770
        %6829 = vmatprep.subr.bf16.mxu0 0
        %6830 = vmatpush1.bf16.msra.mxu0 %v6771
        %6831 = vmatprep.subr.bf16.mxu0 0
        %6832 = vmatpush1.bf16.msra.mxu0 %v6772
        %6833 = vmatprep.subr.bf16.mxu0 0
        %6834 = vmatpush1.bf16.msra.mxu0 %v6773
        %6835 = vmatprep.subr.bf16.mxu0 0
        %6836 = vmatpush1.bf16.msra.mxu0 %v6774
        %6837 = vmatprep.subr.bf16.mxu0 0
        %6838 = vmatpush1.bf16.msra.mxu0 %v6775
        %6839 = vmatprep.subr.bf16.mxu0 0
        %6840 = vmatpush1.bf16.msra.mxu0 %v6776
        %6841 = vmatprep.mubr.bf16.mxu0 %v6166
        %6842 = vmatmul.mubr.bf16.gmra.mrb[0].mxu0 %v6149
        %v6843 = vpop.f32.mrb[0].mxu0
        %v6844 = vadd.f32 0.0, %v6843
        %v6845 = vpop.f32.mrb[0].mxu0
        %v6846 = vpop.f32.mrb[0].mxu0
        %v6847 = vadd.f32 0.0, %v6846
        %v6848 = vpop.f32.mrb[0].mxu0
        %6849 = vmatprep.mubr.bf16.mxu0 %v6196
        %6850 = vmatmul.mubr.bf16.gmra.mrb[0].mxu0 %v6187
        %v6851 = vpop.f32.mrb[0].mxu0
        %v6852 = vadd.f32 0.0, %v6851
        %v6853 = vpop.f32.mrb[0].mxu0
        %v6854 = vpop.f32.mrb[0].mxu0
        %v6855 = vadd.f32 0.0, %v6854
        %v6856 = vpop.f32.mrb[0].mxu0
        %6857 = vmatprep.mubr.bf16.mxu0 %v6218
        %6858 = vmatmul.mubr.bf16.gmra.mrb[0].mxu0 %v6209
        %v6859 = vpop.f32.mrb[0].mxu0
        %v6860 = vadd.f32 0.0, %v6859
        %v6861 = vpop.f32.mrb[0].mxu0
        %v6862 = vpop.f32.mrb[0].mxu0
        %v6863 = vadd.f32 0.0, %v6862
        %v6864 = vpop.f32.mrb[0].mxu0
        %6865 = vmatprep.mubr.bf16.mxu0 %v6240
        %6866 = vmatmul.mubr.bf16.gmra.mrb[0].mxu0 %v6231
        %v6867 = vpop.f32.mrb[0].mxu0
        %v6868 = vadd.f32 0.0, %v6867
        %v6869 = vpop.f32.mrb[0].mxu0
        %v6870 = vpop.f32.mrb[0].mxu0
        %v6871 = vadd.f32 0.0, %v6870
        %v6872 = vpop.f32.mrb[0].mxu0
        %6873 = vmatprep.mubr.bf16.mxu0 %v6262
        %6874 = vmatmul.mubr.bf16.gmra.mrb[0].mxu0 %v6253
        %v6875 = vpop.f32.mrb[0].mxu0
        %v6876 = vadd.f32 0.0, %v6875
        %v6877 = vpop.f32.mrb[0].mxu0
        %v6878 = vpop.f32.mrb[0].mxu0
        %v6879 = vadd.f32 0.0, %v6878
        %v6880 = vpop.f32.mrb[0].mxu0
        %6881 = vmatprep.mubr.bf16.mxu0 %v6284
        %6882 = vmatmul.mubr.bf16.gmra.mrb[0].mxu0 %v6275
        %v6883 = vpop.f32.mrb[0].mxu0
        %v6884 = vadd.f32 0.0, %v6883
        %v6885 = vpop.f32.mrb[0].mxu0
        %v6886 = vpop.f32.mrb[0].mxu0
        %v6887 = vadd.f32 0.0, %v6886
        %v6888 = vpop.f32.mrb[0].mxu0
        %6889 = vmatprep.mubr.bf16.mxu0 %v6306
        %6890 = vmatmul.mubr.bf16.gmra.mrb[0].mxu0 %v6297
        %v6891 = vpop.f32.mrb[0].mxu0
        %v6892 = vadd.f32 0.0, %v6891
        %v6893 = vpop.f32.mrb[0].mxu0
        %v6894 = vpop.f32.mrb[0].mxu0
        %v6895 = vadd.f32 0.0, %v6894
        %v6896 = vpop.f32.mrb[0].mxu0
        %6897 = vmatprep.mubr.bf16.mxu0 %v6328
        %6898 = vmatmul.mubr.bf16.gmra.mrb[0].mxu0 %v6319
        %v6899 = vpop.f32.mrb[0].mxu0
        %v6900 = vadd.f32 0.0, %v6899
        %v6901 = vpop.f32.mrb[0].mxu0
        %v6902 = vpop.f32.mrb[0].mxu0
        %v6903 = vadd.f32 0.0, %v6902
        %v6904 = vpop.f32.mrb[0].mxu0
        %6905 = vmatprep.mubr.bf16.mxu0 %v6350
        %6906 = vmatmul.mubr.bf16.gmra.mrb[0].mxu0 %v6341
        %v6907 = vpop.f32.mrb[0].mxu0
        %v6908 = vadd.f32 0.0, %v6907
        %v6909 = vpop.f32.mrb[0].mxu0
        %v6910 = vpop.f32.mrb[0].mxu0
        %v6911 = vadd.f32 0.0, %v6910
        %v6912 = vpop.f32.mrb[0].mxu0
        %6913 = vmatprep.mubr.bf16.mxu0 %v6372
        %6914 = vmatmul.mubr.bf16.gmra.mrb[0].mxu0 %v6363
        %v6915 = vpop.f32.mrb[0].mxu0
        %v6916 = vadd.f32 0.0, %v6915
        %v6917 = vpop.f32.mrb[0].mxu0
        %v6918 = vpop.f32.mrb[0].mxu0
        %v6919 = vadd.f32 0.0, %v6918
        %v6920 = vpop.f32.mrb[0].mxu0
        %6921 = vmatprep.mubr.bf16.mxu0 %v6394
        %6922 = vmatmul.mubr.bf16.gmra.mrb[0].mxu0 %v6385
        %v6923 = vpop.f32.mrb[0].mxu0
        %v6924 = vadd.f32 0.0, %v6923
        %v6925 = vpop.f32.mrb[0].mxu0
        %v6926 = vpop.f32.mrb[0].mxu0
        %v6927 = vadd.f32 0.0, %v6926
        %v6928 = vpop.f32.mrb[0].mxu0
        %6929 = vmatprep.mubr.bf16.mxu0 %v6416
        %6930 = vmatmul.mubr.bf16.gmra.mrb[0].mxu0 %v6407
        %v6931 = vpop.f32.mrb[0].mxu0
        %v6932 = vadd.f32 0.0, %v6931
        %v6933 = vpop.f32.mrb[0].mxu0
        %v6934 = vpop.f32.mrb[0].mxu0
        %v6935 = vadd.f32 0.0, %v6934
        %v6936 = vpop.f32.mrb[0].mxu0
        %6937 = vmatprep.mubr.bf16.mxu0 %v6438
        %6938 = vmatmul.mubr.bf16.gmra.mrb[0].mxu0 %v6429
        %v6939 = vpop.f32.mrb[0].mxu0
        %v6940 = vadd.f32 0.0, %v6939
        %v6941 = vpop.f32.mrb[0].mxu0
        %v6942 = vpop.f32.mrb[0].mxu0
        %v6943 = vadd.f32 0.0, %v6942
        %v6944 = vpop.f32.mrb[0].mxu0
        %6945 = vmatprep.mubr.bf16.mxu0 %v6460
        %6946 = vmatmul.mubr.bf16.gmra.mrb[0].mxu0 %v6451
        %v6947 = vpop.f32.mrb[0].mxu0
        %v6948 = vadd.f32 0.0, %v6947
        %v6949 = vpop.f32.mrb[0].mxu0
        %v6950 = vpop.f32.mrb[0].mxu0
        %v6951 = vadd.f32 0.0, %v6950
        %v6952 = vpop.f32.mrb[0].mxu0
        %6953 = vmatprep.mubr.bf16.mxu0 %v6482
        %6954 = vmatmul.mubr.bf16.gmra.mrb[0].mxu0 %v6473
        %v6955 = vpop.f32.mrb[0].mxu0
        %v6956 = vadd.f32 0.0, %v6955
        %v6957 = vpop.f32.mrb[0].mxu0
        %v6958 = vpop.f32.mrb[0].mxu0
        %v6959 = vadd.f32 0.0, %v6958
        %v6960 = vpop.f32.mrb[0].mxu0
        %6961 = vmatprep.mubr.bf16.mxu0 %v6504
        %6962 = vmatmul.mubr.bf16.gmra.mrb[0].mxu0 %v6495
        %v6963 = vpop.f32.mrb[0].mxu0
        %v6964 = vadd.f32 0.0, %v6963
        %v6965 = vpop.f32.mrb[0].mxu0
        %v6966 = vpop.f32.mrb[0].mxu0
        %v6967 = vadd.f32 0.0, %v6966
        %v6968 = vpop.f32.mrb[0].mxu0
        %6969 = vmatprep.mubr.bf16.mxu0 %v6526
        %6970 = vmatmul.mubr.bf16.gmra.mrb[0].mxu0 %v6517
        %v6971 = vpop.f32.mrb[0].mxu0
        %v6972 = vadd.f32 0.0, %v6971
        %v6973 = vpop.f32.mrb[0].mxu0
        %v6974 = vpop.f32.mrb[0].mxu0
        %v6975 = vadd.f32 0.0, %v6974
        %v6976 = vpop.f32.mrb[0].mxu0
        %6977 = vmatprep.mubr.bf16.mxu0 %v6548
        %6978 = vmatmul.mubr.bf16.gmra.mrb[0].mxu0 %v6539
        %v6979 = vpop.f32.mrb[0].mxu0
        %v6980 = vadd.f32 0.0, %v6979
        %v6981 = vpop.f32.mrb[0].mxu0
        %v6982 = vpop.f32.mrb[0].mxu0
        %v6983 = vadd.f32 0.0, %v6982
        %v6984 = vpop.f32.mrb[0].mxu0
        %6985 = vmatprep.mubr.bf16.mxu0 %v6570
        %6986 = vmatmul.mubr.bf16.gmra.mrb[0].mxu0 %v6561
        %v6987 = vpop.f32.mrb[0].mxu0
        %v6988 = vadd.f32 0.0, %v6987
        %v6989 = vpop.f32.mrb[0].mxu0
        %v6990 = vpop.f32.mrb[0].mxu0
        %v6991 = vadd.f32 0.0, %v6990
        %v6992 = vpop.f32.mrb[0].mxu0
        %6993 = vmatprep.mubr.bf16.mxu0 %v6592
        %6994 = vmatmul.mubr.bf16.gmra.mrb[0].mxu0 %v6583
        %v6995 = vpop.f32.mrb[0].mxu0
        %v6996 = vadd.f32 0.0, %v6995
        %v6997 = vpop.f32.mrb[0].mxu0
        %v6998 = vpop.f32.mrb[0].mxu0
        %v6999 = vadd.f32 0.0, %v6998
        %v7000 = vpop.f32.mrb[0].mxu0
        %7001 = vmatprep.mubr.bf16.mxu0 %v6591
        %7002 = vmatmul.mubr.bf16.gmra.mrb[0].mxu0 %v6582
        %v7003 = vpop.f32.mrb[0].mxu0
        %v7004 = vadd.f32 0.0, %v7003
        %v7005 = vpop.f32.mrb[0].mxu0
        %v7006 = vpop.f32.mrb[0].mxu0
        %v7007 = vpop.f32.mrb[0].mxu0
        %7008 = vdwg.mxu0
        %7009 = vmatprep.subr.bf16.mxu0 0
        %7010 = vmatpush1.bf16.msra.mxu0 %v6777
        %7011 = vmatprep.subr.bf16.mxu0 0
        %7012 = vmatpush1.bf16.msra.mxu0 %v6778
        %7013 = vmatprep.subr.bf16.mxu0 0
        %7014 = vmatpush1.bf16.msra.mxu0 %v6779
        %7015 = vmatprep.subr.bf16.mxu0 0
        %7016 = vmatpush1.bf16.msra.mxu0 %v6780
        %7017 = vmatprep.subr.bf16.mxu0 0
        %7018 = vmatpush1.bf16.msra.mxu0 %v6781
        %7019 = vmatprep.subr.bf16.mxu0 0
        %7020 = vmatpush1.bf16.msra.mxu0 %v6782
        %7021 = vmatprep.subr.bf16.mxu0 0
        %7022 = vmatpush1.bf16.msra.mxu0 %v6783
        %7023 = vmatprep.subr.bf16.mxu0 0
        %7024 = vmatpush1.bf16.msra.mxu0 %v6784
        %7025 = vmatprep.subr.bf16.mxu0 0
        %7026 = vmatpush1.bf16.msra.mxu0 0
        %7027 = vmatprep.subr.bf16.mxu0 0
        %7028 = vmatpush1.bf16.msra.mxu0 0
        %7029 = vmatprep.subr.bf16.mxu0 0
        %7030 = vmatpush1.bf16.msra.mxu0 0
        %7031 = vmatprep.subr.bf16.mxu0 0
        %7032 = vmatpush1.bf16.msra.mxu0 0
        %7033 = vmatprep.subr.bf16.mxu0 0
        %7034 = vmatpush1.bf16.msra.mxu0 0
        %7035 = vmatprep.subr.bf16.mxu0 0
        %7036 = vmatpush1.bf16.msra.mxu0 0
        %7037 = vmatprep.subr.bf16.mxu0 0
        %7038 = vmatpush1.bf16.msra.mxu0 0
        %7039 = vmatprep.subr.bf16.mxu0 0
        %7040 = vmatpush1.bf16.msra.mxu0 0
        %7041 = vmatprep.mubr.bf16.mxu0 0
        %7042 = vmatmul.mubr.bf16.gmra.mrb[0].mxu0 %v6183
        %v7043 = vpop.f32.mrb[0].mxu0
        %v7044 = vadd.f32 %v6844, %v7043
        %v7045 = vpop.f32.mrb[0].mxu0
        %v7046 = vpop.f32.mrb[0].mxu0
        %v7047 = vadd.f32 %v6847, %v7046
        %v7048 = vpop.f32.mrb[0].mxu0
        %7049 = vmatprep.mubr.bf16.mxu0 0
        %7050 = vmatmul.mubr.bf16.gmra.mrb[0].mxu0 %v6205
        %v7051 = vpop.f32.mrb[0].mxu0
        %v7052 = vadd.f32 %v6852, %v7051
        %v7053 = vpop.f32.mrb[0].mxu0
        %v7054 = vpop.f32.mrb[0].mxu0
        %v7055 = vadd.f32 %v6855, %v7054
        %v7056 = vpop.f32.mrb[0].mxu0
        %7057 = vmatprep.mubr.bf16.mxu0 0
        %7058 = vmatmul.mubr.bf16.gmra.mrb[0].mxu0 %v6227
        %v7059 = vpop.f32.mrb[0].mxu0
        %v7060 = vadd.f32 %v6860, %v7059
        %v7061 = vpop.f32.mrb[0].mxu0
        %v7062 = vpop.f32.mrb[0].mxu0
        %v7063 = vadd.f32 %v6863, %v7062
        %v7064 = vpop.f32.mrb[0].mxu0
        %7065 = vmatprep.mubr.bf16.mxu0 0
        %7066 = vmatmul.mubr.bf16.gmra.mrb[0].mxu0 %v6249
        %v7067 = vpop.f32.mrb[0].mxu0
        %v7068 = vadd.f32 %v6868, %v7067
        %v7069 = vpop.f32.mrb[0].mxu0
        %v7070 = vpop.f32.mrb[0].mxu0
        %v7071 = vadd.f32 %v6871, %v7070
        %v7072 = vpop.f32.mrb[0].mxu0
        %7073 = vmatprep.mubr.bf16.mxu0 0
        %7074 = vmatmul.mubr.bf16.gmra.mrb[0].mxu0 %v6271
        %v7075 = vpop.f32.mrb[0].mxu0
        %v7076 = vadd.f32 %v6876, %v7075
        %v7077 = vpop.f32.mrb[0].mxu0
        %v7078 = vpop.f32.mrb[0].mxu0
        %v7079 = vadd.f32 %v6879, %v7078
        %v7080 = vpop.f32.mrb[0].mxu0
        %7081 = vmatprep.mubr.bf16.mxu0 0
        %7082 = vmatmul.mubr.bf16.gmra.mrb[0].mxu0 %v6293
        %v7083 = vpop.f32.mrb[0].mxu0
        %v7084 = vadd.f32 %v6884, %v7083
        %v7085 = vpop.f32.mrb[0].mxu0
        %v7086 = vpop.f32.mrb[0].mxu0
        %v7087 = vadd.f32 %v6887, %v7086
        %v7088 = vpop.f32.mrb[0].mxu0
        %7089 = vmatprep.mubr.bf16.mxu0 0
        %7090 = vmatmul.mubr.bf16.gmra.mrb[0].mxu0 %v6315
        %v7091 = vpop.f32.mrb[0].mxu0
        %v7092 = vadd.f32 %v6892, %v7091
        %v7093 = vpop.f32.mrb[0].mxu0
        %v7094 = vpop.f32.mrb[0].mxu0
        %v7095 = vadd.f32 %v6895, %v7094
        %v7096 = vpop.f32.mrb[0].mxu0
        %7097 = vmatprep.mubr.bf16.mxu0 0
        %7098 = vmatmul.mubr.bf16.gmra.mrb[0].mxu0 %v6337
        %v7099 = vpop.f32.mrb[0].mxu0
        %v7100 = vadd.f32 %v6900, %v7099
        %v7101 = vpop.f32.mrb[0].mxu0
        %v7102 = vpop.f32.mrb[0].mxu0
        %v7103 = vadd.f32 %v6903, %v7102
        %v7104 = vpop.f32.mrb[0].mxu0
        %7105 = vmatprep.mubr.bf16.mxu0 0
        %7106 = vmatmul.mubr.bf16.gmra.mrb[0].mxu0 %v6359
        %v7107 = vpop.f32.mrb[0].mxu0
        %v7108 = vadd.f32 %v6908, %v7107
        %v7109 = vpop.f32.mrb[0].mxu0
        %v7110 = vpop.f32.mrb[0].mxu0
        %v7111 = vadd.f32 %v6911, %v7110
        %v7112 = vpop.f32.mrb[0].mxu0
        %7113 = vmatprep.mubr.bf16.mxu0 0
        %7114 = vmatmul.mubr.bf16.gmra.mrb[0].mxu0 %v6381
        %v7115 = vpop.f32.mrb[0].mxu0
        %v7116 = vadd.f32 %v6916, %v7115
        %v7117 = vpop.f32.mrb[0].mxu0
        %v7118 = vpop.f32.mrb[0].mxu0
        %v7119 = vadd.f32 %v6919, %v7118
        %v7120 = vpop.f32.mrb[0].mxu0
        %7121 = vmatprep.mubr.bf16.mxu0 0
        %7122 = vmatmul.mubr.bf16.gmra.mrb[0].mxu0 %v6403
        %v7123 = vpop.f32.mrb[0].mxu0
        %v7124 = vadd.f32 %v6924, %v7123
        %v7125 = vpop.f32.mrb[0].mxu0
        %v7126 = vpop.f32.mrb[0].mxu0
        %v7127 = vadd.f32 %v6927, %v7126
        %v7128 = vpop.f32.mrb[0].mxu0
        %7129 = vmatprep.mubr.bf16.mxu0 0
        %7130 = vmatmul.mubr.bf16.gmra.mrb[0].mxu0 %v6425
        %v7131 = vpop.f32.mrb[0].mxu0
        %v7132 = vadd.f32 %v6932, %v7131
        %v7133 = vpop.f32.mrb[0].mxu0
        %v7134 = vpop.f32.mrb[0].mxu0
        %v7135 = vadd.f32 %v6935, %v7134
        %v7136 = vpop.f32.mrb[0].mxu0
        %7137 = vmatprep.mubr.bf16.mxu0 0
        %7138 = vmatmul.mubr.bf16.gmra.mrb[0].mxu0 %v6447
        %v7139 = vpop.f32.mrb[0].mxu0
        %v7140 = vadd.f32 %v6940, %v7139
        %v7141 = vpop.f32.mrb[0].mxu0
        %v7142 = vpop.f32.mrb[0].mxu0
        %v7143 = vadd.f32 %v6943, %v7142
        %v7144 = vpop.f32.mrb[0].mxu0
        %7145 = vmatprep.mubr.bf16.mxu0 0
        %7146 = vmatmul.mubr.bf16.gmra.mrb[0].mxu0 %v6469
        %v7147 = vpop.f32.mrb[0].mxu0
        %v7148 = vadd.f32 %v6948, %v7147
        %v7149 = vpop.f32.mrb[0].mxu0
        %v7150 = vpop.f32.mrb[0].mxu0
        %v7151 = vadd.f32 %v6951, %v7150
        %v7152 = vpop.f32.mrb[0].mxu0
        %7153 = vmatprep.mubr.bf16.mxu0 0
        %7154 = vmatmul.mubr.bf16.gmra.mrb[0].mxu0 %v6491
        %v7155 = vpop.f32.mrb[0].mxu0
        %v7156 = vadd.f32 %v6956, %v7155
        %v7157 = vpop.f32.mrb[0].mxu0
        %v7158 = vpop.f32.mrb[0].mxu0
        %v7159 = vadd.f32 %v6959, %v7158
        %v7160 = vpop.f32.mrb[0].mxu0
        %7161 = vmatprep.mubr.bf16.mxu0 0
        %7162 = vmatmul.mubr.bf16.gmra.mrb[0].mxu0 %v6513
        %v7163 = vpop.f32.mrb[0].mxu0
        %v7164 = vadd.f32 %v6964, %v7163
        %v7165 = vpop.f32.mrb[0].mxu0
        %v7166 = vpop.f32.mrb[0].mxu0
        %v7167 = vadd.f32 %v6967, %v7166
        %v7168 = vpop.f32.mrb[0].mxu0
        %7169 = vmatprep.mubr.bf16.mxu0 0
        %7170 = vmatmul.mubr.bf16.gmra.mrb[0].mxu0 %v6535
        %v7171 = vpop.f32.mrb[0].mxu0
        %v7172 = vadd.f32 %v6972, %v7171
        %v7173 = vpop.f32.mrb[0].mxu0
        %v7174 = vpop.f32.mrb[0].mxu0
        %v7175 = vadd.f32 %v6975, %v7174
        %v7176 = vpop.f32.mrb[0].mxu0
        %7177 = vmatprep.mubr.bf16.mxu0 0
        %7178 = vmatmul.mubr.bf16.gmra.mrb[0].mxu0 %v6557
        %v7179 = vpop.f32.mrb[0].mxu0
        %v7180 = vadd.f32 %v6980, %v7179
        %v7181 = vpop.f32.mrb[0].mxu0
        %v7182 = vpop.f32.mrb[0].mxu0
        %v7183 = vadd.f32 %v6983, %v7182
        %v7184 = vpop.f32.mrb[0].mxu0
        %7185 = vmatprep.mubr.bf16.mxu0 0
        %7186 = vmatmul.mubr.bf16.gmra.mrb[0].mxu0 %v6579
        %v7187 = vpop.f32.mrb[0].mxu0
        %v7188 = vadd.f32 %v6988, %v7187
        %v7189 = vpop.f32.mrb[0].mxu0
        %v7190 = vpop.f32.mrb[0].mxu0
        %v7191 = vadd.f32 %v6991, %v7190
        %v7192 = vpop.f32.mrb[0].mxu0
        %7193 = vmatprep.mubr.bf16.mxu0 0
        %7194 = vmatmul.mubr.bf16.gmra.mrb[0].mxu0 %v6601
        %v7195 = vpop.f32.mrb[0].mxu0
        %v7196 = vadd.f32 %v6996, %v7195
        %v7197 = vpop.f32.mrb[0].mxu0
        %v7198 = vpop.f32.mrb[0].mxu0
        %v7199 = vadd.f32 %v6999, %v7198
        %v7200 = vpop.f32.mrb[0].mxu0
        %7201 = vmatprep.mubr.bf16.mxu0 0
        %7202 = vmatmul.mubr.bf16.gmra.mrb[0].mxu0 %v6600
        %v7203 = vpop.f32.mrb[0].mxu0
        %v7204 = vadd.f32 %v7004, %v7203
        %v7205 = vpop.f32.mrb[0].mxu0
        %v7206 = vpop.f32.mrb[0].mxu0
        %v7207 = vpop.f32.mrb[0].mxu0
        %7208 = vdwg.mxu0
        %v7209 = vrot.slane %v5786, 2
        %v7210 = vrot.slane %v5788, 3
        %v7211 = vor.u32 %v7209, %v7210
        %v7212 = vrot.slane %v5797, 2
        %v7213 = vrot.slane %v5793, 3
        %v7214 = vor.u32 %v7212, %v7213
        %v7215 = vsel %vm2250, %v7211, %v7214
        %v7217 = vshrl.u32 %v5796, 16
        %v7219 = vrot.slane %v7217, 2
        %v7220 = vshll.u32 %v5796, 16
        %v7222 = vrot.slane %v7220, 3
        %v7223 = vor.u32 %v7219, %v7222
        %v7224 = vrot.slane %v6151, 2
        %v7225 = vrot.slane %v6154, 3
        %v7226 = vor.u32 %v7224, %v7225
        %v7227 = vsel %vm2250, %v7223, %v7226
        %v7229 = vshrl.u32 %v6001, 16
        %v7231 = vrot.slane %v7229, 2
        %v7232 = vshll.u32 %v6001, 16
        %v7234 = vrot.slane %v7232, 3
        %v7235 = vor.u32 %v7231, %v7234
        %v7236 = vrot.slane %v6168, 2
        %v7237 = vrot.slane %v6171, 3
        %v7238 = vor.u32 %v7236, %v7237
        %v7239 = vsel %vm2250, %v7235, %v7238
        %v7240 = vrot.slane %v5805, 2
        %v7241 = vrot.slane %v5801, 3
        %v7242 = vor.u32 %v7240, %v7241
        %v7243 = vsel %vm2250, %v7214, %v7242
        %v7244 = vrot.slane %v6159, 2
        %v7245 = vrot.slane %v6162, 3
        %v7246 = vor.u32 %v7244, %v7245
        %v7247 = vsel %vm2250, %v7226, %v7246
        %v7248 = vrot.slane %v6176, 2
        %v7249 = vrot.slane %v6179, 3
        %v7250 = vor.u32 %v7248, %v7249
        %v7251 = vsel %vm2250, %v7238, %v7250
        %v7252 = vrot.slane %v5813, 2
        %v7253 = vrot.slane %v5809, 3
        %v7254 = vor.u32 %v7252, %v7253
        %v7255 = vsel %vm2250, %v7242, %v7254
        %v7256 = vrot.slane %v6189, 2
        %v7257 = vrot.slane %v6192, 3
        %v7258 = vor.u32 %v7256, %v7257
        %v7259 = vsel %vm2250, %v7246, %v7258
        %v7260 = vrot.slane %v6198, 2
        %v7261 = vrot.slane %v6201, 3
        %v7262 = vor.u32 %v7260, %v7261
        %v7263 = vsel %vm2250, %v7250, %v7262
        %v7264 = vrot.slane %v5821, 2
        %v7265 = vrot.slane %v5817, 3
        %v7266 = vor.u32 %v7264, %v7265
        %v7267 = vsel %vm2250, %v7254, %v7266
        %v7268 = vrot.slane %v6211, 2
        %v7269 = vrot.slane %v6214, 3
        %v7270 = vor.u32 %v7268, %v7269
        %v7271 = vsel %vm2250, %v7258, %v7270
        %v7272 = vrot.slane %v6220, 2
        %v7273 = vrot.slane %v6223, 3
        %v7274 = vor.u32 %v7272, %v7273
        %v7275 = vsel %vm2250, %v7262, %v7274
        %v7276 = vrot.slane %v5829, 2
        %v7277 = vrot.slane %v5825, 3
        %v7278 = vor.u32 %v7276, %v7277
        %v7279 = vsel %vm2250, %v7266, %v7278
        %v7280 = vrot.slane %v6233, 2
        %v7281 = vrot.slane %v6236, 3
        %v7282 = vor.u32 %v7280, %v7281
        %v7283 = vsel %vm2250, %v7270, %v7282
        %v7284 = vrot.slane %v6242, 2
        %v7285 = vrot.slane %v6245, 3
        %v7286 = vor.u32 %v7284, %v7285
        %v7287 = vsel %vm2250, %v7274, %v7286
        %v7288 = vrot.slane %v5837, 2
        %v7289 = vrot.slane %v5833, 3
        %v7290 = vor.u32 %v7288, %v7289
        %v7291 = vsel %vm2250, %v7278, %v7290
        %v7292 = vrot.slane %v6255, 2
        %v7293 = vrot.slane %v6258, 3
        %v7294 = vor.u32 %v7292, %v7293
        %v7295 = vsel %vm2250, %v7282, %v7294
        %v7296 = vrot.slane %v6264, 2
        %v7297 = vrot.slane %v6267, 3
        %v7298 = vor.u32 %v7296, %v7297
        %v7299 = vsel %vm2250, %v7286, %v7298
        %v7300 = vrot.slane %v5845, 2
        %v7301 = vrot.slane %v5841, 3
        %v7302 = vor.u32 %v7300, %v7301
        %v7303 = vsel %vm2250, %v7290, %v7302
        %v7304 = vrot.slane %v6277, 2
        %v7305 = vrot.slane %v6280, 3
        %v7306 = vor.u32 %v7304, %v7305
        %v7307 = vsel %vm2250, %v7294, %v7306
        %v7308 = vrot.slane %v6286, 2
        %v7309 = vrot.slane %v6289, 3
        %v7310 = vor.u32 %v7308, %v7309
        %v7311 = vsel %vm2250, %v7298, %v7310
        %v7312 = vrot.slane %v5853, 2
        %v7313 = vrot.slane %v5849, 3
        %v7314 = vor.u32 %v7312, %v7313
        %v7315 = vsel %vm2250, %v7302, %v7314
        %v7316 = vrot.slane %v6299, 2
        %v7317 = vrot.slane %v6302, 3
        %v7318 = vor.u32 %v7316, %v7317
        %v7319 = vsel %vm2250, %v7306, %v7318
        %v7320 = vrot.slane %v6308, 2
        %v7321 = vrot.slane %v6311, 3
        %v7322 = vor.u32 %v7320, %v7321
        %v7323 = vsel %vm2250, %v7310, %v7322
        %v7324 = vrot.slane %v5861, 2
        %v7325 = vrot.slane %v5857, 3
        %v7326 = vor.u32 %v7324, %v7325
        %v7327 = vsel %vm2250, %v7314, %v7326
        %v7328 = vrot.slane %v6321, 2
        %v7329 = vrot.slane %v6324, 3
        %v7330 = vor.u32 %v7328, %v7329
        %v7331 = vsel %vm2250, %v7318, %v7330
        %v7332 = vrot.slane %v6330, 2
        %v7333 = vrot.slane %v6333, 3
        %v7334 = vor.u32 %v7332, %v7333
        %v7335 = vsel %vm2250, %v7322, %v7334
        %v7336 = vrot.slane %v5869, 2
        %v7337 = vrot.slane %v5865, 3
        %v7338 = vor.u32 %v7336, %v7337
        %v7339 = vsel %vm2250, %v7326, %v7338
        %v7340 = vrot.slane %v6343, 2
        %v7341 = vrot.slane %v6346, 3
        %v7342 = vor.u32 %v7340, %v7341
        %v7343 = vsel %vm2250, %v7330, %v7342
        %v7344 = vrot.slane %v6352, 2
        %v7345 = vrot.slane %v6355, 3
        %v7346 = vor.u32 %v7344, %v7345
        %v7347 = vsel %vm2250, %v7334, %v7346
        %v7348 = vrot.slane %v5877, 2
        %v7349 = vrot.slane %v5873, 3
        %v7350 = vor.u32 %v7348, %v7349
        %v7351 = vsel %vm2250, %v7338, %v7350
        %v7352 = vrot.slane %v6365, 2
        %v7353 = vrot.slane %v6368, 3
        %v7354 = vor.u32 %v7352, %v7353
        %v7355 = vsel %vm2250, %v7342, %v7354
        %v7356 = vrot.slane %v6374, 2
        %v7357 = vrot.slane %v6377, 3
        %v7358 = vor.u32 %v7356, %v7357
        %v7359 = vsel %vm2250, %v7346, %v7358
        %v7360 = vrot.slane %v5885, 2
        %v7361 = vrot.slane %v5881, 3
        %v7362 = vor.u32 %v7360, %v7361
        %v7363 = vsel %vm2250, %v7350, %v7362
        %v7364 = vrot.slane %v6387, 2
        %v7365 = vrot.slane %v6390, 3
        %v7366 = vor.u32 %v7364, %v7365
        %v7367 = vsel %vm2250, %v7354, %v7366
        %v7368 = vrot.slane %v6396, 2
        %v7369 = vrot.slane %v6399, 3
        %v7370 = vor.u32 %v7368, %v7369
        %v7371 = vsel %vm2250, %v7358, %v7370
        %v7372 = vrot.slane %v5893, 2
        %v7373 = vrot.slane %v5889, 3
        %v7374 = vor.u32 %v7372, %v7373
        %v7375 = vsel %vm2250, %v7362, %v7374
        %v7376 = vrot.slane %v6409, 2
        %v7377 = vrot.slane %v6412, 3
        %v7378 = vor.u32 %v7376, %v7377
        %v7379 = vsel %vm2250, %v7366, %v7378
        %v7380 = vrot.slane %v6418, 2
        %v7381 = vrot.slane %v6421, 3
        %v7382 = vor.u32 %v7380, %v7381
        %v7383 = vsel %vm2250, %v7370, %v7382
        %v7384 = vrot.slane %v5901, 2
        %v7385 = vrot.slane %v5897, 3
        %v7386 = vor.u32 %v7384, %v7385
        %v7387 = vsel %vm2250, %v7374, %v7386
        %v7388 = vrot.slane %v6431, 2
        %v7389 = vrot.slane %v6434, 3
        %v7390 = vor.u32 %v7388, %v7389
        %v7391 = vsel %vm2250, %v7378, %v7390
        %v7392 = vrot.slane %v6440, 2
        %v7393 = vrot.slane %v6443, 3
        %v7394 = vor.u32 %v7392, %v7393
        %v7395 = vsel %vm2250, %v7382, %v7394
        %v7396 = vrot.slane %v5909, 2
        %v7397 = vrot.slane %v5905, 3
        %v7398 = vor.u32 %v7396, %v7397
        %v7399 = vsel %vm2250, %v7386, %v7398
        %v7400 = vrot.slane %v6453, 2
        %v7401 = vrot.slane %v6456, 3
        %v7402 = vor.u32 %v7400, %v7401
        %v7403 = vsel %vm2250, %v7390, %v7402
        %v7404 = vrot.slane %v6462, 2
        %v7405 = vrot.slane %v6465, 3
        %v7406 = vor.u32 %v7404, %v7405
        %v7407 = vsel %vm2250, %v7394, %v7406
        %v7408 = vrot.slane %v5917, 2
        %v7409 = vrot.slane %v5913, 3
        %v7410 = vor.u32 %v7408, %v7409
        %v7411 = vsel %vm2250, %v7398, %v7410
        %v7412 = vrot.slane %v6475, 2
        %v7413 = vrot.slane %v6478, 3
        %v7414 = vor.u32 %v7412, %v7413
        %v7415 = vsel %vm2250, %v7402, %v7414
        %v7416 = vrot.slane %v6484, 2
        %v7417 = vrot.slane %v6487, 3
        %v7418 = vor.u32 %v7416, %v7417
        %v7419 = vsel %vm2250, %v7406, %v7418
        %v7420 = vrot.slane %v5925, 2
        %v7421 = vrot.slane %v5921, 3
        %v7422 = vor.u32 %v7420, %v7421
        %v7423 = vsel %vm2250, %v7410, %v7422
        %v7424 = vrot.slane %v6497, 2
        %v7425 = vrot.slane %v6500, 3
        %v7426 = vor.u32 %v7424, %v7425
        %v7427 = vsel %vm2250, %v7414, %v7426
        %v7428 = vrot.slane %v6506, 2
        %v7429 = vrot.slane %v6509, 3
        %v7430 = vor.u32 %v7428, %v7429
        %v7431 = vsel %vm2250, %v7418, %v7430
        %v7432 = vrot.slane %v5933, 2
        %v7433 = vrot.slane %v5929, 3
        %v7434 = vor.u32 %v7432, %v7433
        %v7435 = vsel %vm2250, %v7422, %v7434
        %v7436 = vrot.slane %v6519, 2
        %v7437 = vrot.slane %v6522, 3
        %v7438 = vor.u32 %v7436, %v7437
        %v7439 = vsel %vm2250, %v7426, %v7438
        %v7440 = vrot.slane %v6528, 2
        %v7441 = vrot.slane %v6531, 3
        %v7442 = vor.u32 %v7440, %v7441
        %v7443 = vsel %vm2250, %v7430, %v7442
        %v7444 = vrot.slane %v5941, 2
        %v7445 = vrot.slane %v5937, 3
        %v7446 = vor.u32 %v7444, %v7445
        %v7447 = vsel %vm2250, %v7434, %v7446
        %v7448 = vrot.slane %v6541, 2
        %v7449 = vrot.slane %v6544, 3
        %v7450 = vor.u32 %v7448, %v7449
        %v7451 = vsel %vm2250, %v7438, %v7450
        %v7452 = vrot.slane %v6550, 2
        %v7453 = vrot.slane %v6553, 3
        %v7454 = vor.u32 %v7452, %v7453
        %v7455 = vsel %vm2250, %v7442, %v7454
        %v7456 = vrot.slane %v5949, 2
        %v7457 = vrot.slane %v5945, 3
        %v7458 = vor.u32 %v7456, %v7457
        %v7459 = vsel %vm2250, %v7446, %v7458
        %v7460 = vrot.slane %v6563, 2
        %v7461 = vrot.slane %v6566, 3
        %v7462 = vor.u32 %v7460, %v7461
        %v7463 = vsel %vm2250, %v7450, %v7462
        %v7464 = vrot.slane %v6572, 2
        %v7465 = vrot.slane %v6575, 3
        %v7466 = vor.u32 %v7464, %v7465
        %v7467 = vsel %vm2250, %v7454, %v7466
        %v7579 = vunpack.c.l.b16 %v6046
        %v7580 = vunpack.c.l.b16 %v6047
        %v7581 = vunpack.c.l.b16 %v6048
        %v7582 = vunpack.c.l.b16 %v6049
        %v7583 = vunpack.c.l.b16 %v6050
        %v7584 = vunpack.c.l.b16 %v6051
        %v7585 = vunpack.c.l.b16 %v6052
        %v7586 = vunpack.c.l.b16 %v6053
        %v7587 = vunpack.c.l.b16 %v6054
        %v7588 = vunpack.c.l.b16 %v6055
        %v7589 = vunpack.c.l.b16 %v6056
        %v7590 = vunpack.c.l.b16 %v6057
        %v7591 = vunpack.c.l.b16 %v6058
        %v7592 = vunpack.c.l.b16 %v6059
        %v7593 = vunpack.c.l.b16 %v6060
        %v7594 = vunpack.c.l.b16 %v6061
        %v7595 = vunpack.c.l.b16 %v6062
        %v7596 = vunpack.c.l.b16 %v6063
        %v7597 = vunpack.c.l.b16 %v6064
        %v7598 = vunpack.c.l.b16 %v6065
        %v7599 = vunpack.c.l.b16 %v6066
        %v7600 = vunpack.c.l.b16 %v6067
        %v7601 = vunpack.c.l.b16 %v6068
        %v7602 = vunpack.c.l.b16 %v6069
        %v7603 = vunpack.c.l.b16 %v6070
        %v7604 = vunpack.c.l.b16 %v6071
        %v7605 = vunpack.c.l.b16 %v6072
        %v7606 = vunpack.c.l.b16 %v6073
        %v7607 = vunpack.c.l.b16 %v6074
        %v7608 = vunpack.c.l.b16 %v6075
        %v7609 = vunpack.c.l.b16 %v6076
        %v7610 = vunpack.c.l.b16 %v6077
        %v7611 = vunpack.c.l.b16 %v6078
        %v7612 = vunpack.c.l.b16 %v6079
        %v7613 = vunpack.c.l.b16 %v6080
        %v7614 = vunpack.c.l.b16 %v6081
        %v7615 = vunpack.c.l.b16 %v6082
        %v7616 = vunpack.c.l.b16 %v6083
        %v7617 = vunpack.c.l.b16 %v6084
        %v7618 = vunpack.c.l.b16 %v6085
        %v7619 = vunpack.c.l.b16 %v6086
        %v7620 = vunpack.c.l.b16 %v6087
        %v7621 = vunpack.c.l.b16 %v6088
        %v7622 = vunpack.c.l.b16 %v6089
        %v7623 = vunpack.c.l.b16 %v6090
        %v7624 = vunpack.c.l.b16 %v6091
        %v7625 = vunpack.c.l.b16 %v6092
        %v7626 = vunpack.c.l.b16 %v6093
        %v7627 = vpack.c.b16 %v7580, %v7579
        %v7628 = vpack.c.b16 %v7582, %v7581
        %v7629 = vpack.c.b16 %v7584, %v7583
        %v7630 = vpack.c.b16 %v7586, %v7585
        %v7631 = vpack.c.b16 %v7588, %v7587
        %v7632 = vpack.c.b16 %v7590, %v7589
        %v7633 = vpack.c.b16 %v7592, %v7591
        %v7634 = vpack.c.b16 %v7594, %v7593
        %v7635 = vpack.c.b16 %v7596, %v7595
        %v7636 = vpack.c.b16 %v7598, %v7597
        %v7637 = vpack.c.b16 %v7600, %v7599
        %v7638 = vpack.c.b16 %v7602, %v7601
        %v7639 = vpack.c.b16 %v7604, %v7603
        %v7640 = vpack.c.b16 %v7606, %v7605
        %v7641 = vpack.c.b16 %v7608, %v7607
        %v7642 = vpack.c.b16 %v7610, %v7609
        %v7643 = vpack.c.b16 %v7612, %v7611
        %v7644 = vpack.c.b16 %v7614, %v7613
        %v7645 = vpack.c.b16 %v7616, %v7615
        %v7646 = vpack.c.b16 %v7618, %v7617
        %v7647 = vpack.c.b16 %v7620, %v7619
        %v7648 = vpack.c.b16 %v7622, %v7621
        %v7649 = vpack.c.b16 %v7624, %v7623
        %v7650 = vpack.c.b16 %v7626, %v7625
        %7675 = vmatprep.subr.bf16.mxu0 0
        %7676 = vmatpush1.bf16.msra.mxu0 %v7627
        %7677 = vmatprep.subr.bf16.mxu0 0
        %7678 = vmatpush1.bf16.msra.mxu0 %v7628
        %7679 = vmatprep.subr.bf16.mxu0 0
        %7680 = vmatpush1.bf16.msra.mxu0 %v7629
        %7681 = vmatprep.subr.bf16.mxu0 0
        %7682 = vmatpush1.bf16.msra.mxu0 %v7630
        %7683 = vmatprep.subr.bf16.mxu0 0
        %7684 = vmatpush1.bf16.msra.mxu0 %v7631
        %7685 = vmatprep.subr.bf16.mxu0 0
        %7686 = vmatpush1.bf16.msra.mxu0 %v7632
        %7687 = vmatprep.subr.bf16.mxu0 0
        %7688 = vmatpush1.bf16.msra.mxu0 %v7633
        %7689 = vmatprep.subr.bf16.mxu0 0
        %7690 = vmatpush1.bf16.msra.mxu0 %v7634
        %7691 = vmatprep.subr.bf16.mxu0 0
        %7692 = vmatpush1.bf16.msra.mxu0 %v7635
        %7693 = vmatprep.subr.bf16.mxu0 0
        %7694 = vmatpush1.bf16.msra.mxu0 %v7636
        %7695 = vmatprep.subr.bf16.mxu0 0
        %7696 = vmatpush1.bf16.msra.mxu0 %v7637
        %7697 = vmatprep.subr.bf16.mxu0 0
        %7698 = vmatpush1.bf16.msra.mxu0 %v7638
        %7699 = vmatprep.subr.bf16.mxu0 0
        %7700 = vmatpush1.bf16.msra.mxu0 %v7639
        %7701 = vmatprep.subr.bf16.mxu0 0
        %7702 = vmatpush1.bf16.msra.mxu0 %v7640
        %7703 = vmatprep.subr.bf16.mxu0 0
        %7704 = vmatpush1.bf16.msra.mxu0 %v7641
        %7705 = vmatprep.subr.bf16.mxu0 0
        %7706 = vmatpush1.bf16.msra.mxu0 %v7642
        %7707 = vmatprep.mubr.bf16.mxu0 %v7227
        %7708 = vmatmul.mubr.bf16.gmra.mrb[0].mxu0 %v7215
        %v7709 = vpop.f32.mrb[0].mxu0
        %v7710 = vadd.f32 %v7044, %v7709
        %v7711 = vpop.f32.mrb[0].mxu0
        %v7712 = vpop.f32.mrb[0].mxu0
        %v7713 = vadd.f32 %v7047, %v7712
        %v7714 = vpop.f32.mrb[0].mxu0
        %7715 = vmatprep.mubr.bf16.mxu0 %v7247
        %7716 = vmatmul.mubr.bf16.gmra.mrb[0].mxu0 %v7243
        %v7717 = vpop.f32.mrb[0].mxu0
        %v7718 = vadd.f32 %v7052, %v7717
        %v7719 = vpop.f32.mrb[0].mxu0
        %v7720 = vpop.f32.mrb[0].mxu0
        %v7721 = vadd.f32 %v7055, %v7720
        %v7722 = vpop.f32.mrb[0].mxu0
        %7723 = vmatprep.mubr.bf16.mxu0 %v7259
        %7724 = vmatmul.mubr.bf16.gmra.mrb[0].mxu0 %v7255
        %v7725 = vpop.f32.mrb[0].mxu0
        %v7726 = vadd.f32 %v7060, %v7725
        %v7727 = vpop.f32.mrb[0].mxu0
        %v7728 = vpop.f32.mrb[0].mxu0
        %v7729 = vadd.f32 %v7063, %v7728
        %v7730 = vpop.f32.mrb[0].mxu0
        %7731 = vmatprep.mubr.bf16.mxu0 %v7271
        %7732 = vmatmul.mubr.bf16.gmra.mrb[0].mxu0 %v7267
        %v7733 = vpop.f32.mrb[0].mxu0
        %v7734 = vadd.f32 %v7068, %v7733
        %v7735 = vpop.f32.mrb[0].mxu0
        %v7736 = vpop.f32.mrb[0].mxu0
        %v7737 = vadd.f32 %v7071, %v7736
        %v7738 = vpop.f32.mrb[0].mxu0
        %7739 = vmatprep.mubr.bf16.mxu0 %v7283
        %7740 = vmatmul.mubr.bf16.gmra.mrb[0].mxu0 %v7279
        %v7741 = vpop.f32.mrb[0].mxu0
        %v7742 = vadd.f32 %v7076, %v7741
        %v7743 = vpop.f32.mrb[0].mxu0
        %v7744 = vpop.f32.mrb[0].mxu0
        %v7745 = vadd.f32 %v7079, %v7744
        %v7746 = vpop.f32.mrb[0].mxu0
        %7747 = vmatprep.mubr.bf16.mxu0 %v7295
        %7748 = vmatmul.mubr.bf16.gmra.mrb[0].mxu0 %v7291
        %v7749 = vpop.f32.mrb[0].mxu0
        %v7750 = vadd.f32 %v7084, %v7749
        %v7751 = vpop.f32.mrb[0].mxu0
        %v7752 = vpop.f32.mrb[0].mxu0
        %v7753 = vadd.f32 %v7087, %v7752
        %v7754 = vpop.f32.mrb[0].mxu0
        %7755 = vmatprep.mubr.bf16.mxu0 %v7307
        %7756 = vmatmul.mubr.bf16.gmra.mrb[0].mxu0 %v7303
        %v7757 = vpop.f32.mrb[0].mxu0
        %v7758 = vadd.f32 %v7092, %v7757
        %v7759 = vpop.f32.mrb[0].mxu0
        %v7760 = vpop.f32.mrb[0].mxu0
        %v7761 = vadd.f32 %v7095, %v7760
        %v7762 = vpop.f32.mrb[0].mxu0
        %7763 = vmatprep.mubr.bf16.mxu0 %v7319
        %7764 = vmatmul.mubr.bf16.gmra.mrb[0].mxu0 %v7315
        %v7765 = vpop.f32.mrb[0].mxu0
        %v7766 = vadd.f32 %v7100, %v7765
        %v7767 = vpop.f32.mrb[0].mxu0
        %v7768 = vpop.f32.mrb[0].mxu0
        %v7769 = vadd.f32 %v7103, %v7768
        %v7770 = vpop.f32.mrb[0].mxu0
        %7771 = vmatprep.mubr.bf16.mxu0 %v7331
        %7772 = vmatmul.mubr.bf16.gmra.mrb[0].mxu0 %v7327
        %v7773 = vpop.f32.mrb[0].mxu0
        %v7774 = vadd.f32 %v7108, %v7773
        %v7775 = vpop.f32.mrb[0].mxu0
        %v7776 = vpop.f32.mrb[0].mxu0
        %v7777 = vadd.f32 %v7111, %v7776
        %v7778 = vpop.f32.mrb[0].mxu0
        %7779 = vmatprep.mubr.bf16.mxu0 %v7343
        %7780 = vmatmul.mubr.bf16.gmra.mrb[0].mxu0 %v7339
        %v7781 = vpop.f32.mrb[0].mxu0
        %v7782 = vadd.f32 %v7116, %v7781
        %v7783 = vpop.f32.mrb[0].mxu0
        %v7784 = vpop.f32.mrb[0].mxu0
        %v7785 = vadd.f32 %v7119, %v7784
        %v7786 = vpop.f32.mrb[0].mxu0
        %7787 = vmatprep.mubr.bf16.mxu0 %v7355
        %7788 = vmatmul.mubr.bf16.gmra.mrb[0].mxu0 %v7351
        %v7789 = vpop.f32.mrb[0].mxu0
        %v7790 = vadd.f32 %v7124, %v7789
        %v7791 = vpop.f32.mrb[0].mxu0
        %v7792 = vpop.f32.mrb[0].mxu0
        %v7793 = vadd.f32 %v7127, %v7792
        %v7794 = vpop.f32.mrb[0].mxu0
        %7795 = vmatprep.mubr.bf16.mxu0 %v7367
        %7796 = vmatmul.mubr.bf16.gmra.mrb[0].mxu0 %v7363
        %v7797 = vpop.f32.mrb[0].mxu0
        %v7798 = vadd.f32 %v7132, %v7797
        %v7799 = vpop.f32.mrb[0].mxu0
        %v7800 = vpop.f32.mrb[0].mxu0
        %v7801 = vadd.f32 %v7135, %v7800
        %v7802 = vpop.f32.mrb[0].mxu0
        %7803 = vmatprep.mubr.bf16.mxu0 %v7379
        %7804 = vmatmul.mubr.bf16.gmra.mrb[0].mxu0 %v7375
        %v7805 = vpop.f32.mrb[0].mxu0
        %v7806 = vadd.f32 %v7140, %v7805
        %v7807 = vpop.f32.mrb[0].mxu0
        %v7808 = vpop.f32.mrb[0].mxu0
        %v7809 = vadd.f32 %v7143, %v7808
        %v7810 = vpop.f32.mrb[0].mxu0
        %7811 = vmatprep.mubr.bf16.mxu0 %v7391
        %7812 = vmatmul.mubr.bf16.gmra.mrb[0].mxu0 %v7387
        %v7813 = vpop.f32.mrb[0].mxu0
        %v7814 = vadd.f32 %v7148, %v7813
        %v7815 = vpop.f32.mrb[0].mxu0
        %v7816 = vpop.f32.mrb[0].mxu0
        %v7817 = vadd.f32 %v7151, %v7816
        %v7818 = vpop.f32.mrb[0].mxu0
        %7819 = vmatprep.mubr.bf16.mxu0 %v7403
        %7820 = vmatmul.mubr.bf16.gmra.mrb[0].mxu0 %v7399
        %v7821 = vpop.f32.mrb[0].mxu0
        %v7822 = vadd.f32 %v7156, %v7821
        %v7823 = vpop.f32.mrb[0].mxu0
        %v7824 = vpop.f32.mrb[0].mxu0
        %v7825 = vadd.f32 %v7159, %v7824
        %v7826 = vpop.f32.mrb[0].mxu0
        %7827 = vmatprep.mubr.bf16.mxu0 %v7415
        %7828 = vmatmul.mubr.bf16.gmra.mrb[0].mxu0 %v7411
        %v7829 = vpop.f32.mrb[0].mxu0
        %v7830 = vadd.f32 %v7164, %v7829
        %v7831 = vpop.f32.mrb[0].mxu0
        %v7832 = vpop.f32.mrb[0].mxu0
        %v7833 = vadd.f32 %v7167, %v7832
        %v7834 = vpop.f32.mrb[0].mxu0
        %7835 = vmatprep.mubr.bf16.mxu0 %v7427
        %7836 = vmatmul.mubr.bf16.gmra.mrb[0].mxu0 %v7423
        %v7837 = vpop.f32.mrb[0].mxu0
        %v7838 = vadd.f32 %v7172, %v7837
        %v7839 = vpop.f32.mrb[0].mxu0
        %v7840 = vpop.f32.mrb[0].mxu0
        %v7841 = vadd.f32 %v7175, %v7840
        %v7842 = vpop.f32.mrb[0].mxu0
        %7843 = vmatprep.mubr.bf16.mxu0 %v7439
        %7844 = vmatmul.mubr.bf16.gmra.mrb[0].mxu0 %v7435
        %v7845 = vpop.f32.mrb[0].mxu0
        %v7846 = vadd.f32 %v7180, %v7845
        %v7847 = vpop.f32.mrb[0].mxu0
        %v7848 = vpop.f32.mrb[0].mxu0
        %v7849 = vadd.f32 %v7183, %v7848
        %v7850 = vpop.f32.mrb[0].mxu0
        %7851 = vmatprep.mubr.bf16.mxu0 %v7451
        %7852 = vmatmul.mubr.bf16.gmra.mrb[0].mxu0 %v7447
        %v7853 = vpop.f32.mrb[0].mxu0
        %v7854 = vadd.f32 %v7188, %v7853
        %v7855 = vpop.f32.mrb[0].mxu0
        %v7856 = vpop.f32.mrb[0].mxu0
        %v7857 = vadd.f32 %v7191, %v7856
        %v7858 = vpop.f32.mrb[0].mxu0
        %7859 = vmatprep.mubr.bf16.mxu0 %v7463
        %7860 = vmatmul.mubr.bf16.gmra.mrb[0].mxu0 %v7459
        %v7861 = vpop.f32.mrb[0].mxu0
        %v7862 = vadd.f32 %v7196, %v7861
        %v7863 = vpop.f32.mrb[0].mxu0
        %v7864 = vpop.f32.mrb[0].mxu0
        %v7865 = vadd.f32 %v7199, %v7864
        %v7866 = vpop.f32.mrb[0].mxu0
        %7867 = vmatprep.mubr.bf16.mxu0 %v7462
        %7868 = vmatmul.mubr.bf16.gmra.mrb[0].mxu0 %v7458
        %v7869 = vpop.f32.mrb[0].mxu0
        %v7870 = vadd.f32 %v7204, %v7869
        %v7871 = vpop.f32.mrb[0].mxu0
        %v7872 = vpop.f32.mrb[0].mxu0
        %v7873 = vpop.f32.mrb[0].mxu0
        %7874 = vdwg.mxu0
        %7875 = vmatprep.subr.bf16.mxu0 0
        %7876 = vmatpush1.bf16.msra.mxu0 %v7643
        %7877 = vmatprep.subr.bf16.mxu0 0
        %7878 = vmatpush1.bf16.msra.mxu0 %v7644
        %7879 = vmatprep.subr.bf16.mxu0 0
        %7880 = vmatpush1.bf16.msra.mxu0 %v7645
        %7881 = vmatprep.subr.bf16.mxu0 0
        %7882 = vmatpush1.bf16.msra.mxu0 %v7646
        %7883 = vmatprep.subr.bf16.mxu0 0
        %7884 = vmatpush1.bf16.msra.mxu0 %v7647
        %7885 = vmatprep.subr.bf16.mxu0 0
        %7886 = vmatpush1.bf16.msra.mxu0 %v7648
        %7887 = vmatprep.subr.bf16.mxu0 0
        %7888 = vmatpush1.bf16.msra.mxu0 %v7649
        %7889 = vmatprep.subr.bf16.mxu0 0
        %7890 = vmatpush1.bf16.msra.mxu0 %v7650
        %7891 = vmatprep.subr.bf16.mxu0 0
        %7892 = vmatpush1.bf16.msra.mxu0 0
        %7893 = vmatprep.subr.bf16.mxu0 0
        %7894 = vmatpush1.bf16.msra.mxu0 0
        %7895 = vmatprep.subr.bf16.mxu0 0
        %7896 = vmatpush1.bf16.msra.mxu0 0
        %7897 = vmatprep.subr.bf16.mxu0 0
        %7898 = vmatpush1.bf16.msra.mxu0 0
        %7899 = vmatprep.subr.bf16.mxu0 0
        %7900 = vmatpush1.bf16.msra.mxu0 0
        %7901 = vmatprep.subr.bf16.mxu0 0
        %7902 = vmatpush1.bf16.msra.mxu0 0
        %7903 = vmatprep.subr.bf16.mxu0 0
        %7904 = vmatpush1.bf16.msra.mxu0 0
        %7905 = vmatprep.subr.bf16.mxu0 0
        %7906 = vmatpush1.bf16.msra.mxu0 0
        %7907 = vmatprep.mubr.bf16.mxu0 0
        %7908 = vmatmul.mubr.bf16.gmra.mrb[0].mxu0 %v7239
        %v7909 = vpop.f32.mrb[0].mxu0
        %v7910 = vadd.f32 %v7710, %v7909
        %v7911 = vpop.f32.mrb[0].mxu0
        %v7912 = vpop.f32.mrb[0].mxu0
        %v7913 = vadd.f32 %v7713, %v7912
        %v7914 = vpop.f32.mrb[0].mxu0
        %7915 = vmatprep.mubr.bf16.mxu0 0
        %7916 = vmatmul.mubr.bf16.gmra.mrb[0].mxu0 %v7251
        %v7917 = vpop.f32.mrb[0].mxu0
        %v7918 = vadd.f32 %v7718, %v7917
        %v7919 = vpop.f32.mrb[0].mxu0
        %v7920 = vpop.f32.mrb[0].mxu0
        %v7921 = vadd.f32 %v7721, %v7920
        %v7922 = vpop.f32.mrb[0].mxu0
        %7923 = vmatprep.mubr.bf16.mxu0 0
        %7924 = vmatmul.mubr.bf16.gmra.mrb[0].mxu0 %v7263
        %v7925 = vpop.f32.mrb[0].mxu0
        %v7926 = vadd.f32 %v7726, %v7925
        %v7927 = vpop.f32.mrb[0].mxu0
        %v7928 = vpop.f32.mrb[0].mxu0
        %v7929 = vadd.f32 %v7729, %v7928
        %v7930 = vpop.f32.mrb[0].mxu0
        %7931 = vmatprep.mubr.bf16.mxu0 0
        %7932 = vmatmul.mubr.bf16.gmra.mrb[0].mxu0 %v7275
        %v7933 = vpop.f32.mrb[0].mxu0
        %v7934 = vadd.f32 %v7734, %v7933
        %v7935 = vpop.f32.mrb[0].mxu0
        %v7936 = vpop.f32.mrb[0].mxu0
        %v7937 = vadd.f32 %v7737, %v7936
        %v7938 = vpop.f32.mrb[0].mxu0
        %7939 = vmatprep.mubr.bf16.mxu0 0
        %7940 = vmatmul.mubr.bf16.gmra.mrb[0].mxu0 %v7287
        %v7941 = vpop.f32.mrb[0].mxu0
        %v7942 = vadd.f32 %v7742, %v7941
        %v7943 = vpop.f32.mrb[0].mxu0
        %v7944 = vpop.f32.mrb[0].mxu0
        %v7945 = vadd.f32 %v7745, %v7944
        %v7946 = vpop.f32.mrb[0].mxu0
        %7947 = vmatprep.mubr.bf16.mxu0 0
        %7948 = vmatmul.mubr.bf16.gmra.mrb[0].mxu0 %v7299
        %v7949 = vpop.f32.mrb[0].mxu0
        %v7950 = vadd.f32 %v7750, %v7949
        %v7951 = vpop.f32.mrb[0].mxu0
        %v7952 = vpop.f32.mrb[0].mxu0
        %v7953 = vadd.f32 %v7753, %v7952
        %v7954 = vpop.f32.mrb[0].mxu0
        %7955 = vmatprep.mubr.bf16.mxu0 0
        %7956 = vmatmul.mubr.bf16.gmra.mrb[0].mxu0 %v7311
        %v7957 = vpop.f32.mrb[0].mxu0
        %v7958 = vadd.f32 %v7758, %v7957
        %v7959 = vpop.f32.mrb[0].mxu0
        %v7960 = vpop.f32.mrb[0].mxu0
        %v7961 = vadd.f32 %v7761, %v7960
        %v7962 = vpop.f32.mrb[0].mxu0
        %7963 = vmatprep.mubr.bf16.mxu0 0
        %7964 = vmatmul.mubr.bf16.gmra.mrb[0].mxu0 %v7323
        %v7965 = vpop.f32.mrb[0].mxu0
        %v7966 = vadd.f32 %v7766, %v7965
        %v7967 = vpop.f32.mrb[0].mxu0
        %v7968 = vpop.f32.mrb[0].mxu0
        %v7969 = vadd.f32 %v7769, %v7968
        %v7970 = vpop.f32.mrb[0].mxu0
        %7971 = vmatprep.mubr.bf16.mxu0 0
        %7972 = vmatmul.mubr.bf16.gmra.mrb[0].mxu0 %v7335
        %v7973 = vpop.f32.mrb[0].mxu0
        %v7974 = vadd.f32 %v7774, %v7973
        %v7975 = vpop.f32.mrb[0].mxu0
        %v7976 = vpop.f32.mrb[0].mxu0
        %v7977 = vadd.f32 %v7777, %v7976
        %v7978 = vpop.f32.mrb[0].mxu0
        %7979 = vmatprep.mubr.bf16.mxu0 0
        %7980 = vmatmul.mubr.bf16.gmra.mrb[0].mxu0 %v7347
        %v7981 = vpop.f32.mrb[0].mxu0
        %v7982 = vadd.f32 %v7782, %v7981
        %v7983 = vpop.f32.mrb[0].mxu0
        %v7984 = vpop.f32.mrb[0].mxu0
        %v7985 = vadd.f32 %v7785, %v7984
        %v7986 = vpop.f32.mrb[0].mxu0
        %7987 = vmatprep.mubr.bf16.mxu0 0
        %7988 = vmatmul.mubr.bf16.gmra.mrb[0].mxu0 %v7359
        %v7989 = vpop.f32.mrb[0].mxu0
        %v7990 = vadd.f32 %v7790, %v7989
        %v7991 = vpop.f32.mrb[0].mxu0
        %v7992 = vpop.f32.mrb[0].mxu0
        %v7993 = vadd.f32 %v7793, %v7992
        %v7994 = vpop.f32.mrb[0].mxu0
        %7995 = vmatprep.mubr.bf16.mxu0 0
        %7996 = vmatmul.mubr.bf16.gmra.mrb[0].mxu0 %v7371
        %v7997 = vpop.f32.mrb[0].mxu0
        %v7998 = vadd.f32 %v7798, %v7997
        %v7999 = vpop.f32.mrb[0].mxu0
        %v8000 = vpop.f32.mrb[0].mxu0
        %v8001 = vadd.f32 %v7801, %v8000
        %v8002 = vpop.f32.mrb[0].mxu0
        %8003 = vmatprep.mubr.bf16.mxu0 0
        %8004 = vmatmul.mubr.bf16.gmra.mrb[0].mxu0 %v7383
        %v8005 = vpop.f32.mrb[0].mxu0
        %v8006 = vadd.f32 %v7806, %v8005
        %v8007 = vpop.f32.mrb[0].mxu0
        %v8008 = vpop.f32.mrb[0].mxu0
        %v8009 = vadd.f32 %v7809, %v8008
        %v8010 = vpop.f32.mrb[0].mxu0
        %8011 = vmatprep.mubr.bf16.mxu0 0
        %8012 = vmatmul.mubr.bf16.gmra.mrb[0].mxu0 %v7395
        %v8013 = vpop.f32.mrb[0].mxu0
        %v8014 = vadd.f32 %v7814, %v8013
        %v8015 = vpop.f32.mrb[0].mxu0
        %v8016 = vpop.f32.mrb[0].mxu0
        %v8017 = vadd.f32 %v7817, %v8016
        %v8018 = vpop.f32.mrb[0].mxu0
        %8019 = vmatprep.mubr.bf16.mxu0 0
        %8020 = vmatmul.mubr.bf16.gmra.mrb[0].mxu0 %v7407
        %v8021 = vpop.f32.mrb[0].mxu0
        %v8022 = vadd.f32 %v7822, %v8021
        %v8023 = vpop.f32.mrb[0].mxu0
        %v8024 = vpop.f32.mrb[0].mxu0
        %v8025 = vadd.f32 %v7825, %v8024
        %v8026 = vpop.f32.mrb[0].mxu0
        %8027 = vmatprep.mubr.bf16.mxu0 0
        %8028 = vmatmul.mubr.bf16.gmra.mrb[0].mxu0 %v7419
        %v8029 = vpop.f32.mrb[0].mxu0
        %v8030 = vadd.f32 %v7830, %v8029
        %v8031 = vpop.f32.mrb[0].mxu0
        %v8032 = vpop.f32.mrb[0].mxu0
        %v8033 = vadd.f32 %v7833, %v8032
        %v8034 = vpop.f32.mrb[0].mxu0
        %8035 = vmatprep.mubr.bf16.mxu0 0
        %8036 = vmatmul.mubr.bf16.gmra.mrb[0].mxu0 %v7431
        %v8037 = vpop.f32.mrb[0].mxu0
        %v8038 = vadd.f32 %v7838, %v8037
        %v8039 = vpop.f32.mrb[0].mxu0
        %v8040 = vpop.f32.mrb[0].mxu0
        %v8041 = vadd.f32 %v7841, %v8040
        %v8042 = vpop.f32.mrb[0].mxu0
        %8043 = vmatprep.mubr.bf16.mxu0 0
        %8044 = vmatmul.mubr.bf16.gmra.mrb[0].mxu0 %v7443
        %v8045 = vpop.f32.mrb[0].mxu0
        %v8046 = vadd.f32 %v7846, %v8045
        %v8047 = vpop.f32.mrb[0].mxu0
        %v8048 = vpop.f32.mrb[0].mxu0
        %v8049 = vadd.f32 %v7849, %v8048
        %v8050 = vpop.f32.mrb[0].mxu0
        %8051 = vmatprep.mubr.bf16.mxu0 0
        %8052 = vmatmul.mubr.bf16.gmra.mrb[0].mxu0 %v7455
        %v8053 = vpop.f32.mrb[0].mxu0
        %v8054 = vadd.f32 %v7854, %v8053
        %v8055 = vpop.f32.mrb[0].mxu0
        %v8056 = vpop.f32.mrb[0].mxu0
        %v8057 = vadd.f32 %v7857, %v8056
        %v8058 = vpop.f32.mrb[0].mxu0
        %8059 = vmatprep.mubr.bf16.mxu0 0
        %8060 = vmatmul.mubr.bf16.gmra.mrb[0].mxu0 %v7467
        %v8061 = vpop.f32.mrb[0].mxu0
        %v8062 = vadd.f32 %v7862, %v8061
        %v8063 = vpop.f32.mrb[0].mxu0
        %v8064 = vpop.f32.mrb[0].mxu0
        %v8065 = vadd.f32 %v7865, %v8064
        %v8066 = vpop.f32.mrb[0].mxu0
        %8067 = vmatprep.mubr.bf16.mxu0 0
        %8068 = vmatmul.mubr.bf16.gmra.mrb[0].mxu0 %v7466
        %v8069 = vpop.f32.mrb[0].mxu0
        %v8070 = vadd.f32 %v7870, %v8069
        %v8071 = vpop.f32.mrb[0].mxu0
        %v8072 = vpop.f32.mrb[0].mxu0
        %v8073 = vpop.f32.mrb[0].mxu0
        %8074 = vdwg.mxu0
        %s8075 = scalar_lea.vmem [#allocation7], 384
        %v8076 = vld [vmem:[%s8075] sm:$0xf]
        %v8077 = vld [vmem:[%s8075 + $0x4] sm:$0xf]
        %v8078 = vld [vmem:[%s8075 + $0x8] sm:$0xf]
        %v8079 = vld [vmem:[%s8075 + $0xc] sm:$0xf]
        %v8080 = vld [vmem:[%s8075 + $0x10] sm:$0xf]
        %v8081 = vld [vmem:[%s8075 + $0x14] sm:$0xf]
        %v8082 = vld [vmem:[%s8075 + $0x18] sm:$0xf]
        %v8083 = vld [vmem:[%s8075 + $0x1c] sm:$0xf]
        %v8084 = vld [vmem:[%s8075 + $0x20] sm:$0xf]
        %v8085 = vld [vmem:[%s8075 + $0x24] sm:$0xf]
        %v8086 = vld [vmem:[%s8075 + $0x28] sm:$0xf]
        %v8087 = vld [vmem:[%s8075 + $0x2c] sm:$0xf]
        %v8088 = vld [vmem:[%s8075 + $0x30] sm:$0xf]
        %v8089 = vld [vmem:[%s8075 + $0x34] sm:$0xf]
        %v8090 = vld [vmem:[%s8075 + $0x38] sm:$0xf]
        %v8091 = vld [vmem:[%s8075 + $0x3c] sm:$0xf]
        %v8092 = vld [vmem:[%s8075 + $0x40] sm:$0xf]
        %v8093 = vld [vmem:[%s8075 + $0x44] sm:$0xf]
        %v8094 = vld [vmem:[%s8075 + $0x48] sm:$0xf]
        %v8095 = vld [vmem:[%s8075 + $0x4c] sm:$0xf]
        %v8096 = vld [vmem:[%s8075 + $0x50] sm:$0xf]
        %v8097 = vld [vmem:[%s8075 + $0x54] sm:$0xf]
        %v8098 = vld [vmem:[%s8075 + $0x58] sm:$0xf]
        %v8099 = vld [vmem:[%s8075 + $0x5c] sm:$0xf]
        %v8100 = vld [vmem:[%s8075 + $0x60] sm:$0xf]
        %v8101 = vld [vmem:[%s8075 + $0x64] sm:$0xf]
        %v8102 = vld [vmem:[%s8075 + $0x68] sm:$0xf]
        %v8103 = vld [vmem:[%s8075 + $0x6c] sm:$0xf]
        %v8104 = vld [vmem:[%s8075 + $0x70] sm:$0xf]
        %v8105 = vld [vmem:[%s8075 + $0x74] sm:$0xf]
        %v8106 = vld [vmem:[%s8075 + $0x78] sm:$0xf]
        %v8107 = vld [vmem:[%s8075 + $0x7c] sm:$0xf]
        %v8108 = vld [vmem:[%s8075 + $0x80] sm:$0xf]
        %v8109 = vld [vmem:[%s8075 + $0x84] sm:$0xf]
        %v8110 = vld [vmem:[%s8075 + $0x88] sm:$0xf]
        %v8111 = vld [vmem:[%s8075 + $0x8c] sm:$0xf]
        %v8112 = vld [vmem:[%s8075 + $0x90] sm:$0xf]
        %v8113 = vld [vmem:[%s8075 + $0x94] sm:$0xf]
        %v8114 = vld [vmem:[%s8075 + $0x98] sm:$0xf]
        %v8115 = vld [vmem:[%s8075 + $0x9c] sm:$0xf]
        %v8116 = vld [vmem:[%s8075 + $0xa0] sm:$0xf]
        %v8117 = vld [vmem:[%s8075 + $0xa4] sm:$0xf]
        %v8118 = vld [vmem:[%s8075 + $0xa8] sm:$0xf]
        %v8119 = vld [vmem:[%s8075 + $0xac] sm:$0xf]
        %v8120 = vld [vmem:[%s8075 + $0xb0] sm:$0xf]
        %v8121 = vld [vmem:[%s8075 + $0xb4] sm:$0xf]
        %v8122 = vld [vmem:[%s8075 + $0xb8] sm:$0xf]
        %v8123 = vld [vmem:[%s8075 + $0xbc] sm:$0xf]
        %v8124 = vrot.slane %v5805, 4
        %v8125 = vrot.slane %v5801, 5
        %v8126 = vor.u32 %v8124, %v8125
        %v8127 = vrot.slane %v5813, 4
        %v8128 = vrot.slane %v5809, 5
        %v8129 = vor.u32 %v8127, %v8128
        %v8130 = vsel %vm3437, %v8126, %v8129
        %v8131 = vrot.slane %v6159, 4
        %v8132 = vrot.slane %v6162, 5
        %v8133 = vor.u32 %v8131, %v8132
        %v8134 = vrot.slane %v6189, 4
        %v8135 = vrot.slane %v6192, 5
        %v8136 = vor.u32 %v8134, %v8135
        %v8137 = vsel %vm3437, %v8133, %v8136
        %v8138 = vrot.slane %v6176, 4
        %v8139 = vrot.slane %v6179, 5
        %v8140 = vor.u32 %v8138, %v8139
        %v8141 = vrot.slane %v6198, 4
        %v8142 = vrot.slane %v6201, 5
        %v8143 = vor.u32 %v8141, %v8142
        %v8144 = vsel %vm3437, %v8140, %v8143
        %v8145 = vrot.slane %v5821, 4
        %v8146 = vrot.slane %v5817, 5
        %v8147 = vor.u32 %v8145, %v8146
        %v8148 = vsel %vm3437, %v8129, %v8147
        %v8149 = vrot.slane %v6211, 4
        %v8150 = vrot.slane %v6214, 5
        %v8151 = vor.u32 %v8149, %v8150
        %v8152 = vsel %vm3437, %v8136, %v8151
        %v8153 = vrot.slane %v6220, 4
        %v8154 = vrot.slane %v6223, 5
        %v8155 = vor.u32 %v8153, %v8154
        %v8156 = vsel %vm3437, %v8143, %v8155
        %v8157 = vrot.slane %v5829, 4
        %v8158 = vrot.slane %v5825, 5
        %v8159 = vor.u32 %v8157, %v8158
        %v8160 = vsel %vm3437, %v8147, %v8159
        %v8161 = vrot.slane %v6233, 4
        %v8162 = vrot.slane %v6236, 5
        %v8163 = vor.u32 %v8161, %v8162
        %v8164 = vsel %vm3437, %v8151, %v8163
        %v8165 = vrot.slane %v6242, 4
        %v8166 = vrot.slane %v6245, 5
        %v8167 = vor.u32 %v8165, %v8166
        %v8168 = vsel %vm3437, %v8155, %v8167
        %v8169 = vrot.slane %v5837, 4
        %v8170 = vrot.slane %v5833, 5
        %v8171 = vor.u32 %v8169, %v8170
        %v8172 = vsel %vm3437, %v8159, %v8171
        %v8173 = vrot.slane %v6255, 4
        %v8174 = vrot.slane %v6258, 5
        %v8175 = vor.u32 %v8173, %v8174
        %v8176 = vsel %vm3437, %v8163, %v8175
        %v8177 = vrot.slane %v6264, 4
        %v8178 = vrot.slane %v6267, 5
        %v8179 = vor.u32 %v8177, %v8178
        %v8180 = vsel %vm3437, %v8167, %v8179
        %v8181 = vrot.slane %v5845, 4
        %v8182 = vrot.slane %v5841, 5
        %v8183 = vor.u32 %v8181, %v8182
        %v8184 = vsel %vm3437, %v8171, %v8183
        %v8185 = vrot.slane %v6277, 4
        %v8186 = vrot.slane %v6280, 5
        %v8187 = vor.u32 %v8185, %v8186
        %v8188 = vsel %vm3437, %v8175, %v8187
        %v8189 = vrot.slane %v6286, 4
        %v8190 = vrot.slane %v6289, 5
        %v8191 = vor.u32 %v8189, %v8190
        %v8192 = vsel %vm3437, %v8179, %v8191
        %v8193 = vrot.slane %v5853, 4
        %v8194 = vrot.slane %v5849, 5
        %v8195 = vor.u32 %v8193, %v8194
        %v8196 = vsel %vm3437, %v8183, %v8195
        %v8197 = vrot.slane %v6299, 4
        %v8198 = vrot.slane %v6302, 5
        %v8199 = vor.u32 %v8197, %v8198
        %v8200 = vsel %vm3437, %v8187, %v8199
        %v8201 = vrot.slane %v6308, 4
        %v8202 = vrot.slane %v6311, 5
        %v8203 = vor.u32 %v8201, %v8202
        %v8204 = vsel %vm3437, %v8191, %v8203
        %v8205 = vrot.slane %v5861, 4
        %v8206 = vrot.slane %v5857, 5
        %v8207 = vor.u32 %v8205, %v8206
        %v8208 = vsel %vm3437, %v8195, %v8207
        %v8209 = vrot.slane %v6321, 4
        %v8210 = vrot.slane %v6324, 5
        %v8211 = vor.u32 %v8209, %v8210
        %v8212 = vsel %vm3437, %v8199, %v8211
        %v8213 = vrot.slane %v6330, 4
        %v8214 = vrot.slane %v6333, 5
        %v8215 = vor.u32 %v8213, %v8214
        %v8216 = vsel %vm3437, %v8203, %v8215
        %v8217 = vrot.slane %v5869, 4
        %v8218 = vrot.slane %v5865, 5
        %v8219 = vor.u32 %v8217, %v8218
        %v8220 = vsel %vm3437, %v8207, %v8219
        %v8221 = vrot.slane %v6343, 4
        %v8222 = vrot.slane %v6346, 5
        %v8223 = vor.u32 %v8221, %v8222
        %v8224 = vsel %vm3437, %v8211, %v8223
        %v8225 = vrot.slane %v6352, 4
        %v8226 = vrot.slane %v6355, 5
        %v8227 = vor.u32 %v8225, %v8226
        %v8228 = vsel %vm3437, %v8215, %v8227
        %v8229 = vrot.slane %v5877, 4
        %v8230 = vrot.slane %v5873, 5
        %v8231 = vor.u32 %v8229, %v8230
        %v8232 = vsel %vm3437, %v8219, %v8231
        %v8233 = vrot.slane %v6365, 4
        %v8234 = vrot.slane %v6368, 5
        %v8235 = vor.u32 %v8233, %v8234
        %v8236 = vsel %vm3437, %v8223, %v8235
        %v8237 = vrot.slane %v6374, 4
        %v8238 = vrot.slane %v6377, 5
        %v8239 = vor.u32 %v8237, %v8238
        %v8240 = vsel %vm3437, %v8227, %v8239
        %v8241 = vrot.slane %v5885, 4
        %v8242 = vrot.slane %v5881, 5
        %v8243 = vor.u32 %v8241, %v8242
        %v8244 = vsel %vm3437, %v8231, %v8243
        %v8245 = vrot.slane %v6387, 4
        %v8246 = vrot.slane %v6390, 5
        %v8247 = vor.u32 %v8245, %v8246
        %v8248 = vsel %vm3437, %v8235, %v8247
        %v8249 = vrot.slane %v6396, 4
        %v8250 = vrot.slane %v6399, 5
        %v8251 = vor.u32 %v8249, %v8250
        %v8252 = vsel %vm3437, %v8239, %v8251
        %v8253 = vrot.slane %v5893, 4
        %v8254 = vrot.slane %v5889, 5
        %v8255 = vor.u32 %v8253, %v8254
        %v8256 = vsel %vm3437, %v8243, %v8255
        %v8257 = vrot.slane %v6409, 4
        %v8258 = vrot.slane %v6412, 5
        %v8259 = vor.u32 %v8257, %v8258
        %v8260 = vsel %vm3437, %v8247, %v8259
        %v8261 = vrot.slane %v6418, 4
        %v8262 = vrot.slane %v6421, 5
        %v8263 = vor.u32 %v8261, %v8262
        %v8264 = vsel %vm3437, %v8251, %v8263
        %v8265 = vrot.slane %v5901, 4
        %v8266 = vrot.slane %v5897, 5
        %v8267 = vor.u32 %v8265, %v8266
        %v8268 = vsel %vm3437, %v8255, %v8267
        %v8269 = vrot.slane %v6431, 4
        %v8270 = vrot.slane %v6434, 5
        %v8271 = vor.u32 %v8269, %v8270
        %v8272 = vsel %vm3437, %v8259, %v8271
        %v8273 = vrot.slane %v6440, 4
        %v8274 = vrot.slane %v6443, 5
        %v8275 = vor.u32 %v8273, %v8274
        %v8276 = vsel %vm3437, %v8263, %v8275
        %v8277 = vrot.slane %v5909, 4
        %v8278 = vrot.slane %v5905, 5
        %v8279 = vor.u32 %v8277, %v8278
        %v8280 = vsel %vm3437, %v8267, %v8279
        %v8281 = vrot.slane %v6453, 4
        %v8282 = vrot.slane %v6456, 5
        %v8283 = vor.u32 %v8281, %v8282
        %v8284 = vsel %vm3437, %v8271, %v8283
        %v8285 = vrot.slane %v6462, 4
        %v8286 = vrot.slane %v6465, 5
        %v8287 = vor.u32 %v8285, %v8286
        %v8288 = vsel %vm3437, %v8275, %v8287
        %v8289 = vrot.slane %v5917, 4
        %v8290 = vrot.slane %v5913, 5
        %v8291 = vor.u32 %v8289, %v8290
        %v8292 = vsel %vm3437, %v8279, %v8291
        %v8293 = vrot.slane %v6475, 4
        %v8294 = vrot.slane %v6478, 5
        %v8295 = vor.u32 %v8293, %v8294
        %v8296 = vsel %vm3437, %v8283, %v8295
        %v8297 = vrot.slane %v6484, 4
        %v8298 = vrot.slane %v6487, 5
        %v8299 = vor.u32 %v8297, %v8298
        %v8300 = vsel %vm3437, %v8287, %v8299
        %v8301 = vrot.slane %v5925, 4
        %v8302 = vrot.slane %v5921, 5
        %v8303 = vor.u32 %v8301, %v8302
        %v8304 = vsel %vm3437, %v8291, %v8303
        %v8305 = vrot.slane %v6497, 4
        %v8306 = vrot.slane %v6500, 5
        %v8307 = vor.u32 %v8305, %v8306
        %v8308 = vsel %vm3437, %v8295, %v8307
        %v8309 = vrot.slane %v6506, 4
        %v8310 = vrot.slane %v6509, 5
        %v8311 = vor.u32 %v8309, %v8310
        %v8312 = vsel %vm3437, %v8299, %v8311
        %v8313 = vrot.slane %v5933, 4
        %v8314 = vrot.slane %v5929, 5
        %v8315 = vor.u32 %v8313, %v8314
        %v8316 = vsel %vm3437, %v8303, %v8315
        %v8317 = vrot.slane %v6519, 4
        %v8318 = vrot.slane %v6522, 5
        %v8319 = vor.u32 %v8317, %v8318
        %v8320 = vsel %vm3437, %v8307, %v8319
        %v8321 = vrot.slane %v6528, 4
        %v8322 = vrot.slane %v6531, 5
        %v8323 = vor.u32 %v8321, %v8322
        %v8324 = vsel %vm3437, %v8311, %v8323
        %v8325 = vrot.slane %v5941, 4
        %v8326 = vrot.slane %v5937, 5
        %v8327 = vor.u32 %v8325, %v8326
        %v8328 = vsel %vm3437, %v8315, %v8327
        %v8329 = vrot.slane %v6541, 4
        %v8330 = vrot.slane %v6544, 5
        %v8331 = vor.u32 %v8329, %v8330
        %v8332 = vsel %vm3437, %v8319, %v8331
        %v8333 = vrot.slane %v6550, 4
        %v8334 = vrot.slane %v6553, 5
        %v8335 = vor.u32 %v8333, %v8334
        %v8336 = vsel %vm3437, %v8323, %v8335
        %v8337 = vrot.slane %v5949, 4
        %v8338 = vrot.slane %v5945, 5
        %v8339 = vor.u32 %v8337, %v8338
        %v8340 = vsel %vm3437, %v8327, %v8339
        %v8341 = vrot.slane %v6563, 4
        %v8342 = vrot.slane %v6566, 5
        %v8343 = vor.u32 %v8341, %v8342
        %v8344 = vsel %vm3437, %v8331, %v8343
        %v8345 = vrot.slane %v6572, 4
        %v8346 = vrot.slane %v6575, 5
        %v8347 = vor.u32 %v8345, %v8346
        %v8348 = vsel %vm3437, %v8335, %v8347
        %v8349 = vrot.slane %v5957, 4
        %v8350 = vrot.slane %v5953, 5
        %v8351 = vor.u32 %v8349, %v8350
        %v8352 = vsel %vm3437, %v8339, %v8351
        %v8353 = vrot.slane %v6585, 4
        %v8354 = vrot.slane %v6588, 5
        %v8355 = vor.u32 %v8353, %v8354
        %v8356 = vsel %vm3437, %v8343, %v8355
        %v8357 = vrot.slane %v6594, 4
        %v8358 = vrot.slane %v6597, 5
        %v8359 = vor.u32 %v8357, %v8358
        %v8360 = vsel %vm3437, %v8347, %v8359
        %v8361 = vrot.slane %v5965, 4
        %v8362 = vrot.slane %v5961, 5
        %v8363 = vor.u32 %v8361, %v8362
        %v8364 = vsel %vm3437, %v8351, %v8363
        %v8366 = vshrl.u32 %v5972, 16
        %v8368 = vrot.slane %v8366, 4
        %v8369 = vshll.u32 %v5972, 16
        %v8371 = vrot.slane %v8369, 5
        %v8372 = vor.u32 %v8368, %v8371
        %v8373 = vsel %vm3437, %v8355, %v8372
        %v8375 = vshrl.u32 %v6045, 16
        %v8377 = vrot.slane %v8375, 4
        %v8378 = vshll.u32 %v6045, 16
        %v8380 = vrot.slane %v8378, 5
        %v8381 = vor.u32 %v8377, %v8380
        %v8382 = vsel %vm3437, %v8359, %v8381
        %v8383 = vrot.slane %v5969, 5
        %v8384 = vsel %vm3437, %v8363, %v8383
        %v8386 = vshll.u32 %v5973, 16
        %v8388 = vrot.slane %v8386, 5
        %v8389 = vsel %vm3437, %v8372, %v8388
        %v8391 = vshll.u32 %v6044, 16
        %v8393 = vrot.slane %v8391, 5
        %v8394 = vsel %vm3437, %v8381, %v8393
        %v8506 = vunpack.c.l.b16 %v8076
        %v8507 = vunpack.c.l.b16 %v8077
        %v8508 = vunpack.c.l.b16 %v8078
        %v8509 = vunpack.c.l.b16 %v8079
        %v8510 = vunpack.c.l.b16 %v8080
        %v8511 = vunpack.c.l.b16 %v8081
        %v8512 = vunpack.c.l.b16 %v8082
        %v8513 = vunpack.c.l.b16 %v8083
        %v8514 = vunpack.c.l.b16 %v8084
        %v8515 = vunpack.c.l.b16 %v8085
        %v8516 = vunpack.c.l.b16 %v8086
        %v8517 = vunpack.c.l.b16 %v8087
        %v8518 = vunpack.c.l.b16 %v8088
        %v8519 = vunpack.c.l.b16 %v8089
        %v8520 = vunpack.c.l.b16 %v8090
        %v8521 = vunpack.c.l.b16 %v8091
        %v8522 = vunpack.c.l.b16 %v8092
        %v8523 = vunpack.c.l.b16 %v8093
        %v8524 = vunpack.c.l.b16 %v8094
        %v8525 = vunpack.c.l.b16 %v8095
        %v8526 = vunpack.c.l.b16 %v8096
        %v8527 = vunpack.c.l.b16 %v8097
        %v8528 = vunpack.c.l.b16 %v8098
        %v8529 = vunpack.c.l.b16 %v8099
        %v8530 = vunpack.c.l.b16 %v8100
        %v8531 = vunpack.c.l.b16 %v8101
        %v8532 = vunpack.c.l.b16 %v8102
        %v8533 = vunpack.c.l.b16 %v8103
        %v8534 = vunpack.c.l.b16 %v8104
        %v8535 = vunpack.c.l.b16 %v8105
        %v8536 = vunpack.c.l.b16 %v8106
        %v8537 = vunpack.c.l.b16 %v8107
        %v8538 = vunpack.c.l.b16 %v8108
        %v8539 = vunpack.c.l.b16 %v8109
        %v8540 = vunpack.c.l.b16 %v8110
        %v8541 = vunpack.c.l.b16 %v8111
        %v8542 = vunpack.c.l.b16 %v8112
        %v8543 = vunpack.c.l.b16 %v8113
        %v8544 = vunpack.c.l.b16 %v8114
        %v8545 = vunpack.c.l.b16 %v8115
        %v8546 = vunpack.c.l.b16 %v8116
        %v8547 = vunpack.c.l.b16 %v8117
        %v8548 = vunpack.c.l.b16 %v8118
        %v8549 = vunpack.c.l.b16 %v8119
        %v8550 = vunpack.c.l.b16 %v8120
        %v8551 = vunpack.c.l.b16 %v8121
        %v8552 = vunpack.c.l.b16 %v8122
        %v8553 = vunpack.c.l.b16 %v8123
        %v8554 = vpack.c.b16 %v8507, %v8506
        %v8555 = vpack.c.b16 %v8509, %v8508
        %v8556 = vpack.c.b16 %v8511, %v8510
        %v8557 = vpack.c.b16 %v8513, %v8512
        %v8558 = vpack.c.b16 %v8515, %v8514
        %v8559 = vpack.c.b16 %v8517, %v8516
        %v8560 = vpack.c.b16 %v8519, %v8518
        %v8561 = vpack.c.b16 %v8521, %v8520
        %v8562 = vpack.c.b16 %v8523, %v8522
        %v8563 = vpack.c.b16 %v8525, %v8524
        %v8564 = vpack.c.b16 %v8527, %v8526
        %v8565 = vpack.c.b16 %v8529, %v8528
        %v8566 = vpack.c.b16 %v8531, %v8530
        %v8567 = vpack.c.b16 %v8533, %v8532
        %v8568 = vpack.c.b16 %v8535, %v8534
        %v8569 = vpack.c.b16 %v8537, %v8536
        %v8570 = vpack.c.b16 %v8539, %v8538
        %v8571 = vpack.c.b16 %v8541, %v8540
        %v8572 = vpack.c.b16 %v8543, %v8542
        %v8573 = vpack.c.b16 %v8545, %v8544
        %v8574 = vpack.c.b16 %v8547, %v8546
        %v8575 = vpack.c.b16 %v8549, %v8548
        %v8576 = vpack.c.b16 %v8551, %v8550
        %v8577 = vpack.c.b16 %v8553, %v8552
        %8602 = vmatprep.subr.bf16.mxu0 0
        %8603 = vmatpush1.bf16.msra.mxu0 %v8554
        %8604 = vmatprep.subr.bf16.mxu0 0
        %8605 = vmatpush1.bf16.msra.mxu0 %v8555
        %8606 = vmatprep.subr.bf16.mxu0 0
        %8607 = vmatpush1.bf16.msra.mxu0 %v8556
        %8608 = vmatprep.subr.bf16.mxu0 0
        %8609 = vmatpush1.bf16.msra.mxu0 %v8557
        %8610 = vmatprep.subr.bf16.mxu0 0
        %8611 = vmatpush1.bf16.msra.mxu0 %v8558
        %8612 = vmatprep.subr.bf16.mxu0 0
        %8613 = vmatpush1.bf16.msra.mxu0 %v8559
        %8614 = vmatprep.subr.bf16.mxu0 0
        %8615 = vmatpush1.bf16.msra.mxu0 %v8560
        %8616 = vmatprep.subr.bf16.mxu0 0
        %8617 = vmatpush1.bf16.msra.mxu0 %v8561
        %8618 = vmatprep.subr.bf16.mxu0 0
        %8619 = vmatpush1.bf16.msra.mxu0 %v8562
        %8620 = vmatprep.subr.bf16.mxu0 0
        %8621 = vmatpush1.bf16.msra.mxu0 %v8563
        %8622 = vmatprep.subr.bf16.mxu0 0
        %8623 = vmatpush1.bf16.msra.mxu0 %v8564
        %8624 = vmatprep.subr.bf16.mxu0 0
        %8625 = vmatpush1.bf16.msra.mxu0 %v8565
        %8626 = vmatprep.subr.bf16.mxu0 0
        %8627 = vmatpush1.bf16.msra.mxu0 %v8566
        %8628 = vmatprep.subr.bf16.mxu0 0
        %8629 = vmatpush1.bf16.msra.mxu0 %v8567
        %8630 = vmatprep.subr.bf16.mxu0 0
        %8631 = vmatpush1.bf16.msra.mxu0 %v8568
        %8632 = vmatprep.subr.bf16.mxu0 0
        %8633 = vmatpush1.bf16.msra.mxu0 %v8569
        %8634 = vmatprep.mubr.bf16.mxu0 %v8137
        %8635 = vmatmul.mubr.bf16.gmra.mrb[0].mxu0 %v8130
        %v8636 = vpop.f32.mrb[0].mxu0
        %v8637 = vadd.f32 0.0, %v8636
        %v8638 = vpop.f32.mrb[0].mxu0
        %v8639 = vpop.f32.mrb[0].mxu0
        %v8640 = vadd.f32 0.0, %v8639
        %v8641 = vpop.f32.mrb[0].mxu0
        %8642 = vmatprep.mubr.bf16.mxu0 %v8152
        %8643 = vmatmul.mubr.bf16.gmra.mrb[0].mxu0 %v8148
        %v8644 = vpop.f32.mrb[0].mxu0
        %v8645 = vadd.f32 0.0, %v8644
        %v8646 = vpop.f32.mrb[0].mxu0
        %v8647 = vpop.f32.mrb[0].mxu0
        %v8648 = vadd.f32 0.0, %v8647
        %v8649 = vpop.f32.mrb[0].mxu0
        %8650 = vmatprep.mubr.bf16.mxu0 %v8164
        %8651 = vmatmul.mubr.bf16.gmra.mrb[0].mxu0 %v8160
        %v8652 = vpop.f32.mrb[0].mxu0
        %v8653 = vadd.f32 0.0, %v8652
        %v8654 = vpop.f32.mrb[0].mxu0
        %v8655 = vpop.f32.mrb[0].mxu0
        %v8656 = vadd.f32 0.0, %v8655
        %v8657 = vpop.f32.mrb[0].mxu0
        %8658 = vmatprep.mubr.bf16.mxu0 %v8176
        %8659 = vmatmul.mubr.bf16.gmra.mrb[0].mxu0 %v8172
        %v8660 = vpop.f32.mrb[0].mxu0
        %v8661 = vadd.f32 0.0, %v8660
        %v8662 = vpop.f32.mrb[0].mxu0
        %v8663 = vpop.f32.mrb[0].mxu0
        %v8664 = vadd.f32 0.0, %v8663
        %v8665 = vpop.f32.mrb[0].mxu0
        %8666 = vmatprep.mubr.bf16.mxu0 %v8188
        %8667 = vmatmul.mubr.bf16.gmra.mrb[0].mxu0 %v8184
        %v8668 = vpop.f32.mrb[0].mxu0
        %v8669 = vadd.f32 0.0, %v8668
        %v8670 = vpop.f32.mrb[0].mxu0
        %v8671 = vpop.f32.mrb[0].mxu0
        %v8672 = vadd.f32 0.0, %v8671
        %v8673 = vpop.f32.mrb[0].mxu0
        %8674 = vmatprep.mubr.bf16.mxu0 %v8200
        %8675 = vmatmul.mubr.bf16.gmra.mrb[0].mxu0 %v8196
        %v8676 = vpop.f32.mrb[0].mxu0
        %v8677 = vadd.f32 0.0, %v8676
        %v8678 = vpop.f32.mrb[0].mxu0
        %v8679 = vpop.f32.mrb[0].mxu0
        %v8680 = vadd.f32 0.0, %v8679
        %v8681 = vpop.f32.mrb[0].mxu0
        %8682 = vmatprep.mubr.bf16.mxu0 %v8212
        %8683 = vmatmul.mubr.bf16.gmra.mrb[0].mxu0 %v8208
        %v8684 = vpop.f32.mrb[0].mxu0
        %v8685 = vadd.f32 0.0, %v8684
        %v8686 = vpop.f32.mrb[0].mxu0
        %v8687 = vpop.f32.mrb[0].mxu0
        %v8688 = vadd.f32 0.0, %v8687
        %v8689 = vpop.f32.mrb[0].mxu0
        %8690 = vmatprep.mubr.bf16.mxu0 %v8224
        %8691 = vmatmul.mubr.bf16.gmra.mrb[0].mxu0 %v8220
        %v8692 = vpop.f32.mrb[0].mxu0
        %v8693 = vadd.f32 0.0, %v8692
        %v8694 = vpop.f32.mrb[0].mxu0
        %v8695 = vpop.f32.mrb[0].mxu0
        %v8696 = vadd.f32 0.0, %v8695
        %v8697 = vpop.f32.mrb[0].mxu0
        %8698 = vmatprep.mubr.bf16.mxu0 %v8236
        %8699 = vmatmul.mubr.bf16.gmra.mrb[0].mxu0 %v8232
        %v8700 = vpop.f32.mrb[0].mxu0
        %v8701 = vadd.f32 0.0, %v8700
        %v8702 = vpop.f32.mrb[0].mxu0
        %v8703 = vpop.f32.mrb[0].mxu0
        %v8704 = vadd.f32 0.0, %v8703
        %v8705 = vpop.f32.mrb[0].mxu0
        %8706 = vmatprep.mubr.bf16.mxu0 %v8248
        %8707 = vmatmul.mubr.bf16.gmra.mrb[0].mxu0 %v8244
        %v8708 = vpop.f32.mrb[0].mxu0
        %v8709 = vadd.f32 0.0, %v8708
        %v8710 = vpop.f32.mrb[0].mxu0
        %v8711 = vpop.f32.mrb[0].mxu0
        %v8712 = vadd.f32 0.0, %v8711
        %v8713 = vpop.f32.mrb[0].mxu0
        %8714 = vmatprep.mubr.bf16.mxu0 %v8260
        %8715 = vmatmul.mubr.bf16.gmra.mrb[0].mxu0 %v8256
        %v8716 = vpop.f32.mrb[0].mxu0
        %v8717 = vadd.f32 0.0, %v8716
        %v8718 = vpop.f32.mrb[0].mxu0
        %v8719 = vpop.f32.mrb[0].mxu0
        %v8720 = vadd.f32 0.0, %v8719
        %v8721 = vpop.f32.mrb[0].mxu0
        %8722 = vmatprep.mubr.bf16.mxu0 %v8272
        %8723 = vmatmul.mubr.bf16.gmra.mrb[0].mxu0 %v8268
        %v8724 = vpop.f32.mrb[0].mxu0
        %v8725 = vadd.f32 0.0, %v8724
        %v8726 = vpop.f32.mrb[0].mxu0
        %v8727 = vpop.f32.mrb[0].mxu0
        %v8728 = vadd.f32 0.0, %v8727
        %v8729 = vpop.f32.mrb[0].mxu0
        %8730 = vmatprep.mubr.bf16.mxu0 %v8284
        %8731 = vmatmul.mubr.bf16.gmra.mrb[0].mxu0 %v8280
        %v8732 = vpop.f32.mrb[0].mxu0
        %v8733 = vadd.f32 0.0, %v8732
        %v8734 = vpop.f32.mrb[0].mxu0
        %v8735 = vpop.f32.mrb[0].mxu0
        %v8736 = vadd.f32 0.0, %v8735
        %v8737 = vpop.f32.mrb[0].mxu0
        %8738 = vmatprep.mubr.bf16.mxu0 %v8296
        %8739 = vmatmul.mubr.bf16.gmra.mrb[0].mxu0 %v8292
        %v8740 = vpop.f32.mrb[0].mxu0
        %v8741 = vadd.f32 0.0, %v8740
        %v8742 = vpop.f32.mrb[0].mxu0
        %v8743 = vpop.f32.mrb[0].mxu0
        %v8744 = vadd.f32 0.0, %v8743
        %v8745 = vpop.f32.mrb[0].mxu0
        %8746 = vmatprep.mubr.bf16.mxu0 %v8308
        %8747 = vmatmul.mubr.bf16.gmra.mrb[0].mxu0 %v8304
        %v8748 = vpop.f32.mrb[0].mxu0
        %v8749 = vadd.f32 0.0, %v8748
        %v8750 = vpop.f32.mrb[0].mxu0
        %v8751 = vpop.f32.mrb[0].mxu0
        %v8752 = vadd.f32 0.0, %v8751
        %v8753 = vpop.f32.mrb[0].mxu0
        %8754 = vmatprep.mubr.bf16.mxu0 %v8320
        %8755 = vmatmul.mubr.bf16.gmra.mrb[0].mxu0 %v8316
        %v8756 = vpop.f32.mrb[0].mxu0
        %v8757 = vadd.f32 0.0, %v8756
        %v8758 = vpop.f32.mrb[0].mxu0
        %v8759 = vpop.f32.mrb[0].mxu0
        %v8760 = vadd.f32 0.0, %v8759
        %v8761 = vpop.f32.mrb[0].mxu0
        %8762 = vmatprep.mubr.bf16.mxu0 %v8332
        %8763 = vmatmul.mubr.bf16.gmra.mrb[0].mxu0 %v8328
        %v8764 = vpop.f32.mrb[0].mxu0
        %v8765 = vadd.f32 0.0, %v8764
        %v8766 = vpop.f32.mrb[0].mxu0
        %v8767 = vpop.f32.mrb[0].mxu0
        %v8768 = vadd.f32 0.0, %v8767
        %v8769 = vpop.f32.mrb[0].mxu0
        %8770 = vmatprep.mubr.bf16.mxu0 %v8344
        %8771 = vmatmul.mubr.bf16.gmra.mrb[0].mxu0 %v8340
        %v8772 = vpop.f32.mrb[0].mxu0
        %v8773 = vadd.f32 0.0, %v8772
        %v8774 = vpop.f32.mrb[0].mxu0
        %v8775 = vpop.f32.mrb[0].mxu0
        %v8776 = vadd.f32 0.0, %v8775
        %v8777 = vpop.f32.mrb[0].mxu0
        %8778 = vmatprep.mubr.bf16.mxu0 %v8356
        %8779 = vmatmul.mubr.bf16.gmra.mrb[0].mxu0 %v8352
        %v8780 = vpop.f32.mrb[0].mxu0
        %v8781 = vadd.f32 0.0, %v8780
        %v8782 = vpop.f32.mrb[0].mxu0
        %v8783 = vpop.f32.mrb[0].mxu0
        %v8784 = vadd.f32 0.0, %v8783
        %v8785 = vpop.f32.mrb[0].mxu0
        %8786 = vmatprep.mubr.bf16.mxu0 %v8373
        %8787 = vmatmul.mubr.bf16.gmra.mrb[0].mxu0 %v8364
        %v8788 = vpop.f32.mrb[0].mxu0
        %v8789 = vadd.f32 0.0, %v8788
        %v8790 = vpop.f32.mrb[0].mxu0
        %v8791 = vpop.f32.mrb[0].mxu0
        %v8792 = vadd.f32 0.0, %v8791
        %v8793 = vpop.f32.mrb[0].mxu0
        %8794 = vmatprep.mubr.bf16.mxu0 %v8389
        %8795 = vmatmul.mubr.bf16.gmra.mrb[0].mxu0 %v8384
        %v8796 = vpop.f32.mrb[0].mxu0
        %v8797 = vadd.f32 0.0, %v8796
        %v8798 = vpop.f32.mrb[0].mxu0
        %v8799 = vpop.f32.mrb[0].mxu0
        %v8800 = vpop.f32.mrb[0].mxu0
        %8801 = vdwg.mxu0
        %8802 = vmatprep.subr.bf16.mxu0 0
        %8803 = vmatpush1.bf16.msra.mxu0 %v8570
        %8804 = vmatprep.subr.bf16.mxu0 0
        %8805 = vmatpush1.bf16.msra.mxu0 %v8571
        %8806 = vmatprep.subr.bf16.mxu0 0
        %8807 = vmatpush1.bf16.msra.mxu0 %v8572
        %8808 = vmatprep.subr.bf16.mxu0 0
        %8809 = vmatpush1.bf16.msra.mxu0 %v8573
        %8810 = vmatprep.subr.bf16.mxu0 0
        %8811 = vmatpush1.bf16.msra.mxu0 %v8574
        %8812 = vmatprep.subr.bf16.mxu0 0
        %8813 = vmatpush1.bf16.msra.mxu0 %v8575
        %8814 = vmatprep.subr.bf16.mxu0 0
        %8815 = vmatpush1.bf16.msra.mxu0 %v8576
        %8816 = vmatprep.subr.bf16.mxu0 0
        %8817 = vmatpush1.bf16.msra.mxu0 %v8577
        %8818 = vmatprep.subr.bf16.mxu0 0
        %8819 = vmatpush1.bf16.msra.mxu0 0
        %8820 = vmatprep.subr.bf16.mxu0 0
        %8821 = vmatpush1.bf16.msra.mxu0 0
        %8822 = vmatprep.subr.bf16.mxu0 0
        %8823 = vmatpush1.bf16.msra.mxu0 0
        %8824 = vmatprep.subr.bf16.mxu0 0
        %8825 = vmatpush1.bf16.msra.mxu0 0
        %8826 = vmatprep.subr.bf16.mxu0 0
        %8827 = vmatpush1.bf16.msra.mxu0 0
        %8828 = vmatprep.subr.bf16.mxu0 0
        %8829 = vmatpush1.bf16.msra.mxu0 0
        %8830 = vmatprep.subr.bf16.mxu0 0
        %8831 = vmatpush1.bf16.msra.mxu0 0
        %8832 = vmatprep.subr.bf16.mxu0 0
        %8833 = vmatpush1.bf16.msra.mxu0 0
        %8834 = vmatprep.mubr.bf16.mxu0 0
        %8835 = vmatmul.mubr.bf16.gmra.mrb[0].mxu0 %v8144
        %v8836 = vpop.f32.mrb[0].mxu0
        %v8837 = vadd.f32 %v8637, %v8836
        %v8838 = vpop.f32.mrb[0].mxu0
        %v8839 = vpop.f32.mrb[0].mxu0
        %v8840 = vadd.f32 %v8640, %v8839
        %v8841 = vpop.f32.mrb[0].mxu0
        %8842 = vmatprep.mubr.bf16.mxu0 0
        %8843 = vmatmul.mubr.bf16.gmra.mrb[0].mxu0 %v8156
        %v8844 = vpop.f32.mrb[0].mxu0
        %v8845 = vadd.f32 %v8645, %v8844
        %v8846 = vpop.f32.mrb[0].mxu0
        %v8847 = vpop.f32.mrb[0].mxu0
        %v8848 = vadd.f32 %v8648, %v8847
        %v8849 = vpop.f32.mrb[0].mxu0
        %8850 = vmatprep.mubr.bf16.mxu0 0
        %8851 = vmatmul.mubr.bf16.gmra.mrb[0].mxu0 %v8168
        %v8852 = vpop.f32.mrb[0].mxu0
        %v8853 = vadd.f32 %v8653, %v8852
        %v8854 = vpop.f32.mrb[0].mxu0
        %v8855 = vpop.f32.mrb[0].mxu0
        %v8856 = vadd.f32 %v8656, %v8855
        %v8857 = vpop.f32.mrb[0].mxu0
        %8858 = vmatprep.mubr.bf16.mxu0 0
        %8859 = vmatmul.mubr.bf16.gmra.mrb[0].mxu0 %v8180
        %v8860 = vpop.f32.mrb[0].mxu0
        %v8861 = vadd.f32 %v8661, %v8860
        %v8862 = vpop.f32.mrb[0].mxu0
        %v8863 = vpop.f32.mrb[0].mxu0
        %v8864 = vadd.f32 %v8664, %v8863
        %v8865 = vpop.f32.mrb[0].mxu0
        %8866 = vmatprep.mubr.bf16.mxu0 0
        %8867 = vmatmul.mubr.bf16.gmra.mrb[0].mxu0 %v8192
        %v8868 = vpop.f32.mrb[0].mxu0
        %v8869 = vadd.f32 %v8669, %v8868
        %v8870 = vpop.f32.mrb[0].mxu0
        %v8871 = vpop.f32.mrb[0].mxu0
        %v8872 = vadd.f32 %v8672, %v8871
        %v8873 = vpop.f32.mrb[0].mxu0
        %8874 = vmatprep.mubr.bf16.mxu0 0
        %8875 = vmatmul.mubr.bf16.gmra.mrb[0].mxu0 %v8204
        %v8876 = vpop.f32.mrb[0].mxu0
        %v8877 = vadd.f32 %v8677, %v8876
        %v8878 = vpop.f32.mrb[0].mxu0
        %v8879 = vpop.f32.mrb[0].mxu0
        %v8880 = vadd.f32 %v8680, %v8879
        %v8881 = vpop.f32.mrb[0].mxu0
        %8882 = vmatprep.mubr.bf16.mxu0 0
        %8883 = vmatmul.mubr.bf16.gmra.mrb[0].mxu0 %v8216
        %v8884 = vpop.f32.mrb[0].mxu0
        %v8885 = vadd.f32 %v8685, %v8884
        %v8886 = vpop.f32.mrb[0].mxu0
        %v8887 = vpop.f32.mrb[0].mxu0
        %v8888 = vadd.f32 %v8688, %v8887
        %v8889 = vpop.f32.mrb[0].mxu0
        %8890 = vmatprep.mubr.bf16.mxu0 0
        %8891 = vmatmul.mubr.bf16.gmra.mrb[0].mxu0 %v8228
        %v8892 = vpop.f32.mrb[0].mxu0
        %v8893 = vadd.f32 %v8693, %v8892
        %v8894 = vpop.f32.mrb[0].mxu0
        %v8895 = vpop.f32.mrb[0].mxu0
        %v8896 = vadd.f32 %v8696, %v8895
        %v8897 = vpop.f32.mrb[0].mxu0
        %8898 = vmatprep.mubr.bf16.mxu0 0
        %8899 = vmatmul.mubr.bf16.gmra.mrb[0].mxu0 %v8240
        %v8900 = vpop.f32.mrb[0].mxu0
        %v8901 = vadd.f32 %v8701, %v8900
        %v8902 = vpop.f32.mrb[0].mxu0
        %v8903 = vpop.f32.mrb[0].mxu0
        %v8904 = vadd.f32 %v8704, %v8903
        %v8905 = vpop.f32.mrb[0].mxu0
        %8906 = vmatprep.mubr.bf16.mxu0 0
        %8907 = vmatmul.mubr.bf16.gmra.mrb[0].mxu0 %v8252
        %v8908 = vpop.f32.mrb[0].mxu0
        %v8909 = vadd.f32 %v8709, %v8908
        %v8910 = vpop.f32.mrb[0].mxu0
        %v8911 = vpop.f32.mrb[0].mxu0
        %v8912 = vadd.f32 %v8712, %v8911
        %v8913 = vpop.f32.mrb[0].mxu0
        %8914 = vmatprep.mubr.bf16.mxu0 0
        %8915 = vmatmul.mubr.bf16.gmra.mrb[0].mxu0 %v8264
        %v8916 = vpop.f32.mrb[0].mxu0
        %v8917 = vadd.f32 %v8717, %v8916
        %v8918 = vpop.f32.mrb[0].mxu0
        %v8919 = vpop.f32.mrb[0].mxu0
        %v8920 = vadd.f32 %v8720, %v8919
        %v8921 = vpop.f32.mrb[0].mxu0
        %8922 = vmatprep.mubr.bf16.mxu0 0
        %8923 = vmatmul.mubr.bf16.gmra.mrb[0].mxu0 %v8276
        %v8924 = vpop.f32.mrb[0].mxu0
        %v8925 = vadd.f32 %v8725, %v8924
        %v8926 = vpop.f32.mrb[0].mxu0
        %v8927 = vpop.f32.mrb[0].mxu0
        %v8928 = vadd.f32 %v8728, %v8927
        %v8929 = vpop.f32.mrb[0].mxu0
        %8930 = vmatprep.mubr.bf16.mxu0 0
        %8931 = vmatmul.mubr.bf16.gmra.mrb[0].mxu0 %v8288
        %v8932 = vpop.f32.mrb[0].mxu0
        %v8933 = vadd.f32 %v8733, %v8932
        %v8934 = vpop.f32.mrb[0].mxu0
        %v8935 = vpop.f32.mrb[0].mxu0
        %v8936 = vadd.f32 %v8736, %v8935
        %v8937 = vpop.f32.mrb[0].mxu0
        %8938 = vmatprep.mubr.bf16.mxu0 0
        %8939 = vmatmul.mubr.bf16.gmra.mrb[0].mxu0 %v8300
        %v8940 = vpop.f32.mrb[0].mxu0
        %v8941 = vadd.f32 %v8741, %v8940
        %v8942 = vpop.f32.mrb[0].mxu0
        %v8943 = vpop.f32.mrb[0].mxu0
        %v8944 = vadd.f32 %v8744, %v8943
        %v8945 = vpop.f32.mrb[0].mxu0
        %8946 = vmatprep.mubr.bf16.mxu0 0
        %8947 = vmatmul.mubr.bf16.gmra.mrb[0].mxu0 %v8312
        %v8948 = vpop.f32.mrb[0].mxu0
        %v8949 = vadd.f32 %v8749, %v8948
        %v8950 = vpop.f32.mrb[0].mxu0
        %v8951 = vpop.f32.mrb[0].mxu0
        %v8952 = vadd.f32 %v8752, %v8951
        %v8953 = vpop.f32.mrb[0].mxu0
        %8954 = vmatprep.mubr.bf16.mxu0 0
        %8955 = vmatmul.mubr.bf16.gmra.mrb[0].mxu0 %v8324
        %v8956 = vpop.f32.mrb[0].mxu0
        %v8957 = vadd.f32 %v8757, %v8956
        %v8958 = vpop.f32.mrb[0].mxu0
        %v8959 = vpop.f32.mrb[0].mxu0
        %v8960 = vadd.f32 %v8760, %v8959
        %v8961 = vpop.f32.mrb[0].mxu0
        %8962 = vmatprep.mubr.bf16.mxu0 0
        %8963 = vmatmul.mubr.bf16.gmra.mrb[0].mxu0 %v8336
        %v8964 = vpop.f32.mrb[0].mxu0
        %v8965 = vadd.f32 %v8765, %v8964
        %v8966 = vpop.f32.mrb[0].mxu0
        %v8967 = vpop.f32.mrb[0].mxu0
        %v8968 = vadd.f32 %v8768, %v8967
        %v8969 = vpop.f32.mrb[0].mxu0
        %8970 = vmatprep.mubr.bf16.mxu0 0
        %8971 = vmatmul.mubr.bf16.gmra.mrb[0].mxu0 %v8348
        %v8972 = vpop.f32.mrb[0].mxu0
        %v8973 = vadd.f32 %v8773, %v8972
        %v8974 = vpop.f32.mrb[0].mxu0
        %v8975 = vpop.f32.mrb[0].mxu0
        %v8976 = vadd.f32 %v8776, %v8975
        %v8977 = vpop.f32.mrb[0].mxu0
        %8978 = vmatprep.mubr.bf16.mxu0 0
        %8979 = vmatmul.mubr.bf16.gmra.mrb[0].mxu0 %v8360
        %v8980 = vpop.f32.mrb[0].mxu0
        %v8981 = vadd.f32 %v8781, %v8980
        %v8982 = vpop.f32.mrb[0].mxu0
        %v8983 = vpop.f32.mrb[0].mxu0
        %v8984 = vadd.f32 %v8784, %v8983
        %v8985 = vpop.f32.mrb[0].mxu0
        %8986 = vmatprep.mubr.bf16.mxu0 0
        %8987 = vmatmul.mubr.bf16.gmra.mrb[0].mxu0 %v8382
        %v8988 = vpop.f32.mrb[0].mxu0
        %v8989 = vadd.f32 %v8789, %v8988
        %v8990 = vpop.f32.mrb[0].mxu0
        %v8991 = vpop.f32.mrb[0].mxu0
        %v8992 = vadd.f32 %v8792, %v8991
        %v8993 = vpop.f32.mrb[0].mxu0
        %8994 = vmatprep.mubr.bf16.mxu0 0
        %8995 = vmatmul.mubr.bf16.gmra.mrb[0].mxu0 %v8394
        %v8996 = vpop.f32.mrb[0].mxu0
        %v8997 = vadd.f32 %v8797, %v8996
        %v8998 = vpop.f32.mrb[0].mxu0
        %v8999 = vpop.f32.mrb[0].mxu0
        %v9000 = vpop.f32.mrb[0].mxu0
        %9001 = vdwg.mxu0
        %v9002 = vadd.f32 %v7910, %v8837
        %v9003 = vadd.f32 %v7913, %v8840
        %v9004 = vadd.f32 %v7918, %v8845
        %v9005 = vadd.f32 %v7921, %v8848
        %v9006 = vadd.f32 %v7926, %v8853
        %v9007 = vadd.f32 %v7929, %v8856
        %v9008 = vadd.f32 %v7934, %v8861
        %v9009 = vadd.f32 %v7937, %v8864
        %v9010 = vadd.f32 %v7942, %v8869
        %v9011 = vadd.f32 %v7945, %v8872
        %v9012 = vadd.f32 %v7950, %v8877
        %v9013 = vadd.f32 %v7953, %v8880
        %v9014 = vadd.f32 %v7958, %v8885
        %v9015 = vadd.f32 %v7961, %v8888
        %v9016 = vadd.f32 %v7966, %v8893
        %v9017 = vadd.f32 %v7969, %v8896
        %v9018 = vadd.f32 %v7974, %v8901
        %v9019 = vadd.f32 %v7977, %v8904
        %v9020 = vadd.f32 %v7982, %v8909
        %v9021 = vadd.f32 %v7985, %v8912
        %v9022 = vadd.f32 %v7990, %v8917
        %v9023 = vadd.f32 %v7993, %v8920
        %v9024 = vadd.f32 %v7998, %v8925
        %v9025 = vadd.f32 %v8001, %v8928
        %v9026 = vadd.f32 %v8006, %v8933
        %v9027 = vadd.f32 %v8009, %v8936
        %v9028 = vadd.f32 %v8014, %v8941
        %v9029 = vadd.f32 %v8017, %v8944
        %v9030 = vadd.f32 %v8022, %v8949
        %v9031 = vadd.f32 %v8025, %v8952
        %v9032 = vadd.f32 %v8030, %v8957
        %v9033 = vadd.f32 %v8033, %v8960
        %v9034 = vadd.f32 %v8038, %v8965
        %v9035 = vadd.f32 %v8041, %v8968
        %v9036 = vadd.f32 %v8046, %v8973
        %v9037 = vadd.f32 %v8049, %v8976
        %v9038 = vadd.f32 %v8054, %v8981
        %v9039 = vadd.f32 %v8057, %v8984
        %v9040 = vadd.f32 %v8062, %v8989
        %v9041 = vadd.f32 %v8065, %v8992
        %v9042 = vadd.f32 %v8070, %v8997
        %v9043 = vlaneseq
        %v9044 = vshrl.u32 %v9043, 7
        %v9045 = vsub.s32 2, %v9044
        %v9046 = vrot.slane %v382, %v9045
        %v9047 = vmul.f32 %v9002, %v9046
        %v9048 = vmul.f32 %v9003, %v9046
        %v9049 = vmul.f32 %v9004, %v9046
        %v9050 = vmul.f32 %v9005, %v9046
        %v9051 = vmul.f32 %v9006, %v9046
        %v9052 = vmul.f32 %v9007, %v9046
        %v9053 = vmul.f32 %v9008, %v9046
        %v9054 = vmul.f32 %v9009, %v9046
        %v9055 = vmul.f32 %v9010, %v9046
        %v9056 = vmul.f32 %v9011, %v9046
        %v9057 = vmul.f32 %v9012, %v9046
        %v9058 = vmul.f32 %v9013, %v9046
        %v9059 = vmul.f32 %v9014, %v9046
        %v9060 = vmul.f32 %v9015, %v9046
        %v9061 = vmul.f32 %v9016, %v9046
        %v9062 = vmul.f32 %v9017, %v9046
        %v9063 = vmul.f32 %v9018, %v9046
        %v9064 = vmul.f32 %v9019, %v9046
        %v9065 = vmul.f32 %v9020, %v9046
        %v9066 = vmul.f32 %v9021, %v9046
        %v9067 = vmul.f32 %v9022, %v9046
        %v9068 = vmul.f32 %v9023, %v9046
        %v9069 = vmul.f32 %v9024, %v9046
        %v9070 = vmul.f32 %v9025, %v9046
        %v9071 = vmul.f32 %v9026, %v9046
        %v9072 = vmul.f32 %v9027, %v9046
        %v9073 = vmul.f32 %v9028, %v9046
        %v9074 = vmul.f32 %v9029, %v9046
        %v9075 = vmul.f32 %v9030, %v9046
        %v9076 = vmul.f32 %v9031, %v9046
        %v9077 = vmul.f32 %v9032, %v9046
        %v9078 = vmul.f32 %v9033, %v9046
        %v9079 = vmul.f32 %v9034, %v9046
        %v9080 = vmul.f32 %v9035, %v9046
        %v9081 = vmul.f32 %v9036, %v9046
        %v9082 = vmul.f32 %v9037, %v9046
        %v9083 = vmul.f32 %v9038, %v9046
        %v9084 = vmul.f32 %v9039, %v9046
        %v9085 = vmul.f32 %v9040, %v9046
        %v9086 = vmul.f32 %v9041, %v9046
        %v9087 = vmul.f32 %v9042, %v9046
        %v9088 = vlaneseq
        %v9089 = vshrl.u32 %v9088, 7
        %v9090 = vsub.s32 3, %v9089
        %v9091 = vrot.slane %v382, %v9090
        %v9092 = vadd.f32 %v9047, %v9091
        %v9093 = vadd.f32 %v9048, %v9091
        %v9094 = vadd.f32 %v9049, %v9091
        %v9095 = vadd.f32 %v9050, %v9091
        %v9096 = vadd.f32 %v9051, %v9091
        %v9097 = vadd.f32 %v9052, %v9091
        %v9098 = vadd.f32 %v9053, %v9091
        %v9099 = vadd.f32 %v9054, %v9091
        %v9100 = vadd.f32 %v9055, %v9091
        %v9101 = vadd.f32 %v9056, %v9091
        %v9102 = vadd.f32 %v9057, %v9091
        %v9103 = vadd.f32 %v9058, %v9091
        %v9104 = vadd.f32 %v9059, %v9091
        %v9105 = vadd.f32 %v9060, %v9091
        %v9106 = vadd.f32 %v9061, %v9091
        %v9107 = vadd.f32 %v9062, %v9091
        %v9108 = vadd.f32 %v9063, %v9091
        %v9109 = vadd.f32 %v9064, %v9091
        %v9110 = vadd.f32 %v9065, %v9091
        %v9111 = vadd.f32 %v9066, %v9091
        %v9112 = vadd.f32 %v9067, %v9091
        %v9113 = vadd.f32 %v9068, %v9091
        %v9114 = vadd.f32 %v9069, %v9091
        %v9115 = vadd.f32 %v9070, %v9091
        %v9116 = vadd.f32 %v9071, %v9091
        %v9117 = vadd.f32 %v9072, %v9091
        %v9118 = vadd.f32 %v9073, %v9091
        %v9119 = vadd.f32 %v9074, %v9091
        %v9120 = vadd.f32 %v9075, %v9091
        %v9121 = vadd.f32 %v9076, %v9091
        %v9122 = vadd.f32 %v9077, %v9091
        %v9123 = vadd.f32 %v9078, %v9091
        %v9124 = vadd.f32 %v9079, %v9091
        %v9125 = vadd.f32 %v9080, %v9091
        %v9126 = vadd.f32 %v9081, %v9091
        %v9127 = vadd.f32 %v9082, %v9091
        %v9128 = vadd.f32 %v9083, %v9091
        %v9129 = vadd.f32 %v9084, %v9091
        %v9130 = vadd.f32 %v9085, %v9091
        %v9131 = vadd.f32 %v9086, %v9091
        %v9132 = vadd.f32 %v9087, %v9091
        %v9133 = vadd.f32 %v4723, 0.0
        %v9134 = vadd.f32 %v4724, 0.0
        %v9135 = vadd.f32 %v4725, 0.0
        %v9136 = vadd.f32 %v4726, 0.0
        %v9137 = vadd.f32 %v4727, 0.0
        %v9138 = vadd.f32 %v4728, 0.0
        %v9139 = vadd.f32 %v4729, 0.0
        %v9140 = vadd.f32 %v4730, 0.0
        %v9141 = vadd.f32 %v4731, 0.0
        %v9142 = vadd.f32 %v4732, 0.0
        %v9143 = vadd.f32 %v4733, 0.0
        %v9144 = vadd.f32 %v4734, 0.0
        %v9145 = vadd.f32 %v4735, 0.0
        %v9146 = vadd.f32 %v4736, 0.0
        %v9147 = vadd.f32 %v4737, 0.0
        %v9148 = vadd.f32 %v4738, 0.0
        %v9149 = vadd.f32 %v4739, 0.0
        %v9150 = vadd.f32 %v4740, 0.0
        %v9151 = vadd.f32 %v4741, 0.0
        %v9152 = vadd.f32 %v4742, 0.0
        %v9153 = vadd.f32 %v4743, 0.0
        %v9154 = vadd.f32 %v4744, 0.0
        %v9155 = vadd.f32 %v4745, 0.0
        %v9156 = vadd.f32 %v4746, 0.0
        %v9157 = vadd.f32 %v4747, 0.0
        %v9158 = vadd.f32 %v4748, 0.0
        %v9159 = vadd.f32 %v4749, 0.0
        %v9160 = vadd.f32 %v4750, 0.0
        %v9161 = vadd.f32 %v4751, 0.0
        %v9162 = vadd.f32 %v4752, 0.0
        %v9163 = vadd.f32 %v4753, 0.0
        %v9164 = vadd.f32 %v4754, 0.0
        %v9165 = vadd.f32 %v4755, 0.0
        %v9166 = vadd.f32 %v4756, 0.0
        %v9167 = vadd.f32 %v4757, 0.0
        %v9168 = vadd.f32 %v4758, 0.0
        %v9169 = vadd.f32 %v4759, 0.0
        %v9170 = vadd.f32 %v4760, 0.0
        %v9171 = vadd.f32 %v4761, 0.0
        %v9172 = vadd.f32 %v4762, 0.0
        %v9173 = vadd.f32 %v4763, 0.0
        %v9174 = vadd.f32 %v9133, 0.5
        %v9175 = vadd.f32 %v9134, 0.5
        %v9176 = vadd.f32 %v9135, 0.5
        %v9177 = vadd.f32 %v9136, 0.5
        %v9178 = vadd.f32 %v9137, 0.5
        %v9179 = vadd.f32 %v9138, 0.5
        %v9180 = vadd.f32 %v9139, 0.5
        %v9181 = vadd.f32 %v9140, 0.5
        %v9182 = vadd.f32 %v9141, 0.5
        %v9183 = vadd.f32 %v9142, 0.5
        %v9184 = vadd.f32 %v9143, 0.5
        %v9185 = vadd.f32 %v9144, 0.5
        %v9186 = vadd.f32 %v9145, 0.5
        %v9187 = vadd.f32 %v9146, 0.5
        %v9188 = vadd.f32 %v9147, 0.5
        %v9189 = vadd.f32 %v9148, 0.5
        %v9190 = vadd.f32 %v9149, 0.5
        %v9191 = vadd.f32 %v9150, 0.5
        %v9192 = vadd.f32 %v9151, 0.5
        %v9193 = vadd.f32 %v9152, 0.5
        %v9194 = vadd.f32 %v9153, 0.5
        %v9195 = vadd.f32 %v9154, 0.5
        %v9196 = vadd.f32 %v9155, 0.5
        %v9197 = vadd.f32 %v9156, 0.5
        %v9198 = vadd.f32 %v9157, 0.5
        %v9199 = vadd.f32 %v9158, 0.5
        %v9200 = vadd.f32 %v9159, 0.5
        %v9201 = vadd.f32 %v9160, 0.5
        %v9202 = vadd.f32 %v9161, 0.5
        %v9203 = vadd.f32 %v9162, 0.5
        %v9204 = vadd.f32 %v9163, 0.5
        %v9205 = vadd.f32 %v9164, 0.5
        %v9206 = vadd.f32 %v9165, 0.5
        %v9207 = vadd.f32 %v9166, 0.5
        %v9208 = vadd.f32 %v9167, 0.5
        %v9209 = vadd.f32 %v9168, 0.5
        %v9210 = vadd.f32 %v9169, 0.5
        %v9211 = vadd.f32 %v9170, 0.5
        %v9212 = vadd.f32 %v9171, 0.5
        %v9213 = vadd.f32 %v9172, 0.5
        %v9214 = vadd.f32 %v9173, 0.5
        %v9215 = vmul.f32 %v9174, 0.055555556
        %v9216 = vmul.f32 %v9175, 0.055555556
        %v9217 = vmul.f32 %v9176, 0.055555556
        %v9218 = vmul.f32 %v9177, 0.055555556
        %v9219 = vmul.f32 %v9178, 0.055555556
        %v9220 = vmul.f32 %v9179, 0.055555556
        %v9221 = vmul.f32 %v9180, 0.055555556
        %v9222 = vmul.f32 %v9181, 0.055555556
        %v9223 = vmul.f32 %v9182, 0.055555556
        %v9224 = vmul.f32 %v9183, 0.055555556
        %v9225 = vmul.f32 %v9184, 0.055555556
        %v9226 = vmul.f32 %v9185, 0.055555556
        %v9227 = vmul.f32 %v9186, 0.055555556
        %v9228 = vmul.f32 %v9187, 0.055555556
        %v9229 = vmul.f32 %v9188, 0.055555556
        %v9230 = vmul.f32 %v9189, 0.055555556
        %v9231 = vmul.f32 %v9190, 0.055555556
        %v9232 = vmul.f32 %v9191, 0.055555556
        %v9233 = vmul.f32 %v9192, 0.055555556
        %v9234 = vmul.f32 %v9193, 0.055555556
        %v9235 = vmul.f32 %v9194, 0.055555556
        %v9236 = vmul.f32 %v9195, 0.055555556
        %v9237 = vmul.f32 %v9196, 0.055555556
        %v9238 = vmul.f32 %v9197, 0.055555556
        %v9239 = vmul.f32 %v9198, 0.055555556
        %v9240 = vmul.f32 %v9199, 0.055555556
        %v9241 = vmul.f32 %v9200, 0.055555556
        %v9242 = vmul.f32 %v9201, 0.055555556
        %v9243 = vmul.f32 %v9202, 0.055555556
        %v9244 = vmul.f32 %v9203, 0.055555556
        %v9245 = vmul.f32 %v9204, 0.055555556
        %v9246 = vmul.f32 %v9205, 0.055555556
        %v9247 = vmul.f32 %v9206, 0.055555556
        %v9248 = vmul.f32 %v9207, 0.055555556
        %v9249 = vmul.f32 %v9208, 0.055555556
        %v9250 = vmul.f32 %v9209, 0.055555556
        %v9251 = vmul.f32 %v9210, 0.055555556
        %v9252 = vmul.f32 %v9211, 0.055555556
        %v9253 = vmul.f32 %v9212, 0.055555556
        %v9254 = vmul.f32 %v9213, 0.055555556
        %v9255 = vmul.f32 %v9214, 0.055555556
        %v9256 = vfloor.f32 %v9215
        %v9257 = vfloor.f32 %v9216
        %v9258 = vfloor.f32 %v9217
        %v9259 = vfloor.f32 %v9218
        %v9260 = vfloor.f32 %v9219
        %v9261 = vfloor.f32 %v9220
        %v9262 = vfloor.f32 %v9221
        %v9263 = vfloor.f32 %v9222
        %v9264 = vfloor.f32 %v9223
        %v9265 = vfloor.f32 %v9224
        %v9266 = vfloor.f32 %v9225
        %v9267 = vfloor.f32 %v9226
        %v9268 = vfloor.f32 %v9227
        %v9269 = vfloor.f32 %v9228
        %v9270 = vfloor.f32 %v9229
        %v9271 = vfloor.f32 %v9230
        %v9272 = vfloor.f32 %v9231
        %v9273 = vfloor.f32 %v9232
        %v9274 = vfloor.f32 %v9233
        %v9275 = vfloor.f32 %v9234
        %v9276 = vfloor.f32 %v9235
        %v9277 = vfloor.f32 %v9236
        %v9278 = vfloor.f32 %v9237
        %v9279 = vfloor.f32 %v9238
        %v9280 = vfloor.f32 %v9239
        %v9281 = vfloor.f32 %v9240
        %v9282 = vfloor.f32 %v9241
        %v9283 = vfloor.f32 %v9242
        %v9284 = vfloor.f32 %v9243
        %v9285 = vfloor.f32 %v9244
        %v9286 = vfloor.f32 %v9245
        %v9287 = vfloor.f32 %v9246
        %v9288 = vfloor.f32 %v9247
        %v9289 = vfloor.f32 %v9248
        %v9290 = vfloor.f32 %v9249
        %v9291 = vfloor.f32 %v9250
        %v9292 = vfloor.f32 %v9251
        %v9293 = vfloor.f32 %v9252
        %v9294 = vfloor.f32 %v9253
        %v9295 = vfloor.f32 %v9254
        %v9296 = vfloor.f32 %v9255
        %v9297 = vmul.f32 %v9256, 18.0
        %v9298 = vmul.f32 %v9257, 18.0
        %v9299 = vmul.f32 %v9258, 18.0
        %v9300 = vmul.f32 %v9259, 18.0
        %v9301 = vmul.f32 %v9260, 18.0
        %v9302 = vmul.f32 %v9261, 18.0
        %v9303 = vmul.f32 %v9262, 18.0
        %v9304 = vmul.f32 %v9263, 18.0
        %v9305 = vmul.f32 %v9264, 18.0
        %v9306 = vmul.f32 %v9265, 18.0
        %v9307 = vmul.f32 %v9266, 18.0
        %v9308 = vmul.f32 %v9267, 18.0
        %v9309 = vmul.f32 %v9268, 18.0
        %v9310 = vmul.f32 %v9269, 18.0
        %v9311 = vmul.f32 %v9270, 18.0
        %v9312 = vmul.f32 %v9271, 18.0
        %v9313 = vmul.f32 %v9272, 18.0
        %v9314 = vmul.f32 %v9273, 18.0
        %v9315 = vmul.f32 %v9274, 18.0
        %v9316 = vmul.f32 %v9275, 18.0
        %v9317 = vmul.f32 %v9276, 18.0
        %v9318 = vmul.f32 %v9277, 18.0
        %v9319 = vmul.f32 %v9278, 18.0
        %v9320 = vmul.f32 %v9279, 18.0
        %v9321 = vmul.f32 %v9280, 18.0
        %v9322 = vmul.f32 %v9281, 18.0
        %v9323 = vmul.f32 %v9282, 18.0
        %v9324 = vmul.f32 %v9283, 18.0
        %v9325 = vmul.f32 %v9284, 18.0
        %v9326 = vmul.f32 %v9285, 18.0
        %v9327 = vmul.f32 %v9286, 18.0
        %v9328 = vmul.f32 %v9287, 18.0
        %v9329 = vmul.f32 %v9288, 18.0
        %v9330 = vmul.f32 %v9289, 18.0
        %v9331 = vmul.f32 %v9290, 18.0
        %v9332 = vmul.f32 %v9291, 18.0
        %v9333 = vmul.f32 %v9292, 18.0
        %v9334 = vmul.f32 %v9293, 18.0
        %v9335 = vmul.f32 %v9294, 18.0
        %v9336 = vmul.f32 %v9295, 18.0
        %v9337 = vmul.f32 %v9296, 18.0
        %v9338 = vsub.f32 %v9133, %v9297
        %v9339 = vsub.f32 %v9134, %v9298
        %v9340 = vsub.f32 %v9135, %v9299
        %v9341 = vsub.f32 %v9136, %v9300
        %v9342 = vsub.f32 %v9137, %v9301
        %v9343 = vsub.f32 %v9138, %v9302
        %v9344 = vsub.f32 %v9139, %v9303
        %v9345 = vsub.f32 %v9140, %v9304
        %v9346 = vsub.f32 %v9141, %v9305
        %v9347 = vsub.f32 %v9142, %v9306
        %v9348 = vsub.f32 %v9143, %v9307
        %v9349 = vsub.f32 %v9144, %v9308
        %v9350 = vsub.f32 %v9145, %v9309
        %v9351 = vsub.f32 %v9146, %v9310
        %v9352 = vsub.f32 %v9147, %v9311
        %v9353 = vsub.f32 %v9148, %v9312
        %v9354 = vsub.f32 %v9149, %v9313
        %v9355 = vsub.f32 %v9150, %v9314
        %v9356 = vsub.f32 %v9151, %v9315
        %v9357 = vsub.f32 %v9152, %v9316
        %v9358 = vsub.f32 %v9153, %v9317
        %v9359 = vsub.f32 %v9154, %v9318
        %v9360 = vsub.f32 %v9155, %v9319
        %v9361 = vsub.f32 %v9156, %v9320
        %v9362 = vsub.f32 %v9157, %v9321
        %v9363 = vsub.f32 %v9158, %v9322
        %v9364 = vsub.f32 %v9159, %v9323
        %v9365 = vsub.f32 %v9160, %v9324
        %v9366 = vsub.f32 %v9161, %v9325
        %v9367 = vsub.f32 %v9162, %v9326
        %v9368 = vsub.f32 %v9163, %v9327
        %v9369 = vsub.f32 %v9164, %v9328
        %v9370 = vsub.f32 %v9165, %v9329
        %v9371 = vsub.f32 %v9166, %v9330
        %v9372 = vsub.f32 %v9167, %v9331
        %v9373 = vsub.f32 %v9168, %v9332
        %v9374 = vsub.f32 %v9169, %v9333
        %v9375 = vsub.f32 %v9170, %v9334
        %v9376 = vsub.f32 %v9171, %v9335
        %v9377 = vsub.f32 %v9172, %v9336
        %v9378 = vsub.f32 %v9173, %v9337
        %vm9379 = vcmp.ge.f32.partialorder %v9256, 1.0
        %vm9380 = vcmp.ge.f32.partialorder %v9257, 1.0
        %vm9381 = vcmp.ge.f32.partialorder %v9258, 1.0
        %vm9382 = vcmp.ge.f32.partialorder %v9259, 1.0
        %vm9383 = vcmp.ge.f32.partialorder %v9260, 1.0
        %vm9384 = vcmp.ge.f32.partialorder %v9261, 1.0
        %vm9385 = vcmp.ge.f32.partialorder %v9262, 1.0
        %vm9386 = vcmp.ge.f32.partialorder %v9263, 1.0
        %vm9387 = vcmp.ge.f32.partialorder %v9264, 1.0
        %vm9388 = vcmp.ge.f32.partialorder %v9265, 1.0
        %vm9389 = vcmp.ge.f32.partialorder %v9266, 1.0
        %vm9390 = vcmp.ge.f32.partialorder %v9267, 1.0
        %vm9391 = vcmp.ge.f32.partialorder %v9268, 1.0
        %vm9392 = vcmp.ge.f32.partialorder %v9269, 1.0
        %vm9393 = vcmp.ge.f32.partialorder %v9270, 1.0
        %vm9394 = vcmp.ge.f32.partialorder %v9271, 1.0
        %vm9395 = vcmp.ge.f32.partialorder %v9272, 1.0
        %vm9396 = vcmp.ge.f32.partialorder %v9273, 1.0
        %vm9397 = vcmp.ge.f32.partialorder %v9274, 1.0
        %vm9398 = vcmp.ge.f32.partialorder %v9275, 1.0
        %vm9399 = vcmp.ge.f32.partialorder %v9276, 1.0
        %vm9400 = vcmp.ge.f32.partialorder %v9277, 1.0
        %vm9401 = vcmp.ge.f32.partialorder %v9278, 1.0
        %vm9402 = vcmp.ge.f32.partialorder %v9279, 1.0
        %vm9403 = vcmp.ge.f32.partialorder %v9280, 1.0
        %vm9404 = vcmp.ge.f32.partialorder %v9281, 1.0
        %vm9405 = vcmp.ge.f32.partialorder %v9282, 1.0
        %vm9406 = vcmp.ge.f32.partialorder %v9283, 1.0
        %vm9407 = vcmp.ge.f32.partialorder %v9284, 1.0
        %vm9408 = vcmp.ge.f32.partialorder %v9285, 1.0
        %vm9409 = vcmp.ge.f32.partialorder %v9286, 1.0
        %vm9410 = vcmp.ge.f32.partialorder %v9287, 1.0
        %vm9411 = vcmp.ge.f32.partialorder %v9288, 1.0
        %vm9412 = vcmp.ge.f32.partialorder %v9289, 1.0
        %vm9413 = vcmp.ge.f32.partialorder %v9290, 1.0
        %vm9414 = vcmp.ge.f32.partialorder %v9291, 1.0
        %vm9415 = vcmp.ge.f32.partialorder %v9292, 1.0
        %vm9416 = vcmp.ge.f32.partialorder %v9293, 1.0
        %vm9417 = vcmp.ge.f32.partialorder %v9294, 1.0
        %vm9418 = vcmp.ge.f32.partialorder %v9295, 1.0
        %vm9419 = vcmp.ge.f32.partialorder %v9296, 1.0
        %vm9420 = vcmp.le.f32.partialorder %v9256, 16.0
        %vm9421 = vcmp.le.f32.partialorder %v9257, 16.0
        %vm9422 = vcmp.le.f32.partialorder %v9258, 16.0
        %vm9423 = vcmp.le.f32.partialorder %v9259, 16.0
        %vm9424 = vcmp.le.f32.partialorder %v9260, 16.0
        %vm9425 = vcmp.le.f32.partialorder %v9261, 16.0
        %vm9426 = vcmp.le.f32.partialorder %v9262, 16.0
        %vm9427 = vcmp.le.f32.partialorder %v9263, 16.0
        %vm9428 = vcmp.le.f32.partialorder %v9264, 16.0
        %vm9429 = vcmp.le.f32.partialorder %v9265, 16.0
        %vm9430 = vcmp.le.f32.partialorder %v9266, 16.0
        %vm9431 = vcmp.le.f32.partialorder %v9267, 16.0
        %vm9432 = vcmp.le.f32.partialorder %v9268, 16.0
        %vm9433 = vcmp.le.f32.partialorder %v9269, 16.0
        %vm9434 = vcmp.le.f32.partialorder %v9270, 16.0
        %vm9435 = vcmp.le.f32.partialorder %v9271, 16.0
        %vm9436 = vcmp.le.f32.partialorder %v9272, 16.0
        %vm9437 = vcmp.le.f32.partialorder %v9273, 16.0
        %vm9438 = vcmp.le.f32.partialorder %v9274, 16.0
        %vm9439 = vcmp.le.f32.partialorder %v9275, 16.0
        %vm9440 = vcmp.le.f32.partialorder %v9276, 16.0
        %vm9441 = vcmp.le.f32.partialorder %v9277, 16.0
        %vm9442 = vcmp.le.f32.partialorder %v9278, 16.0
        %vm9443 = vcmp.le.f32.partialorder %v9279, 16.0
        %vm9444 = vcmp.le.f32.partialorder %v9280, 16.0
        %vm9445 = vcmp.le.f32.partialorder %v9281, 16.0
        %vm9446 = vcmp.le.f32.partialorder %v9282, 16.0
        %vm9447 = vcmp.le.f32.partialorder %v9283, 16.0
        %vm9448 = vcmp.le.f32.partialorder %v9284, 16.0
        %vm9449 = vcmp.le.f32.partialorder %v9285, 16.0
        %vm9450 = vcmp.le.f32.partialorder %v9286, 16.0
        %vm9451 = vcmp.le.f32.partialorder %v9287, 16.0
        %vm9452 = vcmp.le.f32.partialorder %v9288, 16.0
        %vm9453 = vcmp.le.f32.partialorder %v9289, 16.0
        %vm9454 = vcmp.le.f32.partialorder %v9290, 16.0
        %vm9455 = vcmp.le.f32.partialorder %v9291, 16.0
        %vm9456 = vcmp.le.f32.partialorder %v9292, 16.0
        %vm9457 = vcmp.le.f32.partialorder %v9293, 16.0
        %vm9458 = vcmp.le.f32.partialorder %v9294, 16.0
        %vm9459 = vcmp.le.f32.partialorder %v9295, 16.0
        %vm9460 = vcmp.le.f32.partialorder %v9296, 16.0
        %vm9461 = vmand %vm9379, %vm9420
        %vm9462 = vmand %vm9380, %vm9421
        %vm9463 = vmand %vm9381, %vm9422
        %vm9464 = vmand %vm9382, %vm9423
        %vm9465 = vmand %vm9383, %vm9424
        %vm9466 = vmand %vm9384, %vm9425
        %vm9467 = vmand %vm9385, %vm9426
        %vm9468 = vmand %vm9386, %vm9427
        %vm9469 = vmand %vm9387, %vm9428
        %vm9470 = vmand %vm9388, %vm9429
        %vm9471 = vmand %vm9389, %vm9430
        %vm9472 = vmand %vm9390, %vm9431
        %vm9473 = vmand %vm9391, %vm9432
        %vm9474 = vmand %vm9392, %vm9433
        %vm9475 = vmand %vm9393, %vm9434
        %vm9476 = vmand %vm9394, %vm9435
        %vm9477 = vmand %vm9395, %vm9436
        %vm9478 = vmand %vm9396, %vm9437
        %vm9479 = vmand %vm9397, %vm9438
        %vm9480 = vmand %vm9398, %vm9439
        %vm9481 = vmand %vm9399, %vm9440
        %vm9482 = vmand %vm9400, %vm9441
        %vm9483 = vmand %vm9401, %vm9442
        %vm9484 = vmand %vm9402, %vm9443
        %vm9485 = vmand %vm9403, %vm9444
        %vm9486 = vmand %vm9404, %vm9445
        %vm9487 = vmand %vm9405, %vm9446
        %vm9488 = vmand %vm9406, %vm9447
        %vm9489 = vmand %vm9407, %vm9448
        %vm9490 = vmand %vm9408, %vm9449
        %vm9491 = vmand %vm9409, %vm9450
        %vm9492 = vmand %vm9410, %vm9451
        %vm9493 = vmand %vm9411, %vm9452
        %vm9494 = vmand %vm9412, %vm9453
        %vm9495 = vmand %vm9413, %vm9454
        %vm9496 = vmand %vm9414, %vm9455
        %vm9497 = vmand %vm9415, %vm9456
        %vm9498 = vmand %vm9416, %vm9457
        %vm9499 = vmand %vm9417, %vm9458
        %vm9500 = vmand %vm9418, %vm9459
        %vm9501 = vmand %vm9419, %vm9460
        %vm9502 = vcmp.ge.f32.partialorder %v9338, 1.0
        %vm9503 = vcmp.ge.f32.partialorder %v9339, 1.0
        %vm9504 = vcmp.ge.f32.partialorder %v9340, 1.0
        %vm9505 = vcmp.ge.f32.partialorder %v9341, 1.0
        %vm9506 = vcmp.ge.f32.partialorder %v9342, 1.0
        %vm9507 = vcmp.ge.f32.partialorder %v9343, 1.0
        %vm9508 = vcmp.ge.f32.partialorder %v9344, 1.0
        %vm9509 = vcmp.ge.f32.partialorder %v9345, 1.0
        %vm9510 = vcmp.ge.f32.partialorder %v9346, 1.0
        %vm9511 = vcmp.ge.f32.partialorder %v9347, 1.0
        %vm9512 = vcmp.ge.f32.partialorder %v9348, 1.0
        %vm9513 = vcmp.ge.f32.partialorder %v9349, 1.0
        %vm9514 = vcmp.ge.f32.partialorder %v9350, 1.0
        %vm9515 = vcmp.ge.f32.partialorder %v9351, 1.0
        %vm9516 = vcmp.ge.f32.partialorder %v9352, 1.0
        %vm9517 = vcmp.ge.f32.partialorder %v9353, 1.0
        %vm9518 = vcmp.ge.f32.partialorder %v9354, 1.0
        %vm9519 = vcmp.ge.f32.partialorder %v9355, 1.0
        %vm9520 = vcmp.ge.f32.partialorder %v9356, 1.0
        %vm9521 = vcmp.ge.f32.partialorder %v9357, 1.0
        %vm9522 = vcmp.ge.f32.partialorder %v9358, 1.0
        %vm9523 = vcmp.ge.f32.partialorder %v9359, 1.0
        %vm9524 = vcmp.ge.f32.partialorder %v9360, 1.0
        %vm9525 = vcmp.ge.f32.partialorder %v9361, 1.0
        %vm9526 = vcmp.ge.f32.partialorder %v9362, 1.0
        %vm9527 = vcmp.ge.f32.partialorder %v9363, 1.0
        %vm9528 = vcmp.ge.f32.partialorder %v9364, 1.0
        %vm9529 = vcmp.ge.f32.partialorder %v9365, 1.0
        %vm9530 = vcmp.ge.f32.partialorder %v9366, 1.0
        %vm9531 = vcmp.ge.f32.partialorder %v9367, 1.0
        %vm9532 = vcmp.ge.f32.partialorder %v9368, 1.0
        %vm9533 = vcmp.ge.f32.partialorder %v9369, 1.0
        %vm9534 = vcmp.ge.f32.partialorder %v9370, 1.0
        %vm9535 = vcmp.ge.f32.partialorder %v9371, 1.0
        %vm9536 = vcmp.ge.f32.partialorder %v9372, 1.0
        %vm9537 = vcmp.ge.f32.partialorder %v9373, 1.0
        %vm9538 = vcmp.ge.f32.partialorder %v9374, 1.0
        %vm9539 = vcmp.ge.f32.partialorder %v9375, 1.0
        %vm9540 = vcmp.ge.f32.partialorder %v9376, 1.0
        %vm9541 = vcmp.ge.f32.partialorder %v9377, 1.0
        %vm9542 = vcmp.ge.f32.partialorder %v9378, 1.0
        %vm9543 = vmand %vm9461, %vm9502
        %vm9544 = vmand %vm9462, %vm9503
        %vm9545 = vmand %vm9463, %vm9504
        %vm9546 = vmand %vm9464, %vm9505
        %vm9547 = vmand %vm9465, %vm9506
        %vm9548 = vmand %vm9466, %vm9507
        %vm9549 = vmand %vm9467, %vm9508
        %vm9550 = vmand %vm9468, %vm9509
        %vm9551 = vmand %vm9469, %vm9510
        %vm9552 = vmand %vm9470, %vm9511
        %vm9553 = vmand %vm9471, %vm9512
        %vm9554 = vmand %vm9472, %vm9513
        %vm9555 = vmand %vm9473, %vm9514
        %vm9556 = vmand %vm9474, %vm9515
        %vm9557 = vmand %vm9475, %vm9516
        %vm9558 = vmand %vm9476, %vm9517
        %vm9559 = vmand %vm9477, %vm9518
        %vm9560 = vmand %vm9478, %vm9519
        %vm9561 = vmand %vm9479, %vm9520
        %vm9562 = vmand %vm9480, %vm9521
        %vm9563 = vmand %vm9481, %vm9522
        %vm9564 = vmand %vm9482, %vm9523
        %vm9565 = vmand %vm9483, %vm9524
        %vm9566 = vmand %vm9484, %vm9525
        %vm9567 = vmand %vm9485, %vm9526
        %vm9568 = vmand %vm9486, %vm9527
        %vm9569 = vmand %vm9487, %vm9528
        %vm9570 = vmand %vm9488, %vm9529
        %vm9571 = vmand %vm9489, %vm9530
        %vm9572 = vmand %vm9490, %vm9531
        %vm9573 = vmand %vm9491, %vm9532
        %vm9574 = vmand %vm9492, %vm9533
        %vm9575 = vmand %vm9493, %vm9534
        %vm9576 = vmand %vm9494, %vm9535
        %vm9577 = vmand %vm9495, %vm9536
        %vm9578 = vmand %vm9496, %vm9537
        %vm9579 = vmand %vm9497, %vm9538
        %vm9580 = vmand %vm9498, %vm9539
        %vm9581 = vmand %vm9499, %vm9540
        %vm9582 = vmand %vm9500, %vm9541
        %vm9583 = vmand %vm9501, %vm9542
        %vm9584 = vcmp.le.f32.partialorder %v9338, 16.0
        %vm9585 = vcmp.le.f32.partialorder %v9339, 16.0
        %vm9586 = vcmp.le.f32.partialorder %v9340, 16.0
        %vm9587 = vcmp.le.f32.partialorder %v9341, 16.0
        %vm9588 = vcmp.le.f32.partialorder %v9342, 16.0
        %vm9589 = vcmp.le.f32.partialorder %v9343, 16.0
        %vm9590 = vcmp.le.f32.partialorder %v9344, 16.0
        %vm9591 = vcmp.le.f32.partialorder %v9345, 16.0
        %vm9592 = vcmp.le.f32.partialorder %v9346, 16.0
        %vm9593 = vcmp.le.f32.partialorder %v9347, 16.0
        %vm9594 = vcmp.le.f32.partialorder %v9348, 16.0
        %vm9595 = vcmp.le.f32.partialorder %v9349, 16.0
        %vm9596 = vcmp.le.f32.partialorder %v9350, 16.0
        %vm9597 = vcmp.le.f32.partialorder %v9351, 16.0
        %vm9598 = vcmp.le.f32.partialorder %v9352, 16.0
        %vm9599 = vcmp.le.f32.partialorder %v9353, 16.0
        %vm9600 = vcmp.le.f32.partialorder %v9354, 16.0
        %vm9601 = vcmp.le.f32.partialorder %v9355, 16.0
        %vm9602 = vcmp.le.f32.partialorder %v9356, 16.0
        %vm9603 = vcmp.le.f32.partialorder %v9357, 16.0
        %vm9604 = vcmp.le.f32.partialorder %v9358, 16.0
        %vm9605 = vcmp.le.f32.partialorder %v9359, 16.0
        %vm9606 = vcmp.le.f32.partialorder %v9360, 16.0
        %vm9607 = vcmp.le.f32.partialorder %v9361, 16.0
        %vm9608 = vcmp.le.f32.partialorder %v9362, 16.0
        %vm9609 = vcmp.le.f32.partialorder %v9363, 16.0
        %vm9610 = vcmp.le.f32.partialorder %v9364, 16.0
        %vm9611 = vcmp.le.f32.partialorder %v9365, 16.0
        %vm9612 = vcmp.le.f32.partialorder %v9366, 16.0
        %vm9613 = vcmp.le.f32.partialorder %v9367, 16.0
        %vm9614 = vcmp.le.f32.partialorder %v9368, 16.0
        %vm9615 = vcmp.le.f32.partialorder %v9369, 16.0
        %vm9616 = vcmp.le.f32.partialorder %v9370, 16.0
        %vm9617 = vcmp.le.f32.partialorder %v9371, 16.0
        %vm9618 = vcmp.le.f32.partialorder %v9372, 16.0
        %vm9619 = vcmp.le.f32.partialorder %v9373, 16.0
        %vm9620 = vcmp.le.f32.partialorder %v9374, 16.0
        %vm9621 = vcmp.le.f32.partialorder %v9375, 16.0
        %vm9622 = vcmp.le.f32.partialorder %v9376, 16.0
        %vm9623 = vcmp.le.f32.partialorder %v9377, 16.0
        %vm9624 = vcmp.le.f32.partialorder %v9378, 16.0
        %vm9625 = vmand %vm9543, %vm9584
        %vm9626 = vmand %vm9544, %vm9585
        %vm9627 = vmand %vm9545, %vm9586
        %vm9628 = vmand %vm9546, %vm9587
        %vm9629 = vmand %vm9547, %vm9588
        %vm9630 = vmand %vm9548, %vm9589
        %vm9631 = vmand %vm9549, %vm9590
        %vm9632 = vmand %vm9550, %vm9591
        %vm9633 = vmand %vm9551, %vm9592
        %vm9634 = vmand %vm9552, %vm9593
        %vm9635 = vmand %vm9553, %vm9594
        %vm9636 = vmand %vm9554, %vm9595
        %vm9637 = vmand %vm9555, %vm9596
        %vm9638 = vmand %vm9556, %vm9597
        %vm9639 = vmand %vm9557, %vm9598
        %vm9640 = vmand %vm9558, %vm9599
        %vm9641 = vmand %vm9559, %vm9600
        %vm9642 = vmand %vm9560, %vm9601
        %vm9643 = vmand %vm9561, %vm9602
        %vm9644 = vmand %vm9562, %vm9603
        %vm9645 = vmand %vm9563, %vm9604
        %vm9646 = vmand %vm9564, %vm9605
        %vm9647 = vmand %vm9565, %vm9606
        %vm9648 = vmand %vm9566, %vm9607
        %vm9649 = vmand %vm9567, %vm9608
        %vm9650 = vmand %vm9568, %vm9609
        %vm9651 = vmand %vm9569, %vm9610
        %vm9652 = vmand %vm9570, %vm9611
        %vm9653 = vmand %vm9571, %vm9612
        %vm9654 = vmand %vm9572, %vm9613
        %vm9655 = vmand %vm9573, %vm9614
        %vm9656 = vmand %vm9574, %vm9615
        %vm9657 = vmand %vm9575, %vm9616
        %vm9658 = vmand %vm9576, %vm9617
        %vm9659 = vmand %vm9577, %vm9618
        %vm9660 = vmand %vm9578, %vm9619
        %vm9661 = vmand %vm9579, %vm9620
        %vm9662 = vmand %vm9580, %vm9621
        %vm9663 = vmand %vm9581, %vm9622
        %vm9664 = vmand %vm9582, %vm9623
        %vm9665 = vmand %vm9583, %vm9624
        %v9666 = vsel %vm9625, 1, 0
        %v9667 = vsel %vm9626, 1, 0
        %v9668 = vsel %vm9627, 1, 0
        %v9669 = vsel %vm9628, 1, 0
        %v9670 = vsel %vm9629, 1, 0
        %v9671 = vsel %vm9630, 1, 0
        %v9672 = vsel %vm9631, 1, 0
        %v9673 = vsel %vm9632, 1, 0
        %v9674 = vsel %vm9633, 1, 0
        %v9675 = vsel %vm9634, 1, 0
        %v9676 = vsel %vm9635, 1, 0
        %v9677 = vsel %vm9636, 1, 0
        %v9678 = vsel %vm9637, 1, 0
        %v9679 = vsel %vm9638, 1, 0
        %v9680 = vsel %vm9639, 1, 0
        %v9681 = vsel %vm9640, 1, 0
        %v9682 = vsel %vm9641, 1, 0
        %v9683 = vsel %vm9642, 1, 0
        %v9684 = vsel %vm9643, 1, 0
        %v9685 = vsel %vm9644, 1, 0
        %v9686 = vsel %vm9645, 1, 0
        %v9687 = vsel %vm9646, 1, 0
        %v9688 = vsel %vm9647, 1, 0
        %v9689 = vsel %vm9648, 1, 0
        %v9690 = vsel %vm9649, 1, 0
        %v9691 = vsel %vm9650, 1, 0
        %v9692 = vsel %vm9651, 1, 0
        %v9693 = vsel %vm9652, 1, 0
        %v9694 = vsel %vm9653, 1, 0
        %v9695 = vsel %vm9654, 1, 0
        %v9696 = vsel %vm9655, 1, 0
        %v9697 = vsel %vm9656, 1, 0
        %v9698 = vsel %vm9657, 1, 0
        %v9699 = vsel %vm9658, 1, 0
        %v9700 = vsel %vm9659, 1, 0
        %v9701 = vsel %vm9660, 1, 0
        %v9702 = vsel %vm9661, 1, 0
        %v9703 = vsel %vm9662, 1, 0
        %v9704 = vsel %vm9663, 1, 0
        %v9705 = vsel %vm9664, 1, 0
        %v9706 = vsel %vm9665, 1, 0
        %v9707 = vcvt.s32.f32 %v9666
        %v9708 = vcvt.s32.f32 %v9667
        %v9709 = vcvt.s32.f32 %v9668
        %v9710 = vcvt.s32.f32 %v9669
        %v9711 = vcvt.s32.f32 %v9670
        %v9712 = vcvt.s32.f32 %v9671
        %v9713 = vcvt.s32.f32 %v9672
        %v9714 = vcvt.s32.f32 %v9673
        %v9715 = vcvt.s32.f32 %v9674
        %v9716 = vcvt.s32.f32 %v9675
        %v9717 = vcvt.s32.f32 %v9676
        %v9718 = vcvt.s32.f32 %v9677
        %v9719 = vcvt.s32.f32 %v9678
        %v9720 = vcvt.s32.f32 %v9679
        %v9721 = vcvt.s32.f32 %v9680
        %v9722 = vcvt.s32.f32 %v9681
        %v9723 = vcvt.s32.f32 %v9682
        %v9724 = vcvt.s32.f32 %v9683
        %v9725 = vcvt.s32.f32 %v9684
        %v9726 = vcvt.s32.f32 %v9685
        %v9727 = vcvt.s32.f32 %v9686
        %v9728 = vcvt.s32.f32 %v9687
        %v9729 = vcvt.s32.f32 %v9688
        %v9730 = vcvt.s32.f32 %v9689
        %v9731 = vcvt.s32.f32 %v9690
        %v9732 = vcvt.s32.f32 %v9691
        %v9733 = vcvt.s32.f32 %v9692
        %v9734 = vcvt.s32.f32 %v9693
        %v9735 = vcvt.s32.f32 %v9694
        %v9736 = vcvt.s32.f32 %v9695
        %v9737 = vcvt.s32.f32 %v9696
        %v9738 = vcvt.s32.f32 %v9697
        %v9739 = vcvt.s32.f32 %v9698
        %v9740 = vcvt.s32.f32 %v9699
        %v9741 = vcvt.s32.f32 %v9700
        %v9742 = vcvt.s32.f32 %v9701
        %v9743 = vcvt.s32.f32 %v9702
        %v9744 = vcvt.s32.f32 %v9703
        %v9745 = vcvt.s32.f32 %v9704
        %v9746 = vcvt.s32.f32 %v9705
        %v9747 = vcvt.s32.f32 %v9706
        %v9748 = vmul.f32 %v9092, %v9707
        %v9749 = vmul.f32 %v9093, %v9708
        %v9750 = vmul.f32 %v9094, %v9709
        %v9751 = vmul.f32 %v9095, %v9710
        %v9752 = vmul.f32 %v9096, %v9711
        %v9753 = vmul.f32 %v9097, %v9712
        %v9754 = vmul.f32 %v9098, %v9713
        %v9755 = vmul.f32 %v9099, %v9714
        %v9756 = vmul.f32 %v9100, %v9715
        %v9757 = vmul.f32 %v9101, %v9716
        %v9758 = vmul.f32 %v9102, %v9717
        %v9759 = vmul.f32 %v9103, %v9718
        %v9760 = vmul.f32 %v9104, %v9719
        %v9761 = vmul.f32 %v9105, %v9720
        %v9762 = vmul.f32 %v9106, %v9721
        %v9763 = vmul.f32 %v9107, %v9722
        %v9764 = vmul.f32 %v9108, %v9723
        %v9765 = vmul.f32 %v9109, %v9724
        %v9766 = vmul.f32 %v9110, %v9725
        %v9767 = vmul.f32 %v9111, %v9726
        %v9768 = vmul.f32 %v9112, %v9727
        %v9769 = vmul.f32 %v9113, %v9728
        %v9770 = vmul.f32 %v9114, %v9729
        %v9771 = vmul.f32 %v9115, %v9730
        %v9772 = vmul.f32 %v9116, %v9731
        %v9773 = vmul.f32 %v9117, %v9732
        %v9774 = vmul.f32 %v9118, %v9733
        %v9775 = vmul.f32 %v9119, %v9734
        %v9776 = vmul.f32 %v9120, %v9735
        %v9777 = vmul.f32 %v9121, %v9736
        %v9778 = vmul.f32 %v9122, %v9737
        %v9779 = vmul.f32 %v9123, %v9738
        %v9780 = vmul.f32 %v9124, %v9739
        %v9781 = vmul.f32 %v9125, %v9740
        %v9782 = vmul.f32 %v9126, %v9741
        %v9783 = vmul.f32 %v9127, %v9742
        %v9784 = vmul.f32 %v9128, %v9743
        %v9785 = vmul.f32 %v9129, %v9744
        %v9786 = vmul.f32 %v9130, %v9745
        %v9787 = vmul.f32 %v9131, %v9746
        %v9788 = vmul.f32 %v9132, %v9747
        %v9789 = vadd.f32 %v9748, %v9749
        %v9790 = vadd.f32 %v9789, %v9750
        %v9791 = vadd.f32 %v9790, %v9751
        %v9792 = vadd.f32 %v9791, %v9752
        %v9793 = vadd.f32 %v9792, %v9753
        %v9794 = vadd.f32 %v9793, %v9754
        %v9795 = vadd.f32 %v9794, %v9755
        %v9796 = vadd.f32 %v9795, %v9756
        %v9797 = vadd.f32 %v9796, %v9757
        %v9798 = vadd.f32 %v9797, %v9758
        %v9799 = vadd.f32 %v9798, %v9759
        %v9800 = vadd.f32 %v9799, %v9760
        %v9801 = vadd.f32 %v9800, %v9761
        %v9802 = vadd.f32 %v9801, %v9762
        %v9803 = vadd.f32 %v9802, %v9763
        %v9804 = vadd.f32 %v9803, %v9764
        %v9805 = vadd.f32 %v9804, %v9765
        %v9806 = vadd.f32 %v9805, %v9766
        %v9807 = vadd.f32 %v9806, %v9767
        %v9808 = vadd.f32 %v9807, %v9768
        %v9809 = vadd.f32 %v9808, %v9769
        %v9810 = vadd.f32 %v9809, %v9770
        %v9811 = vadd.f32 %v9810, %v9771
        %v9812 = vadd.f32 %v9811, %v9772
        %v9813 = vadd.f32 %v9812, %v9773
        %v9814 = vadd.f32 %v9813, %v9774
        %v9815 = vadd.f32 %v9814, %v9775
        %v9816 = vadd.f32 %v9815, %v9776
        %v9817 = vadd.f32 %v9816, %v9777
        %v9818 = vadd.f32 %v9817, %v9778
        %v9819 = vadd.f32 %v9818, %v9779
        %v9820 = vadd.f32 %v9819, %v9780
        %v9821 = vadd.f32 %v9820, %v9781
        %v9822 = vadd.f32 %v9821, %v9782
        %v9823 = vadd.f32 %v9822, %v9783
        %v9824 = vadd.f32 %v9823, %v9784
        %v9825 = vadd.f32 %v9824, %v9785
        %v9826 = vadd.f32 %v9825, %v9786
        %v9827 = vadd.f32 %v9826, %v9787
        %v9828 = vadd.f32 %v9827, %v9788
        %v9829 = vrot.slane %v9828, 4
        %v9830 = vadd.f32 %v9828, %v9829
        %v9831 = vrot.slane %v9830, 2
        %v9832 = vadd.f32 %v9830, %v9831
        %v9833 = vrot.slane %v9832, 1
        %v9834 = vadd.f32 %v9832, %v9833
        %v9835 = vmul.f32 %v9834, 0.00390625
        %v9836 = vpack.c.bf16 %v9835, %v9835
        %v9837 = vld [vmem:[#allocation8] sm:$0xf]
        %v9838 = vld [vmem:[#allocation8 + $0x4] sm:$0xf]
        %v9839 = vld [vmem:[#allocation8 + $0x8] sm:$0xf]
        %v9840 = vld [vmem:[#allocation8 + $0xc] sm:$0xf]
        %v9841 = vld [vmem:[#allocation8 + $0x10] sm:$0xf]
        %v9842 = vld [vmem:[#allocation8 + $0x14] sm:$0xf]
        %v9843 = vld [vmem:[#allocation8 + $0x18] sm:$0xf]
        %v9844 = vld [vmem:[#allocation8 + $0x1c] sm:$0xf]
        %v9845 = vld [vmem:[#allocation8 + $0x20] sm:$0xf]
        %v9846 = vld [vmem:[#allocation8 + $0x24] sm:$0xf]
        %v9847 = vld [vmem:[#allocation8 + $0x28] sm:$0xf]
        %v9848 = vld [vmem:[#allocation8 + $0x2c] sm:$0xf]
        %v9849 = vld [vmem:[#allocation8 + $0x30] sm:$0xf]
        %v9850 = vld [vmem:[#allocation8 + $0x34] sm:$0xf]
        %v9851 = vld [vmem:[#allocation8 + $0x38] sm:$0xf]
        %v9852 = vld [vmem:[#allocation8 + $0x3c] sm:$0xf]
        %v9869 = vunpack.c.l.b16 %v9837
        %v9870 = vunpack.c.l.b16 %v9838
        %v9871 = vunpack.c.l.b16 %v9839
        %v9872 = vunpack.c.l.b16 %v9840
        %v9873 = vunpack.c.l.b16 %v9841
        %v9874 = vunpack.c.l.b16 %v9842
        %v9875 = vunpack.c.l.b16 %v9843
        %v9876 = vunpack.c.l.b16 %v9844
        %v9877 = vunpack.c.l.b16 %v9845
        %v9878 = vunpack.c.l.b16 %v9846
        %v9879 = vunpack.c.l.b16 %v9847
        %v9880 = vunpack.c.l.b16 %v9848
        %v9881 = vunpack.c.l.b16 %v9849
        %v9882 = vunpack.c.l.b16 %v9850
        %v9883 = vunpack.c.l.b16 %v9851
        %v9884 = vunpack.c.l.b16 %v9852
        %v9885 = vpack.c.b16 %v9870, %v9869
        %v9886 = vpack.c.b16 %v9872, %v9871
        %v9887 = vpack.c.b16 %v9874, %v9873
        %v9888 = vpack.c.b16 %v9876, %v9875
        %v9889 = vpack.c.b16 %v9878, %v9877
        %v9890 = vpack.c.b16 %v9880, %v9879
        %v9891 = vpack.c.b16 %v9882, %v9881
        %v9892 = vpack.c.b16 %v9884, %v9883
        %9901 = vmatprep.subr.bf16.mxu0 0
        %9902 = vmatpush1.bf16.msra.mxu0 %v9885
        %9903 = vmatprep.subr.bf16.mxu0 0
        %9904 = vmatpush1.bf16.msra.mxu0 %v9886
        %9905 = vmatprep.subr.bf16.mxu0 0
        %9906 = vmatpush1.bf16.msra.mxu0 %v9887
        %9907 = vmatprep.subr.bf16.mxu0 0
        %9908 = vmatpush1.bf16.msra.mxu0 %v9888
        %9909 = vmatprep.subr.bf16.mxu0 0
        %9910 = vmatpush1.bf16.msra.mxu0 %v9889
        %9911 = vmatprep.subr.bf16.mxu0 0
        %9912 = vmatpush1.bf16.msra.mxu0 %v9890
        %9913 = vmatprep.subr.bf16.mxu0 0
        %9914 = vmatpush1.bf16.msra.mxu0 %v9891
        %9915 = vmatprep.subr.bf16.mxu0 0
        %9916 = vmatpush1.bf16.msra.mxu0 %v9892
        %9917 = vmatprep.subr.bf16.mxu0 0
        %9918 = vmatpush1.bf16.msra.mxu0 0
        %9919 = vmatprep.subr.bf16.mxu0 0
        %9920 = vmatpush1.bf16.msra.mxu0 0
        %9921 = vmatprep.subr.bf16.mxu0 0
        %9922 = vmatpush1.bf16.msra.mxu0 0
        %9923 = vmatprep.subr.bf16.mxu0 0
        %9924 = vmatpush1.bf16.msra.mxu0 0
        %9925 = vmatprep.subr.bf16.mxu0 0
        %9926 = vmatpush1.bf16.msra.mxu0 0
        %9927 = vmatprep.subr.bf16.mxu0 0
        %9928 = vmatpush1.bf16.msra.mxu0 0
        %9929 = vmatprep.subr.bf16.mxu0 0
        %9930 = vmatpush1.bf16.msra.mxu0 0
        %9931 = vmatprep.subr.bf16.mxu0 0
        %9932 = vmatpush1.bf16.msra.mxu0 0
        %9933 = vmatprep.mubr.bf16.mxu0 0
        %9934 = vmatmul.mubr.bf16.gmra.mrb[0].mxu0 %v9836
        %v9935 = vpop.f32.mrb[0].mxu0
        %v9936 = vadd.f32 0.0, %v9935
        %v9937 = vpop.f32.mrb[0].mxu0
        %v9938 = vpop.f32.mrb[0].mxu0
        %v9939 = vpop.f32.mrb[0].mxu0
        %9940 = vdwg.mxu0
        %v9941 = vpack.c.bf16 %v9936, %v9936
        %v9942 = vld [vmem:[#allocation10] sm:$0xf]
        %v9943 = vld [vmem:[#allocation10 + $0x4] sm:$0xf]
        %v9944 = vld [vmem:[#allocation10 + $0x8] sm:$0xf]
        %v9945 = vld [vmem:[#allocation10 + $0xc] sm:$0xf]
        %v9946 = vld [vmem:[#allocation10 + $0x10] sm:$0xf]
        %v9947 = vld [vmem:[#allocation10 + $0x14] sm:$0xf]
        %v9948 = vld [vmem:[#allocation10 + $0x18] sm:$0xf]
        %v9949 = vld [vmem:[#allocation10 + $0x1c] sm:$0xf]
        %v9950 = vld [vmem:[#allocation10 + $0x20] sm:$0xf]
        %v9951 = vld [vmem:[#allocation10 + $0x24] sm:$0xf]
        %v9952 = vld [vmem:[#allocation10 + $0x28] sm:$0xf]
        %v9953 = vld [vmem:[#allocation10 + $0x2c] sm:$0xf]
        %v9954 = vld [vmem:[#allocation10 + $0x30] sm:$0xf]
        %v9955 = vld [vmem:[#allocation10 + $0x34] sm:$0xf]
        %v9956 = vld [vmem:[#allocation10 + $0x38] sm:$0xf]
        %v9957 = vld [vmem:[#allocation10 + $0x3c] sm:$0xf]
        %v9974 = vunpack.c.l.b16 %v9942
        %v9975 = vunpack.c.l.b16 %v9943
        %v9976 = vunpack.c.l.b16 %v9944
        %v9977 = vunpack.c.l.b16 %v9945
        %v9978 = vunpack.c.l.b16 %v9946
        %v9979 = vunpack.c.l.b16 %v9947
        %v9980 = vunpack.c.l.b16 %v9948
        %v9981 = vunpack.c.l.b16 %v9949
        %v9982 = vunpack.c.l.b16 %v9950
        %v9983 = vunpack.c.l.b16 %v9951
        %v9984 = vunpack.c.l.b16 %v9952
        %v9985 = vunpack.c.l.b16 %v9953
        %v9986 = vunpack.c.l.b16 %v9954
        %v9987 = vunpack.c.l.b16 %v9955
        %v9988 = vunpack.c.l.b16 %v9956
        %v9989 = vunpack.c.l.b16 %v9957
        %v9990 = vpack.c.b16 %v9975, %v9974
        %v9991 = vpack.c.b16 %v9977, %v9976
        %v9992 = vpack.c.b16 %v9979, %v9978
        %v9993 = vpack.c.b16 %v9981, %v9980
        %v9994 = vpack.c.b16 %v9983, %v9982
        %v9995 = vpack.c.b16 %v9985, %v9984
        %v9996 = vpack.c.b16 %v9987, %v9986
        %v9997 = vpack.c.b16 %v9989, %v9988
        %10006 = vmatprep.subr.bf16.mxu0 0
        %10007 = vmatpush1.bf16.msra.mxu0 %v9990
        %10008 = vmatprep.subr.bf16.mxu0 0
        %10009 = vmatpush1.bf16.msra.mxu0 %v9991
        %10010 = vmatprep.subr.bf16.mxu0 0
        %10011 = vmatpush1.bf16.msra.mxu0 %v9992
        %10012 = vmatprep.subr.bf16.mxu0 0
        %10013 = vmatpush1.bf16.msra.mxu0 %v9993
        %10014 = vmatprep.subr.bf16.mxu0 0
        %10015 = vmatpush1.bf16.msra.mxu0 %v9994
        %10016 = vmatprep.subr.bf16.mxu0 0
        %10017 = vmatpush1.bf16.msra.mxu0 %v9995
        %10018 = vmatprep.subr.bf16.mxu0 0
        %10019 = vmatpush1.bf16.msra.mxu0 %v9996
        %10020 = vmatprep.subr.bf16.mxu0 0
        %10021 = vmatpush1.bf16.msra.mxu0 %v9997
        %10022 = vmatprep.subr.bf16.mxu0 0
        %10023 = vmatpush1.bf16.msra.mxu0 0
        %10024 = vmatprep.subr.bf16.mxu0 0
        %10025 = vmatpush1.bf16.msra.mxu0 0
        %10026 = vmatprep.subr.bf16.mxu0 0
        %10027 = vmatpush1.bf16.msra.mxu0 0
        %10028 = vmatprep.subr.bf16.mxu0 0
        %10029 = vmatpush1.bf16.msra.mxu0 0
        %10030 = vmatprep.subr.bf16.mxu0 0
        %10031 = vmatpush1.bf16.msra.mxu0 0
        %10032 = vmatprep.subr.bf16.mxu0 0
        %10033 = vmatpush1.bf16.msra.mxu0 0
        %10034 = vmatprep.subr.bf16.mxu0 0
        %10035 = vmatpush1.bf16.msra.mxu0 0
        %10036 = vmatprep.subr.bf16.mxu0 0
        %10037 = vmatpush1.bf16.msra.mxu0 0
        %10038 = vmatprep.mubr.bf16.mxu0 0
        %10039 = vmatmul.mubr.bf16.gmra.mrb[0].mxu0 %v9941
        %v10040 = vpop.f32.mrb[0].mxu0
        %v10041 = vadd.f32 0.0, %v10040
        %v10042 = vpop.f32.mrb[0].mxu0
        %v10043 = vpop.f32.mrb[0].mxu0
        %v10044 = vpop.f32.mrb[0].mxu0
        %10045 = vdwg.mxu0
        %v10046 = vxor.u32 %v10041, 2147483648
        %v10047 = vmul.f32 %v10046, 1.442695
        %v10048 = vpow.pop %v10047
        %v10049 = vadd.f32 %v10048, 1.0
        %v10050 = vrcp.pop %v10049
        %v10051 = vmul.f32 1.0, %v10050
        %v10052 = vlaneseq
        %v10053 = vshrl.u32 %v10052, 7
        %v10054 = vsub.s32 0, %v10053
        %v10055 = vrot.slane %v10051, %v10054
        %v10056 = vmul.f32 %v9092, %v10055
        %v10057 = vmul.f32 %v9093, %v10055
        %v10058 = vmul.f32 %v9094, %v10055
        %v10059 = vmul.f32 %v9095, %v10055
        %v10060 = vmul.f32 %v9096, %v10055
        %v10061 = vmul.f32 %v9097, %v10055
        %v10062 = vmul.f32 %v9098, %v10055
        %v10063 = vmul.f32 %v9099, %v10055
        %v10064 = vmul.f32 %v9100, %v10055
        %v10065 = vmul.f32 %v9101, %v10055
        %v10066 = vmul.f32 %v9102, %v10055
        %v10067 = vmul.f32 %v9103, %v10055
        %v10068 = vmul.f32 %v9104, %v10055
        %v10069 = vmul.f32 %v9105, %v10055
        %v10070 = vmul.f32 %v9106, %v10055
        %v10071 = vmul.f32 %v9107, %v10055
        %v10072 = vmul.f32 %v9108, %v10055
        %v10073 = vmul.f32 %v9109, %v10055
        %v10074 = vmul.f32 %v9110, %v10055
        %v10075 = vmul.f32 %v9111, %v10055
        %v10076 = vmul.f32 %v9112, %v10055
        %v10077 = vmul.f32 %v9113, %v10055
        %v10078 = vmul.f32 %v9114, %v10055
        %v10079 = vmul.f32 %v9115, %v10055
        %v10080 = vmul.f32 %v9116, %v10055
        %v10081 = vmul.f32 %v9117, %v10055
        %v10082 = vmul.f32 %v9118, %v10055
        %v10083 = vmul.f32 %v9119, %v10055
        %v10084 = vmul.f32 %v9120, %v10055
        %v10085 = vmul.f32 %v9121, %v10055
        %v10086 = vmul.f32 %v9122, %v10055
        %v10087 = vmul.f32 %v9123, %v10055
        %v10088 = vmul.f32 %v9124, %v10055
        %v10089 = vmul.f32 %v9125, %v10055
        %v10090 = vmul.f32 %v9126, %v10055
        %v10091 = vmul.f32 %v9127, %v10055
        %v10092 = vmul.f32 %v9128, %v10055
        %v10093 = vmul.f32 %v9129, %v10055
        %v10094 = vmul.f32 %v9130, %v10055
        %v10095 = vmul.f32 %v9131, %v10055
        %v10096 = vmul.f32 %v9132, %v10055
        %v10097 = vadd.f32 %v10056, %v5720
        %v10098 = vadd.f32 %v10057, %v5721
        %v10099 = vadd.f32 %v10058, %v5722
        %v10100 = vadd.f32 %v10059, %v5723
        %v10101 = vadd.f32 %v10060, %v5724
        %v10102 = vadd.f32 %v10061, %v5725
        %v10103 = vadd.f32 %v10062, %v5726
        %v10104 = vadd.f32 %v10063, %v5727
        %v10105 = vadd.f32 %v10064, %v5728
        %v10106 = vadd.f32 %v10065, %v5729
        %v10107 = vadd.f32 %v10066, %v5730
        %v10108 = vadd.f32 %v10067, %v5731
        %v10109 = vadd.f32 %v10068, %v5732
        %v10110 = vadd.f32 %v10069, %v5733
        %v10111 = vadd.f32 %v10070, %v5734
        %v10112 = vadd.f32 %v10071, %v5735
        %v10113 = vadd.f32 %v10072, %v5736
        %v10114 = vadd.f32 %v10073, %v5737
        %v10115 = vadd.f32 %v10074, %v5738
        %v10116 = vadd.f32 %v10075, %v5739
        %v10117 = vadd.f32 %v10076, %v5740
        %v10118 = vadd.f32 %v10077, %v5741
        %v10119 = vadd.f32 %v10078, %v5742
        %v10120 = vadd.f32 %v10079, %v5743
        %v10121 = vadd.f32 %v10080, %v5744
        %v10122 = vadd.f32 %v10081, %v5745
        %v10123 = vadd.f32 %v10082, %v5746
        %v10124 = vadd.f32 %v10083, %v5747
        %v10125 = vadd.f32 %v10084, %v5748
        %v10126 = vadd.f32 %v10085, %v5749
        %v10127 = vadd.f32 %v10086, %v5750
        %v10128 = vadd.f32 %v10087, %v5751
        %v10129 = vadd.f32 %v10088, %v5752
        %v10130 = vadd.f32 %v10089, %v5753
        %v10131 = vadd.f32 %v10090, %v5754
        %v10132 = vadd.f32 %v10091, %v5755
        %v10133 = vadd.f32 %v10092, %v5756
        %v10134 = vadd.f32 %v10093, %v5757
        %v10135 = vadd.f32 %v10094, %v5758
        %v10136 = vadd.f32 %v10095, %v5759
        %v10137 = vadd.f32 %v10096, %v5760
        %v10138 = vmax.f32 %v10097, 0.0
        %v10139 = vmax.f32 %v10098, 0.0
        %v10140 = vmax.f32 %v10099, 0.0
        %v10141 = vmax.f32 %v10100, 0.0
        %v10142 = vmax.f32 %v10101, 0.0
        %v10143 = vmax.f32 %v10102, 0.0
        %v10144 = vmax.f32 %v10103, 0.0
        %v10145 = vmax.f32 %v10104, 0.0
        %v10146 = vmax.f32 %v10105, 0.0
        %v10147 = vmax.f32 %v10106, 0.0
        %v10148 = vmax.f32 %v10107, 0.0
        %v10149 = vmax.f32 %v10108, 0.0
        %v10150 = vmax.f32 %v10109, 0.0
        %v10151 = vmax.f32 %v10110, 0.0
        %v10152 = vmax.f32 %v10111, 0.0
        %v10153 = vmax.f32 %v10112, 0.0
        %v10154 = vmax.f32 %v10113, 0.0
        %v10155 = vmax.f32 %v10114, 0.0
        %v10156 = vmax.f32 %v10115, 0.0
        %v10157 = vmax.f32 %v10116, 0.0
        %v10158 = vmax.f32 %v10117, 0.0
        %v10159 = vmax.f32 %v10118, 0.0
        %v10160 = vmax.f32 %v10119, 0.0
        %v10161 = vmax.f32 %v10120, 0.0
        %v10162 = vmax.f32 %v10121, 0.0
        %v10163 = vmax.f32 %v10122, 0.0
        %v10164 = vmax.f32 %v10123, 0.0
        %v10165 = vmax.f32 %v10124, 0.0
        %v10166 = vmax.f32 %v10125, 0.0
        %v10167 = vmax.f32 %v10126, 0.0
        %v10168 = vmax.f32 %v10127, 0.0
        %v10169 = vmax.f32 %v10128, 0.0
        %v10170 = vmax.f32 %v10129, 0.0
        %v10171 = vmax.f32 %v10130, 0.0
        %v10172 = vmax.f32 %v10131, 0.0
        %v10173 = vmax.f32 %v10132, 0.0
        %v10174 = vmax.f32 %v10133, 0.0
        %v10175 = vmax.f32 %v10134, 0.0
        %v10176 = vmax.f32 %v10135, 0.0
        %v10177 = vmax.f32 %v10136, 0.0
        %v10178 = vmax.f32 %v10137, 0.0
        %10179 = vst [vmem:[%s327] sm:$0xff] %v10138
        %10180 = vst [vmem:[%s327 + $0x8] sm:$0xff] %v10139
        %10181 = vst [vmem:[%s327 + $0x10] sm:$0xff] %v10140
        %10182 = vst [vmem:[%s327 + $0x18] sm:$0xff] %v10141
        %10183 = vst [vmem:[%s327 + $0x20] sm:$0xff] %v10142
        %10184 = vst [vmem:[%s327 + $0x28] sm:$0xff] %v10143
        %10185 = vst [vmem:[%s327 + $0x30] sm:$0xff] %v10144
        %10186 = vst [vmem:[%s327 + $0x38] sm:$0xff] %v10145
        %10187 = vst [vmem:[%s327 + $0x40] sm:$0xff] %v10146
        %10188 = vst [vmem:[%s327 + $0x48] sm:$0xff] %v10147
        %10189 = vst [vmem:[%s327 + $0x50] sm:$0xff] %v10148
        %10190 = vst [vmem:[%s327 + $0x58] sm:$0xff] %v10149
        %10191 = vst [vmem:[%s327 + $0x60] sm:$0xff] %v10150
        %10192 = vst [vmem:[%s327 + $0x68] sm:$0xff] %v10151
        %10193 = vst [vmem:[%s327 + $0x70] sm:$0xff] %v10152
        %10194 = vst [vmem:[%s327 + $0x78] sm:$0xff] %v10153
        %10195 = vst [vmem:[%s327 + $0x80] sm:$0xff] %v10154
        %10196 = vst [vmem:[%s327 + $0x88] sm:$0xff] %v10155
        %10197 = vst [vmem:[%s327 + $0x90] sm:$0xff] %v10156
        %10198 = vst [vmem:[%s327 + $0x98] sm:$0xff] %v10157
        %10199 = vst [vmem:[%s327 + $0xa0] sm:$0xff] %v10158
        %10200 = vst [vmem:[%s327 + $0xa8] sm:$0xff] %v10159
        %10201 = vst [vmem:[%s327 + $0xb0] sm:$0xff] %v10160
        %10202 = vst [vmem:[%s327 + $0xb8] sm:$0xff] %v10161
        %10203 = vst [vmem:[%s327 + $0xc0] sm:$0xff] %v10162
        %10204 = vst [vmem:[%s327 + $0xc8] sm:$0xff] %v10163
        %10205 = vst [vmem:[%s327 + $0xd0] sm:$0xff] %v10164
        %10206 = vst [vmem:[%s327 + $0xd8] sm:$0xff] %v10165
        %10207 = vst [vmem:[%s327 + $0xe0] sm:$0xff] %v10166
        %10208 = vst [vmem:[%s327 + $0xe8] sm:$0xff] %v10167
        %10209 = vst [vmem:[%s327 + $0xf0] sm:$0xff] %v10168
        %10210 = vst [vmem:[%s327 + $0xf8] sm:$0xff] %v10169
        %10211 = vst [vmem:[%s327 + $0x100] sm:$0xff] %v10170
        %10212 = vst [vmem:[%s327 + $0x108] sm:$0xff] %v10171
        %10213 = vst [vmem:[%s327 + $0x110] sm:$0xff] %v10172
        %10214 = vst [vmem:[%s327 + $0x118] sm:$0xff] %v10173
        %10215 = vst [vmem:[%s327 + $0x120] sm:$0xff] %v10174
        %10216 = vst [vmem:[%s327 + $0x128] sm:$0xff] %v10175
        %10217 = vst [vmem:[%s327 + $0x130] sm:$0xff] %v10176
        %10218 = vst [vmem:[%s327 + $0x138] sm:$0xff] %v10177
        %10219 = vst [vmem:[%s327 + $0x140] sm:$0xff] %v10178
        %s10220 = sand.u32 %s164, 1
        %s10221 = scalar_lea.sflag [#allocation4], %s10220
        %s10222 = sand.u32 %s164, 1
        %s10223 = smul.addr %s10222, 328
        %s10224 = scalar_lea.vmem [#allocation11], %s10223
        // Predicated region
        $region65: #{tpu_custom_call.1} parent=43 // pred_check
          %p10225 = pneg %p174
        $region66: #{tpu_custom_call.1} parent=43 // pred_check_branch
          %10227 = sbr.rel (%p10225) target = $region68
        $region67: #{tpu_custom_call.1} parent=43 // pred_region
          %s10229 = ssub.s32 5248, 5248
          %10230 = vsyncadd %s10221, %s10229
          %s10231 = smul.addr %s25, 41
          %s10232 = smul.addr %s10231, 128
          %s10233 = scalar_lea.hbm %s6, %s10232
          %s10234 = sshll.u32 %s10224, 4
          %s10235 = int_to_ptr.vmem [resolvable:$true] %s10234
          %10240 = dma.vmem_to_hbm [thread:$0]  %s10235, 5248, %s10233, %s10221, 128, 128, 8
        $region68: #{tpu_custom_call.1} parent=43 // pred_fallthru
          _
      $region44: #{tpu_custom_call.1} parent=5 // pred_fallthru
        _
      %p10241 = scmp.le.s32.totalorder 2, %s20
      // Predicated region
      $region69: #{tpu_custom_call.1} parent=5 // pred_check
        %p10242 = pneg %p10241
      $region70: #{tpu_custom_call.1} parent=5 // pred_check_branch
        %10244 = sbr.rel (%p10242) target = $region72
      $region71: #{tpu_custom_call.1} parent=5 // pred_region
        %s10245 = ssub.s32 %s20, 2
        // Predicated region
        $region73: #{tpu_custom_call.1} parent=71 // pred_check
          %p10246 = pneg %p180
        $region74: #{tpu_custom_call.1} parent=71 // pred_check_branch
          %10248 = sbr.rel (%p10246) target = $region76
        $region75: #{tpu_custom_call.1} parent=71 // pred_region
          %s10249 = sand.u32 %s165, 1
          %s10250 = scalar_lea.sflag [#allocation4], %s10249
          %s10251 = sand.u32 %s165, 1
          %s10252 = smul.addr %s10251, 328
          %s10253 = scalar_lea.vmem [#allocation11], %s10252
          %10254 = dma.done %s10250, 5248
        $region76: #{tpu_custom_call.1} parent=71 // pred_fallthru
          _
      $region72: #{tpu_custom_call.1} parent=5 // pred_fallthru
        _
    $region6: #{tpu_custom_call.1} parent=1 // loop_footer
      %s24 = sadd.s32 1, %s20
    $region7: #{tpu_custom_call.1} parent=1 // loop_footer_branch
      %19 = sbr.rel target = $region3
    $region8: #{tpu_custom_call.1} parent=1 // loop_exit
      _
    %10255 = vsyncpa [#allocation3], 1
    %s10256 = scalar_lea.sflag [#allocation3], 1
    %10257 = vsyncpa %s10256, 1
    %10258 = vsyncpa [#allocation6], 1
    %10259 = vsyncpa [#allocation9], 1
    %10260 = vsyncpa [#allocation4], 1
    %s10261 = scalar_lea.sflag [#allocation4], 1
    %10262 = vsyncpa %s10261, 1

</llo_original>
